<compile_context>
chip_gen: v5e
topology: v5e:2x2
jax: 0.10.0
libtpu: 0.0.40
codegen_flags: <defaults>
</compile_context>

<pallas_src>
import functools

import jax
import jax.numpy as jnp
from jax import lax
from jax.experimental import pallas as pl
from jax.experimental.pallas import tpu as pltpu


def _silu(z):
    # sigmoid via tanh: a single EUP push per element (exp+reciprocal is two).
    return z * (0.5 * jnp.tanh(0.5 * z) + 0.5)


def _bcsp_kernel(x_ref, wc_ref, bc_ref, wm1_ref, bm1_ref, wm2_ref, bm2_ref,
                 w3_ref, bz1_ref, w4_ref, b4_ref, o_ref,
                 apad_ref, b1pad_ref, *, H, TH, W, c_):
    f32 = jnp.float32
    cdt = apad_ref.dtype
    t = pl.program_id(1)
    ext = TH + 4                       # rows of x / a held per tile (2-row halo)
    n_ext = ext * W
    n1 = (TH + 2) * W                  # rows of b1 (1-row halo)
    n2 = TH * W                        # output rows of this tile

    # ---- cv1 & cv2 fused into ONE 1x1-conv matmul over the extended rows ----
    # (BN1 / BNz-second-half folded into wc; SiLU applied to both halves)
    x_ext = x_ref[...]                                        # (ext, W, c1)
    pre = jnp.dot(x_ext.reshape(n_ext, x_ext.shape[-1]), wc_ref[...],
                  preferred_element_type=f32) + bc_ref[...]
    act = _silu(pre)                                          # (n_ext, 2c_) f32
    act3 = act.reshape(ext, W, 2 * c_)
    a_ext = act3[:, :, :c_]                                   # (ext, W, c_)

    # rows of `a` outside the real image must be ZERO (the 3x3 convs zero-pad
    # `a`, not x); mask via a {0,1} float multiply.
    row = t * TH + lax.broadcasted_iota(jnp.int32, (ext, 1, 1), 0)
    a_ext = a_ext * ((row >= 2) & (row < H + 2)).astype(f32)

    # column-padded copy of `a`: only the two 1-col pad strips are cleared,
    # the interior is fully overwritten every grid step.
    zcol = jnp.zeros((ext, 1, c_), cdt)
    apad_ref[:, 0:1, :] = zcol
    apad_ref[:, W + 1:W + 2, :] = zcol
    apad_ref[:, 1:W + 1, :] = a_ext.astype(cdt)

    # ---- Bottleneck conv #1 (3x3): 9 per-tap matmuls, f32 accumulation ------
    acc1 = bm1_ref[...]                                       # (1, c_) f32
    for k in range(9):
        dh, dw = divmod(k, 3)
        tap = apad_ref[dh:dh + TH + 2, dw:dw + W, :].reshape(n1, c_)
        acc1 = acc1 + jnp.dot(tap, wm1_ref[k], preferred_element_type=f32)
    b1 = _silu(acc1).reshape(TH + 2, W, c_)
    row1 = t * TH + lax.broadcasted_iota(jnp.int32, (TH + 2, 1, 1), 0)
    b1 = b1 * ((row1 >= 1) & (row1 < H + 1)).astype(f32)

    zcol1 = jnp.zeros((TH + 2, 1, c_), cdt)
    b1pad_ref[:, 0:1, :] = zcol1
    b1pad_ref[:, W + 1:W + 2, :] = zcol1
    b1pad_ref[:, 1:W + 1, :] = b1.astype(cdt)

    # ---- Bottleneck conv #2 (3x3): per-tap matmuls, then shortcut add -------
    acc2 = bm2_ref[...]                                       # (1, c_) f32
    for k in range(9):
        dh, dw = divmod(k, 3)
        tap = b1pad_ref[dh:dh + TH, dw:dw + W, :].reshape(n2, c_)
        acc2 = acc2 + jnp.dot(tap, wm2_ref[k], preferred_element_type=f32)
    b2 = _silu(acc2)
    a_c = a_ext[2:2 + TH].reshape(n2, c_)                     # center rows of a
    m_out = a_c + b2                                          # shortcut

    # ---- cv3 (+ BNz first half) + SiLU --------------------------------------
    zb1 = _silu(jnp.dot(m_out.astype(cdt), w3_ref[...],
                        preferred_element_type=f32) + bz1_ref[...])
    # cv2 branch (already BNz-folded + SiLU'd inside `act`), center rows only.
    zb2 = act3[2:2 + TH, :, c_:].reshape(n2, c_)

    # ---- cv4 (+ BN4) + SiLU: split K over the two concat halves -------------
    pre4 = (jnp.dot(zb1.astype(cdt), w4_ref[0:c_, :],
                    preferred_element_type=f32)
            + jnp.dot(zb2.astype(cdt), w4_ref[c_:2 * c_, :],
                      preferred_element_type=f32)
            + b4_ref[...])

    # single full-block store of the final result.
    o_ref[...] = _silu(pre4).astype(o_ref.dtype)


def bottleneck_csp_pallas(x_nchw, params, *, eps_conv=1e-3, eps_bn=1e-5,
                          tile_h=32, compute_dtype=None):
    """x_nchw: (B, C1, H, W). Returns (B, C2, H, W) matching the PyTorch module."""
    B, C1, H, W = x_nchw.shape
    c_ = params["cv1_w"].shape[0]
    C2 = params["cv4_w"].shape[0]
    f32 = jnp.float32

    kind = jax.devices()[0].device_kind.lower()
    is_v7 = ("v7" in kind) or ("7x" in kind)
    if compute_dtype is None:
        # bf16 MXU feeds on v6e/v7x (f32 accumulation kept); f32 on v5e & older.
        compute_dtype = jnp.bfloat16 if (is_v7 or "v6" in kind) else f32
    dsz = jnp.dtype(compute_dtype).itemsize

    # ---- tile height: pad H up to a multiple of TH instead of degrading TH --
    TH = max(1, min(tile_h, H))
    while TH > 1 and (TH * W) % 8:          # keep the flat output block 8-aligned
        TH -= 1

    vmem_cap = (48 if is_v7 else 96) * 1024 * 1024

    def footprint(th):
        ext = th + 4
        blocks = 2 * ext * W * C1 * dsz + 2 * th * W * C2 * 4
        scratch = (ext + th + 2) * (W + 2) * c_ * dsz
        weights = 2 * dsz * (C1 * 2 * c_ + 19 * c_ * c_ + 2 * c_ * C2)
        live = 4 * ext * W * (2 * c_) * 3   # rough f32 live intermediates
        return blocks + scratch + weights + live

    while TH > 8 and footprint(TH) > vmem_cap - 8 * 1024 * 1024:
        TH = max(8, TH // 2)
        while TH > 1 and (TH * W) % 8:
            TH -= 1

    NT = -(-H // TH)
    Hp = NT * TH

    # ---- fold every BatchNorm into the adjacent conv weights ----------------
    def fold(bn, eps):
        s = bn["gamma"] / jnp.sqrt(bn["var"] + eps)
        return s, bn["beta"] - bn["mean"] * s

    s1, bb1 = fold(params["cv1_bn"], eps_conv)
    sz, bz = fold(params["bn"], eps_bn)          # standalone BN: eps=1e-5
    sz1, bz1 = sz[:c_], bz[:c_]
    sz2, bz2 = sz[c_:], bz[c_:]
    sm1, bm1 = fold(params["m1_bn"], eps_conv)
    sm2, bm2 = fold(params["m2_bn"], eps_conv)
    s4, b4 = fold(params["cv4_bn"], eps_conv)

    # cv1 and cv2 (both read x) fused into one weight matrix.
    w1 = params["cv1_w"][:, :, 0, 0].T * s1[None, :]              # (c1, c_)
    w2 = params["cv2_w"][:, :, 0, 0].T * sz2[None, :]             # (c1, c_)
    wc = jnp.concatenate([w1, w2], axis=1).astype(compute_dtype)  # (c1, 2c_)
    bc = jnp.concatenate([bb1, bz2]).reshape(1, 2 * c_).astype(f32)

    # 3x3 weights as (tap, cin, cout), tap index = kh*3 + kw.
    wm1 = (jnp.transpose(params["m1_w"], (2, 3, 1, 0)).reshape(9, c_, c_)
           * sm1[None, None, :]).astype(compute_dtype)
    wm2 = (jnp.transpose(params["m2_w"], (2, 3, 1, 0)).reshape(9, c_, c_)
           * sm2[None, None, :]).astype(compute_dtype)
    bm1 = bm1.reshape(1, c_).astype(f32)
    bm2 = bm2.reshape(1, c_).astype(f32)

    w3 = (params["cv3_w"][:, :, 0, 0].T * sz1[None, :]).astype(compute_dtype)
    bz1 = bz1.reshape(1, c_).astype(f32)
    w4 = (params["cv4_w"][:, :, 0, 0].T * s4[None, :]).astype(compute_dtype)
    b4 = b4.reshape(1, C2).astype(f32)

    # layout glue: NCHW -> NHWC row tiles with a 2-row halo on each side.
    x_nhwc = jnp.transpose(x_nchw, (0, 2, 3, 1)).astype(compute_dtype)
    x_pad = jnp.pad(x_nhwc, ((0, 0), (2, 2 + Hp - H), (0, 0), (0, 0)))
    x_tiles = jnp.stack([x_pad[:, t * TH:t * TH + TH + 4]
                         for t in range(NT)], axis=1)  # (B, NT, TH+4, W, C1)

    kernel = functools.partial(_bcsp_kernel, H=H, TH=TH, W=W, c_=c_)

    def wspec(shape):
        return pl.BlockSpec(shape, lambda b, t, _n=len(shape): (0,) * _n)

    out_flat = pl.pallas_call(
        kernel,
        out_shape=jax.ShapeDtypeStruct((B, Hp * W, C2), f32),
        grid_spec=pltpu.PrefetchScalarGridSpec(
            num_scalar_prefetch=0,
            grid=(B, NT),
            in_specs=[
                pl.BlockSpec((None, None, TH + 4, W, C1),
                             lambda b, t: (b, t, 0, 0, 0)),
                wspec((C1, 2 * c_)), wspec((1, 2 * c_)),
                wspec((9, c_, c_)), wspec((1, c_)),
                wspec((9, c_, c_)), wspec((1, c_)),
                wspec((c_, c_)), wspec((1, c_)),
                wspec((2 * c_, C2)), wspec((1, C2)),
            ],
            out_specs=pl.BlockSpec((None, TH * W, C2), lambda b, t: (b, t, 0)),
            scratch_shapes=[
                pltpu.VMEM((TH + 4, W + 2, c_), compute_dtype),   # padded a
                pltpu.VMEM((TH + 2, W + 2, c_), compute_dtype),   # padded b1
            ],
        ),
        compiler_params=pltpu.CompilerParams(
            dimension_semantics=("parallel", "parallel"),
            vmem_limit_bytes=vmem_cap),
    )(x_tiles, wc, bc, wm1, bm1, wm2, bm2, w3, bz1, w4, b4)

    out = out_flat.reshape(B, Hp, W, C2)[:, :H]
    return jnp.transpose(out, (0, 3, 1, 2))


def bottleneck_csp_reference(x, params, eps_conv=1e-3, eps_bn=1e-5):
    """Pure-JAX NCHW reference mirroring the PyTorch forward."""
    dn = ("NCHW", "OIHW", "NCHW")

    def conv(v, w, pad):
        return lax.conv_general_dilated(v, w, (1, 1), ((pad, pad), (pad, pad)),
                                        dimension_numbers=dn)

    def bnorm(y, p, eps):
        s = (p["gamma"] / jnp.sqrt(p["var"] + eps)).reshape(1, -1, 1, 1)
        b = (p["beta"] - p["mean"] * p["gamma"]
             / jnp.sqrt(p["var"] + eps)).reshape(1, -1, 1, 1)
        return y * s + b

    def silu(y):
        return y * jax.nn.sigmoid(y)

    a = silu(bnorm(conv(x, params["cv1_w"], 0), params["cv1_bn"], eps_conv))
    h1 = silu(bnorm(conv(a, params["m1_w"], 1), params["m1_bn"], eps_conv))
    h2 = silu(bnorm(conv(h1, params["m2_w"], 1), params["m2_bn"], eps_conv))
    m = a + h2
    y1 = conv(m, params["cv3_w"], 0)
    y2 = conv(x, params["cv2_w"], 0)
    z = silu(bnorm(jnp.concatenate([y1, y2], axis=1), params["bn"], eps_bn))
    return silu(bnorm(conv(z, params["cv4_w"], 0), params["cv4_bn"], eps_conv))


if __name__ == "__main__":
    B, C1, H, W = 2, 8, 16, 16
    C2 = 16
    c_ = C2 // 2

    ks = jax.random.split(jax.random.PRNGKey(0), 12)

    def bn_params(k, c):
        k = jax.random.split(k, 4)
        return {"gamma": 1.0 + 0.1 * jax.random.normal(k[0], (c,), jnp.float32),
                "beta": 0.1 * jax.random.normal(k[1], (c,), jnp.float32),
                "mean": 0.1 * jax.random.normal(k[2], (c,), jnp.float32),
                "var": jax.random.uniform(k[3], (c,), jnp.float32, 0.5, 1.5)}

    x = jax.random.normal(ks[0], (B, C1, H, W), jnp.float32)
    params = {
        "cv1_w": 0.3 * jax.random.normal(ks[1], (c_, C1, 1, 1), jnp.float32),
        "cv1_bn": bn_params(ks[2], c_),
        "cv2_w": 0.3 * jax.random.normal(ks[3], (c_, C1, 1, 1), jnp.float32),
        "cv3_w": 0.3 * jax.random.normal(ks[4], (c_, c_, 1, 1), jnp.float32),
        "cv4_w": 0.3 * jax.random.normal(ks[5], (C2, 2 * c_, 1, 1), jnp.float32),
        "cv4_bn": bn_params(ks[6], C2),
        "bn": bn_params(ks[7], 2 * c_),
        "m1_w": 0.2 * jax.random.normal(ks[8], (c_, C1, 3, 3), jnp.float32)[:, :c_],
        "m1_bn": bn_params(ks[9], c_),
        "m2_w": 0.2 * jax.random.normal(ks[10], (c_, c_, 3, 3), jnp.float32),
        "m2_bn": bn_params(ks[11], c_),
    }
    # fix m1_w shape in case C1 != c_ slicing above (keep it (c_, c_, 3, 3))
    params["m1_w"] = params["m1_w"][:, :c_]

    ref = jax.block_until_ready(bottleneck_csp_reference(x, params))

    # 1) f32 path, single tile per image (tight tolerance).
    out_f32 = jax.block_until_ready(
        bottleneck_csp_pallas(x, params, compute_dtype=jnp.float32))
    assert out_f32.shape == (B, C2, H, W), out_f32.shape
    err = float(jnp.max(jnp.abs(out_f32 - ref)))
    if err > 2e-3:
        raise AssertionError(f"f32 mismatch: max abs err = {err}")

    # 2) f32 path with a tile height that does NOT divide H (exercises the
    #    pad-to-tile-multiple + crop path and the border masking).
    out_pad = jax.block_until_ready(
        bottleneck_csp_pallas(x, params, tile_h=12, compute_dtype=jnp.float32))
    err = float(jnp.max(jnp.abs(out_pad - ref)))
    if err > 2e-3:
        raise AssertionError(f"padded-tile mismatch: max abs err = {err}")

    # 3) default dtype (bf16 on v6e/v7x, f32 elsewhere) — looser tolerance.
    out = jax.block_until_ready(bottleneck_csp_pallas(x, params))
    err = float(jnp.max(jnp.abs(out - ref)))
    if err > 6e-2:
        raise AssertionError(f"default-dtype mismatch: max abs err = {err}")

    print("KERNEL_OK")
</pallas_src>

<mosaic_0001>
module attributes {stable_mosaic.version = 11 : i64} {
  func.func @_bcsp_kernel(%arg0: i32, %arg1: i32, %arg2: memref<1x1x20x16x8xf32, #tpu.memory_space<vmem>>, %arg3: memref<8x16xf32, #tpu.memory_space<vmem>>, %arg4: memref<1x16xf32, #tpu.memory_space<vmem>>, %arg5: memref<9x8x8xf32, #tpu.memory_space<vmem>>, %arg6: memref<1x8xf32, #tpu.memory_space<vmem>>, %arg7: memref<9x8x8xf32, #tpu.memory_space<vmem>>, %arg8: memref<1x8xf32, #tpu.memory_space<vmem>>, %arg9: memref<8x8xf32, #tpu.memory_space<vmem>>, %arg10: memref<1x8xf32, #tpu.memory_space<vmem>>, %arg11: memref<16x16xf32, #tpu.memory_space<vmem>>, %arg12: memref<1x16xf32, #tpu.memory_space<vmem>>, %arg13: memref<1x256x16xf32, #tpu.memory_space<vmem>>, %arg14: memref<20x18x8xf32, #tpu.memory_space<vmem>>, %arg15: memref<18x18x8xf32, #tpu.memory_space<vmem>>) attributes {dimension_semantics = [#tpu.dimension_semantics<parallel>, #tpu.dimension_semantics<parallel>], iteration_bounds = array<i64: 2, 1>, scalar_prefetch = 0 : i64, scratch_operands = 2 : i64, tpu.core_type = #tpu.core_type<tc>, window_params = [{transform_indices = @transform_0, window_bounds = array<i64: 1, 1, 20, 16, 8>}, {pipeline_mode = #tpu.pipeline_mode<synchronous>, transform_indices = @transform_1, window_bounds = array<i64: 8, 16>}, {pipeline_mode = #tpu.pipeline_mode<synchronous>, transform_indices = @transform_2, window_bounds = array<i64: 1, 16>}, {pipeline_mode = #tpu.pipeline_mode<synchronous>, transform_indices = @transform_3, window_bounds = array<i64: 9, 8, 8>}, {pipeline_mode = #tpu.pipeline_mode<synchronous>, transform_indices = @transform_4, window_bounds = array<i64: 1, 8>}, {pipeline_mode = #tpu.pipeline_mode<synchronous>, transform_indices = @transform_5, window_bounds = array<i64: 9, 8, 8>}, {pipeline_mode = #tpu.pipeline_mode<synchronous>, transform_indices = @transform_6, window_bounds = array<i64: 1, 8>}, {pipeline_mode = #tpu.pipeline_mode<synchronous>, transform_indices = @transform_7, window_bounds = array<i64: 8, 8>}, {pipeline_mode = #tpu.pipeline_mode<synchronous>, transform_indices = @transform_8, window_bounds = array<i64: 1, 8>}, {pipeline_mode = #tpu.pipeline_mode<synchronous>, transform_indices = @transform_9, window_bounds = array<i64: 16, 16>}, {pipeline_mode = #tpu.pipeline_mode<synchronous>, transform_indices = @transform_10, window_bounds = array<i64: 1, 16>}, {transform_indices = @transform_11, window_bounds = array<i64: 1, 256, 16>}]} {
    %c0 = arith.constant 0 : index
    %c0_0 = arith.constant 0 : index
    %c0_1 = arith.constant 0 : index
    %c0_2 = arith.constant 0 : index
    %c0_3 = arith.constant 0 : index
    %0 = vector.load %arg2[%c0, %c0_0, %c0_1, %c0_2, %c0_3] : memref<1x1x20x16x8xf32, #tpu.memory_space<vmem>>, vector<1x1x20x16x8xf32>
    %1 = vector.shape_cast %0 : vector<1x1x20x16x8xf32> to vector<20x16x8xf32>
    %2 = vector.shape_cast %1 : vector<20x16x8xf32> to vector<320x8xf32>
    %c0_4 = arith.constant 0 : index
    %c0_5 = arith.constant 0 : index
    %3 = vector.load %arg3[%c0_4, %c0_5] : memref<8x16xf32, #tpu.memory_space<vmem>>, vector<8x16xf32>
    %cst = arith.constant dense<0.000000e+00> : vector<320x16xf32>
    %4 = tpu.matmul %2, %3, %cst {dimension_numbers = #tpu.dot_dimension_numbers<[1], [0], [0], [1], [0, 0, 1, 1], [], []>} : vector<320x8xf32>, vector<8x16xf32>, vector<320x16xf32> -> vector<320x16xf32>
    %c0_6 = arith.constant 0 : index
    %c0_7 = arith.constant 0 : index
    %5 = vector.load %arg4[%c0_6, %c0_7] : memref<1x16xf32, #tpu.memory_space<vmem>>, vector<1x16xf32>
    %6 = vector.broadcast %5 : vector<1x16xf32> to vector<320x16xf32>
    %7 = arith.addf %4, %6 : vector<320x16xf32>
    %cst_8 = arith.constant 5.000000e-01 : f32
    %8 = vector.broadcast %cst_8 : f32 to vector<320x16xf32>
    %9 = arith.mulf %8, %7 : vector<320x16xf32>
    %10 = math.tanh %9 : vector<320x16xf32>
    %cst_9 = arith.constant 5.000000e-01 : f32
    %11 = vector.broadcast %cst_9 : f32 to vector<320x16xf32>
    %12 = arith.mulf %11, %10 : vector<320x16xf32>
    %cst_10 = arith.constant 5.000000e-01 : f32
    %13 = vector.broadcast %cst_10 : f32 to vector<320x16xf32>
    %14 = arith.addf %12, %13 : vector<320x16xf32>
    %15 = arith.mulf %7, %14 : vector<320x16xf32>
    %16 = vector.shape_cast %15 : vector<320x16xf32> to vector<20x16x16xf32>
    %17 = vector.extract_strided_slice %16 {offsets = [0, 0, 0], sizes = [20, 16, 8], strides = [1, 1, 1]} : vector<20x16x16xf32> to vector<20x16x8xf32>
    %c16_i32 = arith.constant 16 : i32
    %18 = arith.muli %arg1, %c16_i32 : i32
    %19 = tpu.iota {dimensions = array<i32: 0>} : vector<20x1x1xi32>
    %20 = vector.broadcast %18 : i32 to vector<20x1x1xi32>
    %21 = arith.addi %20, %19 : vector<20x1x1xi32>
    %c2_i32 = arith.constant 2 : i32
    %22 = vector.broadcast %c2_i32 : i32 to vector<20x1x1xi32>
    %23 = arith.cmpi sge, %21, %22 : vector<20x1x1xi32>
    %c18_i32 = arith.constant 18 : i32
    %24 = vector.broadcast %c18_i32 : i32 to vector<20x1x1xi32>
    %25 = arith.cmpi slt, %21, %24 : vector<20x1x1xi32>
    %26 = arith.andi %23, %25 : vector<20x1x1xi1>
    %27 = arith.extui %26 : vector<20x1x1xi1> to vector<20x1x1xi32>
    %28 = arith.sitofp %27 : vector<20x1x1xi32> to vector<20x1x1xf32>
    %29 = vector.broadcast %28 : vector<20x1x1xf32> to vector<20x16x8xf32>
    %30 = arith.mulf %17, %29 : vector<20x16x8xf32>
    %cst_11 = arith.constant 0.000000e+00 : f32
    %31 = vector.broadcast %cst_11 : f32 to vector<20x1x8xf32>
    %c0_12 = arith.constant 0 : index
    %c0_13 = arith.constant 0 : index
    %c0_14 = arith.constant 0 : index
    %32 = vector.load %arg14[%c0_12, %c0_13, %c0_14] : memref<20x18x8xf32, #tpu.memory_space<vmem>>, vector<20x1x8xf32>
    tpu.vector_store %arg14[%c0_12, %c0_13, %c0_14], %31 {strides = array<i32>} : memref<20x18x8xf32, #tpu.memory_space<vmem>>, vector<20x1x8xf32>,
    %c0_15 = arith.constant 0 : index
    %c17 = arith.constant 17 : index
    %c0_16 = arith.constant 0 : index
    %33 = vector.load %arg14[%c0_15, %c17, %c0_16] : memref<20x18x8xf32, #tpu.memory_space<vmem>>, vector<20x1x8xf32>
    tpu.vector_store %arg14[%c0_15, %c17, %c0_16], %31 {strides = array<i32>} : memref<20x18x8xf32, #tpu.memory_space<vmem>>, vector<20x1x8xf32>,
    %c0_17 = arith.constant 0 : index
    %c1 = arith.constant 1 : index
    %c0_18 = arith.constant 0 : index
    %34 = vector.load %arg14[%c0_17, %c1, %c0_18] : memref<20x18x8xf32, #tpu.memory_space<vmem>>, vector<20x16x8xf32>
    tpu.vector_store %arg14[%c0_17, %c1, %c0_18], %30 {strides = array<i32>} : memref<20x18x8xf32, #tpu.memory_space<vmem>>, vector<20x16x8xf32>,
    %c0_19 = arith.constant 0 : index
    %c0_20 = arith.constant 0 : index
    %35 = vector.load %arg6[%c0_19, %c0_20] : memref<1x8xf32, #tpu.memory_space<vmem>>, vector<1x8xf32>
    %c0_21 = arith.constant 0 : index
    %c0_22 = arith.constant 0 : index
    %c0_23 = arith.constant 0 : index
    %36 = vector.load %arg14[%c0_21, %c0_22, %c0_23] : memref<20x18x8xf32, #tpu.memory_space<vmem>>, vector<18x16x8xf32>
    %37 = vector.shape_cast %36 : vector<18x16x8xf32> to vector<288x8xf32>
    %c0_24 = arith.constant 0 : index
    %c0_25 = arith.constant 0 : index
    %c0_26 = arith.constant 0 : index
    %38 = vector.load %arg5[%c0_24, %c0_25, %c0_26] : memref<9x8x8xf32, #tpu.memory_space<vmem>>, vector<1x8x8xf32>
    %39 = vector.shape_cast %38 : vector<1x8x8xf32> to vector<8x8xf32>
    %cst_27 = arith.constant dense<0.000000e+00> : vector<288x8xf32>
    %40 = tpu.matmul %37, %39, %cst_27 {dimension_numbers = #tpu.dot_dimension_numbers<[1], [0], [0], [1], [0, 0, 1, 1], [], []>} : vector<288x8xf32>, vector<8x8xf32>, vector<288x8xf32> -> vector<288x8xf32>
    %41 = vector.broadcast %35 : vector<1x8xf32> to vector<288x8xf32>
    %42 = arith.addf %41, %40 : vector<288x8xf32>
    %c0_28 = arith.constant 0 : index
    %c1_29 = arith.constant 1 : index
    %c0_30 = arith.constant 0 : index
    %43 = vector.load %arg14[%c0_28, %c1_29, %c0_30] : memref<20x18x8xf32, #tpu.memory_space<vmem>>, vector<18x16x8xf32>
    %44 = vector.shape_cast %43 : vector<18x16x8xf32> to vector<288x8xf32>
    %c1_31 = arith.constant 1 : index
    %c0_32 = arith.constant 0 : index
    %c0_33 = arith.constant 0 : index
    %45 = vector.load %arg5[%c1_31, %c0_32, %c0_33] : memref<9x8x8xf32, #tpu.memory_space<vmem>>, vector<1x8x8xf32>
    %46 = vector.shape_cast %45 : vector<1x8x8xf32> to vector<8x8xf32>
    %cst_34 = arith.constant dense<0.000000e+00> : vector<288x8xf32>
    %47 = tpu.matmul %44, %46, %cst_34 {dimension_numbers = #tpu.dot_dimension_numbers<[1], [0], [0], [1], [0, 0, 1, 1], [], []>} : vector<288x8xf32>, vector<8x8xf32>, vector<288x8xf32> -> vector<288x8xf32>
    %48 = arith.addf %42, %47 : vector<288x8xf32>
    %c0_35 = arith.constant 0 : index
    %c2 = arith.constant 2 : index
    %c0_36 = arith.constant 0 : index
    %49 = vector.load %arg14[%c0_35, %c2, %c0_36] : memref<20x18x8xf32, #tpu.memory_space<vmem>>, vector<18x16x8xf32>
    %50 = vector.shape_cast %49 : vector<18x16x8xf32> to vector<288x8xf32>
    %c2_37 = arith.constant 2 : index
    %c0_38 = arith.constant 0 : index
    %c0_39 = arith.constant 0 : index
    %51 = vector.load %arg5[%c2_37, %c0_38, %c0_39] : memref<9x8x8xf32, #tpu.memory_space<vmem>>, vector<1x8x8xf32>
    %52 = vector.shape_cast %51 : vector<1x8x8xf32> to vector<8x8xf32>
    %cst_40 = arith.constant dense<0.000000e+00> : vector<288x8xf32>
    %53 = tpu.matmul %50, %52, %cst_40 {dimension_numbers = #tpu.dot_dimension_numbers<[1], [0], [0], [1], [0, 0, 1, 1], [], []>} : vector<288x8xf32>, vector<8x8xf32>, vector<288x8xf32> -> vector<288x8xf32>
    %54 = arith.addf %48, %53 : vector<288x8xf32>
    %c1_41 = arith.constant 1 : index
    %c0_42 = arith.constant 0 : index
    %c0_43 = arith.constant 0 : index
    %55 = vector.load %arg14[%c1_41, %c0_42, %c0_43] : memref<20x18x8xf32, #tpu.memory_space<vmem>>, vector<18x16x8xf32>
    %56 = vector.shape_cast %55 : vector<18x16x8xf32> to vector<288x8xf32>
    %c3 = arith.constant 3 : index
    %c0_44 = arith.constant 0 : index
    %c0_45 = arith.constant 0 : index
    %57 = vector.load %arg5[%c3, %c0_44, %c0_45] : memref<9x8x8xf32, #tpu.memory_space<vmem>>, vector<1x8x8xf32>
    %58 = vector.shape_cast %57 : vector<1x8x8xf32> to vector<8x8xf32>
    %cst_46 = arith.constant dense<0.000000e+00> : vector<288x8xf32>
    %59 = tpu.matmul %56, %58, %cst_46 {dimension_numbers = #tpu.dot_dimension_numbers<[1], [0], [0], [1], [0, 0, 1, 1], [], []>} : vector<288x8xf32>, vector<8x8xf32>, vector<288x8xf32> -> vector<288x8xf32>
    %60 = arith.addf %54, %59 : vector<288x8xf32>
    %c1_47 = arith.constant 1 : index
    %c1_48 = arith.constant 1 : index
    %c0_49 = arith.constant 0 : index
    %61 = vector.load %arg14[%c1_47, %c1_48, %c0_49] : memref<20x18x8xf32, #tpu.memory_space<vmem>>, vector<18x16x8xf32>
    %62 = vector.shape_cast %61 : vector<18x16x8xf32> to vector<288x8xf32>
    %c4 = arith.constant 4 : index
    %c0_50 = arith.constant 0 : index
    %c0_51 = arith.constant 0 : index
    %63 = vector.load %arg5[%c4, %c0_50, %c0_51] : memref<9x8x8xf32, #tpu.memory_space<vmem>>, vector<1x8x8xf32>
    %64 = vector.shape_cast %63 : vector<1x8x8xf32> to vector<8x8xf32>
    %cst_52 = arith.constant dense<0.000000e+00> : vector<288x8xf32>
    %65 = tpu.matmul %62, %64, %cst_52 {dimension_numbers = #tpu.dot_dimension_numbers<[1], [0], [0], [1], [0, 0, 1, 1], [], []>} : vector<288x8xf32>, vector<8x8xf32>, vector<288x8xf32> -> vector<288x8xf32>
    %66 = arith.addf %60, %65 : vector<288x8xf32>
    %c1_53 = arith.constant 1 : index
    %c2_54 = arith.constant 2 : index
    %c0_55 = arith.constant 0 : index
    %67 = vector.load %arg14[%c1_53, %c2_54, %c0_55] : memref<20x18x8xf32, #tpu.memory_space<vmem>>, vector<18x16x8xf32>
    %68 = vector.shape_cast %67 : vector<18x16x8xf32> to vector<288x8xf32>
    %c5 = arith.constant 5 : index
    %c0_56 = arith.constant 0 : index
    %c0_57 = arith.constant 0 : index
    %69 = vector.load %arg5[%c5, %c0_56, %c0_57] : memref<9x8x8xf32, #tpu.memory_space<vmem>>, vector<1x8x8xf32>
    %70 = vector.shape_cast %69 : vector<1x8x8xf32> to vector<8x8xf32>
    %cst_58 = arith.constant dense<0.000000e+00> : vector<288x8xf32>
    %71 = tpu.matmul %68, %70, %cst_58 {dimension_numbers = #tpu.dot_dimension_numbers<[1], [0], [0], [1], [0, 0, 1, 1], [], []>} : vector<288x8xf32>, vector<8x8xf32>, vector<288x8xf32> -> vector<288x8xf32>
    %72 = arith.addf %66, %71 : vector<288x8xf32>
    %c2_59 = arith.constant 2 : index
    %c0_60 = arith.constant 0 : index
    %c0_61 = arith.constant 0 : index
    %73 = vector.load %arg14[%c2_59, %c0_60, %c0_61] : memref<20x18x8xf32, #tpu.memory_space<vmem>>, vector<18x16x8xf32>
    %74 = vector.shape_cast %73 : vector<18x16x8xf32> to vector<288x8xf32>
    %c6 = arith.constant 6 : index
    %c0_62 = arith.constant 0 : index
    %c0_63 = arith.constant 0 : index
    %75 = vector.load %arg5[%c6, %c0_62, %c0_63] : memref<9x8x8xf32, #tpu.memory_space<vmem>>, vector<1x8x8xf32>
    %76 = vector.shape_cast %75 : vector<1x8x8xf32> to vector<8x8xf32>
    %cst_64 = arith.constant dense<0.000000e+00> : vector<288x8xf32>
    %77 = tpu.matmul %74, %76, %cst_64 {dimension_numbers = #tpu.dot_dimension_numbers<[1], [0], [0], [1], [0, 0, 1, 1], [], []>} : vector<288x8xf32>, vector<8x8xf32>, vector<288x8xf32> -> vector<288x8xf32>
    %78 = arith.addf %72, %77 : vector<288x8xf32>
    %c2_65 = arith.constant 2 : index
    %c1_66 = arith.constant 1 : index
    %c0_67 = arith.constant 0 : index
    %79 = vector.load %arg14[%c2_65, %c1_66, %c0_67] : memref<20x18x8xf32, #tpu.memory_space<vmem>>, vector<18x16x8xf32>
    %80 = vector.shape_cast %79 : vector<18x16x8xf32> to vector<288x8xf32>
    %c7 = arith.constant 7 : index
    %c0_68 = arith.constant 0 : index
    %c0_69 = arith.constant 0 : index
    %81 = vector.load %arg5[%c7, %c0_68, %c0_69] : memref<9x8x8xf32, #tpu.memory_space<vmem>>, vector<1x8x8xf32>
    %82 = vector.shape_cast %81 : vector<1x8x8xf32> to vector<8x8xf32>
    %cst_70 = arith.constant dense<0.000000e+00> : vector<288x8xf32>
    %83 = tpu.matmul %80, %82, %cst_70 {dimension_numbers = #tpu.dot_dimension_numbers<[1], [0], [0], [1], [0, 0, 1, 1], [], []>} : vector<288x8xf32>, vector<8x8xf32>, vector<288x8xf32> -> vector<288x8xf32>
    %84 = arith.addf %78, %83 : vector<288x8xf32>
    %c2_71 = arith.constant 2 : index
    %c2_72 = arith.constant 2 : index
    %c0_73 = arith.constant 0 : index
    %85 = vector.load %arg14[%c2_71, %c2_72, %c0_73] : memref<20x18x8xf32, #tpu.memory_space<vmem>>, vector<18x16x8xf32>
    %86 = vector.shape_cast %85 : vector<18x16x8xf32> to vector<288x8xf32>
    %c8 = arith.constant 8 : index
    %c0_74 = arith.constant 0 : index
    %c0_75 = arith.constant 0 : index
    %87 = vector.load %arg5[%c8, %c0_74, %c0_75] : memref<9x8x8xf32, #tpu.memory_space<vmem>>, vector<1x8x8xf32>
    %88 = vector.shape_cast %87 : vector<1x8x8xf32> to vector<8x8xf32>
    %cst_76 = arith.constant dense<0.000000e+00> : vector<288x8xf32>
    %89 = tpu.matmul %86, %88, %cst_76 {dimension_numbers = #tpu.dot_dimension_numbers<[1], [0], [0], [1], [0, 0, 1, 1], [], []>} : vector<288x8xf32>, vector<8x8xf32>, vector<288x8xf32> -> vector<288x8xf32>
    %90 = arith.addf %84, %89 : vector<288x8xf32>
    %cst_77 = arith.constant 5.000000e-01 : f32
    %91 = vector.broadcast %cst_77 : f32 to vector<288x8xf32>
    %92 = arith.mulf %91, %90 : vector<288x8xf32>
    %93 = math.tanh %92 : vector<288x8xf32>
    %cst_78 = arith.constant 5.000000e-01 : f32
    %94 = vector.broadcast %cst_78 : f32 to vector<288x8xf32>
    %95 = arith.mulf %94, %93 : vector<288x8xf32>
    %cst_79 = arith.constant 5.000000e-01 : f32
    %96 = vector.broadcast %cst_79 : f32 to vector<288x8xf32>
    %97 = arith.addf %95, %96 : vector<288x8xf32>
    %98 = arith.mulf %90, %97 : vector<288x8xf32>
    %99 = vector.shape_cast %98 : vector<288x8xf32> to vector<18x16x8xf32>
    %c16_i32_80 = arith.constant 16 : i32
    %100 = arith.muli %arg1, %c16_i32_80 : i32
    %101 = tpu.iota {dimensions = array<i32: 0>} : vector<18x1x1xi32>
    %102 = vector.broadcast %100 : i32 to vector<18x1x1xi32>
    %103 = arith.addi %102, %101 : vector<18x1x1xi32>
    %c1_i32 = arith.constant 1 : i32
    %104 = vector.broadcast %c1_i32 : i32 to vector<18x1x1xi32>
    %105 = arith.cmpi sge, %103, %104 : vector<18x1x1xi32>
    %c17_i32 = arith.constant 17 : i32
    %106 = vector.broadcast %c17_i32 : i32 to vector<18x1x1xi32>
    %107 = arith.cmpi slt, %103, %106 : vector<18x1x1xi32>
    %108 = arith.andi %105, %107 : vector<18x1x1xi1>
    %109 = arith.extui %108 : vector<18x1x1xi1> to vector<18x1x1xi32>
    %110 = arith.sitofp %109 : vector<18x1x1xi32> to vector<18x1x1xf32>
    %111 = vector.broadcast %110 : vector<18x1x1xf32> to vector<18x16x8xf32>
    %112 = arith.mulf %99, %111 : vector<18x16x8xf32>
    %cst_81 = arith.constant 0.000000e+00 : f32
    %113 = vector.broadcast %cst_81 : f32 to vector<18x1x8xf32>
    %c0_82 = arith.constant 0 : index
    %c0_83 = arith.constant 0 : index
    %c0_84 = arith.constant 0 : index
    %114 = vector.load %arg15[%c0_82, %c0_83, %c0_84] : memref<18x18x8xf32, #tpu.memory_space<vmem>>, vector<18x1x8xf32>
    tpu.vector_store %arg15[%c0_82, %c0_83, %c0_84], %113 {strides = array<i32>} : memref<18x18x8xf32, #tpu.memory_space<vmem>>, vector<18x1x8xf32>,
    %c0_85 = arith.constant 0 : index
    %c17_86 = arith.constant 17 : index
    %c0_87 = arith.constant 0 : index
    %115 = vector.load %arg15[%c0_85, %c17_86, %c0_87] : memref<18x18x8xf32, #tpu.memory_space<vmem>>, vector<18x1x8xf32>
    tpu.vector_store %arg15[%c0_85, %c17_86, %c0_87], %113 {strides = array<i32>} : memref<18x18x8xf32, #tpu.memory_space<vmem>>, vector<18x1x8xf32>,
    %c0_88 = arith.constant 0 : index
    %c1_89 = arith.constant 1 : index
    %c0_90 = arith.constant 0 : index
    %116 = vector.load %arg15[%c0_88, %c1_89, %c0_90] : memref<18x18x8xf32, #tpu.memory_space<vmem>>, vector<18x16x8xf32>
    tpu.vector_store %arg15[%c0_88, %c1_89, %c0_90], %112 {strides = array<i32>} : memref<18x18x8xf32, #tpu.memory_space<vmem>>, vector<18x16x8xf32>,
    %c0_91 = arith.constant 0 : index
    %c0_92 = arith.constant 0 : index
    %117 = vector.load %arg8[%c0_91, %c0_92] : memref<1x8xf32, #tpu.memory_space<vmem>>, vector<1x8xf32>
    %c0_93 = arith.constant 0 : index
    %c0_94 = arith.constant 0 : index
    %c0_95 = arith.constant 0 : index
    %118 = vector.load %arg15[%c0_93, %c0_94, %c0_95] : memref<18x18x8xf32, #tpu.memory_space<vmem>>, vector<16x16x8xf32>
    %119 = vector.shape_cast %118 : vector<16x16x8xf32> to vector<256x8xf32>
    %c0_96 = arith.constant 0 : index
    %c0_97 = arith.constant 0 : index
    %c0_98 = arith.constant 0 : index
    %120 = vector.load %arg7[%c0_96, %c0_97, %c0_98] : memref<9x8x8xf32, #tpu.memory_space<vmem>>, vector<1x8x8xf32>
    %121 = vector.shape_cast %120 : vector<1x8x8xf32> to vector<8x8xf32>
    %cst_99 = arith.constant dense<0.000000e+00> : vector<256x8xf32>
    %122 = tpu.matmul %119, %121, %cst_99 {dimension_numbers = #tpu.dot_dimension_numbers<[1], [0], [0], [1], [0, 0, 1, 1], [], []>} : vector<256x8xf32>, vector<8x8xf32>, vector<256x8xf32> -> vector<256x8xf32>
    %123 = vector.broadcast %117 : vector<1x8xf32> to vector<256x8xf32>
    %124 = arith.addf %123, %122 : vector<256x8xf32>
    %c0_100 = arith.constant 0 : index
    %c1_101 = arith.constant 1 : index
    %c0_102 = arith.constant 0 : index
    %125 = vector.load %arg15[%c0_100, %c1_101, %c0_102] : memref<18x18x8xf32, #tpu.memory_space<vmem>>, vector<16x16x8xf32>
    %126 = vector.shape_cast %125 : vector<16x16x8xf32> to vector<256x8xf32>
    %c1_103 = arith.constant 1 : index
    %c0_104 = arith.constant 0 : index
    %c0_105 = arith.constant 0 : index
    %127 = vector.load %arg7[%c1_103, %c0_104, %c0_105] : memref<9x8x8xf32, #tpu.memory_space<vmem>>, vector<1x8x8xf32>
    %128 = vector.shape_cast %127 : vector<1x8x8xf32> to vector<8x8xf32>
    %cst_106 = arith.constant dense<0.000000e+00> : vector<256x8xf32>
    %129 = tpu.matmul %126, %128, %cst_106 {dimension_numbers = #tpu.dot_dimension_numbers<[1], [0], [0], [1], [0, 0, 1, 1], [], []>} : vector<256x8xf32>, vector<8x8xf32>, vector<256x8xf32> -> vector<256x8xf32>
    %130 = arith.addf %124, %129 : vector<256x8xf32>
    %c0_107 = arith.constant 0 : index
    %c2_108 = arith.constant 2 : index
    %c0_109 = arith.constant 0 : index
    %131 = vector.load %arg15[%c0_107, %c2_108, %c0_109] : memref<18x18x8xf32, #tpu.memory_space<vmem>>, vector<16x16x8xf32>
    %132 = vector.shape_cast %131 : vector<16x16x8xf32> to vector<256x8xf32>
    %c2_110 = arith.constant 2 : index
    %c0_111 = arith.constant 0 : index
    %c0_112 = arith.constant 0 : index
    %133 = vector.load %arg7[%c2_110, %c0_111, %c0_112] : memref<9x8x8xf32, #tpu.memory_space<vmem>>, vector<1x8x8xf32>
    %134 = vector.shape_cast %133 : vector<1x8x8xf32> to vector<8x8xf32>
    %cst_113 = arith.constant dense<0.000000e+00> : vector<256x8xf32>
    %135 = tpu.matmul %132, %134, %cst_113 {dimension_numbers = #tpu.dot_dimension_numbers<[1], [0], [0], [1], [0, 0, 1, 1], [], []>} : vector<256x8xf32>, vector<8x8xf32>, vector<256x8xf32> -> vector<256x8xf32>
    %136 = arith.addf %130, %135 : vector<256x8xf32>
    %c1_114 = arith.constant 1 : index
    %c0_115 = arith.constant 0 : index
    %c0_116 = arith.constant 0 : index
    %137 = vector.load %arg15[%c1_114, %c0_115, %c0_116] : memref<18x18x8xf32, #tpu.memory_space<vmem>>, vector<16x16x8xf32>
    %138 = vector.shape_cast %137 : vector<16x16x8xf32> to vector<256x8xf32>
    %c3_117 = arith.constant 3 : index
    %c0_118 = arith.constant 0 : index
    %c0_119 = arith.constant 0 : index
    %139 = vector.load %arg7[%c3_117, %c0_118, %c0_119] : memref<9x8x8xf32, #tpu.memory_space<vmem>>, vector<1x8x8xf32>
    %140 = vector.shape_cast %139 : vector<1x8x8xf32> to vector<8x8xf32>
    %cst_120 = arith.constant dense<0.000000e+00> : vector<256x8xf32>
    %141 = tpu.matmul %138, %140, %cst_120 {dimension_numbers = #tpu.dot_dimension_numbers<[1], [0], [0], [1], [0, 0, 1, 1], [], []>} : vector<256x8xf32>, vector<8x8xf32>, vector<256x8xf32> -> vector<256x8xf32>
    %142 = arith.addf %136, %141 : vector<256x8xf32>
    %c1_121 = arith.constant 1 : index
    %c1_122 = arith.constant 1 : index
    %c0_123 = arith.constant 0 : index
    %143 = vector.load %arg15[%c1_121, %c1_122, %c0_123] : memref<18x18x8xf32, #tpu.memory_space<vmem>>, vector<16x16x8xf32>
    %144 = vector.shape_cast %143 : vector<16x16x8xf32> to vector<256x8xf32>
    %c4_124 = arith.constant 4 : index
    %c0_125 = arith.constant 0 : index
    %c0_126 = arith.constant 0 : index
    %145 = vector.load %arg7[%c4_124, %c0_125, %c0_126] : memref<9x8x8xf32, #tpu.memory_space<vmem>>, vector<1x8x8xf32>
    %146 = vector.shape_cast %145 : vector<1x8x8xf32> to vector<8x8xf32>
    %cst_127 = arith.constant dense<0.000000e+00> : vector<256x8xf32>
    %147 = tpu.matmul %144, %146, %cst_127 {dimension_numbers = #tpu.dot_dimension_numbers<[1], [0], [0], [1], [0, 0, 1, 1], [], []>} : vector<256x8xf32>, vector<8x8xf32>, vector<256x8xf32> -> vector<256x8xf32>
    %148 = arith.addf %142, %147 : vector<256x8xf32>
    %c1_128 = arith.constant 1 : index
    %c2_129 = arith.constant 2 : index
    %c0_130 = arith.constant 0 : index
    %149 = vector.load %arg15[%c1_128, %c2_129, %c0_130] : memref<18x18x8xf32, #tpu.memory_space<vmem>>, vector<16x16x8xf32>
    %150 = vector.shape_cast %149 : vector<16x16x8xf32> to vector<256x8xf32>
    %c5_131 = arith.constant 5 : index
    %c0_132 = arith.constant 0 : index
    %c0_133 = arith.constant 0 : index
    %151 = vector.load %arg7[%c5_131, %c0_132, %c0_133] : memref<9x8x8xf32, #tpu.memory_space<vmem>>, vector<1x8x8xf32>
    %152 = vector.shape_cast %151 : vector<1x8x8xf32> to vector<8x8xf32>
    %cst_134 = arith.constant dense<0.000000e+00> : vector<256x8xf32>
    %153 = tpu.matmul %150, %152, %cst_134 {dimension_numbers = #tpu.dot_dimension_numbers<[1], [0], [0], [1], [0, 0, 1, 1], [], []>} : vector<256x8xf32>, vector<8x8xf32>, vector<256x8xf32> -> vector<256x8xf32>
    %154 = arith.addf %148, %153 : vector<256x8xf32>
    %c2_135 = arith.constant 2 : index
    %c0_136 = arith.constant 0 : index
    %c0_137 = arith.constant 0 : index
    %155 = vector.load %arg15[%c2_135, %c0_136, %c0_137] : memref<18x18x8xf32, #tpu.memory_space<vmem>>, vector<16x16x8xf32>
    %156 = vector.shape_cast %155 : vector<16x16x8xf32> to vector<256x8xf32>
    %c6_138 = arith.constant 6 : index
    %c0_139 = arith.constant 0 : index
    %c0_140 = arith.constant 0 : index
    %157 = vector.load %arg7[%c6_138, %c0_139, %c0_140] : memref<9x8x8xf32, #tpu.memory_space<vmem>>, vector<1x8x8xf32>
    %158 = vector.shape_cast %157 : vector<1x8x8xf32> to vector<8x8xf32>
    %cst_141 = arith.constant dense<0.000000e+00> : vector<256x8xf32>
    %159 = tpu.matmul %156, %158, %cst_141 {dimension_numbers = #tpu.dot_dimension_numbers<[1], [0], [0], [1], [0, 0, 1, 1], [], []>} : vector<256x8xf32>, vector<8x8xf32>, vector<256x8xf32> -> vector<256x8xf32>
    %160 = arith.addf %154, %159 : vector<256x8xf32>
    %c2_142 = arith.constant 2 : index
    %c1_143 = arith.constant 1 : index
    %c0_144 = arith.constant 0 : index
    %161 = vector.load %arg15[%c2_142, %c1_143, %c0_144] : memref<18x18x8xf32, #tpu.memory_space<vmem>>, vector<16x16x8xf32>
    %162 = vector.shape_cast %161 : vector<16x16x8xf32> to vector<256x8xf32>
    %c7_145 = arith.constant 7 : index
    %c0_146 = arith.constant 0 : index
    %c0_147 = arith.constant 0 : index
    %163 = vector.load %arg7[%c7_145, %c0_146, %c0_147] : memref<9x8x8xf32, #tpu.memory_space<vmem>>, vector<1x8x8xf32>
    %164 = vector.shape_cast %163 : vector<1x8x8xf32> to vector<8x8xf32>
    %cst_148 = arith.constant dense<0.000000e+00> : vector<256x8xf32>
    %165 = tpu.matmul %162, %164, %cst_148 {dimension_numbers = #tpu.dot_dimension_numbers<[1], [0], [0], [1], [0, 0, 1, 1], [], []>} : vector<256x8xf32>, vector<8x8xf32>, vector<256x8xf32> -> vector<256x8xf32>
    %166 = arith.addf %160, %165 : vector<256x8xf32>
    %c2_149 = arith.constant 2 : index
    %c2_150 = arith.constant 2 : index
    %c0_151 = arith.constant 0 : index
    %167 = vector.load %arg15[%c2_149, %c2_150, %c0_151] : memref<18x18x8xf32, #tpu.memory_space<vmem>>, vector<16x16x8xf32>
    %168 = vector.shape_cast %167 : vector<16x16x8xf32> to vector<256x8xf32>
    %c8_152 = arith.constant 8 : index
    %c0_153 = arith.constant 0 : index
    %c0_154 = arith.constant 0 : index
    %169 = vector.load %arg7[%c8_152, %c0_153, %c0_154] : memref<9x8x8xf32, #tpu.memory_space<vmem>>, vector<1x8x8xf32>
    %170 = vector.shape_cast %169 : vector<1x8x8xf32> to vector<8x8xf32>
    %cst_155 = arith.constant dense<0.000000e+00> : vector<256x8xf32>
    %171 = tpu.matmul %168, %170, %cst_155 {dimension_numbers = #tpu.dot_dimension_numbers<[1], [0], [0], [1], [0, 0, 1, 1], [], []>} : vector<256x8xf32>, vector<8x8xf32>, vector<256x8xf32> -> vector<256x8xf32>
    %172 = arith.addf %166, %171 : vector<256x8xf32>
    %cst_156 = arith.constant 5.000000e-01 : f32
    %173 = vector.broadcast %cst_156 : f32 to vector<256x8xf32>
    %174 = arith.mulf %173, %172 : vector<256x8xf32>
    %175 = math.tanh %174 : vector<256x8xf32>
    %cst_157 = arith.constant 5.000000e-01 : f32
    %176 = vector.broadcast %cst_157 : f32 to vector<256x8xf32>
    %177 = arith.mulf %176, %175 : vector<256x8xf32>
    %cst_158 = arith.constant 5.000000e-01 : f32
    %178 = vector.broadcast %cst_158 : f32 to vector<256x8xf32>
    %179 = arith.addf %177, %178 : vector<256x8xf32>
    %180 = arith.mulf %172, %179 : vector<256x8xf32>
    %181 = vector.extract_strided_slice %30 {offsets = [2, 0, 0], sizes = [16, 16, 8], strides = [1, 1, 1]} : vector<20x16x8xf32> to vector<16x16x8xf32>
    %182 = vector.shape_cast %181 : vector<16x16x8xf32> to vector<256x8xf32>
    %183 = arith.addf %182, %180 : vector<256x8xf32>
    %c0_159 = arith.constant 0 : index
    %c0_160 = arith.constant 0 : index
    %184 = vector.load %arg9[%c0_159, %c0_160] : memref<8x8xf32, #tpu.memory_space<vmem>>, vector<8x8xf32>
    %cst_161 = arith.constant dense<0.000000e+00> : vector<256x8xf32>
    %185 = tpu.matmul %183, %184, %cst_161 {dimension_numbers = #tpu.dot_dimension_numbers<[1], [0], [0], [1], [0, 0, 1, 1], [], []>} : vector<256x8xf32>, vector<8x8xf32>, vector<256x8xf32> -> vector<256x8xf32>
    %c0_162 = arith.constant 0 : index
    %c0_163 = arith.constant 0 : index
    %186 = vector.load %arg10[%c0_162, %c0_163] : memref<1x8xf32, #tpu.memory_space<vmem>>, vector<1x8xf32>
    %187 = vector.broadcast %186 : vector<1x8xf32> to vector<256x8xf32>
    %188 = arith.addf %185, %187 : vector<256x8xf32>
    %cst_164 = arith.constant 5.000000e-01 : f32
    %189 = vector.broadcast %cst_164 : f32 to vector<256x8xf32>
    %190 = arith.mulf %189, %188 : vector<256x8xf32>
    %191 = math.tanh %190 : vector<256x8xf32>
    %cst_165 = arith.constant 5.000000e-01 : f32
    %192 = vector.broadcast %cst_165 : f32 to vector<256x8xf32>
    %193 = arith.mulf %192, %191 : vector<256x8xf32>
    %cst_166 = arith.constant 5.000000e-01 : f32
    %194 = vector.broadcast %cst_166 : f32 to vector<256x8xf32>
    %195 = arith.addf %193, %194 : vector<256x8xf32>
    %196 = arith.mulf %188, %195 : vector<256x8xf32>
    %197 = vector.extract_strided_slice %16 {offsets = [2, 0, 8], sizes = [16, 16, 8], strides = [1, 1, 1]} : vector<20x16x16xf32> to vector<16x16x8xf32>
    %198 = vector.shape_cast %197 : vector<16x16x8xf32> to vector<256x8xf32>
    %c0_167 = arith.constant 0 : index
    %c0_168 = arith.constant 0 : index
    %199 = vector.load %arg11[%c0_167, %c0_168] : memref<16x16xf32, #tpu.memory_space<vmem>>, vector<8x16xf32>
    %cst_169 = arith.constant dense<0.000000e+00> : vector<256x16xf32>
    %200 = tpu.matmul %196, %199, %cst_169 {dimension_numbers = #tpu.dot_dimension_numbers<[1], [0], [0], [1], [0, 0, 1, 1], [], []>} : vector<256x8xf32>, vector<8x16xf32>, vector<256x16xf32> -> vector<256x16xf32>
    %c8_170 = arith.constant 8 : index
    %c0_171 = arith.constant 0 : index
    %201 = vector.load %arg11[%c8_170, %c0_171] : memref<16x16xf32, #tpu.memory_space<vmem>>, vector<8x16xf32>
    %cst_172 = arith.constant dense<0.000000e+00> : vector<256x16xf32>
    %202 = tpu.matmul %198, %201, %cst_172 {dimension_numbers = #tpu.dot_dimension_numbers<[1], [0], [0], [1], [0, 0, 1, 1], [], []>} : vector<256x8xf32>, vector<8x16xf32>, vector<256x16xf32> -> vector<256x16xf32>
    %203 = arith.addf %200, %202 : vector<256x16xf32>
    %c0_173 = arith.constant 0 : index
    %c0_174 = arith.constant 0 : index
    %204 = vector.load %arg12[%c0_173, %c0_174] : memref<1x16xf32, #tpu.memory_space<vmem>>, vector<1x16xf32>
    %205 = vector.broadcast %204 : vector<1x16xf32> to vector<256x16xf32>
    %206 = arith.addf %203, %205 : vector<256x16xf32>
    %cst_175 = arith.constant 5.000000e-01 : f32
    %207 = vector.broadcast %cst_175 : f32 to vector<256x16xf32>
    %208 = arith.mulf %207, %206 : vector<256x16xf32>
    %209 = math.tanh %208 : vector<256x16xf32>
    %cst_176 = arith.constant 5.000000e-01 : f32
    %210 = vector.broadcast %cst_176 : f32 to vector<256x16xf32>
    %211 = arith.mulf %210, %209 : vector<256x16xf32>
    %cst_177 = arith.constant 5.000000e-01 : f32
    %212 = vector.broadcast %cst_177 : f32 to vector<256x16xf32>
    %213 = arith.addf %211, %212 : vector<256x16xf32>
    %214 = arith.mulf %206, %213 : vector<256x16xf32>
    %c0_178 = arith.constant 0 : index
    %c0_179 = arith.constant 0 : index
    %c0_180 = arith.constant 0 : index
    %215 = vector.load %arg13[%c0_178, %c0_179, %c0_180] : memref<1x256x16xf32, #tpu.memory_space<vmem>>, vector<1x256x16xf32>
    %216 = vector.shape_cast %215 : vector<1x256x16xf32> to vector<256x16xf32>
    %217 = vector.shape_cast %214 : vector<256x16xf32> to vector<1x256x16xf32>
    tpu.vector_store %arg13[%c0_178, %c0_179, %c0_180], %217 {strides = array<i32>} : memref<1x256x16xf32, #tpu.memory_space<vmem>>, vector<1x256x16xf32>,
    return
  }
  func.func @transform_0(%arg0: i32, %arg1: i32) -> (i32, i32, i32, i32, i32) {
    %c0_i32 = arith.constant 0 : i32
    %c0_i32_0 = arith.constant 0 : i32
    %c0_i32_1 = arith.constant 0 : i32
    %c0_i32_2 = arith.constant 0 : i32
    return %arg0, %arg1, %c0_i32, %c0_i32_0, %c0_i32_1 : i32, i32, i32, i32, i32
  }
  func.func @transform_1(%arg0: i32, %arg1: i32) -> (i32, i32) {
    %c0_i32 = arith.constant 0 : i32
    %c0_i32_0 = arith.constant 0 : i32
    %c0_i32_1 = arith.constant 0 : i32
    return %c0_i32, %c0_i32_0 : i32, i32
  }
  func.func @transform_2(%arg0: i32, %arg1: i32) -> (i32, i32) {
    %c0_i32 = arith.constant 0 : i32
    %c0_i32_0 = arith.constant 0 : i32
    %c0_i32_1 = arith.constant 0 : i32
    return %c0_i32, %c0_i32_0 : i32, i32
  }
  func.func @transform_3(%arg0: i32, %arg1: i32) -> (i32, i32, i32) {
    %c0_i32 = arith.constant 0 : i32
    %c0_i32_0 = arith.constant 0 : i32
    %c0_i32_1 = arith.constant 0 : i32
    %c0_i32_2 = arith.constant 0 : i32
    return %c0_i32, %c0_i32_0, %c0_i32_1 : i32, i32, i32
  }
  func.func @transform_4(%arg0: i32, %arg1: i32) -> (i32, i32) {
    %c0_i32 = arith.constant 0 : i32
    %c0_i32_0 = arith.constant 0 : i32
    %c0_i32_1 = arith.constant 0 : i32
    return %c0_i32, %c0_i32_0 : i32, i32
  }
  func.func @transform_5(%arg0: i32, %arg1: i32) -> (i32, i32, i32) {
    %c0_i32 = arith.constant 0 : i32
    %c0_i32_0 = arith.constant 0 : i32
    %c0_i32_1 = arith.constant 0 : i32
    %c0_i32_2 = arith.constant 0 : i32
    return %c0_i32, %c0_i32_0, %c0_i32_1 : i32, i32, i32
  }
  func.func @transform_6(%arg0: i32, %arg1: i32) -> (i32, i32) {
    %c0_i32 = arith.constant 0 : i32
    %c0_i32_0 = arith.constant 0 : i32
    %c0_i32_1 = arith.constant 0 : i32
    return %c0_i32, %c0_i32_0 : i32, i32
  }
  func.func @transform_7(%arg0: i32, %arg1: i32) -> (i32, i32) {
    %c0_i32 = arith.constant 0 : i32
    %c0_i32_0 = arith.constant 0 : i32
    %c0_i32_1 = arith.constant 0 : i32
    return %c0_i32, %c0_i32_0 : i32, i32
  }
  func.func @transform_8(%arg0: i32, %arg1: i32) -> (i32, i32) {
    %c0_i32 = arith.constant 0 : i32
    %c0_i32_0 = arith.constant 0 : i32
    %c0_i32_1 = arith.constant 0 : i32
    return %c0_i32, %c0_i32_0 : i32, i32
  }
  func.func @transform_9(%arg0: i32, %arg1: i32) -> (i32, i32) {
    %c0_i32 = arith.constant 0 : i32
    %c0_i32_0 = arith.constant 0 : i32
    %c0_i32_1 = arith.constant 0 : i32
    return %c0_i32, %c0_i32_0 : i32, i32
  }
  func.func @transform_10(%arg0: i32, %arg1: i32) -> (i32, i32) {
    %c0_i32 = arith.constant 0 : i32
    %c0_i32_0 = arith.constant 0 : i32
    %c0_i32_1 = arith.constant 0 : i32
    return %c0_i32, %c0_i32_0 : i32, i32
  }
  func.func @transform_11(%arg0: i32, %arg1: i32) -> (i32, i32, i32) {
    %c0_i32 = arith.constant 0 : i32
    %c0_i32_0 = arith.constant 0 : i32
    return %arg0, %arg1, %c0_i32 : i32, i32, i32
  }
}

</mosaic_0001>

<llo_original>
// kernel: tpu_custom_call.1
$region0: #{tpu_custom_call.1}
  #allocation0 [shape = 'u32[]', space=smem, size = 0x4, offset = 0x4, fixed_abs, tag = 'smem constant byte address 0x4 - core index']
  #allocation1 [shape = 'u32[72,128]{1,0:T(1,128)}', space=vmem, size = 0x9000, scoped, tag = 'internal scratch']
  #allocation2 [shape = 'f32[20,18,8]{2,1,0:T(8,128)}', space=vmem, size = 0x3c000, scoped, tag = 'scratch operand']
  #allocation3 [shape = 'f32[18,18,8]{2,1,0:T(8,128)}', space=vmem, size = 0x36000, scoped, tag = 'scratch operand']
  %s0 = inlined_call_operand.vmem [shape: f32[2,1,20,16,8], index: 0, kind: input, shape index: {}]
  %s1 = inlined_call_operand.vmem [shape: f32[8,16], index: 1, kind: input, shape index: {}]
  %s2 = inlined_call_operand.vmem [shape: f32[1,16], index: 2, kind: input, shape index: {}]
  %s3 = inlined_call_operand.vmem [shape: f32[9,8,8], index: 3, kind: input, shape index: {}]
  %s4 = inlined_call_operand.vmem [shape: f32[1,8], index: 4, kind: input, shape index: {}]
  %s5 = inlined_call_operand.vmem [shape: f32[9,8,8], index: 5, kind: input, shape index: {}]
  %s6 = inlined_call_operand.vmem [shape: f32[1,8], index: 6, kind: input, shape index: {}]
  %s7 = inlined_call_operand.vmem [shape: f32[8,8], index: 7, kind: input, shape index: {}]
  %s8 = inlined_call_operand.vmem [shape: f32[1,8], index: 8, kind: input, shape index: {}]
  %s9 = inlined_call_operand.vmem [shape: f32[16,16], index: 9, kind: input, shape index: {}]
  %s10 = inlined_call_operand.vmem [shape: f32[1,16], index: 10, kind: input, shape index: {}]
  %s11 = inlined_call_operand.vmem [shape: f32[2,256,16], index: 11, kind: output, shape index: {}]
  %s12 = sld [smem:[#allocation0]]
  $region77: #{tpu_custom_call.1} parent=0
    _
  %s14 = ssub.s32 1, %s12
  %s15 = scalar_select 0, %s14, %s12
  loop: start=0, step=1, limit=4
  $region2: #{tpu_custom_call.1} parent=0 // loop_pre_header
    _
  $region3: #{tpu_custom_call.1} parent=0 // loop_header
    %s17 = sphi 0, %s21
    %p18 = scmp.ge.s32.totalorder %s17, 4
    %s24 = sphi 0, %s36
    %s25 = sphi 0, %s32
    %s26 = sphi 0, %s24
    %s27 = sphi 0, %s25
    %s28 = sphi 0, %s26
    %s29 = sphi 0, %s27
    %s41 = sphi 0, %s43
    %s44 = sphi 0, %s41
    %s45 = sphi 0, %s44
    %s61 = sphi 0, %s45
    %s65 = sphi 0, %s65
    %s67 = sphi 0, %s65
    %s68 = sphi 0, %s67
    %s82 = sphi 0, %s68
    %s86 = sphi 0, %s86
    %s88 = sphi 0, %s86
    %s89 = sphi 0, %s88
    %s103 = sphi 0, %s89
    %s107 = sphi 0, %s107
    %s109 = sphi 0, %s107
    %s110 = sphi 0, %s109
    %s124 = sphi 0, %s110
    %s128 = sphi 0, %s128
    %s130 = sphi 0, %s128
    %s131 = sphi 0, %s130
    %s145 = sphi 0, %s131
    %s149 = sphi 0, %s149
    %s151 = sphi 0, %s149
    %s152 = sphi 0, %s151
    %s166 = sphi 0, %s152
    %s170 = sphi 0, %s170
    %s172 = sphi 0, %s170
    %s173 = sphi 0, %s172
    %s187 = sphi 0, %s173
    %s191 = sphi 0, %s191
    %s193 = sphi 0, %s191
    %s194 = sphi 0, %s193
    %s208 = sphi 0, %s194
    %s212 = sphi 0, %s212
    %s214 = sphi 0, %s212
    %s215 = sphi 0, %s214
    %s229 = sphi 0, %s215
    %s233 = sphi 0, %s233
    %s235 = sphi 0, %s233
    %s236 = sphi 0, %s235
    %s250 = sphi 0, %s236
    %s254 = sphi 0, %s254
    %s256 = sphi 0, %s254
    %s257 = sphi 0, %s256
    %s271 = sphi 0, %s257
    %s279 = sphi 0, %s281
    %s282 = sphi 0, %s279
    %s283 = sphi 0, %s282
    %s299 = sphi 0, %s283
  $region4: #{tpu_custom_call.1} parent=0 // loop_header_branch
    %20 = sbr.rel (%p18) target = $region8
  $region5: #{tpu_custom_call.1} parent=0 // loop_body
    %s22 = ssub.s32 %s17, 1
    %s23 = ssub.s32 %s17, 2
    %s30 = sadd.s32 1, %s25
    %p31 = scmp.ge.s32.totalorder %s30, 1
    %s32 = scalar_select %p31, 0, %s30
    %s33 = sadd.s32 1, %s24
    %s34 = scalar_select %p31, %s33, %s24
    %p35 = scmp.ge.s32.totalorder %s34, 2
    %s36 = scalar_select %p35, 0, %s34
    %s37 = ssub.s32 %s24, %s36
    %s38 = ssub.s32 %s25, %s32
    %s39 = sor.u32 %s37, %s38
    %p40 = scmp.eq.s32.totalorder %s39, 0
    %s42 = sadd.s32 %s41, 1
    %s43 = scalar_select %p40, %s41, %s42
    %p46 = pneg %p40
    %p47 = scmp.eq.s32.totalorder %s17, 1
    %p48 = por %p46, %p47
    %p49 = scmp.ne.s32.totalorder %s41, %s44
    %p50 = scmp.eq.s32.totalorder %s17, 0
    %p51 = por %p49, %p50
    %p52 = scmp.ne.s32.totalorder %s41, %s44
    %p53 = scmp.eq.s32.totalorder %s22, 1
    %p54 = por %p52, %p53
    %p55 = scmp.ne.s32.totalorder %s44, %s45
    %p56 = scmp.eq.s32.totalorder %s22, 0
    %p57 = por %p55, %p56
    %p58 = scmp.ne.s32.totalorder %s44, %s45
    %p59 = scmp.eq.s32.totalorder %s23, 1
    %p60 = por %p58, %p59
    %p62 = scmp.ne.s32.totalorder %s45, %s61
    %p63 = scmp.eq.s32.totalorder %s23, 0
    %p64 = por %p62, %p63
    %s66 = sadd.s32 %s65, 1
    %p69 = scmp.eq.s32.totalorder %s17, 1
    %p70 = scmp.ne.s32.totalorder %s65, %s67
    %p71 = scmp.eq.s32.totalorder %s17, 0
    %p72 = por %p70, %p71
    %p73 = scmp.ne.s32.totalorder %s65, %s67
    %p74 = scmp.eq.s32.totalorder %s22, 1
    %p75 = por %p73, %p74
    %p76 = scmp.ne.s32.totalorder %s67, %s68
    %p77 = scmp.eq.s32.totalorder %s22, 0
    %p78 = por %p76, %p77
    %p79 = scmp.ne.s32.totalorder %s67, %s68
    %p80 = scmp.eq.s32.totalorder %s23, 1
    %p81 = por %p79, %p80
    %p83 = scmp.ne.s32.totalorder %s68, %s82
    %p84 = scmp.eq.s32.totalorder %s23, 0
    %p85 = por %p83, %p84
    %s87 = sadd.s32 %s86, 1
    %p90 = scmp.eq.s32.totalorder %s17, 1
    %p91 = scmp.ne.s32.totalorder %s86, %s88
    %p92 = scmp.eq.s32.totalorder %s17, 0
    %p93 = por %p91, %p92
    %p94 = scmp.ne.s32.totalorder %s86, %s88
    %p95 = scmp.eq.s32.totalorder %s22, 1
    %p96 = por %p94, %p95
    %p97 = scmp.ne.s32.totalorder %s88, %s89
    %p98 = scmp.eq.s32.totalorder %s22, 0
    %p99 = por %p97, %p98
    %p100 = scmp.ne.s32.totalorder %s88, %s89
    %p101 = scmp.eq.s32.totalorder %s23, 1
    %p102 = por %p100, %p101
    %p104 = scmp.ne.s32.totalorder %s89, %s103
    %p105 = scmp.eq.s32.totalorder %s23, 0
    %p106 = por %p104, %p105
    %s108 = sadd.s32 %s107, 1
    %p111 = scmp.eq.s32.totalorder %s17, 1
    %p112 = scmp.ne.s32.totalorder %s107, %s109
    %p113 = scmp.eq.s32.totalorder %s17, 0
    %p114 = por %p112, %p113
    %p115 = scmp.ne.s32.totalorder %s107, %s109
    %p116 = scmp.eq.s32.totalorder %s22, 1
    %p117 = por %p115, %p116
    %p118 = scmp.ne.s32.totalorder %s109, %s110
    %p119 = scmp.eq.s32.totalorder %s22, 0
    %p120 = por %p118, %p119
    %p121 = scmp.ne.s32.totalorder %s109, %s110
    %p122 = scmp.eq.s32.totalorder %s23, 1
    %p123 = por %p121, %p122
    %p125 = scmp.ne.s32.totalorder %s110, %s124
    %p126 = scmp.eq.s32.totalorder %s23, 0
    %p127 = por %p125, %p126
    %s129 = sadd.s32 %s128, 1
    %p132 = scmp.eq.s32.totalorder %s17, 1
    %p133 = scmp.ne.s32.totalorder %s128, %s130
    %p134 = scmp.eq.s32.totalorder %s17, 0
    %p135 = por %p133, %p134
    %p136 = scmp.ne.s32.totalorder %s128, %s130
    %p137 = scmp.eq.s32.totalorder %s22, 1
    %p138 = por %p136, %p137
    %p139 = scmp.ne.s32.totalorder %s130, %s131
    %p140 = scmp.eq.s32.totalorder %s22, 0
    %p141 = por %p139, %p140
    %p142 = scmp.ne.s32.totalorder %s130, %s131
    %p143 = scmp.eq.s32.totalorder %s23, 1
    %p144 = por %p142, %p143
    %p146 = scmp.ne.s32.totalorder %s131, %s145
    %p147 = scmp.eq.s32.totalorder %s23, 0
    %p148 = por %p146, %p147
    %s150 = sadd.s32 %s149, 1
    %p153 = scmp.eq.s32.totalorder %s17, 1
    %p154 = scmp.ne.s32.totalorder %s149, %s151
    %p155 = scmp.eq.s32.totalorder %s17, 0
    %p156 = por %p154, %p155
    %p157 = scmp.ne.s32.totalorder %s149, %s151
    %p158 = scmp.eq.s32.totalorder %s22, 1
    %p159 = por %p157, %p158
    %p160 = scmp.ne.s32.totalorder %s151, %s152
    %p161 = scmp.eq.s32.totalorder %s22, 0
    %p162 = por %p160, %p161
    %p163 = scmp.ne.s32.totalorder %s151, %s152
    %p164 = scmp.eq.s32.totalorder %s23, 1
    %p165 = por %p163, %p164
    %p167 = scmp.ne.s32.totalorder %s152, %s166
    %p168 = scmp.eq.s32.totalorder %s23, 0
    %p169 = por %p167, %p168
    %s171 = sadd.s32 %s170, 1
    %p174 = scmp.eq.s32.totalorder %s17, 1
    %p175 = scmp.ne.s32.totalorder %s170, %s172
    %p176 = scmp.eq.s32.totalorder %s17, 0
    %p177 = por %p175, %p176
    %p178 = scmp.ne.s32.totalorder %s170, %s172
    %p179 = scmp.eq.s32.totalorder %s22, 1
    %p180 = por %p178, %p179
    %p181 = scmp.ne.s32.totalorder %s172, %s173
    %p182 = scmp.eq.s32.totalorder %s22, 0
    %p183 = por %p181, %p182
    %p184 = scmp.ne.s32.totalorder %s172, %s173
    %p185 = scmp.eq.s32.totalorder %s23, 1
    %p186 = por %p184, %p185
    %p188 = scmp.ne.s32.totalorder %s173, %s187
    %p189 = scmp.eq.s32.totalorder %s23, 0
    %p190 = por %p188, %p189
    %s192 = sadd.s32 %s191, 1
    %p195 = scmp.eq.s32.totalorder %s17, 1
    %p196 = scmp.ne.s32.totalorder %s191, %s193
    %p197 = scmp.eq.s32.totalorder %s17, 0
    %p198 = por %p196, %p197
    %p199 = scmp.ne.s32.totalorder %s191, %s193
    %p200 = scmp.eq.s32.totalorder %s22, 1
    %p201 = por %p199, %p200
    %p202 = scmp.ne.s32.totalorder %s193, %s194
    %p203 = scmp.eq.s32.totalorder %s22, 0
    %p204 = por %p202, %p203
    %p205 = scmp.ne.s32.totalorder %s193, %s194
    %p206 = scmp.eq.s32.totalorder %s23, 1
    %p207 = por %p205, %p206
    %p209 = scmp.ne.s32.totalorder %s194, %s208
    %p210 = scmp.eq.s32.totalorder %s23, 0
    %p211 = por %p209, %p210
    %s213 = sadd.s32 %s212, 1
    %p216 = scmp.eq.s32.totalorder %s17, 1
    %p217 = scmp.ne.s32.totalorder %s212, %s214
    %p218 = scmp.eq.s32.totalorder %s17, 0
    %p219 = por %p217, %p218
    %p220 = scmp.ne.s32.totalorder %s212, %s214
    %p221 = scmp.eq.s32.totalorder %s22, 1
    %p222 = por %p220, %p221
    %p223 = scmp.ne.s32.totalorder %s214, %s215
    %p224 = scmp.eq.s32.totalorder %s22, 0
    %p225 = por %p223, %p224
    %p226 = scmp.ne.s32.totalorder %s214, %s215
    %p227 = scmp.eq.s32.totalorder %s23, 1
    %p228 = por %p226, %p227
    %p230 = scmp.ne.s32.totalorder %s215, %s229
    %p231 = scmp.eq.s32.totalorder %s23, 0
    %p232 = por %p230, %p231
    %s234 = sadd.s32 %s233, 1
    %p237 = scmp.eq.s32.totalorder %s17, 1
    %p238 = scmp.ne.s32.totalorder %s233, %s235
    %p239 = scmp.eq.s32.totalorder %s17, 0
    %p240 = por %p238, %p239
    %p241 = scmp.ne.s32.totalorder %s233, %s235
    %p242 = scmp.eq.s32.totalorder %s22, 1
    %p243 = por %p241, %p242
    %p244 = scmp.ne.s32.totalorder %s235, %s236
    %p245 = scmp.eq.s32.totalorder %s22, 0
    %p246 = por %p244, %p245
    %p247 = scmp.ne.s32.totalorder %s235, %s236
    %p248 = scmp.eq.s32.totalorder %s23, 1
    %p249 = por %p247, %p248
    %p251 = scmp.ne.s32.totalorder %s236, %s250
    %p252 = scmp.eq.s32.totalorder %s23, 0
    %p253 = por %p251, %p252
    %s255 = sadd.s32 %s254, 1
    %p258 = scmp.eq.s32.totalorder %s17, 1
    %p259 = scmp.ne.s32.totalorder %s254, %s256
    %p260 = scmp.eq.s32.totalorder %s17, 0
    %p261 = por %p259, %p260
    %p262 = scmp.ne.s32.totalorder %s254, %s256
    %p263 = scmp.eq.s32.totalorder %s22, 1
    %p264 = por %p262, %p263
    %p265 = scmp.ne.s32.totalorder %s256, %s257
    %p266 = scmp.eq.s32.totalorder %s22, 0
    %p267 = por %p265, %p266
    %p268 = scmp.ne.s32.totalorder %s256, %s257
    %p269 = scmp.eq.s32.totalorder %s23, 1
    %p270 = por %p268, %p269
    %p272 = scmp.ne.s32.totalorder %s257, %s271
    %p273 = scmp.eq.s32.totalorder %s23, 0
    %p274 = por %p272, %p273
    %s275 = ssub.s32 %s24, %s36
    %s276 = ssub.s32 %s25, %s32
    %s277 = sor.u32 %s275, %s276
    %p278 = scmp.eq.s32.totalorder %s277, 0
    %s280 = sadd.s32 %s279, 1
    %s281 = scalar_select %p278, %s279, %s280
    %p284 = pneg %p278
    %p285 = scmp.eq.s32.totalorder %s17, 1
    %p286 = por %p284, %p285
    %p287 = scmp.ne.s32.totalorder %s279, %s282
    %p288 = scmp.eq.s32.totalorder %s17, 0
    %p289 = por %p287, %p288
    %p290 = scmp.ne.s32.totalorder %s279, %s282
    %p291 = scmp.eq.s32.totalorder %s22, 1
    %p292 = por %p290, %p291
    %p293 = scmp.ne.s32.totalorder %s282, %s283
    %p294 = scmp.eq.s32.totalorder %s22, 0
    %p295 = por %p293, %p294
    %p296 = scmp.ne.s32.totalorder %s282, %s283
    %p297 = scmp.eq.s32.totalorder %s23, 1
    %p298 = por %p296, %p297
    %p300 = scmp.ne.s32.totalorder %s283, %s299
    %p301 = scmp.eq.s32.totalorder %s23, 0
    %p302 = por %p300, %p301
    %p303 = scmp.le.s32.totalorder 1, %s17
    %p304 = scmp.lt.s32.totalorder %s17, 3
    %p305 = pnand %p303, %p304
    %p306 = pneg %p305
    // Predicated region
    $region9: #{tpu_custom_call.1} parent=5 // pred_check
      _
    $region10: #{tpu_custom_call.1} parent=5 // pred_check_branch
      %308 = sbr.rel (%p305) target = $region12
    $region11: #{tpu_custom_call.1} parent=5 // pred_region
      %s309 = ssub.s32 %s17, 1
      // Predicated region
      $region13: #{tpu_custom_call.1} parent=11 // pred_check
        %p310 = pneg %p78
      $region14: #{tpu_custom_call.1} parent=11 // pred_check_branch
        %312 = sbr.rel (%p310) target = $region16
      $region15: #{tpu_custom_call.1} parent=11 // pred_region
        _
      $region16: #{tpu_custom_call.1} parent=11 // pred_fallthru
        _
      // Predicated region
      $region17: #{tpu_custom_call.1} parent=11 // pred_check
        %p313 = pneg %p99
      $region18: #{tpu_custom_call.1} parent=11 // pred_check_branch
        %315 = sbr.rel (%p313) target = $region20
      $region19: #{tpu_custom_call.1} parent=11 // pred_region
        _
      $region20: #{tpu_custom_call.1} parent=11 // pred_fallthru
        _
      // Predicated region
      $region21: #{tpu_custom_call.1} parent=11 // pred_check
        %p316 = pneg %p120
      $region22: #{tpu_custom_call.1} parent=11 // pred_check_branch
        %318 = sbr.rel (%p316) target = $region24
      $region23: #{tpu_custom_call.1} parent=11 // pred_region
        _
      $region24: #{tpu_custom_call.1} parent=11 // pred_fallthru
        _
      // Predicated region
      $region25: #{tpu_custom_call.1} parent=11 // pred_check
        %p319 = pneg %p141
      $region26: #{tpu_custom_call.1} parent=11 // pred_check_branch
        %321 = sbr.rel (%p319) target = $region28
      $region27: #{tpu_custom_call.1} parent=11 // pred_region
        _
      $region28: #{tpu_custom_call.1} parent=11 // pred_fallthru
        _
      // Predicated region
      $region29: #{tpu_custom_call.1} parent=11 // pred_check
        %p322 = pneg %p162
      $region30: #{tpu_custom_call.1} parent=11 // pred_check_branch
        %324 = sbr.rel (%p322) target = $region32
      $region31: #{tpu_custom_call.1} parent=11 // pred_region
        _
      $region32: #{tpu_custom_call.1} parent=11 // pred_fallthru
        _
      // Predicated region
      $region33: #{tpu_custom_call.1} parent=11 // pred_check
        %p325 = pneg %p183
      $region34: #{tpu_custom_call.1} parent=11 // pred_check_branch
        %327 = sbr.rel (%p325) target = $region36
      $region35: #{tpu_custom_call.1} parent=11 // pred_region
        _
      $region36: #{tpu_custom_call.1} parent=11 // pred_fallthru
        _
      // Predicated region
      $region37: #{tpu_custom_call.1} parent=11 // pred_check
        %p328 = pneg %p204
      $region38: #{tpu_custom_call.1} parent=11 // pred_check_branch
        %330 = sbr.rel (%p328) target = $region40
      $region39: #{tpu_custom_call.1} parent=11 // pred_region
        _
      $region40: #{tpu_custom_call.1} parent=11 // pred_fallthru
        _
      // Predicated region
      $region41: #{tpu_custom_call.1} parent=11 // pred_check
        %p331 = pneg %p225
      $region42: #{tpu_custom_call.1} parent=11 // pred_check_branch
        %333 = sbr.rel (%p331) target = $region44
      $region43: #{tpu_custom_call.1} parent=11 // pred_region
        _
      $region44: #{tpu_custom_call.1} parent=11 // pred_fallthru
        _
      // Predicated region
      $region45: #{tpu_custom_call.1} parent=11 // pred_check
        %p334 = pneg %p246
      $region46: #{tpu_custom_call.1} parent=11 // pred_check_branch
        %336 = sbr.rel (%p334) target = $region48
      $region47: #{tpu_custom_call.1} parent=11 // pred_region
        _
      $region48: #{tpu_custom_call.1} parent=11 // pred_fallthru
        _
      // Predicated region
      $region49: #{tpu_custom_call.1} parent=11 // pred_check
        %p337 = pneg %p267
      $region50: #{tpu_custom_call.1} parent=11 // pred_check_branch
        %339 = sbr.rel (%p337) target = $region52
      $region51: #{tpu_custom_call.1} parent=11 // pred_region
        _
      $region52: #{tpu_custom_call.1} parent=11 // pred_fallthru
        _
    $region12: #{tpu_custom_call.1} parent=5 // pred_fallthru
      _
    %p340 = scmp.lt.s32.totalorder %s17, 2
    // Predicated region
    $region53: #{tpu_custom_call.1} parent=5 // pred_check
      %p341 = pneg %p340
    $region54: #{tpu_custom_call.1} parent=5 // pred_check_branch
      %343 = sbr.rel (%p341) target = $region56
    $region55: #{tpu_custom_call.1} parent=5 // pred_region
      // Predicated region
      $region57: #{tpu_custom_call.1} parent=55 // pred_check
        %p344 = pneg %p51
      $region58: #{tpu_custom_call.1} parent=55 // pred_check_branch
        %346 = sbr.rel (%p344) target = $region60
      $region59: #{tpu_custom_call.1} parent=55 // pred_region
        %p347 = scmp.lt.s32.totalorder %s24, 1
        %s348 = scalar_select %p347, %s24, 1
        %p349 = scmp.lt.s32.totalorder %s25, 0
        %s350 = scalar_select %p349, %s25, 0
        %s351 = smul.addr %s350, 40
        %s352 = smul.addr %s348, 40
        %s353 = sadd.s32 %s351, %s352
        %s354 = smul.addr %s353, 8
        %s355 = scalar_lea.vmem %s0, %s354
      $region60: #{tpu_custom_call.1} parent=55 // pred_fallthru
        _
    $region56: #{tpu_custom_call.1} parent=5 // pred_fallthru
      _
    %p356 = scmp.le.s32.totalorder 1, %s17
    %p357 = scmp.lt.s32.totalorder %s17, 3
    %p358 = pnand %p356, %p357
    %p359 = pneg %p358
    // Predicated region
    $region61: #{tpu_custom_call.1} parent=5 // pred_check
      _
    $region62: #{tpu_custom_call.1} parent=5 // pred_check_branch
      %361 = sbr.rel (%p358) target = $region64
    $region63: #{tpu_custom_call.1} parent=5 // pred_region
      %s362 = ssub.s32 %s17, 1
      %p363 = scmp.lt.s32.totalorder %s26, 1
      %s364 = scalar_select %p363, %s26, 1
      %p365 = scmp.lt.s32.totalorder %s27, 0
      %s366 = scalar_select %p365, %s27, 0
      %s367 = smul.addr %s366, 40
      %s368 = smul.addr %s364, 40
      %s369 = sadd.s32 %s367, %s368
      %s370 = smul.addr %s369, 8
      %s371 = scalar_lea.vmem %s0, %s370
      %p372 = pneg %p57
      %p373 = pneg %p54
      %p374 = pneg %p78
      %p375 = pneg %p75
      %p376 = pneg %p99
      %p377 = pneg %p96
      %p378 = pneg %p120
      %p379 = pneg %p117
      %p380 = pneg %p141
      %p381 = pneg %p138
      %p382 = pneg %p162
      %p383 = pneg %p159
      %p384 = pneg %p183
      %p385 = pneg %p180
      %p386 = pneg %p204
      %p387 = pneg %p201
      %p388 = pneg %p225
      %p389 = pneg %p222
      %p390 = pneg %p246
      %p391 = pneg %p243
      %p392 = pneg %p267
      %p393 = pneg %p264
      %p394 = pneg %p295
      %p395 = pneg %p292
      %s396 = smul.u32 32, %s27
      %p397 = scmp.lt.s32.totalorder %s26, 1
      %s398 = scalar_select %p397, %s26, 1
      %p399 = scmp.lt.s32.totalorder %s396, 31
      %s400 = scalar_select %p399, %s396, 31
      %s401 = smul.addr %s398, 32
      %s402 = sadd.s32 %s400, %s401
      %s403 = smul.addr %s402, 8
      %s404 = scalar_lea.vmem %s11, %s403
      %p405 = scmp.lt.s32.totalorder %s26, 1
      %s406 = scalar_select %p405, %s26, 1
      %p407 = scmp.lt.s32.totalorder %s27, 0
      %s408 = scalar_select %p407, %s27, 0
      %s409 = smul.addr %s408, 40
      %s410 = smul.addr %s406, 40
      %s411 = sadd.s32 %s409, %s410
      %s412 = smul.addr %s411, 8
      %s413 = scalar_lea.vmem %s0, %s412
      %s414 = smul.u32 32, %s27
      %p415 = scmp.lt.s32.totalorder %s26, 1
      %s416 = scalar_select %p415, %s26, 1
      %p417 = scmp.lt.s32.totalorder %s414, 31
      %s418 = scalar_select %p417, %s414, 31
      %s419 = smul.addr %s416, 32
      %s420 = sadd.s32 %s418, %s419
      %s421 = smul.addr %s420, 8
      %s422 = scalar_lea.vmem %s11, %s421
      %s423 = smul.u32 32, %s27
      %v424 = vld [vmem:[%s413] sm:$0xff]
      %v425 = vld [vmem:[%s413 + $0x8] sm:$0xff]
      %v426 = vld [vmem:[%s413 + $0x10] sm:$0xff]
      %v427 = vld [vmem:[%s413 + $0x18] sm:$0xff]
      %v428 = vld [vmem:[%s413 + $0x20] sm:$0xff]
      %v429 = vld [vmem:[%s413 + $0x28] sm:$0xff]
      %v430 = vld [vmem:[%s413 + $0x30] sm:$0xff]
      %v431 = vld [vmem:[%s413 + $0x38] sm:$0xff]
      %v432 = vld [vmem:[%s413 + $0x40] sm:$0xff]
      %v433 = vld [vmem:[%s413 + $0x48] sm:$0xff]
      %v434 = vld [vmem:[%s413 + $0x50] sm:$0xff]
      %v435 = vld [vmem:[%s413 + $0x58] sm:$0xff]
      %v436 = vld [vmem:[%s413 + $0x60] sm:$0xff]
      %v437 = vld [vmem:[%s413 + $0x68] sm:$0xff]
      %v438 = vld [vmem:[%s413 + $0x70] sm:$0xff]
      %v439 = vld [vmem:[%s413 + $0x78] sm:$0xff]
      %v440 = vld [vmem:[%s413 + $0x80] sm:$0xff]
      %v441 = vld [vmem:[%s413 + $0x88] sm:$0xff]
      %v442 = vld [vmem:[%s413 + $0x90] sm:$0xff]
      %v443 = vld [vmem:[%s413 + $0x98] sm:$0xff]
      %v444 = vld [vmem:[%s413 + $0xa0] sm:$0xff]
      %v445 = vld [vmem:[%s413 + $0xa8] sm:$0xff]
      %v446 = vld [vmem:[%s413 + $0xb0] sm:$0xff]
      %v447 = vld [vmem:[%s413 + $0xb8] sm:$0xff]
      %v448 = vld [vmem:[%s413 + $0xc0] sm:$0xff]
      %v449 = vld [vmem:[%s413 + $0xc8] sm:$0xff]
      %v450 = vld [vmem:[%s413 + $0xd0] sm:$0xff]
      %v451 = vld [vmem:[%s413 + $0xd8] sm:$0xff]
      %v452 = vld [vmem:[%s413 + $0xe0] sm:$0xff]
      %v453 = vld [vmem:[%s413 + $0xe8] sm:$0xff]
      %v454 = vld [vmem:[%s413 + $0xf0] sm:$0xff]
      %v455 = vld [vmem:[%s413 + $0xf8] sm:$0xff]
      %v456 = vld [vmem:[%s413 + $0x100] sm:$0xff]
      %v457 = vld [vmem:[%s413 + $0x108] sm:$0xff]
      %v458 = vld [vmem:[%s413 + $0x110] sm:$0xff]
      %v459 = vld [vmem:[%s413 + $0x118] sm:$0xff]
      %v460 = vld [vmem:[%s413 + $0x120] sm:$0xff]
      %v461 = vld [vmem:[%s413 + $0x128] sm:$0xff]
      %v462 = vld [vmem:[%s413 + $0x130] sm:$0xff]
      %v463 = vld [vmem:[%s413 + $0x138] sm:$0xff]
      %v464 = vld [vmem:[%s1] sm:$0xff]
      %v465 = vld [vmem:[%s2] sm:$0x1]
      %v467 = vperm.slane %v465, 0
      %vm469 = vcmask 64512
      %v471 = vsel %vm469, %v424, 0
      %v474 = vsel %vm469, %v425, 0
      %v477 = vsel %vm469, %v426, 0
      %v480 = vsel %vm469, %v427, 0
      %v483 = vsel %vm469, %v428, 0
      %v486 = vsel %vm469, %v429, 0
      %v489 = vsel %vm469, %v430, 0
      %v492 = vsel %vm469, %v431, 0
      %v495 = vsel %vm469, %v432, 0
      %v498 = vsel %vm469, %v433, 0
      %v501 = vsel %vm469, %v434, 0
      %v504 = vsel %vm469, %v435, 0
      %v507 = vsel %vm469, %v436, 0
      %v510 = vsel %vm469, %v437, 0
      %v513 = vsel %vm469, %v438, 0
      %v516 = vsel %vm469, %v439, 0
      %v519 = vsel %vm469, %v440, 0
      %v522 = vsel %vm469, %v441, 0
      %v525 = vsel %vm469, %v442, 0
      %v528 = vsel %vm469, %v443, 0
      %v531 = vsel %vm469, %v444, 0
      %v534 = vsel %vm469, %v445, 0
      %v537 = vsel %vm469, %v446, 0
      %v540 = vsel %vm469, %v447, 0
      %v543 = vsel %vm469, %v448, 0
      %v546 = vsel %vm469, %v449, 0
      %v549 = vsel %vm469, %v450, 0
      %v552 = vsel %vm469, %v451, 0
      %v555 = vsel %vm469, %v452, 0
      %v558 = vsel %vm469, %v453, 0
      %v561 = vsel %vm469, %v454, 0
      %v564 = vsel %vm469, %v455, 0
      %v567 = vsel %vm469, %v456, 0
      %v570 = vsel %vm469, %v457, 0
      %v573 = vsel %vm469, %v458, 0
      %v576 = vsel %vm469, %v459, 0
      %v579 = vsel %vm469, %v460, 0
      %v582 = vsel %vm469, %v461, 0
      %v585 = vsel %vm469, %v462, 0
      %v588 = vsel %vm469, %v463, 0
      %590 = vmatpush.msra.mxu0 0.0
      %591 = vmatpush.msra.mxu0 0.0
      %592 = vmatpush.msra.mxu0 0.0
      %593 = vmatpush.msra.mxu0 0.0
      %594 = vmatpush.msra.mxu0 0.0
      %595 = vmatpush.msra.mxu0 0.0
      %596 = vmatpush.msra.mxu0 0.0
      %597 = vmatpush.msra.mxu0 0.0
      %598 = vmatpush.msra.mxu0 0.0
      %599 = vmatpush.msra.mxu0 0.0
      %600 = vmatpush.msra.mxu0 0.0
      %601 = vmatpush.msra.mxu0 0.0
      %602 = vmatpush.msra.mxu0 0.0
      %603 = vmatpush.msra.mxu0 0.0
      %604 = vmatpush.msra.mxu0 0.0
      %605 = vmatpush.msra.mxu0 %v464
      %606 = vmatmul.f32.gmra.mxu0 %v471
      %v607 = vpop.f32.mrf.mxu0
      %v608 = vadd.f32 %v467, %v607
      %609 = vmatmul.f32.gmra.mxu0 %v474
      %v610 = vpop.f32.mrf.mxu0
      %v611 = vadd.f32 %v467, %v610
      %612 = vmatmul.f32.gmra.mxu0 %v477
      %v613 = vpop.f32.mrf.mxu0
      %v614 = vadd.f32 %v467, %v613
      %615 = vmatmul.f32.gmra.mxu0 %v480
      %v616 = vpop.f32.mrf.mxu0
      %v617 = vadd.f32 %v467, %v616
      %618 = vmatmul.f32.gmra.mxu0 %v483
      %v619 = vpop.f32.mrf.mxu0
      %v620 = vadd.f32 %v467, %v619
      %621 = vmatmul.f32.gmra.mxu0 %v486
      %v622 = vpop.f32.mrf.mxu0
      %v623 = vadd.f32 %v467, %v622
      %624 = vmatmul.f32.gmra.mxu0 %v489
      %v625 = vpop.f32.mrf.mxu0
      %v626 = vadd.f32 %v467, %v625
      %627 = vmatmul.f32.gmra.mxu0 %v492
      %v628 = vpop.f32.mrf.mxu0
      %v629 = vadd.f32 %v467, %v628
      %630 = vmatmul.f32.gmra.mxu0 %v495
      %v631 = vpop.f32.mrf.mxu0
      %v632 = vadd.f32 %v467, %v631
      %633 = vmatmul.f32.gmra.mxu0 %v498
      %v634 = vpop.f32.mrf.mxu0
      %v635 = vadd.f32 %v467, %v634
      %636 = vmatmul.f32.gmra.mxu0 %v501
      %v637 = vpop.f32.mrf.mxu0
      %v638 = vadd.f32 %v467, %v637
      %639 = vmatmul.f32.gmra.mxu0 %v504
      %v640 = vpop.f32.mrf.mxu0
      %v641 = vadd.f32 %v467, %v640
      %642 = vmatmul.f32.gmra.mxu0 %v507
      %v643 = vpop.f32.mrf.mxu0
      %v644 = vadd.f32 %v467, %v643
      %645 = vmatmul.f32.gmra.mxu0 %v510
      %v646 = vpop.f32.mrf.mxu0
      %v647 = vadd.f32 %v467, %v646
      %648 = vmatmul.f32.gmra.mxu0 %v513
      %v649 = vpop.f32.mrf.mxu0
      %v650 = vadd.f32 %v467, %v649
      %651 = vmatmul.f32.gmra.mxu0 %v516
      %v652 = vpop.f32.mrf.mxu0
      %v653 = vadd.f32 %v467, %v652
      %654 = vmatmul.f32.gmra.mxu0 %v519
      %v655 = vpop.f32.mrf.mxu0
      %v656 = vadd.f32 %v467, %v655
      %657 = vmatmul.f32.gmra.mxu0 %v522
      %v658 = vpop.f32.mrf.mxu0
      %v659 = vadd.f32 %v467, %v658
      %660 = vmatmul.f32.gmra.mxu0 %v525
      %v661 = vpop.f32.mrf.mxu0
      %v662 = vadd.f32 %v467, %v661
      %663 = vmatmul.f32.gmra.mxu0 %v528
      %v664 = vpop.f32.mrf.mxu0
      %v665 = vadd.f32 %v467, %v664
      %666 = vmatmul.f32.gmra.mxu0 %v531
      %v667 = vpop.f32.mrf.mxu0
      %v668 = vadd.f32 %v467, %v667
      %669 = vmatmul.f32.gmra.mxu0 %v534
      %v670 = vpop.f32.mrf.mxu0
      %v671 = vadd.f32 %v467, %v670
      %672 = vmatmul.f32.gmra.mxu0 %v537
      %v673 = vpop.f32.mrf.mxu0
      %v674 = vadd.f32 %v467, %v673
      %675 = vmatmul.f32.gmra.mxu0 %v540
      %v676 = vpop.f32.mrf.mxu0
      %v677 = vadd.f32 %v467, %v676
      %678 = vmatmul.f32.gmra.mxu0 %v543
      %v679 = vpop.f32.mrf.mxu0
      %v680 = vadd.f32 %v467, %v679
      %681 = vmatmul.f32.gmra.mxu0 %v546
      %v682 = vpop.f32.mrf.mxu0
      %v683 = vadd.f32 %v467, %v682
      %684 = vmatmul.f32.gmra.mxu0 %v549
      %v685 = vpop.f32.mrf.mxu0
      %v686 = vadd.f32 %v467, %v685
      %687 = vmatmul.f32.gmra.mxu0 %v552
      %v688 = vpop.f32.mrf.mxu0
      %v689 = vadd.f32 %v467, %v688
      %690 = vmatmul.f32.gmra.mxu0 %v555
      %v691 = vpop.f32.mrf.mxu0
      %v692 = vadd.f32 %v467, %v691
      %693 = vmatmul.f32.gmra.mxu0 %v558
      %v694 = vpop.f32.mrf.mxu0
      %v695 = vadd.f32 %v467, %v694
      %696 = vmatmul.f32.gmra.mxu0 %v561
      %v697 = vpop.f32.mrf.mxu0
      %v698 = vadd.f32 %v467, %v697
      %699 = vmatmul.f32.gmra.mxu0 %v564
      %v700 = vpop.f32.mrf.mxu0
      %v701 = vadd.f32 %v467, %v700
      %702 = vmatmul.f32.gmra.mxu0 %v567
      %v703 = vpop.f32.mrf.mxu0
      %v704 = vadd.f32 %v467, %v703
      %705 = vmatmul.f32.gmra.mxu0 %v570
      %v706 = vpop.f32.mrf.mxu0
      %v707 = vadd.f32 %v467, %v706
      %708 = vmatmul.f32.gmra.mxu0 %v573
      %v709 = vpop.f32.mrf.mxu0
      %v710 = vadd.f32 %v467, %v709
      %711 = vmatmul.f32.gmra.mxu0 %v576
      %v712 = vpop.f32.mrf.mxu0
      %v713 = vadd.f32 %v467, %v712
      %714 = vmatmul.f32.gmra.mxu0 %v579
      %v715 = vpop.f32.mrf.mxu0
      %v716 = vadd.f32 %v467, %v715
      %717 = vmatmul.f32.gmra.mxu0 %v582
      %v718 = vpop.f32.mrf.mxu0
      %v719 = vadd.f32 %v467, %v718
      %720 = vmatmul.f32.gmra.mxu0 %v585
      %v721 = vpop.f32.mrf.mxu0
      %v722 = vadd.f32 %v467, %v721
      %723 = vmatmul.f32.gmra.mxu0 %v588
      %v724 = vpop.f32.mrf.mxu0
      %v725 = vadd.f32 %v467, %v724
      %726 = vdwg.mxu0
      %v727 = vmul.f32 %v608, 0.5
      %v728 = vmul.f32 %v611, 0.5
      %v729 = vmul.f32 %v614, 0.5
      %v730 = vmul.f32 %v617, 0.5
      %v731 = vmul.f32 %v620, 0.5
      %v732 = vmul.f32 %v623, 0.5
      %v733 = vmul.f32 %v626, 0.5
      %v734 = vmul.f32 %v629, 0.5
      %v735 = vmul.f32 %v632, 0.5
      %v736 = vmul.f32 %v635, 0.5
      %v737 = vmul.f32 %v638, 0.5
      %v738 = vmul.f32 %v641, 0.5
      %v739 = vmul.f32 %v644, 0.5
      %v740 = vmul.f32 %v647, 0.5
      %v741 = vmul.f32 %v650, 0.5
      %v742 = vmul.f32 %v653, 0.5
      %v743 = vmul.f32 %v656, 0.5
      %v744 = vmul.f32 %v659, 0.5
      %v745 = vmul.f32 %v662, 0.5
      %v746 = vmul.f32 %v665, 0.5
      %v747 = vmul.f32 %v668, 0.5
      %v748 = vmul.f32 %v671, 0.5
      %v749 = vmul.f32 %v674, 0.5
      %v750 = vmul.f32 %v677, 0.5
      %v751 = vmul.f32 %v680, 0.5
      %v752 = vmul.f32 %v683, 0.5
      %v753 = vmul.f32 %v686, 0.5
      %v754 = vmul.f32 %v689, 0.5
      %v755 = vmul.f32 %v692, 0.5
      %v756 = vmul.f32 %v695, 0.5
      %v757 = vmul.f32 %v698, 0.5
      %v758 = vmul.f32 %v701, 0.5
      %v759 = vmul.f32 %v704, 0.5
      %v760 = vmul.f32 %v707, 0.5
      %v761 = vmul.f32 %v710, 0.5
      %v762 = vmul.f32 %v713, 0.5
      %v763 = vmul.f32 %v716, 0.5
      %v764 = vmul.f32 %v719, 0.5
      %v765 = vmul.f32 %v722, 0.5
      %v766 = vmul.f32 %v725, 0.5
      %v767 = vtanh.pop %v727
      %v768 = vtanh.pop %v728
      %v769 = vtanh.pop %v729
      %v770 = vtanh.pop %v730
      %v771 = vtanh.pop %v731
      %v772 = vtanh.pop %v732
      %v773 = vtanh.pop %v733
      %v774 = vtanh.pop %v734
      %v775 = vtanh.pop %v735
      %v776 = vtanh.pop %v736
      %v777 = vtanh.pop %v737
      %v778 = vtanh.pop %v738
      %v779 = vtanh.pop %v739
      %v780 = vtanh.pop %v740
      %v781 = vtanh.pop %v741
      %v782 = vtanh.pop %v742
      %v783 = vtanh.pop %v743
      %v784 = vtanh.pop %v744
      %v785 = vtanh.pop %v745
      %v786 = vtanh.pop %v746
      %v787 = vtanh.pop %v747
      %v788 = vtanh.pop %v748
      %v789 = vtanh.pop %v749
      %v790 = vtanh.pop %v750
      %v791 = vtanh.pop %v751
      %v792 = vtanh.pop %v752
      %v793 = vtanh.pop %v753
      %v794 = vtanh.pop %v754
      %v795 = vtanh.pop %v755
      %v796 = vtanh.pop %v756
      %v797 = vtanh.pop %v757
      %v798 = vtanh.pop %v758
      %v799 = vtanh.pop %v759
      %v800 = vtanh.pop %v760
      %v801 = vtanh.pop %v761
      %v802 = vtanh.pop %v762
      %v803 = vtanh.pop %v763
      %v804 = vtanh.pop %v764
      %v805 = vtanh.pop %v765
      %v806 = vtanh.pop %v766
      %v807 = vmul.f32 %v767, 0.5
      %v808 = vmul.f32 %v768, 0.5
      %v809 = vmul.f32 %v769, 0.5
      %v810 = vmul.f32 %v770, 0.5
      %v811 = vmul.f32 %v771, 0.5
      %v812 = vmul.f32 %v772, 0.5
      %v813 = vmul.f32 %v773, 0.5
      %v814 = vmul.f32 %v774, 0.5
      %v815 = vmul.f32 %v775, 0.5
      %v816 = vmul.f32 %v776, 0.5
      %v817 = vmul.f32 %v777, 0.5
      %v818 = vmul.f32 %v778, 0.5
      %v819 = vmul.f32 %v779, 0.5
      %v820 = vmul.f32 %v780, 0.5
      %v821 = vmul.f32 %v781, 0.5
      %v822 = vmul.f32 %v782, 0.5
      %v823 = vmul.f32 %v783, 0.5
      %v824 = vmul.f32 %v784, 0.5
      %v825 = vmul.f32 %v785, 0.5
      %v826 = vmul.f32 %v786, 0.5
      %v827 = vmul.f32 %v787, 0.5
      %v828 = vmul.f32 %v788, 0.5
      %v829 = vmul.f32 %v789, 0.5
      %v830 = vmul.f32 %v790, 0.5
      %v831 = vmul.f32 %v791, 0.5
      %v832 = vmul.f32 %v792, 0.5
      %v833 = vmul.f32 %v793, 0.5
      %v834 = vmul.f32 %v794, 0.5
      %v835 = vmul.f32 %v795, 0.5
      %v836 = vmul.f32 %v796, 0.5
      %v837 = vmul.f32 %v797, 0.5
      %v838 = vmul.f32 %v798, 0.5
      %v839 = vmul.f32 %v799, 0.5
      %v840 = vmul.f32 %v800, 0.5
      %v841 = vmul.f32 %v801, 0.5
      %v842 = vmul.f32 %v802, 0.5
      %v843 = vmul.f32 %v803, 0.5
      %v844 = vmul.f32 %v804, 0.5
      %v845 = vmul.f32 %v805, 0.5
      %v846 = vmul.f32 %v806, 0.5
      %v847 = vadd.f32 %v807, 0.5
      %v848 = vadd.f32 %v808, 0.5
      %v849 = vadd.f32 %v809, 0.5
      %v850 = vadd.f32 %v810, 0.5
      %v851 = vadd.f32 %v811, 0.5
      %v852 = vadd.f32 %v812, 0.5
      %v853 = vadd.f32 %v813, 0.5
      %v854 = vadd.f32 %v814, 0.5
      %v855 = vadd.f32 %v815, 0.5
      %v856 = vadd.f32 %v816, 0.5
      %v857 = vadd.f32 %v817, 0.5
      %v858 = vadd.f32 %v818, 0.5
      %v859 = vadd.f32 %v819, 0.5
      %v860 = vadd.f32 %v820, 0.5
      %v861 = vadd.f32 %v821, 0.5
      %v862 = vadd.f32 %v822, 0.5
      %v863 = vadd.f32 %v823, 0.5
      %v864 = vadd.f32 %v824, 0.5
      %v865 = vadd.f32 %v825, 0.5
      %v866 = vadd.f32 %v826, 0.5
      %v867 = vadd.f32 %v827, 0.5
      %v868 = vadd.f32 %v828, 0.5
      %v869 = vadd.f32 %v829, 0.5
      %v870 = vadd.f32 %v830, 0.5
      %v871 = vadd.f32 %v831, 0.5
      %v872 = vadd.f32 %v832, 0.5
      %v873 = vadd.f32 %v833, 0.5
      %v874 = vadd.f32 %v834, 0.5
      %v875 = vadd.f32 %v835, 0.5
      %v876 = vadd.f32 %v836, 0.5
      %v877 = vadd.f32 %v837, 0.5
      %v878 = vadd.f32 %v838, 0.5
      %v879 = vadd.f32 %v839, 0.5
      %v880 = vadd.f32 %v840, 0.5
      %v881 = vadd.f32 %v841, 0.5
      %v882 = vadd.f32 %v842, 0.5
      %v883 = vadd.f32 %v843, 0.5
      %v884 = vadd.f32 %v844, 0.5
      %v885 = vadd.f32 %v845, 0.5
      %v886 = vadd.f32 %v846, 0.5
      %v887 = vmul.f32 %v608, %v847
      %v888 = vmul.f32 %v611, %v848
      %v889 = vmul.f32 %v614, %v849
      %v890 = vmul.f32 %v617, %v850
      %v891 = vmul.f32 %v620, %v851
      %v892 = vmul.f32 %v623, %v852
      %v893 = vmul.f32 %v626, %v853
      %v894 = vmul.f32 %v629, %v854
      %v895 = vmul.f32 %v632, %v855
      %v896 = vmul.f32 %v635, %v856
      %v897 = vmul.f32 %v638, %v857
      %v898 = vmul.f32 %v641, %v858
      %v899 = vmul.f32 %v644, %v859
      %v900 = vmul.f32 %v647, %v860
      %v901 = vmul.f32 %v650, %v861
      %v902 = vmul.f32 %v653, %v862
      %v903 = vmul.f32 %v656, %v863
      %v904 = vmul.f32 %v659, %v864
      %v905 = vmul.f32 %v662, %v865
      %v906 = vmul.f32 %v665, %v866
      %v907 = vmul.f32 %v668, %v867
      %v908 = vmul.f32 %v671, %v868
      %v909 = vmul.f32 %v674, %v869
      %v910 = vmul.f32 %v677, %v870
      %v911 = vmul.f32 %v680, %v871
      %v912 = vmul.f32 %v683, %v872
      %v913 = vmul.f32 %v686, %v873
      %v914 = vmul.f32 %v689, %v874
      %v915 = vmul.f32 %v692, %v875
      %v916 = vmul.f32 %v695, %v876
      %v917 = vmul.f32 %v698, %v877
      %v918 = vmul.f32 %v701, %v878
      %v919 = vmul.f32 %v704, %v879
      %v920 = vmul.f32 %v707, %v880
      %v921 = vmul.f32 %v710, %v881
      %v922 = vmul.f32 %v713, %v882
      %v923 = vmul.f32 %v716, %v883
      %v924 = vmul.f32 %v719, %v884
      %v925 = vmul.f32 %v722, %v885
      %v926 = vmul.f32 %v725, %v886
      %s927 = smul.u32 %s27, 16
      %v928 = vstv %s927
      %v929 = vadd.s32 %v928, 1
      %v930 = vadd.s32 %v928, 2
      %v931 = vadd.s32 %v928, 3
      %v932 = vadd.s32 %v928, 4
      %v933 = vadd.s32 %v928, 5
      %v934 = vadd.s32 %v928, 6
      %v935 = vadd.s32 %v928, 7
      %v936 = vadd.s32 %v928, 8
      %v937 = vadd.s32 %v928, 9
      %v938 = vadd.s32 %v928, 10
      %v939 = vadd.s32 %v928, 11
      %v940 = vadd.s32 %v928, 12
      %v941 = vadd.s32 %v928, 13
      %v942 = vadd.s32 %v928, 14
      %v943 = vadd.s32 %v928, 15
      %v944 = vadd.s32 %v928, 16
      %v945 = vadd.s32 %v928, 17
      %v946 = vadd.s32 %v928, 18
      %v947 = vadd.s32 %v928, 19
      %vm948 = vcmp.ge.s32.totalorder %v928, 2
      %vm949 = vcmp.ge.s32.totalorder %v929, 2
      %vm950 = vcmp.ge.s32.totalorder %v930, 2
      %vm951 = vcmp.ge.s32.totalorder %v931, 2
      %vm952 = vcmp.ge.s32.totalorder %v932, 2
      %vm953 = vcmp.ge.s32.totalorder %v933, 2
      %vm954 = vcmp.ge.s32.totalorder %v934, 2
      %vm955 = vcmp.ge.s32.totalorder %v935, 2
      %vm956 = vcmp.ge.s32.totalorder %v936, 2
      %vm957 = vcmp.ge.s32.totalorder %v937, 2
      %vm958 = vcmp.ge.s32.totalorder %v938, 2
      %vm959 = vcmp.ge.s32.totalorder %v939, 2
      %vm960 = vcmp.ge.s32.totalorder %v940, 2
      %vm961 = vcmp.ge.s32.totalorder %v941, 2
      %vm962 = vcmp.ge.s32.totalorder %v942, 2
      %vm963 = vcmp.ge.s32.totalorder %v943, 2
      %vm964 = vcmp.ge.s32.totalorder %v944, 2
      %vm965 = vcmp.ge.s32.totalorder %v945, 2
      %vm966 = vcmp.ge.s32.totalorder %v946, 2
      %vm967 = vcmp.ge.s32.totalorder %v947, 2
      %vm968 = vcmp.lt.s32.totalorder %v928, 18
      %vm969 = vcmp.lt.s32.totalorder %v929, 18
      %vm970 = vcmp.lt.s32.totalorder %v930, 18
      %vm971 = vcmp.lt.s32.totalorder %v931, 18
      %vm972 = vcmp.lt.s32.totalorder %v932, 18
      %vm973 = vcmp.lt.s32.totalorder %v933, 18
      %vm974 = vcmp.lt.s32.totalorder %v934, 18
      %vm975 = vcmp.lt.s32.totalorder %v935, 18
      %vm976 = vcmp.lt.s32.totalorder %v936, 18
      %vm977 = vcmp.lt.s32.totalorder %v937, 18
      %vm978 = vcmp.lt.s32.totalorder %v938, 18
      %vm979 = vcmp.lt.s32.totalorder %v939, 18
      %vm980 = vcmp.lt.s32.totalorder %v940, 18
      %vm981 = vcmp.lt.s32.totalorder %v941, 18
      %vm982 = vcmp.lt.s32.totalorder %v942, 18
      %vm983 = vcmp.lt.s32.totalorder %v943, 18
      %vm984 = vcmp.lt.s32.totalorder %v944, 18
      %vm985 = vcmp.lt.s32.totalorder %v945, 18
      %vm986 = vcmp.lt.s32.totalorder %v946, 18
      %vm987 = vcmp.lt.s32.totalorder %v947, 18
      %vm988 = vmand %vm948, %vm968
      %vm989 = vmand %vm949, %vm969
      %vm990 = vmand %vm950, %vm970
      %vm991 = vmand %vm951, %vm971
      %vm992 = vmand %vm952, %vm972
      %vm993 = vmand %vm953, %vm973
      %vm994 = vmand %vm954, %vm974
      %vm995 = vmand %vm955, %vm975
      %vm996 = vmand %vm956, %vm976
      %vm997 = vmand %vm957, %vm977
      %vm998 = vmand %vm958, %vm978
      %vm999 = vmand %vm959, %vm979
      %vm1000 = vmand %vm960, %vm980
      %vm1001 = vmand %vm961, %vm981
      %vm1002 = vmand %vm962, %vm982
      %vm1003 = vmand %vm963, %vm983
      %vm1004 = vmand %vm964, %vm984
      %vm1005 = vmand %vm965, %vm985
      %vm1006 = vmand %vm966, %vm986
      %vm1007 = vmand %vm967, %vm987
      %v1008 = vsel %vm988, 1, 0
      %v1009 = vsel %vm989, 1, 0
      %v1010 = vsel %vm990, 1, 0
      %v1011 = vsel %vm991, 1, 0
      %v1012 = vsel %vm992, 1, 0
      %v1013 = vsel %vm993, 1, 0
      %v1014 = vsel %vm994, 1, 0
      %v1015 = vsel %vm995, 1, 0
      %v1016 = vsel %vm996, 1, 0
      %v1017 = vsel %vm997, 1, 0
      %v1018 = vsel %vm998, 1, 0
      %v1019 = vsel %vm999, 1, 0
      %v1020 = vsel %vm1000, 1, 0
      %v1021 = vsel %vm1001, 1, 0
      %v1022 = vsel %vm1002, 1, 0
      %v1023 = vsel %vm1003, 1, 0
      %v1024 = vsel %vm1004, 1, 0
      %v1025 = vsel %vm1005, 1, 0
      %v1026 = vsel %vm1006, 1, 0
      %v1027 = vsel %vm1007, 1, 0
      %v1028 = vcvt.s32.f32 %v1008
      %v1029 = vcvt.s32.f32 %v1009
      %v1030 = vcvt.s32.f32 %v1010
      %v1031 = vcvt.s32.f32 %v1011
      %v1032 = vcvt.s32.f32 %v1012
      %v1033 = vcvt.s32.f32 %v1013
      %v1034 = vcvt.s32.f32 %v1014
      %v1035 = vcvt.s32.f32 %v1015
      %v1036 = vcvt.s32.f32 %v1016
      %v1037 = vcvt.s32.f32 %v1017
      %v1038 = vcvt.s32.f32 %v1018
      %v1039 = vcvt.s32.f32 %v1019
      %v1040 = vcvt.s32.f32 %v1020
      %v1041 = vcvt.s32.f32 %v1021
      %v1042 = vcvt.s32.f32 %v1022
      %v1043 = vcvt.s32.f32 %v1023
      %v1044 = vcvt.s32.f32 %v1024
      %v1045 = vcvt.s32.f32 %v1025
      %v1046 = vcvt.s32.f32 %v1026
      %v1047 = vcvt.s32.f32 %v1027
      %v1048 = vmul.f32 %v887, %v1028
      %v1049 = vmul.f32 %v888, %v1028
      %v1050 = vmul.f32 %v889, %v1029
      %v1051 = vmul.f32 %v890, %v1029
      %v1052 = vmul.f32 %v891, %v1030
      %v1053 = vmul.f32 %v892, %v1030
      %v1054 = vmul.f32 %v893, %v1031
      %v1055 = vmul.f32 %v894, %v1031
      %v1056 = vmul.f32 %v895, %v1032
      %v1057 = vmul.f32 %v896, %v1032
      %v1058 = vmul.f32 %v897, %v1033
      %v1059 = vmul.f32 %v898, %v1033
      %v1060 = vmul.f32 %v899, %v1034
      %v1061 = vmul.f32 %v900, %v1034
      %v1062 = vmul.f32 %v901, %v1035
      %v1063 = vmul.f32 %v902, %v1035
      %v1064 = vmul.f32 %v903, %v1036
      %v1065 = vmul.f32 %v904, %v1036
      %v1066 = vmul.f32 %v905, %v1037
      %v1067 = vmul.f32 %v906, %v1037
      %v1068 = vmul.f32 %v907, %v1038
      %v1069 = vmul.f32 %v908, %v1038
      %v1070 = vmul.f32 %v909, %v1039
      %v1071 = vmul.f32 %v910, %v1039
      %v1072 = vmul.f32 %v911, %v1040
      %v1073 = vmul.f32 %v912, %v1040
      %v1074 = vmul.f32 %v913, %v1041
      %v1075 = vmul.f32 %v914, %v1041
      %v1076 = vmul.f32 %v915, %v1042
      %v1077 = vmul.f32 %v916, %v1042
      %v1078 = vmul.f32 %v917, %v1043
      %v1079 = vmul.f32 %v918, %v1043
      %v1080 = vmul.f32 %v919, %v1044
      %v1081 = vmul.f32 %v920, %v1044
      %v1082 = vmul.f32 %v921, %v1045
      %v1083 = vmul.f32 %v922, %v1045
      %v1084 = vmul.f32 %v923, %v1046
      %v1085 = vmul.f32 %v924, %v1046
      %v1086 = vmul.f32 %v925, %v1047
      %v1087 = vmul.f32 %v926, %v1047
      %vm1088 = vcmask 57344
      %1089 = vst.msk [vmem:[#allocation2] sm:$0x1] %vm1088, 0.0
      %1090 = vst.msk [vmem:[#allocation2 + $0x18] sm:$0x1] %vm1088, 0.0
      %1091 = vst.msk [vmem:[#allocation2 + $0x30] sm:$0x1] %vm1088, 0.0
      %1092 = vst.msk [vmem:[#allocation2 + $0x48] sm:$0x1] %vm1088, 0.0
      %1093 = vst.msk [vmem:[#allocation2 + $0x60] sm:$0x1] %vm1088, 0.0
      %1094 = vst.msk [vmem:[#allocation2 + $0x78] sm:$0x1] %vm1088, 0.0
      %1095 = vst.msk [vmem:[#allocation2 + $0x90] sm:$0x1] %vm1088, 0.0
      %1096 = vst.msk [vmem:[#allocation2 + $0xa8] sm:$0x1] %vm1088, 0.0
      %1097 = vst.msk [vmem:[#allocation2 + $0xc0] sm:$0x1] %vm1088, 0.0
      %1098 = vst.msk [vmem:[#allocation2 + $0xd8] sm:$0x1] %vm1088, 0.0
      %1099 = vst.msk [vmem:[#allocation2 + $0xf0] sm:$0x1] %vm1088, 0.0
      %1100 = vst.msk [vmem:[#allocation2 + $0x108] sm:$0x1] %vm1088, 0.0
      %1101 = vst.msk [vmem:[#allocation2 + $0x120] sm:$0x1] %vm1088, 0.0
      %1102 = vst.msk [vmem:[#allocation2 + $0x138] sm:$0x1] %vm1088, 0.0
      %1103 = vst.msk [vmem:[#allocation2 + $0x150] sm:$0x1] %vm1088, 0.0
      %1104 = vst.msk [vmem:[#allocation2 + $0x168] sm:$0x1] %vm1088, 0.0
      %1105 = vst.msk [vmem:[#allocation2 + $0x180] sm:$0x1] %vm1088, 0.0
      %1106 = vst.msk [vmem:[#allocation2 + $0x198] sm:$0x1] %vm1088, 0.0
      %1107 = vst.msk [vmem:[#allocation2 + $0x1b0] sm:$0x1] %vm1088, 0.0
      %1108 = vst.msk [vmem:[#allocation2 + $0x1c8] sm:$0x1] %vm1088, 0.0
      %1109 = vst.msk [vmem:[#allocation2 + $0x11] sm:$0x1] %vm1088, 0.0
      %1110 = vst.msk [vmem:[#allocation2 + $0x29] sm:$0x1] %vm1088, 0.0
      %1111 = vst.msk [vmem:[#allocation2 + $0x41] sm:$0x1] %vm1088, 0.0
      %1112 = vst.msk [vmem:[#allocation2 + $0x59] sm:$0x1] %vm1088, 0.0
      %1113 = vst.msk [vmem:[#allocation2 + $0x71] sm:$0x1] %vm1088, 0.0
      %1114 = vst.msk [vmem:[#allocation2 + $0x89] sm:$0x1] %vm1088, 0.0
      %1115 = vst.msk [vmem:[#allocation2 + $0xa1] sm:$0x1] %vm1088, 0.0
      %1116 = vst.msk [vmem:[#allocation2 + $0xb9] sm:$0x1] %vm1088, 0.0
      %1117 = vst.msk [vmem:[#allocation2 + $0xd1] sm:$0x1] %vm1088, 0.0
      %1118 = vst.msk [vmem:[#allocation2 + $0xe9] sm:$0x1] %vm1088, 0.0
      %1119 = vst.msk [vmem:[#allocation2 + $0x101] sm:$0x1] %vm1088, 0.0
      %1120 = vst.msk [vmem:[#allocation2 + $0x119] sm:$0x1] %vm1088, 0.0
      %1121 = vst.msk [vmem:[#allocation2 + $0x131] sm:$0x1] %vm1088, 0.0
      %1122 = vst.msk [vmem:[#allocation2 + $0x149] sm:$0x1] %vm1088, 0.0
      %1123 = vst.msk [vmem:[#allocation2 + $0x161] sm:$0x1] %vm1088, 0.0
      %1124 = vst.msk [vmem:[#allocation2 + $0x179] sm:$0x1] %vm1088, 0.0
      %1125 = vst.msk [vmem:[#allocation2 + $0x191] sm:$0x1] %vm1088, 0.0
      %1126 = vst.msk [vmem:[#allocation2 + $0x1a9] sm:$0x1] %vm1088, 0.0
      %1127 = vst.msk [vmem:[#allocation2 + $0x1c1] sm:$0x1] %vm1088, 0.0
      %1128 = vst.msk [vmem:[#allocation2 + $0x1d9] sm:$0x1] %vm1088, 0.0
      %1129 = vst.msk [vmem:[#allocation2 + $0x1] sm:$0xff] %vm469, %v1048
      %1130 = vst.msk [vmem:[#allocation2 + $0x9] sm:$0xff] %vm469, %v1049
      %1131 = vst.msk [vmem:[#allocation2 + $0x19] sm:$0xff] %vm469, %v1050
      %1132 = vst.msk [vmem:[#allocation2 + $0x21] sm:$0xff] %vm469, %v1051
      %1133 = vst.msk [vmem:[#allocation2 + $0x31] sm:$0xff] %vm469, %v1052
      %1134 = vst.msk [vmem:[#allocation2 + $0x39] sm:$0xff] %vm469, %v1053
      %1135 = vst.msk [vmem:[#allocation2 + $0x49] sm:$0xff] %vm469, %v1054
      %1136 = vst.msk [vmem:[#allocation2 + $0x51] sm:$0xff] %vm469, %v1055
      %1137 = vst.msk [vmem:[#allocation2 + $0x61] sm:$0xff] %vm469, %v1056
      %1138 = vst.msk [vmem:[#allocation2 + $0x69] sm:$0xff] %vm469, %v1057
      %1139 = vst.msk [vmem:[#allocation2 + $0x79] sm:$0xff] %vm469, %v1058
      %1140 = vst.msk [vmem:[#allocation2 + $0x81] sm:$0xff] %vm469, %v1059
      %1141 = vst.msk [vmem:[#allocation2 + $0x91] sm:$0xff] %vm469, %v1060
      %1142 = vst.msk [vmem:[#allocation2 + $0x99] sm:$0xff] %vm469, %v1061
      %1143 = vst.msk [vmem:[#allocation2 + $0xa9] sm:$0xff] %vm469, %v1062
      %1144 = vst.msk [vmem:[#allocation2 + $0xb1] sm:$0xff] %vm469, %v1063
      %1145 = vst.msk [vmem:[#allocation2 + $0xc1] sm:$0xff] %vm469, %v1064
      %1146 = vst.msk [vmem:[#allocation2 + $0xc9] sm:$0xff] %vm469, %v1065
      %1147 = vst.msk [vmem:[#allocation2 + $0xd9] sm:$0xff] %vm469, %v1066
      %1148 = vst.msk [vmem:[#allocation2 + $0xe1] sm:$0xff] %vm469, %v1067
      %1149 = vst.msk [vmem:[#allocation2 + $0xf1] sm:$0xff] %vm469, %v1068
      %1150 = vst.msk [vmem:[#allocation2 + $0xf9] sm:$0xff] %vm469, %v1069
      %1151 = vst.msk [vmem:[#allocation2 + $0x109] sm:$0xff] %vm469, %v1070
      %1152 = vst.msk [vmem:[#allocation2 + $0x111] sm:$0xff] %vm469, %v1071
      %1153 = vst.msk [vmem:[#allocation2 + $0x121] sm:$0xff] %vm469, %v1072
      %1154 = vst.msk [vmem:[#allocation2 + $0x129] sm:$0xff] %vm469, %v1073
      %1155 = vst.msk [vmem:[#allocation2 + $0x139] sm:$0xff] %vm469, %v1074
      %1156 = vst.msk [vmem:[#allocation2 + $0x141] sm:$0xff] %vm469, %v1075
      %1157 = vst.msk [vmem:[#allocation2 + $0x151] sm:$0xff] %vm469, %v1076
      %1158 = vst.msk [vmem:[#allocation2 + $0x159] sm:$0xff] %vm469, %v1077
      %1159 = vst.msk [vmem:[#allocation2 + $0x169] sm:$0xff] %vm469, %v1078
      %1160 = vst.msk [vmem:[#allocation2 + $0x171] sm:$0xff] %vm469, %v1079
      %1161 = vst.msk [vmem:[#allocation2 + $0x181] sm:$0xff] %vm469, %v1080
      %1162 = vst.msk [vmem:[#allocation2 + $0x189] sm:$0xff] %vm469, %v1081
      %1163 = vst.msk [vmem:[#allocation2 + $0x199] sm:$0xff] %vm469, %v1082
      %1164 = vst.msk [vmem:[#allocation2 + $0x1a1] sm:$0xff] %vm469, %v1083
      %1165 = vst.msk [vmem:[#allocation2 + $0x1b1] sm:$0xff] %vm469, %v1084
      %1166 = vst.msk [vmem:[#allocation2 + $0x1b9] sm:$0xff] %vm469, %v1085
      %1167 = vst.msk [vmem:[#allocation2 + $0x1c9] sm:$0xff] %vm469, %v1086
      %1168 = vst.msk [vmem:[#allocation2 + $0x1d1] sm:$0xff] %vm469, %v1087
      %v1169 = vld [vmem:[%s4] sm:$0x1]
      %v1170 = vld [vmem:[#allocation2] sm:$0xff]
      %v1171 = vld [vmem:[#allocation2 + $0x8] sm:$0xff]
      %v1172 = vld [vmem:[#allocation2 + $0x18] sm:$0xff]
      %v1173 = vld [vmem:[#allocation2 + $0x20] sm:$0xff]
      %v1174 = vld [vmem:[#allocation2 + $0x30] sm:$0xff]
      %v1175 = vld [vmem:[#allocation2 + $0x38] sm:$0xff]
      %v1176 = vld [vmem:[#allocation2 + $0x48] sm:$0xff]
      %v1177 = vld [vmem:[#allocation2 + $0x50] sm:$0xff]
      %v1178 = vld [vmem:[#allocation2 + $0x60] sm:$0xff]
      %v1179 = vld [vmem:[#allocation2 + $0x68] sm:$0xff]
      %v1180 = vld [vmem:[#allocation2 + $0x78] sm:$0xff]
      %v1181 = vld [vmem:[#allocation2 + $0x80] sm:$0xff]
      %v1182 = vld [vmem:[#allocation2 + $0x90] sm:$0xff]
      %v1183 = vld [vmem:[#allocation2 + $0x98] sm:$0xff]
      %v1184 = vld [vmem:[#allocation2 + $0xa8] sm:$0xff]
      %v1185 = vld [vmem:[#allocation2 + $0xb0] sm:$0xff]
      %v1186 = vld [vmem:[#allocation2 + $0xc0] sm:$0xff]
      %v1187 = vld [vmem:[#allocation2 + $0xc8] sm:$0xff]
      %v1188 = vld [vmem:[#allocation2 + $0xd8] sm:$0xff]
      %v1189 = vld [vmem:[#allocation2 + $0xe0] sm:$0xff]
      %v1190 = vld [vmem:[#allocation2 + $0xf0] sm:$0xff]
      %v1191 = vld [vmem:[#allocation2 + $0xf8] sm:$0xff]
      %v1192 = vld [vmem:[#allocation2 + $0x108] sm:$0xff]
      %v1193 = vld [vmem:[#allocation2 + $0x110] sm:$0xff]
      %v1194 = vld [vmem:[#allocation2 + $0x120] sm:$0xff]
      %v1195 = vld [vmem:[#allocation2 + $0x128] sm:$0xff]
      %v1196 = vld [vmem:[#allocation2 + $0x138] sm:$0xff]
      %v1197 = vld [vmem:[#allocation2 + $0x140] sm:$0xff]
      %v1198 = vld [vmem:[#allocation2 + $0x150] sm:$0xff]
      %v1199 = vld [vmem:[#allocation2 + $0x158] sm:$0xff]
      %v1200 = vld [vmem:[#allocation2 + $0x168] sm:$0xff]
      %v1201 = vld [vmem:[#allocation2 + $0x170] sm:$0xff]
      %v1202 = vld [vmem:[#allocation2 + $0x180] sm:$0xff]
      %v1203 = vld [vmem:[#allocation2 + $0x188] sm:$0xff]
      %v1204 = vld [vmem:[#allocation2 + $0x198] sm:$0xff]
      %v1205 = vld [vmem:[#allocation2 + $0x1a0] sm:$0xff]
      %v1206 = vld [vmem:[%s3] sm:$0xff]
      %v1208 = vsel %vm469, %v1170, 0
      %v1211 = vsel %vm469, %v1171, 0
      %v1214 = vsel %vm469, %v1172, 0
      %v1217 = vsel %vm469, %v1173, 0
      %v1220 = vsel %vm469, %v1174, 0
      %v1223 = vsel %vm469, %v1175, 0
      %v1226 = vsel %vm469, %v1176, 0
      %v1229 = vsel %vm469, %v1177, 0
      %v1232 = vsel %vm469, %v1178, 0
      %v1235 = vsel %vm469, %v1179, 0
      %v1238 = vsel %vm469, %v1180, 0
      %v1241 = vsel %vm469, %v1181, 0
      %v1244 = vsel %vm469, %v1182, 0
      %v1247 = vsel %vm469, %v1183, 0
      %v1250 = vsel %vm469, %v1184, 0
      %v1253 = vsel %vm469, %v1185, 0
      %v1256 = vsel %vm469, %v1186, 0
      %v1259 = vsel %vm469, %v1187, 0
      %v1262 = vsel %vm469, %v1188, 0
      %v1265 = vsel %vm469, %v1189, 0
      %v1268 = vsel %vm469, %v1190, 0
      %v1271 = vsel %vm469, %v1191, 0
      %v1274 = vsel %vm469, %v1192, 0
      %v1277 = vsel %vm469, %v1193, 0
      %v1280 = vsel %vm469, %v1194, 0
      %v1283 = vsel %vm469, %v1195, 0
      %v1286 = vsel %vm469, %v1196, 0
      %v1289 = vsel %vm469, %v1197, 0
      %v1292 = vsel %vm469, %v1198, 0
      %v1295 = vsel %vm469, %v1199, 0
      %v1298 = vsel %vm469, %v1200, 0
      %v1301 = vsel %vm469, %v1201, 0
      %v1304 = vsel %vm469, %v1202, 0
      %v1307 = vsel %vm469, %v1203, 0
      %v1310 = vsel %vm469, %v1204, 0
      %v1313 = vsel %vm469, %v1205, 0
      %1315 = vmatpush.msra.mxu0 0.0
      %1316 = vmatpush.msra.mxu0 0.0
      %1317 = vmatpush.msra.mxu0 0.0
      %1318 = vmatpush.msra.mxu0 0.0
      %1319 = vmatpush.msra.mxu0 0.0
      %1320 = vmatpush.msra.mxu0 0.0
      %1321 = vmatpush.msra.mxu0 0.0
      %1322 = vmatpush.msra.mxu0 0.0
      %1323 = vmatpush.msra.mxu0 0.0
      %1324 = vmatpush.msra.mxu0 0.0
      %1325 = vmatpush.msra.mxu0 0.0
      %1326 = vmatpush.msra.mxu0 0.0
      %1327 = vmatpush.msra.mxu0 0.0
      %1328 = vmatpush.msra.mxu0 0.0
      %1329 = vmatpush.msra.mxu0 0.0
      %1330 = vmatpush.msra.mxu0 %v1206
      %1331 = vmatmul.f32.gmra.mxu0 %v1208
      %v1332 = vpop.f32.mrf.mxu0
      %v1333 = vadd.f32 0.0, %v1332
      %1334 = vmatmul.f32.gmra.mxu0 %v1211
      %v1335 = vpop.f32.mrf.mxu0
      %v1336 = vadd.f32 0.0, %v1335
      %1337 = vmatmul.f32.gmra.mxu0 %v1214
      %v1338 = vpop.f32.mrf.mxu0
      %v1339 = vadd.f32 0.0, %v1338
      %1340 = vmatmul.f32.gmra.mxu0 %v1217
      %v1341 = vpop.f32.mrf.mxu0
      %v1342 = vadd.f32 0.0, %v1341
      %1343 = vmatmul.f32.gmra.mxu0 %v1220
      %v1344 = vpop.f32.mrf.mxu0
      %v1345 = vadd.f32 0.0, %v1344
      %1346 = vmatmul.f32.gmra.mxu0 %v1223
      %v1347 = vpop.f32.mrf.mxu0
      %v1348 = vadd.f32 0.0, %v1347
      %1349 = vmatmul.f32.gmra.mxu0 %v1226
      %v1350 = vpop.f32.mrf.mxu0
      %v1351 = vadd.f32 0.0, %v1350
      %1352 = vmatmul.f32.gmra.mxu0 %v1229
      %v1353 = vpop.f32.mrf.mxu0
      %v1354 = vadd.f32 0.0, %v1353
      %1355 = vmatmul.f32.gmra.mxu0 %v1232
      %v1356 = vpop.f32.mrf.mxu0
      %v1357 = vadd.f32 0.0, %v1356
      %1358 = vmatmul.f32.gmra.mxu0 %v1235
      %v1359 = vpop.f32.mrf.mxu0
      %v1360 = vadd.f32 0.0, %v1359
      %1361 = vmatmul.f32.gmra.mxu0 %v1238
      %v1362 = vpop.f32.mrf.mxu0
      %v1363 = vadd.f32 0.0, %v1362
      %1364 = vmatmul.f32.gmra.mxu0 %v1241
      %v1365 = vpop.f32.mrf.mxu0
      %v1366 = vadd.f32 0.0, %v1365
      %1367 = vmatmul.f32.gmra.mxu0 %v1244
      %v1368 = vpop.f32.mrf.mxu0
      %v1369 = vadd.f32 0.0, %v1368
      %1370 = vmatmul.f32.gmra.mxu0 %v1247
      %v1371 = vpop.f32.mrf.mxu0
      %v1372 = vadd.f32 0.0, %v1371
      %1373 = vmatmul.f32.gmra.mxu0 %v1250
      %v1374 = vpop.f32.mrf.mxu0
      %v1375 = vadd.f32 0.0, %v1374
      %1376 = vmatmul.f32.gmra.mxu0 %v1253
      %v1377 = vpop.f32.mrf.mxu0
      %v1378 = vadd.f32 0.0, %v1377
      %1379 = vmatmul.f32.gmra.mxu0 %v1256
      %v1380 = vpop.f32.mrf.mxu0
      %v1381 = vadd.f32 0.0, %v1380
      %1382 = vmatmul.f32.gmra.mxu0 %v1259
      %v1383 = vpop.f32.mrf.mxu0
      %v1384 = vadd.f32 0.0, %v1383
      %1385 = vmatmul.f32.gmra.mxu0 %v1262
      %v1386 = vpop.f32.mrf.mxu0
      %v1387 = vadd.f32 0.0, %v1386
      %1388 = vmatmul.f32.gmra.mxu0 %v1265
      %v1389 = vpop.f32.mrf.mxu0
      %v1390 = vadd.f32 0.0, %v1389
      %1391 = vmatmul.f32.gmra.mxu0 %v1268
      %v1392 = vpop.f32.mrf.mxu0
      %v1393 = vadd.f32 0.0, %v1392
      %1394 = vmatmul.f32.gmra.mxu0 %v1271
      %v1395 = vpop.f32.mrf.mxu0
      %v1396 = vadd.f32 0.0, %v1395
      %1397 = vmatmul.f32.gmra.mxu0 %v1274
      %v1398 = vpop.f32.mrf.mxu0
      %v1399 = vadd.f32 0.0, %v1398
      %1400 = vmatmul.f32.gmra.mxu0 %v1277
      %v1401 = vpop.f32.mrf.mxu0
      %v1402 = vadd.f32 0.0, %v1401
      %1403 = vmatmul.f32.gmra.mxu0 %v1280
      %v1404 = vpop.f32.mrf.mxu0
      %v1405 = vadd.f32 0.0, %v1404
      %1406 = vmatmul.f32.gmra.mxu0 %v1283
      %v1407 = vpop.f32.mrf.mxu0
      %v1408 = vadd.f32 0.0, %v1407
      %1409 = vmatmul.f32.gmra.mxu0 %v1286
      %v1410 = vpop.f32.mrf.mxu0
      %v1411 = vadd.f32 0.0, %v1410
      %1412 = vmatmul.f32.gmra.mxu0 %v1289
      %v1413 = vpop.f32.mrf.mxu0
      %v1414 = vadd.f32 0.0, %v1413
      %1415 = vmatmul.f32.gmra.mxu0 %v1292
      %v1416 = vpop.f32.mrf.mxu0
      %v1417 = vadd.f32 0.0, %v1416
      %1418 = vmatmul.f32.gmra.mxu0 %v1295
      %v1419 = vpop.f32.mrf.mxu0
      %v1420 = vadd.f32 0.0, %v1419
      %1421 = vmatmul.f32.gmra.mxu0 %v1298
      %v1422 = vpop.f32.mrf.mxu0
      %v1423 = vadd.f32 0.0, %v1422
      %1424 = vmatmul.f32.gmra.mxu0 %v1301
      %v1425 = vpop.f32.mrf.mxu0
      %v1426 = vadd.f32 0.0, %v1425
      %1427 = vmatmul.f32.gmra.mxu0 %v1304
      %v1428 = vpop.f32.mrf.mxu0
      %v1429 = vadd.f32 0.0, %v1428
      %1430 = vmatmul.f32.gmra.mxu0 %v1307
      %v1431 = vpop.f32.mrf.mxu0
      %v1432 = vadd.f32 0.0, %v1431
      %1433 = vmatmul.f32.gmra.mxu0 %v1310
      %v1434 = vpop.f32.mrf.mxu0
      %v1435 = vadd.f32 0.0, %v1434
      %1436 = vmatmul.f32.gmra.mxu0 %v1313
      %v1437 = vpop.f32.mrf.mxu0
      %v1438 = vadd.f32 0.0, %v1437
      %1439 = vdwg.mxu0
      %v1441 = vperm.slane %v1169, 0
      %v1443 = vadd.f32 %v1441, %v1333
      %v1444 = vadd.f32 %v1441, %v1336
      %v1445 = vadd.f32 %v1441, %v1339
      %v1446 = vadd.f32 %v1441, %v1342
      %v1447 = vadd.f32 %v1441, %v1345
      %v1448 = vadd.f32 %v1441, %v1348
      %v1449 = vadd.f32 %v1441, %v1351
      %v1450 = vadd.f32 %v1441, %v1354
      %v1451 = vadd.f32 %v1441, %v1357
      %v1452 = vadd.f32 %v1441, %v1360
      %v1453 = vadd.f32 %v1441, %v1363
      %v1454 = vadd.f32 %v1441, %v1366
      %v1455 = vadd.f32 %v1441, %v1369
      %v1456 = vadd.f32 %v1441, %v1372
      %v1457 = vadd.f32 %v1441, %v1375
      %v1458 = vadd.f32 %v1441, %v1378
      %v1459 = vadd.f32 %v1441, %v1381
      %v1460 = vadd.f32 %v1441, %v1384
      %v1461 = vadd.f32 %v1441, %v1387
      %v1462 = vadd.f32 %v1441, %v1390
      %v1463 = vadd.f32 %v1441, %v1393
      %v1464 = vadd.f32 %v1441, %v1396
      %v1465 = vadd.f32 %v1441, %v1399
      %v1466 = vadd.f32 %v1441, %v1402
      %v1467 = vadd.f32 %v1441, %v1405
      %v1468 = vadd.f32 %v1441, %v1408
      %v1469 = vadd.f32 %v1441, %v1411
      %v1470 = vadd.f32 %v1441, %v1414
      %v1471 = vadd.f32 %v1441, %v1417
      %v1472 = vadd.f32 %v1441, %v1420
      %v1473 = vadd.f32 %v1441, %v1423
      %v1474 = vadd.f32 %v1441, %v1426
      %v1475 = vadd.f32 %v1441, %v1429
      %v1476 = vadd.f32 %v1441, %v1432
      %v1477 = vadd.f32 %v1441, %v1435
      %v1478 = vadd.f32 %v1441, %v1438
      %v1479 = vld [vmem:[#allocation2 + $0x1] sm:$0xff]
      %v1480 = vld [vmem:[#allocation2 + $0x9] sm:$0xff]
      %v1481 = vld [vmem:[#allocation2 + $0x19] sm:$0xff]
      %v1482 = vld [vmem:[#allocation2 + $0x21] sm:$0xff]
      %v1483 = vld [vmem:[#allocation2 + $0x31] sm:$0xff]
      %v1484 = vld [vmem:[#allocation2 + $0x39] sm:$0xff]
      %v1485 = vld [vmem:[#allocation2 + $0x49] sm:$0xff]
      %v1486 = vld [vmem:[#allocation2 + $0x51] sm:$0xff]
      %v1487 = vld [vmem:[#allocation2 + $0x61] sm:$0xff]
      %v1488 = vld [vmem:[#allocation2 + $0x69] sm:$0xff]
      %v1489 = vld [vmem:[#allocation2 + $0x79] sm:$0xff]
      %v1490 = vld [vmem:[#allocation2 + $0x81] sm:$0xff]
      %v1491 = vld [vmem:[#allocation2 + $0x91] sm:$0xff]
      %v1492 = vld [vmem:[#allocation2 + $0x99] sm:$0xff]
      %v1493 = vld [vmem:[#allocation2 + $0xa9] sm:$0xff]
      %v1494 = vld [vmem:[#allocation2 + $0xb1] sm:$0xff]
      %v1495 = vld [vmem:[#allocation2 + $0xc1] sm:$0xff]
      %v1496 = vld [vmem:[#allocation2 + $0xc9] sm:$0xff]
      %v1497 = vld [vmem:[#allocation2 + $0xd9] sm:$0xff]
      %v1498 = vld [vmem:[#allocation2 + $0xe1] sm:$0xff]
      %v1499 = vld [vmem:[#allocation2 + $0xf1] sm:$0xff]
      %v1500 = vld [vmem:[#allocation2 + $0xf9] sm:$0xff]
      %v1501 = vld [vmem:[#allocation2 + $0x109] sm:$0xff]
      %v1502 = vld [vmem:[#allocation2 + $0x111] sm:$0xff]
      %v1503 = vld [vmem:[#allocation2 + $0x121] sm:$0xff]
      %v1504 = vld [vmem:[#allocation2 + $0x129] sm:$0xff]
      %v1505 = vld [vmem:[#allocation2 + $0x139] sm:$0xff]
      %v1506 = vld [vmem:[#allocation2 + $0x141] sm:$0xff]
      %v1507 = vld [vmem:[#allocation2 + $0x151] sm:$0xff]
      %v1508 = vld [vmem:[#allocation2 + $0x159] sm:$0xff]
      %v1509 = vld [vmem:[#allocation2 + $0x169] sm:$0xff]
      %v1510 = vld [vmem:[#allocation2 + $0x171] sm:$0xff]
      %v1511 = vld [vmem:[#allocation2 + $0x181] sm:$0xff]
      %v1512 = vld [vmem:[#allocation2 + $0x189] sm:$0xff]
      %v1513 = vld [vmem:[#allocation2 + $0x199] sm:$0xff]
      %v1514 = vld [vmem:[#allocation2 + $0x1a1] sm:$0xff]
      %s1515 = scalar_lea.vmem %s3, 8
      %v1516 = vld [vmem:[%s1515] sm:$0xff]
      %v1518 = vsel %vm469, %v1479, 0
      %v1521 = vsel %vm469, %v1480, 0
      %v1524 = vsel %vm469, %v1481, 0
      %v1527 = vsel %vm469, %v1482, 0
      %v1530 = vsel %vm469, %v1483, 0
      %v1533 = vsel %vm469, %v1484, 0
      %v1536 = vsel %vm469, %v1485, 0
      %v1539 = vsel %vm469, %v1486, 0
      %v1542 = vsel %vm469, %v1487, 0
      %v1545 = vsel %vm469, %v1488, 0
      %v1548 = vsel %vm469, %v1489, 0
      %v1551 = vsel %vm469, %v1490, 0
      %v1554 = vsel %vm469, %v1491, 0
      %v1557 = vsel %vm469, %v1492, 0
      %v1560 = vsel %vm469, %v1493, 0
      %v1563 = vsel %vm469, %v1494, 0
      %v1566 = vsel %vm469, %v1495, 0
      %v1569 = vsel %vm469, %v1496, 0
      %v1572 = vsel %vm469, %v1497, 0
      %v1575 = vsel %vm469, %v1498, 0
      %v1578 = vsel %vm469, %v1499, 0
      %v1581 = vsel %vm469, %v1500, 0
      %v1584 = vsel %vm469, %v1501, 0
      %v1587 = vsel %vm469, %v1502, 0
      %v1590 = vsel %vm469, %v1503, 0
      %v1593 = vsel %vm469, %v1504, 0
      %v1596 = vsel %vm469, %v1505, 0
      %v1599 = vsel %vm469, %v1506, 0
      %v1602 = vsel %vm469, %v1507, 0
      %v1605 = vsel %vm469, %v1508, 0
      %v1608 = vsel %vm469, %v1509, 0
      %v1611 = vsel %vm469, %v1510, 0
      %v1614 = vsel %vm469, %v1511, 0
      %v1617 = vsel %vm469, %v1512, 0
      %v1620 = vsel %vm469, %v1513, 0
      %v1623 = vsel %vm469, %v1514, 0
      %1625 = vmatpush.msra.mxu0 0.0
      %1626 = vmatpush.msra.mxu0 0.0
      %1627 = vmatpush.msra.mxu0 0.0
      %1628 = vmatpush.msra.mxu0 0.0
      %1629 = vmatpush.msra.mxu0 0.0
      %1630 = vmatpush.msra.mxu0 0.0
      %1631 = vmatpush.msra.mxu0 0.0
      %1632 = vmatpush.msra.mxu0 0.0
      %1633 = vmatpush.msra.mxu0 0.0
      %1634 = vmatpush.msra.mxu0 0.0
      %1635 = vmatpush.msra.mxu0 0.0
      %1636 = vmatpush.msra.mxu0 0.0
      %1637 = vmatpush.msra.mxu0 0.0
      %1638 = vmatpush.msra.mxu0 0.0
      %1639 = vmatpush.msra.mxu0 0.0
      %1640 = vmatpush.msra.mxu0 %v1516
      %1641 = vmatmul.f32.gmra.mxu0 %v1518
      %v1642 = vpop.f32.mrf.mxu0
      %v1643 = vadd.f32 0.0, %v1642
      %1644 = vmatmul.f32.gmra.mxu0 %v1521
      %v1645 = vpop.f32.mrf.mxu0
      %v1646 = vadd.f32 0.0, %v1645
      %1647 = vmatmul.f32.gmra.mxu0 %v1524
      %v1648 = vpop.f32.mrf.mxu0
      %v1649 = vadd.f32 0.0, %v1648
      %1650 = vmatmul.f32.gmra.mxu0 %v1527
      %v1651 = vpop.f32.mrf.mxu0
      %v1652 = vadd.f32 0.0, %v1651
      %1653 = vmatmul.f32.gmra.mxu0 %v1530
      %v1654 = vpop.f32.mrf.mxu0
      %v1655 = vadd.f32 0.0, %v1654
      %1656 = vmatmul.f32.gmra.mxu0 %v1533
      %v1657 = vpop.f32.mrf.mxu0
      %v1658 = vadd.f32 0.0, %v1657
      %1659 = vmatmul.f32.gmra.mxu0 %v1536
      %v1660 = vpop.f32.mrf.mxu0
      %v1661 = vadd.f32 0.0, %v1660
      %1662 = vmatmul.f32.gmra.mxu0 %v1539
      %v1663 = vpop.f32.mrf.mxu0
      %v1664 = vadd.f32 0.0, %v1663
      %1665 = vmatmul.f32.gmra.mxu0 %v1542
      %v1666 = vpop.f32.mrf.mxu0
      %v1667 = vadd.f32 0.0, %v1666
      %1668 = vmatmul.f32.gmra.mxu0 %v1545
      %v1669 = vpop.f32.mrf.mxu0
      %v1670 = vadd.f32 0.0, %v1669
      %1671 = vmatmul.f32.gmra.mxu0 %v1548
      %v1672 = vpop.f32.mrf.mxu0
      %v1673 = vadd.f32 0.0, %v1672
      %1674 = vmatmul.f32.gmra.mxu0 %v1551
      %v1675 = vpop.f32.mrf.mxu0
      %v1676 = vadd.f32 0.0, %v1675
      %1677 = vmatmul.f32.gmra.mxu0 %v1554
      %v1678 = vpop.f32.mrf.mxu0
      %v1679 = vadd.f32 0.0, %v1678
      %1680 = vmatmul.f32.gmra.mxu0 %v1557
      %v1681 = vpop.f32.mrf.mxu0
      %v1682 = vadd.f32 0.0, %v1681
      %1683 = vmatmul.f32.gmra.mxu0 %v1560
      %v1684 = vpop.f32.mrf.mxu0
      %v1685 = vadd.f32 0.0, %v1684
      %1686 = vmatmul.f32.gmra.mxu0 %v1563
      %v1687 = vpop.f32.mrf.mxu0
      %v1688 = vadd.f32 0.0, %v1687
      %1689 = vmatmul.f32.gmra.mxu0 %v1566
      %v1690 = vpop.f32.mrf.mxu0
      %v1691 = vadd.f32 0.0, %v1690
      %1692 = vmatmul.f32.gmra.mxu0 %v1569
      %v1693 = vpop.f32.mrf.mxu0
      %v1694 = vadd.f32 0.0, %v1693
      %1695 = vmatmul.f32.gmra.mxu0 %v1572
      %v1696 = vpop.f32.mrf.mxu0
      %v1697 = vadd.f32 0.0, %v1696
      %1698 = vmatmul.f32.gmra.mxu0 %v1575
      %v1699 = vpop.f32.mrf.mxu0
      %v1700 = vadd.f32 0.0, %v1699
      %1701 = vmatmul.f32.gmra.mxu0 %v1578
      %v1702 = vpop.f32.mrf.mxu0
      %v1703 = vadd.f32 0.0, %v1702
      %1704 = vmatmul.f32.gmra.mxu0 %v1581
      %v1705 = vpop.f32.mrf.mxu0
      %v1706 = vadd.f32 0.0, %v1705
      %1707 = vmatmul.f32.gmra.mxu0 %v1584
      %v1708 = vpop.f32.mrf.mxu0
      %v1709 = vadd.f32 0.0, %v1708
      %1710 = vmatmul.f32.gmra.mxu0 %v1587
      %v1711 = vpop.f32.mrf.mxu0
      %v1712 = vadd.f32 0.0, %v1711
      %1713 = vmatmul.f32.gmra.mxu0 %v1590
      %v1714 = vpop.f32.mrf.mxu0
      %v1715 = vadd.f32 0.0, %v1714
      %1716 = vmatmul.f32.gmra.mxu0 %v1593
      %v1717 = vpop.f32.mrf.mxu0
      %v1718 = vadd.f32 0.0, %v1717
      %1719 = vmatmul.f32.gmra.mxu0 %v1596
      %v1720 = vpop.f32.mrf.mxu0
      %v1721 = vadd.f32 0.0, %v1720
      %1722 = vmatmul.f32.gmra.mxu0 %v1599
      %v1723 = vpop.f32.mrf.mxu0
      %v1724 = vadd.f32 0.0, %v1723
      %1725 = vmatmul.f32.gmra.mxu0 %v1602
      %v1726 = vpop.f32.mrf.mxu0
      %v1727 = vadd.f32 0.0, %v1726
      %1728 = vmatmul.f32.gmra.mxu0 %v1605
      %v1729 = vpop.f32.mrf.mxu0
      %v1730 = vadd.f32 0.0, %v1729
      %1731 = vmatmul.f32.gmra.mxu0 %v1608
      %v1732 = vpop.f32.mrf.mxu0
      %v1733 = vadd.f32 0.0, %v1732
      %1734 = vmatmul.f32.gmra.mxu0 %v1611
      %v1735 = vpop.f32.mrf.mxu0
      %v1736 = vadd.f32 0.0, %v1735
      %1737 = vmatmul.f32.gmra.mxu0 %v1614
      %v1738 = vpop.f32.mrf.mxu0
      %v1739 = vadd.f32 0.0, %v1738
      %1740 = vmatmul.f32.gmra.mxu0 %v1617
      %v1741 = vpop.f32.mrf.mxu0
      %v1742 = vadd.f32 0.0, %v1741
      %1743 = vmatmul.f32.gmra.mxu0 %v1620
      %v1744 = vpop.f32.mrf.mxu0
      %v1745 = vadd.f32 0.0, %v1744
      %1746 = vmatmul.f32.gmra.mxu0 %v1623
      %v1747 = vpop.f32.mrf.mxu0
      %v1748 = vadd.f32 0.0, %v1747
      %1749 = vdwg.mxu0
      %v1750 = vadd.f32 %v1443, %v1643
      %v1751 = vadd.f32 %v1444, %v1646
      %v1752 = vadd.f32 %v1445, %v1649
      %v1753 = vadd.f32 %v1446, %v1652
      %v1754 = vadd.f32 %v1447, %v1655
      %v1755 = vadd.f32 %v1448, %v1658
      %v1756 = vadd.f32 %v1449, %v1661
      %v1757 = vadd.f32 %v1450, %v1664
      %v1758 = vadd.f32 %v1451, %v1667
      %v1759 = vadd.f32 %v1452, %v1670
      %v1760 = vadd.f32 %v1453, %v1673
      %v1761 = vadd.f32 %v1454, %v1676
      %v1762 = vadd.f32 %v1455, %v1679
      %v1763 = vadd.f32 %v1456, %v1682
      %v1764 = vadd.f32 %v1457, %v1685
      %v1765 = vadd.f32 %v1458, %v1688
      %v1766 = vadd.f32 %v1459, %v1691
      %v1767 = vadd.f32 %v1460, %v1694
      %v1768 = vadd.f32 %v1461, %v1697
      %v1769 = vadd.f32 %v1462, %v1700
      %v1770 = vadd.f32 %v1463, %v1703
      %v1771 = vadd.f32 %v1464, %v1706
      %v1772 = vadd.f32 %v1465, %v1709
      %v1773 = vadd.f32 %v1466, %v1712
      %v1774 = vadd.f32 %v1467, %v1715
      %v1775 = vadd.f32 %v1468, %v1718
      %v1776 = vadd.f32 %v1469, %v1721
      %v1777 = vadd.f32 %v1470, %v1724
      %v1778 = vadd.f32 %v1471, %v1727
      %v1779 = vadd.f32 %v1472, %v1730
      %v1780 = vadd.f32 %v1473, %v1733
      %v1781 = vadd.f32 %v1474, %v1736
      %v1782 = vadd.f32 %v1475, %v1739
      %v1783 = vadd.f32 %v1476, %v1742
      %v1784 = vadd.f32 %v1477, %v1745
      %v1785 = vadd.f32 %v1478, %v1748
      %v1786 = vld [vmem:[#allocation2 + $0x2] sm:$0xff]
      %v1787 = vld [vmem:[#allocation2 + $0xa] sm:$0xff]
      %v1788 = vld [vmem:[#allocation2 + $0x1a] sm:$0xff]
      %v1789 = vld [vmem:[#allocation2 + $0x22] sm:$0xff]
      %v1790 = vld [vmem:[#allocation2 + $0x32] sm:$0xff]
      %v1791 = vld [vmem:[#allocation2 + $0x3a] sm:$0xff]
      %v1792 = vld [vmem:[#allocation2 + $0x4a] sm:$0xff]
      %v1793 = vld [vmem:[#allocation2 + $0x52] sm:$0xff]
      %v1794 = vld [vmem:[#allocation2 + $0x62] sm:$0xff]
      %v1795 = vld [vmem:[#allocation2 + $0x6a] sm:$0xff]
      %v1796 = vld [vmem:[#allocation2 + $0x7a] sm:$0xff]
      %v1797 = vld [vmem:[#allocation2 + $0x82] sm:$0xff]
      %v1798 = vld [vmem:[#allocation2 + $0x92] sm:$0xff]
      %v1799 = vld [vmem:[#allocation2 + $0x9a] sm:$0xff]
      %v1800 = vld [vmem:[#allocation2 + $0xaa] sm:$0xff]
      %v1801 = vld [vmem:[#allocation2 + $0xb2] sm:$0xff]
      %v1802 = vld [vmem:[#allocation2 + $0xc2] sm:$0xff]
      %v1803 = vld [vmem:[#allocation2 + $0xca] sm:$0xff]
      %v1804 = vld [vmem:[#allocation2 + $0xda] sm:$0xff]
      %v1805 = vld [vmem:[#allocation2 + $0xe2] sm:$0xff]
      %v1806 = vld [vmem:[#allocation2 + $0xf2] sm:$0xff]
      %v1807 = vld [vmem:[#allocation2 + $0xfa] sm:$0xff]
      %v1808 = vld [vmem:[#allocation2 + $0x10a] sm:$0xff]
      %v1809 = vld [vmem:[#allocation2 + $0x112] sm:$0xff]
      %v1810 = vld [vmem:[#allocation2 + $0x122] sm:$0xff]
      %v1811 = vld [vmem:[#allocation2 + $0x12a] sm:$0xff]
      %v1812 = vld [vmem:[#allocation2 + $0x13a] sm:$0xff]
      %v1813 = vld [vmem:[#allocation2 + $0x142] sm:$0xff]
      %v1814 = vld [vmem:[#allocation2 + $0x152] sm:$0xff]
      %v1815 = vld [vmem:[#allocation2 + $0x15a] sm:$0xff]
      %v1816 = vld [vmem:[#allocation2 + $0x16a] sm:$0xff]
      %v1817 = vld [vmem:[#allocation2 + $0x172] sm:$0xff]
      %v1818 = vld [vmem:[#allocation2 + $0x182] sm:$0xff]
      %v1819 = vld [vmem:[#allocation2 + $0x18a] sm:$0xff]
      %v1820 = vld [vmem:[#allocation2 + $0x19a] sm:$0xff]
      %v1821 = vld [vmem:[#allocation2 + $0x1a2] sm:$0xff]
      %s1822 = scalar_lea.vmem %s3, 16
      %v1823 = vld [vmem:[%s1822] sm:$0xff]
      %v1825 = vsel %vm469, %v1786, 0
      %v1828 = vsel %vm469, %v1787, 0
      %v1831 = vsel %vm469, %v1788, 0
      %v1834 = vsel %vm469, %v1789, 0
      %v1837 = vsel %vm469, %v1790, 0
      %v1840 = vsel %vm469, %v1791, 0
      %v1843 = vsel %vm469, %v1792, 0
      %v1846 = vsel %vm469, %v1793, 0
      %v1849 = vsel %vm469, %v1794, 0
      %v1852 = vsel %vm469, %v1795, 0
      %v1855 = vsel %vm469, %v1796, 0
      %v1858 = vsel %vm469, %v1797, 0
      %v1861 = vsel %vm469, %v1798, 0
      %v1864 = vsel %vm469, %v1799, 0
      %v1867 = vsel %vm469, %v1800, 0
      %v1870 = vsel %vm469, %v1801, 0
      %v1873 = vsel %vm469, %v1802, 0
      %v1876 = vsel %vm469, %v1803, 0
      %v1879 = vsel %vm469, %v1804, 0
      %v1882 = vsel %vm469, %v1805, 0
      %v1885 = vsel %vm469, %v1806, 0
      %v1888 = vsel %vm469, %v1807, 0
      %v1891 = vsel %vm469, %v1808, 0
      %v1894 = vsel %vm469, %v1809, 0
      %v1897 = vsel %vm469, %v1810, 0
      %v1900 = vsel %vm469, %v1811, 0
      %v1903 = vsel %vm469, %v1812, 0
      %v1906 = vsel %vm469, %v1813, 0
      %v1909 = vsel %vm469, %v1814, 0
      %v1912 = vsel %vm469, %v1815, 0
      %v1915 = vsel %vm469, %v1816, 0
      %v1918 = vsel %vm469, %v1817, 0
      %v1921 = vsel %vm469, %v1818, 0
      %v1924 = vsel %vm469, %v1819, 0
      %v1927 = vsel %vm469, %v1820, 0
      %v1930 = vsel %vm469, %v1821, 0
      %1932 = vmatpush.msra.mxu0 0.0
      %1933 = vmatpush.msra.mxu0 0.0
      %1934 = vmatpush.msra.mxu0 0.0
      %1935 = vmatpush.msra.mxu0 0.0
      %1936 = vmatpush.msra.mxu0 0.0
      %1937 = vmatpush.msra.mxu0 0.0
      %1938 = vmatpush.msra.mxu0 0.0
      %1939 = vmatpush.msra.mxu0 0.0
      %1940 = vmatpush.msra.mxu0 0.0
      %1941 = vmatpush.msra.mxu0 0.0
      %1942 = vmatpush.msra.mxu0 0.0
      %1943 = vmatpush.msra.mxu0 0.0
      %1944 = vmatpush.msra.mxu0 0.0
      %1945 = vmatpush.msra.mxu0 0.0
      %1946 = vmatpush.msra.mxu0 0.0
      %1947 = vmatpush.msra.mxu0 %v1823
      %1948 = vmatmul.f32.gmra.mxu0 %v1825
      %v1949 = vpop.f32.mrf.mxu0
      %v1950 = vadd.f32 0.0, %v1949
      %1951 = vmatmul.f32.gmra.mxu0 %v1828
      %v1952 = vpop.f32.mrf.mxu0
      %v1953 = vadd.f32 0.0, %v1952
      %1954 = vmatmul.f32.gmra.mxu0 %v1831
      %v1955 = vpop.f32.mrf.mxu0
      %v1956 = vadd.f32 0.0, %v1955
      %1957 = vmatmul.f32.gmra.mxu0 %v1834
      %v1958 = vpop.f32.mrf.mxu0
      %v1959 = vadd.f32 0.0, %v1958
      %1960 = vmatmul.f32.gmra.mxu0 %v1837
      %v1961 = vpop.f32.mrf.mxu0
      %v1962 = vadd.f32 0.0, %v1961
      %1963 = vmatmul.f32.gmra.mxu0 %v1840
      %v1964 = vpop.f32.mrf.mxu0
      %v1965 = vadd.f32 0.0, %v1964
      %1966 = vmatmul.f32.gmra.mxu0 %v1843
      %v1967 = vpop.f32.mrf.mxu0
      %v1968 = vadd.f32 0.0, %v1967
      %1969 = vmatmul.f32.gmra.mxu0 %v1846
      %v1970 = vpop.f32.mrf.mxu0
      %v1971 = vadd.f32 0.0, %v1970
      %1972 = vmatmul.f32.gmra.mxu0 %v1849
      %v1973 = vpop.f32.mrf.mxu0
      %v1974 = vadd.f32 0.0, %v1973
      %1975 = vmatmul.f32.gmra.mxu0 %v1852
      %v1976 = vpop.f32.mrf.mxu0
      %v1977 = vadd.f32 0.0, %v1976
      %1978 = vmatmul.f32.gmra.mxu0 %v1855
      %v1979 = vpop.f32.mrf.mxu0
      %v1980 = vadd.f32 0.0, %v1979
      %1981 = vmatmul.f32.gmra.mxu0 %v1858
      %v1982 = vpop.f32.mrf.mxu0
      %v1983 = vadd.f32 0.0, %v1982
      %1984 = vmatmul.f32.gmra.mxu0 %v1861
      %v1985 = vpop.f32.mrf.mxu0
      %v1986 = vadd.f32 0.0, %v1985
      %1987 = vmatmul.f32.gmra.mxu0 %v1864
      %v1988 = vpop.f32.mrf.mxu0
      %v1989 = vadd.f32 0.0, %v1988
      %1990 = vmatmul.f32.gmra.mxu0 %v1867
      %v1991 = vpop.f32.mrf.mxu0
      %v1992 = vadd.f32 0.0, %v1991
      %1993 = vmatmul.f32.gmra.mxu0 %v1870
      %v1994 = vpop.f32.mrf.mxu0
      %v1995 = vadd.f32 0.0, %v1994
      %1996 = vmatmul.f32.gmra.mxu0 %v1873
      %v1997 = vpop.f32.mrf.mxu0
      %v1998 = vadd.f32 0.0, %v1997
      %1999 = vmatmul.f32.gmra.mxu0 %v1876
      %v2000 = vpop.f32.mrf.mxu0
      %v2001 = vadd.f32 0.0, %v2000
      %2002 = vmatmul.f32.gmra.mxu0 %v1879
      %v2003 = vpop.f32.mrf.mxu0
      %v2004 = vadd.f32 0.0, %v2003
      %2005 = vmatmul.f32.gmra.mxu0 %v1882
      %v2006 = vpop.f32.mrf.mxu0
      %v2007 = vadd.f32 0.0, %v2006
      %2008 = vmatmul.f32.gmra.mxu0 %v1885
      %v2009 = vpop.f32.mrf.mxu0
      %v2010 = vadd.f32 0.0, %v2009
      %2011 = vmatmul.f32.gmra.mxu0 %v1888
      %v2012 = vpop.f32.mrf.mxu0
      %v2013 = vadd.f32 0.0, %v2012
      %2014 = vmatmul.f32.gmra.mxu0 %v1891
      %v2015 = vpop.f32.mrf.mxu0
      %v2016 = vadd.f32 0.0, %v2015
      %2017 = vmatmul.f32.gmra.mxu0 %v1894
      %v2018 = vpop.f32.mrf.mxu0
      %v2019 = vadd.f32 0.0, %v2018
      %2020 = vmatmul.f32.gmra.mxu0 %v1897
      %v2021 = vpop.f32.mrf.mxu0
      %v2022 = vadd.f32 0.0, %v2021
      %2023 = vmatmul.f32.gmra.mxu0 %v1900
      %v2024 = vpop.f32.mrf.mxu0
      %v2025 = vadd.f32 0.0, %v2024
      %2026 = vmatmul.f32.gmra.mxu0 %v1903
      %v2027 = vpop.f32.mrf.mxu0
      %v2028 = vadd.f32 0.0, %v2027
      %2029 = vmatmul.f32.gmra.mxu0 %v1906
      %v2030 = vpop.f32.mrf.mxu0
      %v2031 = vadd.f32 0.0, %v2030
      %2032 = vmatmul.f32.gmra.mxu0 %v1909
      %v2033 = vpop.f32.mrf.mxu0
      %v2034 = vadd.f32 0.0, %v2033
      %2035 = vmatmul.f32.gmra.mxu0 %v1912
      %v2036 = vpop.f32.mrf.mxu0
      %v2037 = vadd.f32 0.0, %v2036
      %2038 = vmatmul.f32.gmra.mxu0 %v1915
      %v2039 = vpop.f32.mrf.mxu0
      %v2040 = vadd.f32 0.0, %v2039
      %2041 = vmatmul.f32.gmra.mxu0 %v1918
      %v2042 = vpop.f32.mrf.mxu0
      %v2043 = vadd.f32 0.0, %v2042
      %2044 = vmatmul.f32.gmra.mxu0 %v1921
      %v2045 = vpop.f32.mrf.mxu0
      %v2046 = vadd.f32 0.0, %v2045
      %2047 = vmatmul.f32.gmra.mxu0 %v1924
      %v2048 = vpop.f32.mrf.mxu0
      %v2049 = vadd.f32 0.0, %v2048
      %2050 = vmatmul.f32.gmra.mxu0 %v1927
      %v2051 = vpop.f32.mrf.mxu0
      %v2052 = vadd.f32 0.0, %v2051
      %2053 = vmatmul.f32.gmra.mxu0 %v1930
      %v2054 = vpop.f32.mrf.mxu0
      %v2055 = vadd.f32 0.0, %v2054
      %2056 = vdwg.mxu0
      %v2057 = vadd.f32 %v1750, %v1950
      %v2058 = vadd.f32 %v1751, %v1953
      %v2059 = vadd.f32 %v1752, %v1956
      %v2060 = vadd.f32 %v1753, %v1959
      %v2061 = vadd.f32 %v1754, %v1962
      %v2062 = vadd.f32 %v1755, %v1965
      %v2063 = vadd.f32 %v1756, %v1968
      %v2064 = vadd.f32 %v1757, %v1971
      %v2065 = vadd.f32 %v1758, %v1974
      %v2066 = vadd.f32 %v1759, %v1977
      %v2067 = vadd.f32 %v1760, %v1980
      %v2068 = vadd.f32 %v1761, %v1983
      %v2069 = vadd.f32 %v1762, %v1986
      %v2070 = vadd.f32 %v1763, %v1989
      %v2071 = vadd.f32 %v1764, %v1992
      %v2072 = vadd.f32 %v1765, %v1995
      %v2073 = vadd.f32 %v1766, %v1998
      %v2074 = vadd.f32 %v1767, %v2001
      %v2075 = vadd.f32 %v1768, %v2004
      %v2076 = vadd.f32 %v1769, %v2007
      %v2077 = vadd.f32 %v1770, %v2010
      %v2078 = vadd.f32 %v1771, %v2013
      %v2079 = vadd.f32 %v1772, %v2016
      %v2080 = vadd.f32 %v1773, %v2019
      %v2081 = vadd.f32 %v1774, %v2022
      %v2082 = vadd.f32 %v1775, %v2025
      %v2083 = vadd.f32 %v1776, %v2028
      %v2084 = vadd.f32 %v1777, %v2031
      %v2085 = vadd.f32 %v1778, %v2034
      %v2086 = vadd.f32 %v1779, %v2037
      %v2087 = vadd.f32 %v1780, %v2040
      %v2088 = vadd.f32 %v1781, %v2043
      %v2089 = vadd.f32 %v1782, %v2046
      %v2090 = vadd.f32 %v1783, %v2049
      %v2091 = vadd.f32 %v1784, %v2052
      %v2092 = vadd.f32 %v1785, %v2055
      %s2093 = scalar_lea.vmem [#allocation2], 24
      %v2094 = vld [vmem:[%s2093] sm:$0xff]
      %v2095 = vld [vmem:[%s2093 + $0x8] sm:$0xff]
      %v2096 = vld [vmem:[%s2093 + $0x18] sm:$0xff]
      %v2097 = vld [vmem:[%s2093 + $0x20] sm:$0xff]
      %v2098 = vld [vmem:[%s2093 + $0x30] sm:$0xff]
      %v2099 = vld [vmem:[%s2093 + $0x38] sm:$0xff]
      %v2100 = vld [vmem:[%s2093 + $0x48] sm:$0xff]
      %v2101 = vld [vmem:[%s2093 + $0x50] sm:$0xff]
      %v2102 = vld [vmem:[%s2093 + $0x60] sm:$0xff]
      %v2103 = vld [vmem:[%s2093 + $0x68] sm:$0xff]
      %v2104 = vld [vmem:[%s2093 + $0x78] sm:$0xff]
      %v2105 = vld [vmem:[%s2093 + $0x80] sm:$0xff]
      %v2106 = vld [vmem:[%s2093 + $0x90] sm:$0xff]
      %v2107 = vld [vmem:[%s2093 + $0x98] sm:$0xff]
      %v2108 = vld [vmem:[%s2093 + $0xa8] sm:$0xff]
      %v2109 = vld [vmem:[%s2093 + $0xb0] sm:$0xff]
      %v2110 = vld [vmem:[%s2093 + $0xc0] sm:$0xff]
      %v2111 = vld [vmem:[%s2093 + $0xc8] sm:$0xff]
      %v2112 = vld [vmem:[%s2093 + $0xd8] sm:$0xff]
      %v2113 = vld [vmem:[%s2093 + $0xe0] sm:$0xff]
      %v2114 = vld [vmem:[%s2093 + $0xf0] sm:$0xff]
      %v2115 = vld [vmem:[%s2093 + $0xf8] sm:$0xff]
      %v2116 = vld [vmem:[%s2093 + $0x108] sm:$0xff]
      %v2117 = vld [vmem:[%s2093 + $0x110] sm:$0xff]
      %v2118 = vld [vmem:[%s2093 + $0x120] sm:$0xff]
      %v2119 = vld [vmem:[%s2093 + $0x128] sm:$0xff]
      %v2120 = vld [vmem:[%s2093 + $0x138] sm:$0xff]
      %v2121 = vld [vmem:[%s2093 + $0x140] sm:$0xff]
      %v2122 = vld [vmem:[%s2093 + $0x150] sm:$0xff]
      %v2123 = vld [vmem:[%s2093 + $0x158] sm:$0xff]
      %v2124 = vld [vmem:[%s2093 + $0x168] sm:$0xff]
      %v2125 = vld [vmem:[%s2093 + $0x170] sm:$0xff]
      %v2126 = vld [vmem:[%s2093 + $0x180] sm:$0xff]
      %v2127 = vld [vmem:[%s2093 + $0x188] sm:$0xff]
      %v2128 = vld [vmem:[%s2093 + $0x198] sm:$0xff]
      %v2129 = vld [vmem:[%s2093 + $0x1a0] sm:$0xff]
      %s2130 = scalar_lea.vmem %s3, 24
      %v2131 = vld [vmem:[%s2130] sm:$0xff]
      %v2133 = vsel %vm469, %v2094, 0
      %v2136 = vsel %vm469, %v2095, 0
      %v2139 = vsel %vm469, %v2096, 0
      %v2142 = vsel %vm469, %v2097, 0
      %v2145 = vsel %vm469, %v2098, 0
      %v2148 = vsel %vm469, %v2099, 0
      %v2151 = vsel %vm469, %v2100, 0
      %v2154 = vsel %vm469, %v2101, 0
      %v2157 = vsel %vm469, %v2102, 0
      %v2160 = vsel %vm469, %v2103, 0
      %v2163 = vsel %vm469, %v2104, 0
      %v2166 = vsel %vm469, %v2105, 0
      %v2169 = vsel %vm469, %v2106, 0
      %v2172 = vsel %vm469, %v2107, 0
      %v2175 = vsel %vm469, %v2108, 0
      %v2178 = vsel %vm469, %v2109, 0
      %v2181 = vsel %vm469, %v2110, 0
      %v2184 = vsel %vm469, %v2111, 0
      %v2187 = vsel %vm469, %v2112, 0
      %v2190 = vsel %vm469, %v2113, 0
      %v2193 = vsel %vm469, %v2114, 0
      %v2196 = vsel %vm469, %v2115, 0
      %v2199 = vsel %vm469, %v2116, 0
      %v2202 = vsel %vm469, %v2117, 0
      %v2205 = vsel %vm469, %v2118, 0
      %v2208 = vsel %vm469, %v2119, 0
      %v2211 = vsel %vm469, %v2120, 0
      %v2214 = vsel %vm469, %v2121, 0
      %v2217 = vsel %vm469, %v2122, 0
      %v2220 = vsel %vm469, %v2123, 0
      %v2223 = vsel %vm469, %v2124, 0
      %v2226 = vsel %vm469, %v2125, 0
      %v2229 = vsel %vm469, %v2126, 0
      %v2232 = vsel %vm469, %v2127, 0
      %v2235 = vsel %vm469, %v2128, 0
      %v2238 = vsel %vm469, %v2129, 0
      %2240 = vmatpush.msra.mxu0 0.0
      %2241 = vmatpush.msra.mxu0 0.0
      %2242 = vmatpush.msra.mxu0 0.0
      %2243 = vmatpush.msra.mxu0 0.0
      %2244 = vmatpush.msra.mxu0 0.0
      %2245 = vmatpush.msra.mxu0 0.0
      %2246 = vmatpush.msra.mxu0 0.0
      %2247 = vmatpush.msra.mxu0 0.0
      %2248 = vmatpush.msra.mxu0 0.0
      %2249 = vmatpush.msra.mxu0 0.0
      %2250 = vmatpush.msra.mxu0 0.0
      %2251 = vmatpush.msra.mxu0 0.0
      %2252 = vmatpush.msra.mxu0 0.0
      %2253 = vmatpush.msra.mxu0 0.0
      %2254 = vmatpush.msra.mxu0 0.0
      %2255 = vmatpush.msra.mxu0 %v2131
      %2256 = vmatmul.f32.gmra.mxu0 %v2133
      %v2257 = vpop.f32.mrf.mxu0
      %v2258 = vadd.f32 0.0, %v2257
      %2259 = vmatmul.f32.gmra.mxu0 %v2136
      %v2260 = vpop.f32.mrf.mxu0
      %v2261 = vadd.f32 0.0, %v2260
      %2262 = vmatmul.f32.gmra.mxu0 %v2139
      %v2263 = vpop.f32.mrf.mxu0
      %v2264 = vadd.f32 0.0, %v2263
      %2265 = vmatmul.f32.gmra.mxu0 %v2142
      %v2266 = vpop.f32.mrf.mxu0
      %v2267 = vadd.f32 0.0, %v2266
      %2268 = vmatmul.f32.gmra.mxu0 %v2145
      %v2269 = vpop.f32.mrf.mxu0
      %v2270 = vadd.f32 0.0, %v2269
      %2271 = vmatmul.f32.gmra.mxu0 %v2148
      %v2272 = vpop.f32.mrf.mxu0
      %v2273 = vadd.f32 0.0, %v2272
      %2274 = vmatmul.f32.gmra.mxu0 %v2151
      %v2275 = vpop.f32.mrf.mxu0
      %v2276 = vadd.f32 0.0, %v2275
      %2277 = vmatmul.f32.gmra.mxu0 %v2154
      %v2278 = vpop.f32.mrf.mxu0
      %v2279 = vadd.f32 0.0, %v2278
      %2280 = vmatmul.f32.gmra.mxu0 %v2157
      %v2281 = vpop.f32.mrf.mxu0
      %v2282 = vadd.f32 0.0, %v2281
      %2283 = vmatmul.f32.gmra.mxu0 %v2160
      %v2284 = vpop.f32.mrf.mxu0
      %v2285 = vadd.f32 0.0, %v2284
      %2286 = vmatmul.f32.gmra.mxu0 %v2163
      %v2287 = vpop.f32.mrf.mxu0
      %v2288 = vadd.f32 0.0, %v2287
      %2289 = vmatmul.f32.gmra.mxu0 %v2166
      %v2290 = vpop.f32.mrf.mxu0
      %v2291 = vadd.f32 0.0, %v2290
      %2292 = vmatmul.f32.gmra.mxu0 %v2169
      %v2293 = vpop.f32.mrf.mxu0
      %v2294 = vadd.f32 0.0, %v2293
      %2295 = vmatmul.f32.gmra.mxu0 %v2172
      %v2296 = vpop.f32.mrf.mxu0
      %v2297 = vadd.f32 0.0, %v2296
      %2298 = vmatmul.f32.gmra.mxu0 %v2175
      %v2299 = vpop.f32.mrf.mxu0
      %v2300 = vadd.f32 0.0, %v2299
      %2301 = vmatmul.f32.gmra.mxu0 %v2178
      %v2302 = vpop.f32.mrf.mxu0
      %v2303 = vadd.f32 0.0, %v2302
      %2304 = vmatmul.f32.gmra.mxu0 %v2181
      %v2305 = vpop.f32.mrf.mxu0
      %v2306 = vadd.f32 0.0, %v2305
      %2307 = vmatmul.f32.gmra.mxu0 %v2184
      %v2308 = vpop.f32.mrf.mxu0
      %v2309 = vadd.f32 0.0, %v2308
      %2310 = vmatmul.f32.gmra.mxu0 %v2187
      %v2311 = vpop.f32.mrf.mxu0
      %v2312 = vadd.f32 0.0, %v2311
      %2313 = vmatmul.f32.gmra.mxu0 %v2190
      %v2314 = vpop.f32.mrf.mxu0
      %v2315 = vadd.f32 0.0, %v2314
      %2316 = vmatmul.f32.gmra.mxu0 %v2193
      %v2317 = vpop.f32.mrf.mxu0
      %v2318 = vadd.f32 0.0, %v2317
      %2319 = vmatmul.f32.gmra.mxu0 %v2196
      %v2320 = vpop.f32.mrf.mxu0
      %v2321 = vadd.f32 0.0, %v2320
      %2322 = vmatmul.f32.gmra.mxu0 %v2199
      %v2323 = vpop.f32.mrf.mxu0
      %v2324 = vadd.f32 0.0, %v2323
      %2325 = vmatmul.f32.gmra.mxu0 %v2202
      %v2326 = vpop.f32.mrf.mxu0
      %v2327 = vadd.f32 0.0, %v2326
      %2328 = vmatmul.f32.gmra.mxu0 %v2205
      %v2329 = vpop.f32.mrf.mxu0
      %v2330 = vadd.f32 0.0, %v2329
      %2331 = vmatmul.f32.gmra.mxu0 %v2208
      %v2332 = vpop.f32.mrf.mxu0
      %v2333 = vadd.f32 0.0, %v2332
      %2334 = vmatmul.f32.gmra.mxu0 %v2211
      %v2335 = vpop.f32.mrf.mxu0
      %v2336 = vadd.f32 0.0, %v2335
      %2337 = vmatmul.f32.gmra.mxu0 %v2214
      %v2338 = vpop.f32.mrf.mxu0
      %v2339 = vadd.f32 0.0, %v2338
      %2340 = vmatmul.f32.gmra.mxu0 %v2217
      %v2341 = vpop.f32.mrf.mxu0
      %v2342 = vadd.f32 0.0, %v2341
      %2343 = vmatmul.f32.gmra.mxu0 %v2220
      %v2344 = vpop.f32.mrf.mxu0
      %v2345 = vadd.f32 0.0, %v2344
      %2346 = vmatmul.f32.gmra.mxu0 %v2223
      %v2347 = vpop.f32.mrf.mxu0
      %v2348 = vadd.f32 0.0, %v2347
      %2349 = vmatmul.f32.gmra.mxu0 %v2226
      %v2350 = vpop.f32.mrf.mxu0
      %v2351 = vadd.f32 0.0, %v2350
      %2352 = vmatmul.f32.gmra.mxu0 %v2229
      %v2353 = vpop.f32.mrf.mxu0
      %v2354 = vadd.f32 0.0, %v2353
      %2355 = vmatmul.f32.gmra.mxu0 %v2232
      %v2356 = vpop.f32.mrf.mxu0
      %v2357 = vadd.f32 0.0, %v2356
      %2358 = vmatmul.f32.gmra.mxu0 %v2235
      %v2359 = vpop.f32.mrf.mxu0
      %v2360 = vadd.f32 0.0, %v2359
      %2361 = vmatmul.f32.gmra.mxu0 %v2238
      %v2362 = vpop.f32.mrf.mxu0
      %v2363 = vadd.f32 0.0, %v2362
      %2364 = vdwg.mxu0
      %v2365 = vadd.f32 %v2057, %v2258
      %v2366 = vadd.f32 %v2058, %v2261
      %v2367 = vadd.f32 %v2059, %v2264
      %v2368 = vadd.f32 %v2060, %v2267
      %v2369 = vadd.f32 %v2061, %v2270
      %v2370 = vadd.f32 %v2062, %v2273
      %v2371 = vadd.f32 %v2063, %v2276
      %v2372 = vadd.f32 %v2064, %v2279
      %v2373 = vadd.f32 %v2065, %v2282
      %v2374 = vadd.f32 %v2066, %v2285
      %v2375 = vadd.f32 %v2067, %v2288
      %v2376 = vadd.f32 %v2068, %v2291
      %v2377 = vadd.f32 %v2069, %v2294
      %v2378 = vadd.f32 %v2070, %v2297
      %v2379 = vadd.f32 %v2071, %v2300
      %v2380 = vadd.f32 %v2072, %v2303
      %v2381 = vadd.f32 %v2073, %v2306
      %v2382 = vadd.f32 %v2074, %v2309
      %v2383 = vadd.f32 %v2075, %v2312
      %v2384 = vadd.f32 %v2076, %v2315
      %v2385 = vadd.f32 %v2077, %v2318
      %v2386 = vadd.f32 %v2078, %v2321
      %v2387 = vadd.f32 %v2079, %v2324
      %v2388 = vadd.f32 %v2080, %v2327
      %v2389 = vadd.f32 %v2081, %v2330
      %v2390 = vadd.f32 %v2082, %v2333
      %v2391 = vadd.f32 %v2083, %v2336
      %v2392 = vadd.f32 %v2084, %v2339
      %v2393 = vadd.f32 %v2085, %v2342
      %v2394 = vadd.f32 %v2086, %v2345
      %v2395 = vadd.f32 %v2087, %v2348
      %v2396 = vadd.f32 %v2088, %v2351
      %v2397 = vadd.f32 %v2089, %v2354
      %v2398 = vadd.f32 %v2090, %v2357
      %v2399 = vadd.f32 %v2091, %v2360
      %v2400 = vadd.f32 %v2092, %v2363
      %v2401 = vld [vmem:[%s2093 + $0x1] sm:$0xff]
      %v2402 = vld [vmem:[%s2093 + $0x9] sm:$0xff]
      %v2403 = vld [vmem:[%s2093 + $0x19] sm:$0xff]
      %v2404 = vld [vmem:[%s2093 + $0x21] sm:$0xff]
      %v2405 = vld [vmem:[%s2093 + $0x31] sm:$0xff]
      %v2406 = vld [vmem:[%s2093 + $0x39] sm:$0xff]
      %v2407 = vld [vmem:[%s2093 + $0x49] sm:$0xff]
      %v2408 = vld [vmem:[%s2093 + $0x51] sm:$0xff]
      %v2409 = vld [vmem:[%s2093 + $0x61] sm:$0xff]
      %v2410 = vld [vmem:[%s2093 + $0x69] sm:$0xff]
      %v2411 = vld [vmem:[%s2093 + $0x79] sm:$0xff]
      %v2412 = vld [vmem:[%s2093 + $0x81] sm:$0xff]
      %v2413 = vld [vmem:[%s2093 + $0x91] sm:$0xff]
      %v2414 = vld [vmem:[%s2093 + $0x99] sm:$0xff]
      %v2415 = vld [vmem:[%s2093 + $0xa9] sm:$0xff]
      %v2416 = vld [vmem:[%s2093 + $0xb1] sm:$0xff]
      %v2417 = vld [vmem:[%s2093 + $0xc1] sm:$0xff]
      %v2418 = vld [vmem:[%s2093 + $0xc9] sm:$0xff]
      %v2419 = vld [vmem:[%s2093 + $0xd9] sm:$0xff]
      %v2420 = vld [vmem:[%s2093 + $0xe1] sm:$0xff]
      %v2421 = vld [vmem:[%s2093 + $0xf1] sm:$0xff]
      %v2422 = vld [vmem:[%s2093 + $0xf9] sm:$0xff]
      %v2423 = vld [vmem:[%s2093 + $0x109] sm:$0xff]
      %v2424 = vld [vmem:[%s2093 + $0x111] sm:$0xff]
      %v2425 = vld [vmem:[%s2093 + $0x121] sm:$0xff]
      %v2426 = vld [vmem:[%s2093 + $0x129] sm:$0xff]
      %v2427 = vld [vmem:[%s2093 + $0x139] sm:$0xff]
      %v2428 = vld [vmem:[%s2093 + $0x141] sm:$0xff]
      %v2429 = vld [vmem:[%s2093 + $0x151] sm:$0xff]
      %v2430 = vld [vmem:[%s2093 + $0x159] sm:$0xff]
      %v2431 = vld [vmem:[%s2093 + $0x169] sm:$0xff]
      %v2432 = vld [vmem:[%s2093 + $0x171] sm:$0xff]
      %v2433 = vld [vmem:[%s2093 + $0x181] sm:$0xff]
      %v2434 = vld [vmem:[%s2093 + $0x189] sm:$0xff]
      %v2435 = vld [vmem:[%s2093 + $0x199] sm:$0xff]
      %v2436 = vld [vmem:[%s2093 + $0x1a1] sm:$0xff]
      %s2437 = scalar_lea.vmem %s3, 32
      %v2438 = vld [vmem:[%s2437] sm:$0xff]
      %v2440 = vsel %vm469, %v2401, 0
      %v2443 = vsel %vm469, %v2402, 0
      %v2446 = vsel %vm469, %v2403, 0
      %v2449 = vsel %vm469, %v2404, 0
      %v2452 = vsel %vm469, %v2405, 0
      %v2455 = vsel %vm469, %v2406, 0
      %v2458 = vsel %vm469, %v2407, 0
      %v2461 = vsel %vm469, %v2408, 0
      %v2464 = vsel %vm469, %v2409, 0
      %v2467 = vsel %vm469, %v2410, 0
      %v2470 = vsel %vm469, %v2411, 0
      %v2473 = vsel %vm469, %v2412, 0
      %v2476 = vsel %vm469, %v2413, 0
      %v2479 = vsel %vm469, %v2414, 0
      %v2482 = vsel %vm469, %v2415, 0
      %v2485 = vsel %vm469, %v2416, 0
      %v2488 = vsel %vm469, %v2417, 0
      %v2491 = vsel %vm469, %v2418, 0
      %v2494 = vsel %vm469, %v2419, 0
      %v2497 = vsel %vm469, %v2420, 0
      %v2500 = vsel %vm469, %v2421, 0
      %v2503 = vsel %vm469, %v2422, 0
      %v2506 = vsel %vm469, %v2423, 0
      %v2509 = vsel %vm469, %v2424, 0
      %v2512 = vsel %vm469, %v2425, 0
      %v2515 = vsel %vm469, %v2426, 0
      %v2518 = vsel %vm469, %v2427, 0
      %v2521 = vsel %vm469, %v2428, 0
      %v2524 = vsel %vm469, %v2429, 0
      %v2527 = vsel %vm469, %v2430, 0
      %v2530 = vsel %vm469, %v2431, 0
      %v2533 = vsel %vm469, %v2432, 0
      %v2536 = vsel %vm469, %v2433, 0
      %v2539 = vsel %vm469, %v2434, 0
      %v2542 = vsel %vm469, %v2435, 0
      %v2545 = vsel %vm469, %v2436, 0
      %2547 = vmatpush.msra.mxu0 0.0
      %2548 = vmatpush.msra.mxu0 0.0
      %2549 = vmatpush.msra.mxu0 0.0
      %2550 = vmatpush.msra.mxu0 0.0
      %2551 = vmatpush.msra.mxu0 0.0
      %2552 = vmatpush.msra.mxu0 0.0
      %2553 = vmatpush.msra.mxu0 0.0
      %2554 = vmatpush.msra.mxu0 0.0
      %2555 = vmatpush.msra.mxu0 0.0
      %2556 = vmatpush.msra.mxu0 0.0
      %2557 = vmatpush.msra.mxu0 0.0
      %2558 = vmatpush.msra.mxu0 0.0
      %2559 = vmatpush.msra.mxu0 0.0
      %2560 = vmatpush.msra.mxu0 0.0
      %2561 = vmatpush.msra.mxu0 0.0
      %2562 = vmatpush.msra.mxu0 %v2438
      %2563 = vmatmul.f32.gmra.mxu0 %v2440
      %v2564 = vpop.f32.mrf.mxu0
      %v2565 = vadd.f32 0.0, %v2564
      %2566 = vmatmul.f32.gmra.mxu0 %v2443
      %v2567 = vpop.f32.mrf.mxu0
      %v2568 = vadd.f32 0.0, %v2567
      %2569 = vmatmul.f32.gmra.mxu0 %v2446
      %v2570 = vpop.f32.mrf.mxu0
      %v2571 = vadd.f32 0.0, %v2570
      %2572 = vmatmul.f32.gmra.mxu0 %v2449
      %v2573 = vpop.f32.mrf.mxu0
      %v2574 = vadd.f32 0.0, %v2573
      %2575 = vmatmul.f32.gmra.mxu0 %v2452
      %v2576 = vpop.f32.mrf.mxu0
      %v2577 = vadd.f32 0.0, %v2576
      %2578 = vmatmul.f32.gmra.mxu0 %v2455
      %v2579 = vpop.f32.mrf.mxu0
      %v2580 = vadd.f32 0.0, %v2579
      %2581 = vmatmul.f32.gmra.mxu0 %v2458
      %v2582 = vpop.f32.mrf.mxu0
      %v2583 = vadd.f32 0.0, %v2582
      %2584 = vmatmul.f32.gmra.mxu0 %v2461
      %v2585 = vpop.f32.mrf.mxu0
      %v2586 = vadd.f32 0.0, %v2585
      %2587 = vmatmul.f32.gmra.mxu0 %v2464
      %v2588 = vpop.f32.mrf.mxu0
      %v2589 = vadd.f32 0.0, %v2588
      %2590 = vmatmul.f32.gmra.mxu0 %v2467
      %v2591 = vpop.f32.mrf.mxu0
      %v2592 = vadd.f32 0.0, %v2591
      %2593 = vmatmul.f32.gmra.mxu0 %v2470
      %v2594 = vpop.f32.mrf.mxu0
      %v2595 = vadd.f32 0.0, %v2594
      %2596 = vmatmul.f32.gmra.mxu0 %v2473
      %v2597 = vpop.f32.mrf.mxu0
      %v2598 = vadd.f32 0.0, %v2597
      %2599 = vmatmul.f32.gmra.mxu0 %v2476
      %v2600 = vpop.f32.mrf.mxu0
      %v2601 = vadd.f32 0.0, %v2600
      %2602 = vmatmul.f32.gmra.mxu0 %v2479
      %v2603 = vpop.f32.mrf.mxu0
      %v2604 = vadd.f32 0.0, %v2603
      %2605 = vmatmul.f32.gmra.mxu0 %v2482
      %v2606 = vpop.f32.mrf.mxu0
      %v2607 = vadd.f32 0.0, %v2606
      %2608 = vmatmul.f32.gmra.mxu0 %v2485
      %v2609 = vpop.f32.mrf.mxu0
      %v2610 = vadd.f32 0.0, %v2609
      %2611 = vmatmul.f32.gmra.mxu0 %v2488
      %v2612 = vpop.f32.mrf.mxu0
      %v2613 = vadd.f32 0.0, %v2612
      %2614 = vmatmul.f32.gmra.mxu0 %v2491
      %v2615 = vpop.f32.mrf.mxu0
      %v2616 = vadd.f32 0.0, %v2615
      %2617 = vmatmul.f32.gmra.mxu0 %v2494
      %v2618 = vpop.f32.mrf.mxu0
      %v2619 = vadd.f32 0.0, %v2618
      %2620 = vmatmul.f32.gmra.mxu0 %v2497
      %v2621 = vpop.f32.mrf.mxu0
      %v2622 = vadd.f32 0.0, %v2621
      %2623 = vmatmul.f32.gmra.mxu0 %v2500
      %v2624 = vpop.f32.mrf.mxu0
      %v2625 = vadd.f32 0.0, %v2624
      %2626 = vmatmul.f32.gmra.mxu0 %v2503
      %v2627 = vpop.f32.mrf.mxu0
      %v2628 = vadd.f32 0.0, %v2627
      %2629 = vmatmul.f32.gmra.mxu0 %v2506
      %v2630 = vpop.f32.mrf.mxu0
      %v2631 = vadd.f32 0.0, %v2630
      %2632 = vmatmul.f32.gmra.mxu0 %v2509
      %v2633 = vpop.f32.mrf.mxu0
      %v2634 = vadd.f32 0.0, %v2633
      %2635 = vmatmul.f32.gmra.mxu0 %v2512
      %v2636 = vpop.f32.mrf.mxu0
      %v2637 = vadd.f32 0.0, %v2636
      %2638 = vmatmul.f32.gmra.mxu0 %v2515
      %v2639 = vpop.f32.mrf.mxu0
      %v2640 = vadd.f32 0.0, %v2639
      %2641 = vmatmul.f32.gmra.mxu0 %v2518
      %v2642 = vpop.f32.mrf.mxu0
      %v2643 = vadd.f32 0.0, %v2642
      %2644 = vmatmul.f32.gmra.mxu0 %v2521
      %v2645 = vpop.f32.mrf.mxu0
      %v2646 = vadd.f32 0.0, %v2645
      %2647 = vmatmul.f32.gmra.mxu0 %v2524
      %v2648 = vpop.f32.mrf.mxu0
      %v2649 = vadd.f32 0.0, %v2648
      %2650 = vmatmul.f32.gmra.mxu0 %v2527
      %v2651 = vpop.f32.mrf.mxu0
      %v2652 = vadd.f32 0.0, %v2651
      %2653 = vmatmul.f32.gmra.mxu0 %v2530
      %v2654 = vpop.f32.mrf.mxu0
      %v2655 = vadd.f32 0.0, %v2654
      %2656 = vmatmul.f32.gmra.mxu0 %v2533
      %v2657 = vpop.f32.mrf.mxu0
      %v2658 = vadd.f32 0.0, %v2657
      %2659 = vmatmul.f32.gmra.mxu0 %v2536
      %v2660 = vpop.f32.mrf.mxu0
      %v2661 = vadd.f32 0.0, %v2660
      %2662 = vmatmul.f32.gmra.mxu0 %v2539
      %v2663 = vpop.f32.mrf.mxu0
      %v2664 = vadd.f32 0.0, %v2663
      %2665 = vmatmul.f32.gmra.mxu0 %v2542
      %v2666 = vpop.f32.mrf.mxu0
      %v2667 = vadd.f32 0.0, %v2666
      %2668 = vmatmul.f32.gmra.mxu0 %v2545
      %v2669 = vpop.f32.mrf.mxu0
      %v2670 = vadd.f32 0.0, %v2669
      %2671 = vdwg.mxu0
      %v2672 = vadd.f32 %v2365, %v2565
      %v2673 = vadd.f32 %v2366, %v2568
      %v2674 = vadd.f32 %v2367, %v2571
      %v2675 = vadd.f32 %v2368, %v2574
      %v2676 = vadd.f32 %v2369, %v2577
      %v2677 = vadd.f32 %v2370, %v2580
      %v2678 = vadd.f32 %v2371, %v2583
      %v2679 = vadd.f32 %v2372, %v2586
      %v2680 = vadd.f32 %v2373, %v2589
      %v2681 = vadd.f32 %v2374, %v2592
      %v2682 = vadd.f32 %v2375, %v2595
      %v2683 = vadd.f32 %v2376, %v2598
      %v2684 = vadd.f32 %v2377, %v2601
      %v2685 = vadd.f32 %v2378, %v2604
      %v2686 = vadd.f32 %v2379, %v2607
      %v2687 = vadd.f32 %v2380, %v2610
      %v2688 = vadd.f32 %v2381, %v2613
      %v2689 = vadd.f32 %v2382, %v2616
      %v2690 = vadd.f32 %v2383, %v2619
      %v2691 = vadd.f32 %v2384, %v2622
      %v2692 = vadd.f32 %v2385, %v2625
      %v2693 = vadd.f32 %v2386, %v2628
      %v2694 = vadd.f32 %v2387, %v2631
      %v2695 = vadd.f32 %v2388, %v2634
      %v2696 = vadd.f32 %v2389, %v2637
      %v2697 = vadd.f32 %v2390, %v2640
      %v2698 = vadd.f32 %v2391, %v2643
      %v2699 = vadd.f32 %v2392, %v2646
      %v2700 = vadd.f32 %v2393, %v2649
      %v2701 = vadd.f32 %v2394, %v2652
      %v2702 = vadd.f32 %v2395, %v2655
      %v2703 = vadd.f32 %v2396, %v2658
      %v2704 = vadd.f32 %v2397, %v2661
      %v2705 = vadd.f32 %v2398, %v2664
      %v2706 = vadd.f32 %v2399, %v2667
      %v2707 = vadd.f32 %v2400, %v2670
      %v2708 = vld [vmem:[%s2093 + $0x2] sm:$0xff]
      %v2709 = vld [vmem:[%s2093 + $0xa] sm:$0xff]
      %v2710 = vld [vmem:[%s2093 + $0x1a] sm:$0xff]
      %v2711 = vld [vmem:[%s2093 + $0x22] sm:$0xff]
      %v2712 = vld [vmem:[%s2093 + $0x32] sm:$0xff]
      %v2713 = vld [vmem:[%s2093 + $0x3a] sm:$0xff]
      %v2714 = vld [vmem:[%s2093 + $0x4a] sm:$0xff]
      %v2715 = vld [vmem:[%s2093 + $0x52] sm:$0xff]
      %v2716 = vld [vmem:[%s2093 + $0x62] sm:$0xff]
      %v2717 = vld [vmem:[%s2093 + $0x6a] sm:$0xff]
      %v2718 = vld [vmem:[%s2093 + $0x7a] sm:$0xff]
      %v2719 = vld [vmem:[%s2093 + $0x82] sm:$0xff]
      %v2720 = vld [vmem:[%s2093 + $0x92] sm:$0xff]
      %v2721 = vld [vmem:[%s2093 + $0x9a] sm:$0xff]
      %v2722 = vld [vmem:[%s2093 + $0xaa] sm:$0xff]
      %v2723 = vld [vmem:[%s2093 + $0xb2] sm:$0xff]
      %v2724 = vld [vmem:[%s2093 + $0xc2] sm:$0xff]
      %v2725 = vld [vmem:[%s2093 + $0xca] sm:$0xff]
      %v2726 = vld [vmem:[%s2093 + $0xda] sm:$0xff]
      %v2727 = vld [vmem:[%s2093 + $0xe2] sm:$0xff]
      %v2728 = vld [vmem:[%s2093 + $0xf2] sm:$0xff]
      %v2729 = vld [vmem:[%s2093 + $0xfa] sm:$0xff]
      %v2730 = vld [vmem:[%s2093 + $0x10a] sm:$0xff]
      %v2731 = vld [vmem:[%s2093 + $0x112] sm:$0xff]
      %v2732 = vld [vmem:[%s2093 + $0x122] sm:$0xff]
      %v2733 = vld [vmem:[%s2093 + $0x12a] sm:$0xff]
      %v2734 = vld [vmem:[%s2093 + $0x13a] sm:$0xff]
      %v2735 = vld [vmem:[%s2093 + $0x142] sm:$0xff]
      %v2736 = vld [vmem:[%s2093 + $0x152] sm:$0xff]
      %v2737 = vld [vmem:[%s2093 + $0x15a] sm:$0xff]
      %v2738 = vld [vmem:[%s2093 + $0x16a] sm:$0xff]
      %v2739 = vld [vmem:[%s2093 + $0x172] sm:$0xff]
      %v2740 = vld [vmem:[%s2093 + $0x182] sm:$0xff]
      %v2741 = vld [vmem:[%s2093 + $0x18a] sm:$0xff]
      %v2742 = vld [vmem:[%s2093 + $0x19a] sm:$0xff]
      %v2743 = vld [vmem:[%s2093 + $0x1a2] sm:$0xff]
      %s2744 = scalar_lea.vmem %s3, 40
      %v2745 = vld [vmem:[%s2744] sm:$0xff]
      %v2747 = vsel %vm469, %v2708, 0
      %v2750 = vsel %vm469, %v2709, 0
      %v2753 = vsel %vm469, %v2710, 0
      %v2756 = vsel %vm469, %v2711, 0
      %v2759 = vsel %vm469, %v2712, 0
      %v2762 = vsel %vm469, %v2713, 0
      %v2765 = vsel %vm469, %v2714, 0
      %v2768 = vsel %vm469, %v2715, 0
      %v2771 = vsel %vm469, %v2716, 0
      %v2774 = vsel %vm469, %v2717, 0
      %v2777 = vsel %vm469, %v2718, 0
      %v2780 = vsel %vm469, %v2719, 0
      %v2783 = vsel %vm469, %v2720, 0
      %v2786 = vsel %vm469, %v2721, 0
      %v2789 = vsel %vm469, %v2722, 0
      %v2792 = vsel %vm469, %v2723, 0
      %v2795 = vsel %vm469, %v2724, 0
      %v2798 = vsel %vm469, %v2725, 0
      %v2801 = vsel %vm469, %v2726, 0
      %v2804 = vsel %vm469, %v2727, 0
      %v2807 = vsel %vm469, %v2728, 0
      %v2810 = vsel %vm469, %v2729, 0
      %v2813 = vsel %vm469, %v2730, 0
      %v2816 = vsel %vm469, %v2731, 0
      %v2819 = vsel %vm469, %v2732, 0
      %v2822 = vsel %vm469, %v2733, 0
      %v2825 = vsel %vm469, %v2734, 0
      %v2828 = vsel %vm469, %v2735, 0
      %v2831 = vsel %vm469, %v2736, 0
      %v2834 = vsel %vm469, %v2737, 0
      %v2837 = vsel %vm469, %v2738, 0
      %v2840 = vsel %vm469, %v2739, 0
      %v2843 = vsel %vm469, %v2740, 0
      %v2846 = vsel %vm469, %v2741, 0
      %v2849 = vsel %vm469, %v2742, 0
      %v2852 = vsel %vm469, %v2743, 0
      %2854 = vmatpush.msra.mxu0 0.0
      %2855 = vmatpush.msra.mxu0 0.0
      %2856 = vmatpush.msra.mxu0 0.0
      %2857 = vmatpush.msra.mxu0 0.0
      %2858 = vmatpush.msra.mxu0 0.0
      %2859 = vmatpush.msra.mxu0 0.0
      %2860 = vmatpush.msra.mxu0 0.0
      %2861 = vmatpush.msra.mxu0 0.0
      %2862 = vmatpush.msra.mxu0 0.0
      %2863 = vmatpush.msra.mxu0 0.0
      %2864 = vmatpush.msra.mxu0 0.0
      %2865 = vmatpush.msra.mxu0 0.0
      %2866 = vmatpush.msra.mxu0 0.0
      %2867 = vmatpush.msra.mxu0 0.0
      %2868 = vmatpush.msra.mxu0 0.0
      %2869 = vmatpush.msra.mxu0 %v2745
      %2870 = vmatmul.f32.gmra.mxu0 %v2747
      %v2871 = vpop.f32.mrf.mxu0
      %v2872 = vadd.f32 0.0, %v2871
      %2873 = vmatmul.f32.gmra.mxu0 %v2750
      %v2874 = vpop.f32.mrf.mxu0
      %v2875 = vadd.f32 0.0, %v2874
      %2876 = vmatmul.f32.gmra.mxu0 %v2753
      %v2877 = vpop.f32.mrf.mxu0
      %v2878 = vadd.f32 0.0, %v2877
      %2879 = vmatmul.f32.gmra.mxu0 %v2756
      %v2880 = vpop.f32.mrf.mxu0
      %v2881 = vadd.f32 0.0, %v2880
      %2882 = vmatmul.f32.gmra.mxu0 %v2759
      %v2883 = vpop.f32.mrf.mxu0
      %v2884 = vadd.f32 0.0, %v2883
      %2885 = vmatmul.f32.gmra.mxu0 %v2762
      %v2886 = vpop.f32.mrf.mxu0
      %v2887 = vadd.f32 0.0, %v2886
      %2888 = vmatmul.f32.gmra.mxu0 %v2765
      %v2889 = vpop.f32.mrf.mxu0
      %v2890 = vadd.f32 0.0, %v2889
      %2891 = vmatmul.f32.gmra.mxu0 %v2768
      %v2892 = vpop.f32.mrf.mxu0
      %v2893 = vadd.f32 0.0, %v2892
      %2894 = vmatmul.f32.gmra.mxu0 %v2771
      %v2895 = vpop.f32.mrf.mxu0
      %v2896 = vadd.f32 0.0, %v2895
      %2897 = vmatmul.f32.gmra.mxu0 %v2774
      %v2898 = vpop.f32.mrf.mxu0
      %v2899 = vadd.f32 0.0, %v2898
      %2900 = vmatmul.f32.gmra.mxu0 %v2777
      %v2901 = vpop.f32.mrf.mxu0
      %v2902 = vadd.f32 0.0, %v2901
      %2903 = vmatmul.f32.gmra.mxu0 %v2780
      %v2904 = vpop.f32.mrf.mxu0
      %v2905 = vadd.f32 0.0, %v2904
      %2906 = vmatmul.f32.gmra.mxu0 %v2783
      %v2907 = vpop.f32.mrf.mxu0
      %v2908 = vadd.f32 0.0, %v2907
      %2909 = vmatmul.f32.gmra.mxu0 %v2786
      %v2910 = vpop.f32.mrf.mxu0
      %v2911 = vadd.f32 0.0, %v2910
      %2912 = vmatmul.f32.gmra.mxu0 %v2789
      %v2913 = vpop.f32.mrf.mxu0
      %v2914 = vadd.f32 0.0, %v2913
      %2915 = vmatmul.f32.gmra.mxu0 %v2792
      %v2916 = vpop.f32.mrf.mxu0
      %v2917 = vadd.f32 0.0, %v2916
      %2918 = vmatmul.f32.gmra.mxu0 %v2795
      %v2919 = vpop.f32.mrf.mxu0
      %v2920 = vadd.f32 0.0, %v2919
      %2921 = vmatmul.f32.gmra.mxu0 %v2798
      %v2922 = vpop.f32.mrf.mxu0
      %v2923 = vadd.f32 0.0, %v2922
      %2924 = vmatmul.f32.gmra.mxu0 %v2801
      %v2925 = vpop.f32.mrf.mxu0
      %v2926 = vadd.f32 0.0, %v2925
      %2927 = vmatmul.f32.gmra.mxu0 %v2804
      %v2928 = vpop.f32.mrf.mxu0
      %v2929 = vadd.f32 0.0, %v2928
      %2930 = vmatmul.f32.gmra.mxu0 %v2807
      %v2931 = vpop.f32.mrf.mxu0
      %v2932 = vadd.f32 0.0, %v2931
      %2933 = vmatmul.f32.gmra.mxu0 %v2810
      %v2934 = vpop.f32.mrf.mxu0
      %v2935 = vadd.f32 0.0, %v2934
      %2936 = vmatmul.f32.gmra.mxu0 %v2813
      %v2937 = vpop.f32.mrf.mxu0
      %v2938 = vadd.f32 0.0, %v2937
      %2939 = vmatmul.f32.gmra.mxu0 %v2816
      %v2940 = vpop.f32.mrf.mxu0
      %v2941 = vadd.f32 0.0, %v2940
      %2942 = vmatmul.f32.gmra.mxu0 %v2819
      %v2943 = vpop.f32.mrf.mxu0
      %v2944 = vadd.f32 0.0, %v2943
      %2945 = vmatmul.f32.gmra.mxu0 %v2822
      %v2946 = vpop.f32.mrf.mxu0
      %v2947 = vadd.f32 0.0, %v2946
      %2948 = vmatmul.f32.gmra.mxu0 %v2825
      %v2949 = vpop.f32.mrf.mxu0
      %v2950 = vadd.f32 0.0, %v2949
      %2951 = vmatmul.f32.gmra.mxu0 %v2828
      %v2952 = vpop.f32.mrf.mxu0
      %v2953 = vadd.f32 0.0, %v2952
      %2954 = vmatmul.f32.gmra.mxu0 %v2831
      %v2955 = vpop.f32.mrf.mxu0
      %v2956 = vadd.f32 0.0, %v2955
      %2957 = vmatmul.f32.gmra.mxu0 %v2834
      %v2958 = vpop.f32.mrf.mxu0
      %v2959 = vadd.f32 0.0, %v2958
      %2960 = vmatmul.f32.gmra.mxu0 %v2837
      %v2961 = vpop.f32.mrf.mxu0
      %v2962 = vadd.f32 0.0, %v2961
      %2963 = vmatmul.f32.gmra.mxu0 %v2840
      %v2964 = vpop.f32.mrf.mxu0
      %v2965 = vadd.f32 0.0, %v2964
      %2966 = vmatmul.f32.gmra.mxu0 %v2843
      %v2967 = vpop.f32.mrf.mxu0
      %v2968 = vadd.f32 0.0, %v2967
      %2969 = vmatmul.f32.gmra.mxu0 %v2846
      %v2970 = vpop.f32.mrf.mxu0
      %v2971 = vadd.f32 0.0, %v2970
      %2972 = vmatmul.f32.gmra.mxu0 %v2849
      %v2973 = vpop.f32.mrf.mxu0
      %v2974 = vadd.f32 0.0, %v2973
      %2975 = vmatmul.f32.gmra.mxu0 %v2852
      %v2976 = vpop.f32.mrf.mxu0
      %v2977 = vadd.f32 0.0, %v2976
      %2978 = vdwg.mxu0
      %v2979 = vadd.f32 %v2672, %v2872
      %v2980 = vadd.f32 %v2673, %v2875
      %v2981 = vadd.f32 %v2674, %v2878
      %v2982 = vadd.f32 %v2675, %v2881
      %v2983 = vadd.f32 %v2676, %v2884
      %v2984 = vadd.f32 %v2677, %v2887
      %v2985 = vadd.f32 %v2678, %v2890
      %v2986 = vadd.f32 %v2679, %v2893
      %v2987 = vadd.f32 %v2680, %v2896
      %v2988 = vadd.f32 %v2681, %v2899
      %v2989 = vadd.f32 %v2682, %v2902
      %v2990 = vadd.f32 %v2683, %v2905
      %v2991 = vadd.f32 %v2684, %v2908
      %v2992 = vadd.f32 %v2685, %v2911
      %v2993 = vadd.f32 %v2686, %v2914
      %v2994 = vadd.f32 %v2687, %v2917
      %v2995 = vadd.f32 %v2688, %v2920
      %v2996 = vadd.f32 %v2689, %v2923
      %v2997 = vadd.f32 %v2690, %v2926
      %v2998 = vadd.f32 %v2691, %v2929
      %v2999 = vadd.f32 %v2692, %v2932
      %v3000 = vadd.f32 %v2693, %v2935
      %v3001 = vadd.f32 %v2694, %v2938
      %v3002 = vadd.f32 %v2695, %v2941
      %v3003 = vadd.f32 %v2696, %v2944
      %v3004 = vadd.f32 %v2697, %v2947
      %v3005 = vadd.f32 %v2698, %v2950
      %v3006 = vadd.f32 %v2699, %v2953
      %v3007 = vadd.f32 %v2700, %v2956
      %v3008 = vadd.f32 %v2701, %v2959
      %v3009 = vadd.f32 %v2702, %v2962
      %v3010 = vadd.f32 %v2703, %v2965
      %v3011 = vadd.f32 %v2704, %v2968
      %v3012 = vadd.f32 %v2705, %v2971
      %v3013 = vadd.f32 %v2706, %v2974
      %v3014 = vadd.f32 %v2707, %v2977
      %s3015 = scalar_lea.vmem [#allocation2], 48
      %v3016 = vld [vmem:[%s3015] sm:$0xff]
      %v3017 = vld [vmem:[%s3015 + $0x8] sm:$0xff]
      %v3018 = vld [vmem:[%s3015 + $0x18] sm:$0xff]
      %v3019 = vld [vmem:[%s3015 + $0x20] sm:$0xff]
      %v3020 = vld [vmem:[%s3015 + $0x30] sm:$0xff]
      %v3021 = vld [vmem:[%s3015 + $0x38] sm:$0xff]
      %v3022 = vld [vmem:[%s3015 + $0x48] sm:$0xff]
      %v3023 = vld [vmem:[%s3015 + $0x50] sm:$0xff]
      %v3024 = vld [vmem:[%s3015 + $0x60] sm:$0xff]
      %v3025 = vld [vmem:[%s3015 + $0x68] sm:$0xff]
      %v3026 = vld [vmem:[%s3015 + $0x78] sm:$0xff]
      %v3027 = vld [vmem:[%s3015 + $0x80] sm:$0xff]
      %v3028 = vld [vmem:[%s3015 + $0x90] sm:$0xff]
      %v3029 = vld [vmem:[%s3015 + $0x98] sm:$0xff]
      %v3030 = vld [vmem:[%s3015 + $0xa8] sm:$0xff]
      %v3031 = vld [vmem:[%s3015 + $0xb0] sm:$0xff]
      %v3032 = vld [vmem:[%s3015 + $0xc0] sm:$0xff]
      %v3033 = vld [vmem:[%s3015 + $0xc8] sm:$0xff]
      %v3034 = vld [vmem:[%s3015 + $0xd8] sm:$0xff]
      %v3035 = vld [vmem:[%s3015 + $0xe0] sm:$0xff]
      %v3036 = vld [vmem:[%s3015 + $0xf0] sm:$0xff]
      %v3037 = vld [vmem:[%s3015 + $0xf8] sm:$0xff]
      %v3038 = vld [vmem:[%s3015 + $0x108] sm:$0xff]
      %v3039 = vld [vmem:[%s3015 + $0x110] sm:$0xff]
      %v3040 = vld [vmem:[%s3015 + $0x120] sm:$0xff]
      %v3041 = vld [vmem:[%s3015 + $0x128] sm:$0xff]
      %v3042 = vld [vmem:[%s3015 + $0x138] sm:$0xff]
      %v3043 = vld [vmem:[%s3015 + $0x140] sm:$0xff]
      %v3044 = vld [vmem:[%s3015 + $0x150] sm:$0xff]
      %v3045 = vld [vmem:[%s3015 + $0x158] sm:$0xff]
      %v3046 = vld [vmem:[%s3015 + $0x168] sm:$0xff]
      %v3047 = vld [vmem:[%s3015 + $0x170] sm:$0xff]
      %v3048 = vld [vmem:[%s3015 + $0x180] sm:$0xff]
      %v3049 = vld [vmem:[%s3015 + $0x188] sm:$0xff]
      %v3050 = vld [vmem:[%s3015 + $0x198] sm:$0xff]
      %v3051 = vld [vmem:[%s3015 + $0x1a0] sm:$0xff]
      %s3052 = scalar_lea.vmem %s3, 48
      %v3053 = vld [vmem:[%s3052] sm:$0xff]
      %v3055 = vsel %vm469, %v3016, 0
      %v3058 = vsel %vm469, %v3017, 0
      %v3061 = vsel %vm469, %v3018, 0
      %v3064 = vsel %vm469, %v3019, 0
      %v3067 = vsel %vm469, %v3020, 0
      %v3070 = vsel %vm469, %v3021, 0
      %v3073 = vsel %vm469, %v3022, 0
      %v3076 = vsel %vm469, %v3023, 0
      %v3079 = vsel %vm469, %v3024, 0
      %v3082 = vsel %vm469, %v3025, 0
      %v3085 = vsel %vm469, %v3026, 0
      %v3088 = vsel %vm469, %v3027, 0
      %v3091 = vsel %vm469, %v3028, 0
      %v3094 = vsel %vm469, %v3029, 0
      %v3097 = vsel %vm469, %v3030, 0
      %v3100 = vsel %vm469, %v3031, 0
      %v3103 = vsel %vm469, %v3032, 0
      %v3106 = vsel %vm469, %v3033, 0
      %v3109 = vsel %vm469, %v3034, 0
      %v3112 = vsel %vm469, %v3035, 0
      %v3115 = vsel %vm469, %v3036, 0
      %v3118 = vsel %vm469, %v3037, 0
      %v3121 = vsel %vm469, %v3038, 0
      %v3124 = vsel %vm469, %v3039, 0
      %v3127 = vsel %vm469, %v3040, 0
      %v3130 = vsel %vm469, %v3041, 0
      %v3133 = vsel %vm469, %v3042, 0
      %v3136 = vsel %vm469, %v3043, 0
      %v3139 = vsel %vm469, %v3044, 0
      %v3142 = vsel %vm469, %v3045, 0
      %v3145 = vsel %vm469, %v3046, 0
      %v3148 = vsel %vm469, %v3047, 0
      %v3151 = vsel %vm469, %v3048, 0
      %v3154 = vsel %vm469, %v3049, 0
      %v3157 = vsel %vm469, %v3050, 0
      %v3160 = vsel %vm469, %v3051, 0
      %3162 = vmatpush.msra.mxu0 0.0
      %3163 = vmatpush.msra.mxu0 0.0
      %3164 = vmatpush.msra.mxu0 0.0
      %3165 = vmatpush.msra.mxu0 0.0
      %3166 = vmatpush.msra.mxu0 0.0
      %3167 = vmatpush.msra.mxu0 0.0
      %3168 = vmatpush.msra.mxu0 0.0
      %3169 = vmatpush.msra.mxu0 0.0
      %3170 = vmatpush.msra.mxu0 0.0
      %3171 = vmatpush.msra.mxu0 0.0
      %3172 = vmatpush.msra.mxu0 0.0
      %3173 = vmatpush.msra.mxu0 0.0
      %3174 = vmatpush.msra.mxu0 0.0
      %3175 = vmatpush.msra.mxu0 0.0
      %3176 = vmatpush.msra.mxu0 0.0
      %3177 = vmatpush.msra.mxu0 %v3053
      %3178 = vmatmul.f32.gmra.mxu0 %v3055
      %v3179 = vpop.f32.mrf.mxu0
      %v3180 = vadd.f32 0.0, %v3179
      %3181 = vmatmul.f32.gmra.mxu0 %v3058
      %v3182 = vpop.f32.mrf.mxu0
      %v3183 = vadd.f32 0.0, %v3182
      %3184 = vmatmul.f32.gmra.mxu0 %v3061
      %v3185 = vpop.f32.mrf.mxu0
      %v3186 = vadd.f32 0.0, %v3185
      %3187 = vmatmul.f32.gmra.mxu0 %v3064
      %v3188 = vpop.f32.mrf.mxu0
      %v3189 = vadd.f32 0.0, %v3188
      %3190 = vmatmul.f32.gmra.mxu0 %v3067
      %v3191 = vpop.f32.mrf.mxu0
      %v3192 = vadd.f32 0.0, %v3191
      %3193 = vmatmul.f32.gmra.mxu0 %v3070
      %v3194 = vpop.f32.mrf.mxu0
      %v3195 = vadd.f32 0.0, %v3194
      %3196 = vmatmul.f32.gmra.mxu0 %v3073
      %v3197 = vpop.f32.mrf.mxu0
      %v3198 = vadd.f32 0.0, %v3197
      %3199 = vmatmul.f32.gmra.mxu0 %v3076
      %v3200 = vpop.f32.mrf.mxu0
      %v3201 = vadd.f32 0.0, %v3200
      %3202 = vmatmul.f32.gmra.mxu0 %v3079
      %v3203 = vpop.f32.mrf.mxu0
      %v3204 = vadd.f32 0.0, %v3203
      %3205 = vmatmul.f32.gmra.mxu0 %v3082
      %v3206 = vpop.f32.mrf.mxu0
      %v3207 = vadd.f32 0.0, %v3206
      %3208 = vmatmul.f32.gmra.mxu0 %v3085
      %v3209 = vpop.f32.mrf.mxu0
      %v3210 = vadd.f32 0.0, %v3209
      %3211 = vmatmul.f32.gmra.mxu0 %v3088
      %v3212 = vpop.f32.mrf.mxu0
      %v3213 = vadd.f32 0.0, %v3212
      %3214 = vmatmul.f32.gmra.mxu0 %v3091
      %v3215 = vpop.f32.mrf.mxu0
      %v3216 = vadd.f32 0.0, %v3215
      %3217 = vmatmul.f32.gmra.mxu0 %v3094
      %v3218 = vpop.f32.mrf.mxu0
      %v3219 = vadd.f32 0.0, %v3218
      %3220 = vmatmul.f32.gmra.mxu0 %v3097
      %v3221 = vpop.f32.mrf.mxu0
      %v3222 = vadd.f32 0.0, %v3221
      %3223 = vmatmul.f32.gmra.mxu0 %v3100
      %v3224 = vpop.f32.mrf.mxu0
      %v3225 = vadd.f32 0.0, %v3224
      %3226 = vmatmul.f32.gmra.mxu0 %v3103
      %v3227 = vpop.f32.mrf.mxu0
      %v3228 = vadd.f32 0.0, %v3227
      %3229 = vmatmul.f32.gmra.mxu0 %v3106
      %v3230 = vpop.f32.mrf.mxu0
      %v3231 = vadd.f32 0.0, %v3230
      %3232 = vmatmul.f32.gmra.mxu0 %v3109
      %v3233 = vpop.f32.mrf.mxu0
      %v3234 = vadd.f32 0.0, %v3233
      %3235 = vmatmul.f32.gmra.mxu0 %v3112
      %v3236 = vpop.f32.mrf.mxu0
      %v3237 = vadd.f32 0.0, %v3236
      %3238 = vmatmul.f32.gmra.mxu0 %v3115
      %v3239 = vpop.f32.mrf.mxu0
      %v3240 = vadd.f32 0.0, %v3239
      %3241 = vmatmul.f32.gmra.mxu0 %v3118
      %v3242 = vpop.f32.mrf.mxu0
      %v3243 = vadd.f32 0.0, %v3242
      %3244 = vmatmul.f32.gmra.mxu0 %v3121
      %v3245 = vpop.f32.mrf.mxu0
      %v3246 = vadd.f32 0.0, %v3245
      %3247 = vmatmul.f32.gmra.mxu0 %v3124
      %v3248 = vpop.f32.mrf.mxu0
      %v3249 = vadd.f32 0.0, %v3248
      %3250 = vmatmul.f32.gmra.mxu0 %v3127
      %v3251 = vpop.f32.mrf.mxu0
      %v3252 = vadd.f32 0.0, %v3251
      %3253 = vmatmul.f32.gmra.mxu0 %v3130
      %v3254 = vpop.f32.mrf.mxu0
      %v3255 = vadd.f32 0.0, %v3254
      %3256 = vmatmul.f32.gmra.mxu0 %v3133
      %v3257 = vpop.f32.mrf.mxu0
      %v3258 = vadd.f32 0.0, %v3257
      %3259 = vmatmul.f32.gmra.mxu0 %v3136
      %v3260 = vpop.f32.mrf.mxu0
      %v3261 = vadd.f32 0.0, %v3260
      %3262 = vmatmul.f32.gmra.mxu0 %v3139
      %v3263 = vpop.f32.mrf.mxu0
      %v3264 = vadd.f32 0.0, %v3263
      %3265 = vmatmul.f32.gmra.mxu0 %v3142
      %v3266 = vpop.f32.mrf.mxu0
      %v3267 = vadd.f32 0.0, %v3266
      %3268 = vmatmul.f32.gmra.mxu0 %v3145
      %v3269 = vpop.f32.mrf.mxu0
      %v3270 = vadd.f32 0.0, %v3269
      %3271 = vmatmul.f32.gmra.mxu0 %v3148
      %v3272 = vpop.f32.mrf.mxu0
      %v3273 = vadd.f32 0.0, %v3272
      %3274 = vmatmul.f32.gmra.mxu0 %v3151
      %v3275 = vpop.f32.mrf.mxu0
      %v3276 = vadd.f32 0.0, %v3275
      %3277 = vmatmul.f32.gmra.mxu0 %v3154
      %v3278 = vpop.f32.mrf.mxu0
      %v3279 = vadd.f32 0.0, %v3278
      %3280 = vmatmul.f32.gmra.mxu0 %v3157
      %v3281 = vpop.f32.mrf.mxu0
      %v3282 = vadd.f32 0.0, %v3281
      %3283 = vmatmul.f32.gmra.mxu0 %v3160
      %v3284 = vpop.f32.mrf.mxu0
      %v3285 = vadd.f32 0.0, %v3284
      %3286 = vdwg.mxu0
      %v3287 = vadd.f32 %v2979, %v3180
      %v3288 = vadd.f32 %v2980, %v3183
      %v3289 = vadd.f32 %v2981, %v3186
      %v3290 = vadd.f32 %v2982, %v3189
      %v3291 = vadd.f32 %v2983, %v3192
      %v3292 = vadd.f32 %v2984, %v3195
      %v3293 = vadd.f32 %v2985, %v3198
      %v3294 = vadd.f32 %v2986, %v3201
      %v3295 = vadd.f32 %v2987, %v3204
      %v3296 = vadd.f32 %v2988, %v3207
      %v3297 = vadd.f32 %v2989, %v3210
      %v3298 = vadd.f32 %v2990, %v3213
      %v3299 = vadd.f32 %v2991, %v3216
      %v3300 = vadd.f32 %v2992, %v3219
      %v3301 = vadd.f32 %v2993, %v3222
      %v3302 = vadd.f32 %v2994, %v3225
      %v3303 = vadd.f32 %v2995, %v3228
      %v3304 = vadd.f32 %v2996, %v3231
      %v3305 = vadd.f32 %v2997, %v3234
      %v3306 = vadd.f32 %v2998, %v3237
      %v3307 = vadd.f32 %v2999, %v3240
      %v3308 = vadd.f32 %v3000, %v3243
      %v3309 = vadd.f32 %v3001, %v3246
      %v3310 = vadd.f32 %v3002, %v3249
      %v3311 = vadd.f32 %v3003, %v3252
      %v3312 = vadd.f32 %v3004, %v3255
      %v3313 = vadd.f32 %v3005, %v3258
      %v3314 = vadd.f32 %v3006, %v3261
      %v3315 = vadd.f32 %v3007, %v3264
      %v3316 = vadd.f32 %v3008, %v3267
      %v3317 = vadd.f32 %v3009, %v3270
      %v3318 = vadd.f32 %v3010, %v3273
      %v3319 = vadd.f32 %v3011, %v3276
      %v3320 = vadd.f32 %v3012, %v3279
      %v3321 = vadd.f32 %v3013, %v3282
      %v3322 = vadd.f32 %v3014, %v3285
      %v3323 = vld [vmem:[%s3015 + $0x1] sm:$0xff]
      %v3324 = vld [vmem:[%s3015 + $0x9] sm:$0xff]
      %v3325 = vld [vmem:[%s3015 + $0x19] sm:$0xff]
      %v3326 = vld [vmem:[%s3015 + $0x21] sm:$0xff]
      %v3327 = vld [vmem:[%s3015 + $0x31] sm:$0xff]
      %v3328 = vld [vmem:[%s3015 + $0x39] sm:$0xff]
      %v3329 = vld [vmem:[%s3015 + $0x49] sm:$0xff]
      %v3330 = vld [vmem:[%s3015 + $0x51] sm:$0xff]
      %v3331 = vld [vmem:[%s3015 + $0x61] sm:$0xff]
      %v3332 = vld [vmem:[%s3015 + $0x69] sm:$0xff]
      %v3333 = vld [vmem:[%s3015 + $0x79] sm:$0xff]
      %v3334 = vld [vmem:[%s3015 + $0x81] sm:$0xff]
      %v3335 = vld [vmem:[%s3015 + $0x91] sm:$0xff]
      %v3336 = vld [vmem:[%s3015 + $0x99] sm:$0xff]
      %v3337 = vld [vmem:[%s3015 + $0xa9] sm:$0xff]
      %v3338 = vld [vmem:[%s3015 + $0xb1] sm:$0xff]
      %v3339 = vld [vmem:[%s3015 + $0xc1] sm:$0xff]
      %v3340 = vld [vmem:[%s3015 + $0xc9] sm:$0xff]
      %v3341 = vld [vmem:[%s3015 + $0xd9] sm:$0xff]
      %v3342 = vld [vmem:[%s3015 + $0xe1] sm:$0xff]
      %v3343 = vld [vmem:[%s3015 + $0xf1] sm:$0xff]
      %v3344 = vld [vmem:[%s3015 + $0xf9] sm:$0xff]
      %v3345 = vld [vmem:[%s3015 + $0x109] sm:$0xff]
      %v3346 = vld [vmem:[%s3015 + $0x111] sm:$0xff]
      %v3347 = vld [vmem:[%s3015 + $0x121] sm:$0xff]
      %v3348 = vld [vmem:[%s3015 + $0x129] sm:$0xff]
      %v3349 = vld [vmem:[%s3015 + $0x139] sm:$0xff]
      %v3350 = vld [vmem:[%s3015 + $0x141] sm:$0xff]
      %v3351 = vld [vmem:[%s3015 + $0x151] sm:$0xff]
      %v3352 = vld [vmem:[%s3015 + $0x159] sm:$0xff]
      %v3353 = vld [vmem:[%s3015 + $0x169] sm:$0xff]
      %v3354 = vld [vmem:[%s3015 + $0x171] sm:$0xff]
      %v3355 = vld [vmem:[%s3015 + $0x181] sm:$0xff]
      %v3356 = vld [vmem:[%s3015 + $0x189] sm:$0xff]
      %v3357 = vld [vmem:[%s3015 + $0x199] sm:$0xff]
      %v3358 = vld [vmem:[%s3015 + $0x1a1] sm:$0xff]
      %s3359 = scalar_lea.vmem %s3, 56
      %v3360 = vld [vmem:[%s3359] sm:$0xff]
      %v3362 = vsel %vm469, %v3323, 0
      %v3365 = vsel %vm469, %v3324, 0
      %v3368 = vsel %vm469, %v3325, 0
      %v3371 = vsel %vm469, %v3326, 0
      %v3374 = vsel %vm469, %v3327, 0
      %v3377 = vsel %vm469, %v3328, 0
      %v3380 = vsel %vm469, %v3329, 0
      %v3383 = vsel %vm469, %v3330, 0
      %v3386 = vsel %vm469, %v3331, 0
      %v3389 = vsel %vm469, %v3332, 0
      %v3392 = vsel %vm469, %v3333, 0
      %v3395 = vsel %vm469, %v3334, 0
      %v3398 = vsel %vm469, %v3335, 0
      %v3401 = vsel %vm469, %v3336, 0
      %v3404 = vsel %vm469, %v3337, 0
      %v3407 = vsel %vm469, %v3338, 0
      %v3410 = vsel %vm469, %v3339, 0
      %v3413 = vsel %vm469, %v3340, 0
      %v3416 = vsel %vm469, %v3341, 0
      %v3419 = vsel %vm469, %v3342, 0
      %v3422 = vsel %vm469, %v3343, 0
      %v3425 = vsel %vm469, %v3344, 0
      %v3428 = vsel %vm469, %v3345, 0
      %v3431 = vsel %vm469, %v3346, 0
      %v3434 = vsel %vm469, %v3347, 0
      %v3437 = vsel %vm469, %v3348, 0
      %v3440 = vsel %vm469, %v3349, 0
      %v3443 = vsel %vm469, %v3350, 0
      %v3446 = vsel %vm469, %v3351, 0
      %v3449 = vsel %vm469, %v3352, 0
      %v3452 = vsel %vm469, %v3353, 0
      %v3455 = vsel %vm469, %v3354, 0
      %v3458 = vsel %vm469, %v3355, 0
      %v3461 = vsel %vm469, %v3356, 0
      %v3464 = vsel %vm469, %v3357, 0
      %v3467 = vsel %vm469, %v3358, 0
      %3469 = vmatpush.msra.mxu0 0.0
      %3470 = vmatpush.msra.mxu0 0.0
      %3471 = vmatpush.msra.mxu0 0.0
      %3472 = vmatpush.msra.mxu0 0.0
      %3473 = vmatpush.msra.mxu0 0.0
      %3474 = vmatpush.msra.mxu0 0.0
      %3475 = vmatpush.msra.mxu0 0.0
      %3476 = vmatpush.msra.mxu0 0.0
      %3477 = vmatpush.msra.mxu0 0.0
      %3478 = vmatpush.msra.mxu0 0.0
      %3479 = vmatpush.msra.mxu0 0.0
      %3480 = vmatpush.msra.mxu0 0.0
      %3481 = vmatpush.msra.mxu0 0.0
      %3482 = vmatpush.msra.mxu0 0.0
      %3483 = vmatpush.msra.mxu0 0.0
      %3484 = vmatpush.msra.mxu0 %v3360
      %3485 = vmatmul.f32.gmra.mxu0 %v3362
      %v3486 = vpop.f32.mrf.mxu0
      %v3487 = vadd.f32 0.0, %v3486
      %3488 = vmatmul.f32.gmra.mxu0 %v3365
      %v3489 = vpop.f32.mrf.mxu0
      %v3490 = vadd.f32 0.0, %v3489
      %3491 = vmatmul.f32.gmra.mxu0 %v3368
      %v3492 = vpop.f32.mrf.mxu0
      %v3493 = vadd.f32 0.0, %v3492
      %3494 = vmatmul.f32.gmra.mxu0 %v3371
      %v3495 = vpop.f32.mrf.mxu0
      %v3496 = vadd.f32 0.0, %v3495
      %3497 = vmatmul.f32.gmra.mxu0 %v3374
      %v3498 = vpop.f32.mrf.mxu0
      %v3499 = vadd.f32 0.0, %v3498
      %3500 = vmatmul.f32.gmra.mxu0 %v3377
      %v3501 = vpop.f32.mrf.mxu0
      %v3502 = vadd.f32 0.0, %v3501
      %3503 = vmatmul.f32.gmra.mxu0 %v3380
      %v3504 = vpop.f32.mrf.mxu0
      %v3505 = vadd.f32 0.0, %v3504
      %3506 = vmatmul.f32.gmra.mxu0 %v3383
      %v3507 = vpop.f32.mrf.mxu0
      %v3508 = vadd.f32 0.0, %v3507
      %3509 = vmatmul.f32.gmra.mxu0 %v3386
      %v3510 = vpop.f32.mrf.mxu0
      %v3511 = vadd.f32 0.0, %v3510
      %3512 = vmatmul.f32.gmra.mxu0 %v3389
      %v3513 = vpop.f32.mrf.mxu0
      %v3514 = vadd.f32 0.0, %v3513
      %3515 = vmatmul.f32.gmra.mxu0 %v3392
      %v3516 = vpop.f32.mrf.mxu0
      %v3517 = vadd.f32 0.0, %v3516
      %3518 = vmatmul.f32.gmra.mxu0 %v3395
      %v3519 = vpop.f32.mrf.mxu0
      %v3520 = vadd.f32 0.0, %v3519
      %3521 = vmatmul.f32.gmra.mxu0 %v3398
      %v3522 = vpop.f32.mrf.mxu0
      %v3523 = vadd.f32 0.0, %v3522
      %3524 = vmatmul.f32.gmra.mxu0 %v3401
      %v3525 = vpop.f32.mrf.mxu0
      %v3526 = vadd.f32 0.0, %v3525
      %3527 = vmatmul.f32.gmra.mxu0 %v3404
      %v3528 = vpop.f32.mrf.mxu0
      %v3529 = vadd.f32 0.0, %v3528
      %3530 = vmatmul.f32.gmra.mxu0 %v3407
      %v3531 = vpop.f32.mrf.mxu0
      %v3532 = vadd.f32 0.0, %v3531
      %3533 = vmatmul.f32.gmra.mxu0 %v3410
      %v3534 = vpop.f32.mrf.mxu0
      %v3535 = vadd.f32 0.0, %v3534
      %3536 = vmatmul.f32.gmra.mxu0 %v3413
      %v3537 = vpop.f32.mrf.mxu0
      %v3538 = vadd.f32 0.0, %v3537
      %3539 = vmatmul.f32.gmra.mxu0 %v3416
      %v3540 = vpop.f32.mrf.mxu0
      %v3541 = vadd.f32 0.0, %v3540
      %3542 = vmatmul.f32.gmra.mxu0 %v3419
      %v3543 = vpop.f32.mrf.mxu0
      %v3544 = vadd.f32 0.0, %v3543
      %3545 = vmatmul.f32.gmra.mxu0 %v3422
      %v3546 = vpop.f32.mrf.mxu0
      %v3547 = vadd.f32 0.0, %v3546
      %3548 = vmatmul.f32.gmra.mxu0 %v3425
      %v3549 = vpop.f32.mrf.mxu0
      %v3550 = vadd.f32 0.0, %v3549
      %3551 = vmatmul.f32.gmra.mxu0 %v3428
      %v3552 = vpop.f32.mrf.mxu0
      %v3553 = vadd.f32 0.0, %v3552
      %3554 = vmatmul.f32.gmra.mxu0 %v3431
      %v3555 = vpop.f32.mrf.mxu0
      %v3556 = vadd.f32 0.0, %v3555
      %3557 = vmatmul.f32.gmra.mxu0 %v3434
      %v3558 = vpop.f32.mrf.mxu0
      %v3559 = vadd.f32 0.0, %v3558
      %3560 = vmatmul.f32.gmra.mxu0 %v3437
      %v3561 = vpop.f32.mrf.mxu0
      %v3562 = vadd.f32 0.0, %v3561
      %3563 = vmatmul.f32.gmra.mxu0 %v3440
      %v3564 = vpop.f32.mrf.mxu0
      %v3565 = vadd.f32 0.0, %v3564
      %3566 = vmatmul.f32.gmra.mxu0 %v3443
      %v3567 = vpop.f32.mrf.mxu0
      %v3568 = vadd.f32 0.0, %v3567
      %3569 = vmatmul.f32.gmra.mxu0 %v3446
      %v3570 = vpop.f32.mrf.mxu0
      %v3571 = vadd.f32 0.0, %v3570
      %3572 = vmatmul.f32.gmra.mxu0 %v3449
      %v3573 = vpop.f32.mrf.mxu0
      %v3574 = vadd.f32 0.0, %v3573
      %3575 = vmatmul.f32.gmra.mxu0 %v3452
      %v3576 = vpop.f32.mrf.mxu0
      %v3577 = vadd.f32 0.0, %v3576
      %3578 = vmatmul.f32.gmra.mxu0 %v3455
      %v3579 = vpop.f32.mrf.mxu0
      %v3580 = vadd.f32 0.0, %v3579
      %3581 = vmatmul.f32.gmra.mxu0 %v3458
      %v3582 = vpop.f32.mrf.mxu0
      %v3583 = vadd.f32 0.0, %v3582
      %3584 = vmatmul.f32.gmra.mxu0 %v3461
      %v3585 = vpop.f32.mrf.mxu0
      %v3586 = vadd.f32 0.0, %v3585
      %3587 = vmatmul.f32.gmra.mxu0 %v3464
      %v3588 = vpop.f32.mrf.mxu0
      %v3589 = vadd.f32 0.0, %v3588
      %3590 = vmatmul.f32.gmra.mxu0 %v3467
      %v3591 = vpop.f32.mrf.mxu0
      %v3592 = vadd.f32 0.0, %v3591
      %3593 = vdwg.mxu0
      %v3594 = vadd.f32 %v3287, %v3487
      %v3595 = vadd.f32 %v3288, %v3490
      %v3596 = vadd.f32 %v3289, %v3493
      %v3597 = vadd.f32 %v3290, %v3496
      %v3598 = vadd.f32 %v3291, %v3499
      %v3599 = vadd.f32 %v3292, %v3502
      %v3600 = vadd.f32 %v3293, %v3505
      %v3601 = vadd.f32 %v3294, %v3508
      %v3602 = vadd.f32 %v3295, %v3511
      %v3603 = vadd.f32 %v3296, %v3514
      %v3604 = vadd.f32 %v3297, %v3517
      %v3605 = vadd.f32 %v3298, %v3520
      %v3606 = vadd.f32 %v3299, %v3523
      %v3607 = vadd.f32 %v3300, %v3526
      %v3608 = vadd.f32 %v3301, %v3529
      %v3609 = vadd.f32 %v3302, %v3532
      %v3610 = vadd.f32 %v3303, %v3535
      %v3611 = vadd.f32 %v3304, %v3538
      %v3612 = vadd.f32 %v3305, %v3541
      %v3613 = vadd.f32 %v3306, %v3544
      %v3614 = vadd.f32 %v3307, %v3547
      %v3615 = vadd.f32 %v3308, %v3550
      %v3616 = vadd.f32 %v3309, %v3553
      %v3617 = vadd.f32 %v3310, %v3556
      %v3618 = vadd.f32 %v3311, %v3559
      %v3619 = vadd.f32 %v3312, %v3562
      %v3620 = vadd.f32 %v3313, %v3565
      %v3621 = vadd.f32 %v3314, %v3568
      %v3622 = vadd.f32 %v3315, %v3571
      %v3623 = vadd.f32 %v3316, %v3574
      %v3624 = vadd.f32 %v3317, %v3577
      %v3625 = vadd.f32 %v3318, %v3580
      %v3626 = vadd.f32 %v3319, %v3583
      %v3627 = vadd.f32 %v3320, %v3586
      %v3628 = vadd.f32 %v3321, %v3589
      %v3629 = vadd.f32 %v3322, %v3592
      %v3630 = vld [vmem:[%s3015 + $0x2] sm:$0xff]
      %v3631 = vld [vmem:[%s3015 + $0xa] sm:$0xff]
      %v3632 = vld [vmem:[%s3015 + $0x1a] sm:$0xff]
      %v3633 = vld [vmem:[%s3015 + $0x22] sm:$0xff]
      %v3634 = vld [vmem:[%s3015 + $0x32] sm:$0xff]
      %v3635 = vld [vmem:[%s3015 + $0x3a] sm:$0xff]
      %v3636 = vld [vmem:[%s3015 + $0x4a] sm:$0xff]
      %v3637 = vld [vmem:[%s3015 + $0x52] sm:$0xff]
      %v3638 = vld [vmem:[%s3015 + $0x62] sm:$0xff]
      %v3639 = vld [vmem:[%s3015 + $0x6a] sm:$0xff]
      %v3640 = vld [vmem:[%s3015 + $0x7a] sm:$0xff]
      %v3641 = vld [vmem:[%s3015 + $0x82] sm:$0xff]
      %v3642 = vld [vmem:[%s3015 + $0x92] sm:$0xff]
      %v3643 = vld [vmem:[%s3015 + $0x9a] sm:$0xff]
      %v3644 = vld [vmem:[%s3015 + $0xaa] sm:$0xff]
      %v3645 = vld [vmem:[%s3015 + $0xb2] sm:$0xff]
      %v3646 = vld [vmem:[%s3015 + $0xc2] sm:$0xff]
      %v3647 = vld [vmem:[%s3015 + $0xca] sm:$0xff]
      %v3648 = vld [vmem:[%s3015 + $0xda] sm:$0xff]
      %v3649 = vld [vmem:[%s3015 + $0xe2] sm:$0xff]
      %v3650 = vld [vmem:[%s3015 + $0xf2] sm:$0xff]
      %v3651 = vld [vmem:[%s3015 + $0xfa] sm:$0xff]
      %v3652 = vld [vmem:[%s3015 + $0x10a] sm:$0xff]
      %v3653 = vld [vmem:[%s3015 + $0x112] sm:$0xff]
      %v3654 = vld [vmem:[%s3015 + $0x122] sm:$0xff]
      %v3655 = vld [vmem:[%s3015 + $0x12a] sm:$0xff]
      %v3656 = vld [vmem:[%s3015 + $0x13a] sm:$0xff]
      %v3657 = vld [vmem:[%s3015 + $0x142] sm:$0xff]
      %v3658 = vld [vmem:[%s3015 + $0x152] sm:$0xff]
      %v3659 = vld [vmem:[%s3015 + $0x15a] sm:$0xff]
      %v3660 = vld [vmem:[%s3015 + $0x16a] sm:$0xff]
      %v3661 = vld [vmem:[%s3015 + $0x172] sm:$0xff]
      %v3662 = vld [vmem:[%s3015 + $0x182] sm:$0xff]
      %v3663 = vld [vmem:[%s3015 + $0x18a] sm:$0xff]
      %v3664 = vld [vmem:[%s3015 + $0x19a] sm:$0xff]
      %v3665 = vld [vmem:[%s3015 + $0x1a2] sm:$0xff]
      %s3666 = scalar_lea.vmem %s3, 64
      %v3667 = vld [vmem:[%s3666] sm:$0xff]
      %v3669 = vsel %vm469, %v3630, 0
      %v3672 = vsel %vm469, %v3631, 0
      %v3675 = vsel %vm469, %v3632, 0
      %v3678 = vsel %vm469, %v3633, 0
      %v3681 = vsel %vm469, %v3634, 0
      %v3684 = vsel %vm469, %v3635, 0
      %v3687 = vsel %vm469, %v3636, 0
      %v3690 = vsel %vm469, %v3637, 0
      %v3693 = vsel %vm469, %v3638, 0
      %v3696 = vsel %vm469, %v3639, 0
      %v3699 = vsel %vm469, %v3640, 0
      %v3702 = vsel %vm469, %v3641, 0
      %v3705 = vsel %vm469, %v3642, 0
      %v3708 = vsel %vm469, %v3643, 0
      %v3711 = vsel %vm469, %v3644, 0
      %v3714 = vsel %vm469, %v3645, 0
      %v3717 = vsel %vm469, %v3646, 0
      %v3720 = vsel %vm469, %v3647, 0
      %v3723 = vsel %vm469, %v3648, 0
      %v3726 = vsel %vm469, %v3649, 0
      %v3729 = vsel %vm469, %v3650, 0
      %v3732 = vsel %vm469, %v3651, 0
      %v3735 = vsel %vm469, %v3652, 0
      %v3738 = vsel %vm469, %v3653, 0
      %v3741 = vsel %vm469, %v3654, 0
      %v3744 = vsel %vm469, %v3655, 0
      %v3747 = vsel %vm469, %v3656, 0
      %v3750 = vsel %vm469, %v3657, 0
      %v3753 = vsel %vm469, %v3658, 0
      %v3756 = vsel %vm469, %v3659, 0
      %v3759 = vsel %vm469, %v3660, 0
      %v3762 = vsel %vm469, %v3661, 0
      %v3765 = vsel %vm469, %v3662, 0
      %v3768 = vsel %vm469, %v3663, 0
      %v3771 = vsel %vm469, %v3664, 0
      %v3774 = vsel %vm469, %v3665, 0
      %3776 = vmatpush.msra.mxu0 0.0
      %3777 = vmatpush.msra.mxu0 0.0
      %3778 = vmatpush.msra.mxu0 0.0
      %3779 = vmatpush.msra.mxu0 0.0
      %3780 = vmatpush.msra.mxu0 0.0
      %3781 = vmatpush.msra.mxu0 0.0
      %3782 = vmatpush.msra.mxu0 0.0
      %3783 = vmatpush.msra.mxu0 0.0
      %3784 = vmatpush.msra.mxu0 0.0
      %3785 = vmatpush.msra.mxu0 0.0
      %3786 = vmatpush.msra.mxu0 0.0
      %3787 = vmatpush.msra.mxu0 0.0
      %3788 = vmatpush.msra.mxu0 0.0
      %3789 = vmatpush.msra.mxu0 0.0
      %3790 = vmatpush.msra.mxu0 0.0
      %3791 = vmatpush.msra.mxu0 %v3667
      %3792 = vmatmul.f32.gmra.mxu0 %v3669
      %v3793 = vpop.f32.mrf.mxu0
      %v3794 = vadd.f32 0.0, %v3793
      %3795 = vmatmul.f32.gmra.mxu0 %v3672
      %v3796 = vpop.f32.mrf.mxu0
      %v3797 = vadd.f32 0.0, %v3796
      %3798 = vmatmul.f32.gmra.mxu0 %v3675
      %v3799 = vpop.f32.mrf.mxu0
      %v3800 = vadd.f32 0.0, %v3799
      %3801 = vmatmul.f32.gmra.mxu0 %v3678
      %v3802 = vpop.f32.mrf.mxu0
      %v3803 = vadd.f32 0.0, %v3802
      %3804 = vmatmul.f32.gmra.mxu0 %v3681
      %v3805 = vpop.f32.mrf.mxu0
      %v3806 = vadd.f32 0.0, %v3805
      %3807 = vmatmul.f32.gmra.mxu0 %v3684
      %v3808 = vpop.f32.mrf.mxu0
      %v3809 = vadd.f32 0.0, %v3808
      %3810 = vmatmul.f32.gmra.mxu0 %v3687
      %v3811 = vpop.f32.mrf.mxu0
      %v3812 = vadd.f32 0.0, %v3811
      %3813 = vmatmul.f32.gmra.mxu0 %v3690
      %v3814 = vpop.f32.mrf.mxu0
      %v3815 = vadd.f32 0.0, %v3814
      %3816 = vmatmul.f32.gmra.mxu0 %v3693
      %v3817 = vpop.f32.mrf.mxu0
      %v3818 = vadd.f32 0.0, %v3817
      %3819 = vmatmul.f32.gmra.mxu0 %v3696
      %v3820 = vpop.f32.mrf.mxu0
      %v3821 = vadd.f32 0.0, %v3820
      %3822 = vmatmul.f32.gmra.mxu0 %v3699
      %v3823 = vpop.f32.mrf.mxu0
      %v3824 = vadd.f32 0.0, %v3823
      %3825 = vmatmul.f32.gmra.mxu0 %v3702
      %v3826 = vpop.f32.mrf.mxu0
      %v3827 = vadd.f32 0.0, %v3826
      %3828 = vmatmul.f32.gmra.mxu0 %v3705
      %v3829 = vpop.f32.mrf.mxu0
      %v3830 = vadd.f32 0.0, %v3829
      %3831 = vmatmul.f32.gmra.mxu0 %v3708
      %v3832 = vpop.f32.mrf.mxu0
      %v3833 = vadd.f32 0.0, %v3832
      %3834 = vmatmul.f32.gmra.mxu0 %v3711
      %v3835 = vpop.f32.mrf.mxu0
      %v3836 = vadd.f32 0.0, %v3835
      %3837 = vmatmul.f32.gmra.mxu0 %v3714
      %v3838 = vpop.f32.mrf.mxu0
      %v3839 = vadd.f32 0.0, %v3838
      %3840 = vmatmul.f32.gmra.mxu0 %v3717
      %v3841 = vpop.f32.mrf.mxu0
      %v3842 = vadd.f32 0.0, %v3841
      %3843 = vmatmul.f32.gmra.mxu0 %v3720
      %v3844 = vpop.f32.mrf.mxu0
      %v3845 = vadd.f32 0.0, %v3844
      %3846 = vmatmul.f32.gmra.mxu0 %v3723
      %v3847 = vpop.f32.mrf.mxu0
      %v3848 = vadd.f32 0.0, %v3847
      %3849 = vmatmul.f32.gmra.mxu0 %v3726
      %v3850 = vpop.f32.mrf.mxu0
      %v3851 = vadd.f32 0.0, %v3850
      %3852 = vmatmul.f32.gmra.mxu0 %v3729
      %v3853 = vpop.f32.mrf.mxu0
      %v3854 = vadd.f32 0.0, %v3853
      %3855 = vmatmul.f32.gmra.mxu0 %v3732
      %v3856 = vpop.f32.mrf.mxu0
      %v3857 = vadd.f32 0.0, %v3856
      %3858 = vmatmul.f32.gmra.mxu0 %v3735
      %v3859 = vpop.f32.mrf.mxu0
      %v3860 = vadd.f32 0.0, %v3859
      %3861 = vmatmul.f32.gmra.mxu0 %v3738
      %v3862 = vpop.f32.mrf.mxu0
      %v3863 = vadd.f32 0.0, %v3862
      %3864 = vmatmul.f32.gmra.mxu0 %v3741
      %v3865 = vpop.f32.mrf.mxu0
      %v3866 = vadd.f32 0.0, %v3865
      %3867 = vmatmul.f32.gmra.mxu0 %v3744
      %v3868 = vpop.f32.mrf.mxu0
      %v3869 = vadd.f32 0.0, %v3868
      %3870 = vmatmul.f32.gmra.mxu0 %v3747
      %v3871 = vpop.f32.mrf.mxu0
      %v3872 = vadd.f32 0.0, %v3871
      %3873 = vmatmul.f32.gmra.mxu0 %v3750
      %v3874 = vpop.f32.mrf.mxu0
      %v3875 = vadd.f32 0.0, %v3874
      %3876 = vmatmul.f32.gmra.mxu0 %v3753
      %v3877 = vpop.f32.mrf.mxu0
      %v3878 = vadd.f32 0.0, %v3877
      %3879 = vmatmul.f32.gmra.mxu0 %v3756
      %v3880 = vpop.f32.mrf.mxu0
      %v3881 = vadd.f32 0.0, %v3880
      %3882 = vmatmul.f32.gmra.mxu0 %v3759
      %v3883 = vpop.f32.mrf.mxu0
      %v3884 = vadd.f32 0.0, %v3883
      %3885 = vmatmul.f32.gmra.mxu0 %v3762
      %v3886 = vpop.f32.mrf.mxu0
      %v3887 = vadd.f32 0.0, %v3886
      %3888 = vmatmul.f32.gmra.mxu0 %v3765
      %v3889 = vpop.f32.mrf.mxu0
      %v3890 = vadd.f32 0.0, %v3889
      %3891 = vmatmul.f32.gmra.mxu0 %v3768
      %v3892 = vpop.f32.mrf.mxu0
      %v3893 = vadd.f32 0.0, %v3892
      %3894 = vmatmul.f32.gmra.mxu0 %v3771
      %v3895 = vpop.f32.mrf.mxu0
      %v3896 = vadd.f32 0.0, %v3895
      %3897 = vmatmul.f32.gmra.mxu0 %v3774
      %v3898 = vpop.f32.mrf.mxu0
      %v3899 = vadd.f32 0.0, %v3898
      %3900 = vdwg.mxu0
      %v3901 = vadd.f32 %v3594, %v3794
      %v3902 = vadd.f32 %v3595, %v3797
      %v3903 = vadd.f32 %v3596, %v3800
      %v3904 = vadd.f32 %v3597, %v3803
      %v3905 = vadd.f32 %v3598, %v3806
      %v3906 = vadd.f32 %v3599, %v3809
      %v3907 = vadd.f32 %v3600, %v3812
      %v3908 = vadd.f32 %v3601, %v3815
      %v3909 = vadd.f32 %v3602, %v3818
      %v3910 = vadd.f32 %v3603, %v3821
      %v3911 = vadd.f32 %v3604, %v3824
      %v3912 = vadd.f32 %v3605, %v3827
      %v3913 = vadd.f32 %v3606, %v3830
      %v3914 = vadd.f32 %v3607, %v3833
      %v3915 = vadd.f32 %v3608, %v3836
      %v3916 = vadd.f32 %v3609, %v3839
      %v3917 = vadd.f32 %v3610, %v3842
      %v3918 = vadd.f32 %v3611, %v3845
      %v3919 = vadd.f32 %v3612, %v3848
      %v3920 = vadd.f32 %v3613, %v3851
      %v3921 = vadd.f32 %v3614, %v3854
      %v3922 = vadd.f32 %v3615, %v3857
      %v3923 = vadd.f32 %v3616, %v3860
      %v3924 = vadd.f32 %v3617, %v3863
      %v3925 = vadd.f32 %v3618, %v3866
      %v3926 = vadd.f32 %v3619, %v3869
      %v3927 = vadd.f32 %v3620, %v3872
      %v3928 = vadd.f32 %v3621, %v3875
      %v3929 = vadd.f32 %v3622, %v3878
      %v3930 = vadd.f32 %v3623, %v3881
      %v3931 = vadd.f32 %v3624, %v3884
      %v3932 = vadd.f32 %v3625, %v3887
      %v3933 = vadd.f32 %v3626, %v3890
      %v3934 = vadd.f32 %v3627, %v3893
      %v3935 = vadd.f32 %v3628, %v3896
      %v3936 = vadd.f32 %v3629, %v3899
      %v3937 = vmul.f32 %v3901, 0.5
      %v3938 = vmul.f32 %v3902, 0.5
      %v3939 = vmul.f32 %v3903, 0.5
      %v3940 = vmul.f32 %v3904, 0.5
      %v3941 = vmul.f32 %v3905, 0.5
      %v3942 = vmul.f32 %v3906, 0.5
      %v3943 = vmul.f32 %v3907, 0.5
      %v3944 = vmul.f32 %v3908, 0.5
      %v3945 = vmul.f32 %v3909, 0.5
      %v3946 = vmul.f32 %v3910, 0.5
      %v3947 = vmul.f32 %v3911, 0.5
      %v3948 = vmul.f32 %v3912, 0.5
      %v3949 = vmul.f32 %v3913, 0.5
      %v3950 = vmul.f32 %v3914, 0.5
      %v3951 = vmul.f32 %v3915, 0.5
      %v3952 = vmul.f32 %v3916, 0.5
      %v3953 = vmul.f32 %v3917, 0.5
      %v3954 = vmul.f32 %v3918, 0.5
      %v3955 = vmul.f32 %v3919, 0.5
      %v3956 = vmul.f32 %v3920, 0.5
      %v3957 = vmul.f32 %v3921, 0.5
      %v3958 = vmul.f32 %v3922, 0.5
      %v3959 = vmul.f32 %v3923, 0.5
      %v3960 = vmul.f32 %v3924, 0.5
      %v3961 = vmul.f32 %v3925, 0.5
      %v3962 = vmul.f32 %v3926, 0.5
      %v3963 = vmul.f32 %v3927, 0.5
      %v3964 = vmul.f32 %v3928, 0.5
      %v3965 = vmul.f32 %v3929, 0.5
      %v3966 = vmul.f32 %v3930, 0.5
      %v3967 = vmul.f32 %v3931, 0.5
      %v3968 = vmul.f32 %v3932, 0.5
      %v3969 = vmul.f32 %v3933, 0.5
      %v3970 = vmul.f32 %v3934, 0.5
      %v3971 = vmul.f32 %v3935, 0.5
      %v3972 = vmul.f32 %v3936, 0.5
      %v3973 = vtanh.pop %v3937
      %v3974 = vtanh.pop %v3938
      %v3975 = vtanh.pop %v3939
      %v3976 = vtanh.pop %v3940
      %v3977 = vtanh.pop %v3941
      %v3978 = vtanh.pop %v3942
      %v3979 = vtanh.pop %v3943
      %v3980 = vtanh.pop %v3944
      %v3981 = vtanh.pop %v3945
      %v3982 = vtanh.pop %v3946
      %v3983 = vtanh.pop %v3947
      %v3984 = vtanh.pop %v3948
      %v3985 = vtanh.pop %v3949
      %v3986 = vtanh.pop %v3950
      %v3987 = vtanh.pop %v3951
      %v3988 = vtanh.pop %v3952
      %v3989 = vtanh.pop %v3953
      %v3990 = vtanh.pop %v3954
      %v3991 = vtanh.pop %v3955
      %v3992 = vtanh.pop %v3956
      %v3993 = vtanh.pop %v3957
      %v3994 = vtanh.pop %v3958
      %v3995 = vtanh.pop %v3959
      %v3996 = vtanh.pop %v3960
      %v3997 = vtanh.pop %v3961
      %v3998 = vtanh.pop %v3962
      %v3999 = vtanh.pop %v3963
      %v4000 = vtanh.pop %v3964
      %v4001 = vtanh.pop %v3965
      %v4002 = vtanh.pop %v3966
      %v4003 = vtanh.pop %v3967
      %v4004 = vtanh.pop %v3968
      %v4005 = vtanh.pop %v3969
      %v4006 = vtanh.pop %v3970
      %v4007 = vtanh.pop %v3971
      %v4008 = vtanh.pop %v3972
      %v4009 = vmul.f32 %v3973, 0.5
      %v4010 = vmul.f32 %v3974, 0.5
      %v4011 = vmul.f32 %v3975, 0.5
      %v4012 = vmul.f32 %v3976, 0.5
      %v4013 = vmul.f32 %v3977, 0.5
      %v4014 = vmul.f32 %v3978, 0.5
      %v4015 = vmul.f32 %v3979, 0.5
      %v4016 = vmul.f32 %v3980, 0.5
      %v4017 = vmul.f32 %v3981, 0.5
      %v4018 = vmul.f32 %v3982, 0.5
      %v4019 = vmul.f32 %v3983, 0.5
      %v4020 = vmul.f32 %v3984, 0.5
      %v4021 = vmul.f32 %v3985, 0.5
      %v4022 = vmul.f32 %v3986, 0.5
      %v4023 = vmul.f32 %v3987, 0.5
      %v4024 = vmul.f32 %v3988, 0.5
      %v4025 = vmul.f32 %v3989, 0.5
      %v4026 = vmul.f32 %v3990, 0.5
      %v4027 = vmul.f32 %v3991, 0.5
      %v4028 = vmul.f32 %v3992, 0.5
      %v4029 = vmul.f32 %v3993, 0.5
      %v4030 = vmul.f32 %v3994, 0.5
      %v4031 = vmul.f32 %v3995, 0.5
      %v4032 = vmul.f32 %v3996, 0.5
      %v4033 = vmul.f32 %v3997, 0.5
      %v4034 = vmul.f32 %v3998, 0.5
      %v4035 = vmul.f32 %v3999, 0.5
      %v4036 = vmul.f32 %v4000, 0.5
      %v4037 = vmul.f32 %v4001, 0.5
      %v4038 = vmul.f32 %v4002, 0.5
      %v4039 = vmul.f32 %v4003, 0.5
      %v4040 = vmul.f32 %v4004, 0.5
      %v4041 = vmul.f32 %v4005, 0.5
      %v4042 = vmul.f32 %v4006, 0.5
      %v4043 = vmul.f32 %v4007, 0.5
      %v4044 = vmul.f32 %v4008, 0.5
      %v4045 = vadd.f32 %v4009, 0.5
      %v4046 = vadd.f32 %v4010, 0.5
      %v4047 = vadd.f32 %v4011, 0.5
      %v4048 = vadd.f32 %v4012, 0.5
      %v4049 = vadd.f32 %v4013, 0.5
      %v4050 = vadd.f32 %v4014, 0.5
      %v4051 = vadd.f32 %v4015, 0.5
      %v4052 = vadd.f32 %v4016, 0.5
      %v4053 = vadd.f32 %v4017, 0.5
      %v4054 = vadd.f32 %v4018, 0.5
      %v4055 = vadd.f32 %v4019, 0.5
      %v4056 = vadd.f32 %v4020, 0.5
      %v4057 = vadd.f32 %v4021, 0.5
      %v4058 = vadd.f32 %v4022, 0.5
      %v4059 = vadd.f32 %v4023, 0.5
      %v4060 = vadd.f32 %v4024, 0.5
      %v4061 = vadd.f32 %v4025, 0.5
      %v4062 = vadd.f32 %v4026, 0.5
      %v4063 = vadd.f32 %v4027, 0.5
      %v4064 = vadd.f32 %v4028, 0.5
      %v4065 = vadd.f32 %v4029, 0.5
      %v4066 = vadd.f32 %v4030, 0.5
      %v4067 = vadd.f32 %v4031, 0.5
      %v4068 = vadd.f32 %v4032, 0.5
      %v4069 = vadd.f32 %v4033, 0.5
      %v4070 = vadd.f32 %v4034, 0.5
      %v4071 = vadd.f32 %v4035, 0.5
      %v4072 = vadd.f32 %v4036, 0.5
      %v4073 = vadd.f32 %v4037, 0.5
      %v4074 = vadd.f32 %v4038, 0.5
      %v4075 = vadd.f32 %v4039, 0.5
      %v4076 = vadd.f32 %v4040, 0.5
      %v4077 = vadd.f32 %v4041, 0.5
      %v4078 = vadd.f32 %v4042, 0.5
      %v4079 = vadd.f32 %v4043, 0.5
      %v4080 = vadd.f32 %v4044, 0.5
      %v4081 = vmul.f32 %v3901, %v4045
      %v4082 = vmul.f32 %v3902, %v4046
      %v4083 = vmul.f32 %v3903, %v4047
      %v4084 = vmul.f32 %v3904, %v4048
      %v4085 = vmul.f32 %v3905, %v4049
      %v4086 = vmul.f32 %v3906, %v4050
      %v4087 = vmul.f32 %v3907, %v4051
      %v4088 = vmul.f32 %v3908, %v4052
      %v4089 = vmul.f32 %v3909, %v4053
      %v4090 = vmul.f32 %v3910, %v4054
      %v4091 = vmul.f32 %v3911, %v4055
      %v4092 = vmul.f32 %v3912, %v4056
      %v4093 = vmul.f32 %v3913, %v4057
      %v4094 = vmul.f32 %v3914, %v4058
      %v4095 = vmul.f32 %v3915, %v4059
      %v4096 = vmul.f32 %v3916, %v4060
      %v4097 = vmul.f32 %v3917, %v4061
      %v4098 = vmul.f32 %v3918, %v4062
      %v4099 = vmul.f32 %v3919, %v4063
      %v4100 = vmul.f32 %v3920, %v4064
      %v4101 = vmul.f32 %v3921, %v4065
      %v4102 = vmul.f32 %v3922, %v4066
      %v4103 = vmul.f32 %v3923, %v4067
      %v4104 = vmul.f32 %v3924, %v4068
      %v4105 = vmul.f32 %v3925, %v4069
      %v4106 = vmul.f32 %v3926, %v4070
      %v4107 = vmul.f32 %v3927, %v4071
      %v4108 = vmul.f32 %v3928, %v4072
      %v4109 = vmul.f32 %v3929, %v4073
      %v4110 = vmul.f32 %v3930, %v4074
      %v4111 = vmul.f32 %v3931, %v4075
      %v4112 = vmul.f32 %v3932, %v4076
      %v4113 = vmul.f32 %v3933, %v4077
      %v4114 = vmul.f32 %v3934, %v4078
      %v4115 = vmul.f32 %v3935, %v4079
      %v4116 = vmul.f32 %v3936, %v4080
      %vm4117 = vcmp.ge.s32.totalorder %v928, 1
      %vm4118 = vcmp.ge.s32.totalorder %v929, 1
      %vm4119 = vcmp.ge.s32.totalorder %v930, 1
      %vm4120 = vcmp.ge.s32.totalorder %v931, 1
      %vm4121 = vcmp.ge.s32.totalorder %v932, 1
      %vm4122 = vcmp.ge.s32.totalorder %v933, 1
      %vm4123 = vcmp.ge.s32.totalorder %v934, 1
      %vm4124 = vcmp.ge.s32.totalorder %v935, 1
      %vm4125 = vcmp.ge.s32.totalorder %v936, 1
      %vm4126 = vcmp.ge.s32.totalorder %v937, 1
      %vm4127 = vcmp.ge.s32.totalorder %v938, 1
      %vm4128 = vcmp.ge.s32.totalorder %v939, 1
      %vm4129 = vcmp.ge.s32.totalorder %v940, 1
      %vm4130 = vcmp.ge.s32.totalorder %v941, 1
      %vm4131 = vcmp.ge.s32.totalorder %v942, 1
      %vm4132 = vcmp.ge.s32.totalorder %v943, 1
      %vm4133 = vcmp.ge.s32.totalorder %v944, 1
      %vm4134 = vcmp.ge.s32.totalorder %v945, 1
      %vm4135 = vcmp.lt.s32.totalorder %v928, 17
      %vm4136 = vcmp.lt.s32.totalorder %v929, 17
      %vm4137 = vcmp.lt.s32.totalorder %v930, 17
      %vm4138 = vcmp.lt.s32.totalorder %v931, 17
      %vm4139 = vcmp.lt.s32.totalorder %v932, 17
      %vm4140 = vcmp.lt.s32.totalorder %v933, 17
      %vm4141 = vcmp.lt.s32.totalorder %v934, 17
      %vm4142 = vcmp.lt.s32.totalorder %v935, 17
      %vm4143 = vcmp.lt.s32.totalorder %v936, 17
      %vm4144 = vcmp.lt.s32.totalorder %v937, 17
      %vm4145 = vcmp.lt.s32.totalorder %v938, 17
      %vm4146 = vcmp.lt.s32.totalorder %v939, 17
      %vm4147 = vcmp.lt.s32.totalorder %v940, 17
      %vm4148 = vcmp.lt.s32.totalorder %v941, 17
      %vm4149 = vcmp.lt.s32.totalorder %v942, 17
      %vm4150 = vcmp.lt.s32.totalorder %v943, 17
      %vm4151 = vcmp.lt.s32.totalorder %v944, 17
      %vm4152 = vcmp.lt.s32.totalorder %v945, 17
      %vm4153 = vmand %vm4117, %vm4135
      %vm4154 = vmand %vm4118, %vm4136
      %vm4155 = vmand %vm4119, %vm4137
      %vm4156 = vmand %vm4120, %vm4138
      %vm4157 = vmand %vm4121, %vm4139
      %vm4158 = vmand %vm4122, %vm4140
      %vm4159 = vmand %vm4123, %vm4141
      %vm4160 = vmand %vm4124, %vm4142
      %vm4161 = vmand %vm4125, %vm4143
      %vm4162 = vmand %vm4126, %vm4144
      %vm4163 = vmand %vm4127, %vm4145
      %vm4164 = vmand %vm4128, %vm4146
      %vm4165 = vmand %vm4129, %vm4147
      %vm4166 = vmand %vm4130, %vm4148
      %vm4167 = vmand %vm4131, %vm4149
      %vm4168 = vmand %vm4132, %vm4150
      %vm4169 = vmand %vm4133, %vm4151
      %vm4170 = vmand %vm4134, %vm4152
      %v4171 = vsel %vm4153, 1, 0
      %v4172 = vsel %vm4154, 1, 0
      %v4173 = vsel %vm4155, 1, 0
      %v4174 = vsel %vm4156, 1, 0
      %v4175 = vsel %vm4157, 1, 0
      %v4176 = vsel %vm4158, 1, 0
      %v4177 = vsel %vm4159, 1, 0
      %v4178 = vsel %vm4160, 1, 0
      %v4179 = vsel %vm4161, 1, 0
      %v4180 = vsel %vm4162, 1, 0
      %v4181 = vsel %vm4163, 1, 0
      %v4182 = vsel %vm4164, 1, 0
      %v4183 = vsel %vm4165, 1, 0
      %v4184 = vsel %vm4166, 1, 0
      %v4185 = vsel %vm4167, 1, 0
      %v4186 = vsel %vm4168, 1, 0
      %v4187 = vsel %vm4169, 1, 0
      %v4188 = vsel %vm4170, 1, 0
      %v4189 = vcvt.s32.f32 %v4171
      %v4190 = vcvt.s32.f32 %v4172
      %v4191 = vcvt.s32.f32 %v4173
      %v4192 = vcvt.s32.f32 %v4174
      %v4193 = vcvt.s32.f32 %v4175
      %v4194 = vcvt.s32.f32 %v4176
      %v4195 = vcvt.s32.f32 %v4177
      %v4196 = vcvt.s32.f32 %v4178
      %v4197 = vcvt.s32.f32 %v4179
      %v4198 = vcvt.s32.f32 %v4180
      %v4199 = vcvt.s32.f32 %v4181
      %v4200 = vcvt.s32.f32 %v4182
      %v4201 = vcvt.s32.f32 %v4183
      %v4202 = vcvt.s32.f32 %v4184
      %v4203 = vcvt.s32.f32 %v4185
      %v4204 = vcvt.s32.f32 %v4186
      %v4205 = vcvt.s32.f32 %v4187
      %v4206 = vcvt.s32.f32 %v4188
      %v4207 = vmul.f32 %v4081, %v4189
      %v4208 = vmul.f32 %v4082, %v4189
      %v4209 = vmul.f32 %v4083, %v4190
      %v4210 = vmul.f32 %v4084, %v4190
      %v4211 = vmul.f32 %v4085, %v4191
      %v4212 = vmul.f32 %v4086, %v4191
      %v4213 = vmul.f32 %v4087, %v4192
      %v4214 = vmul.f32 %v4088, %v4192
      %v4215 = vmul.f32 %v4089, %v4193
      %v4216 = vmul.f32 %v4090, %v4193
      %v4217 = vmul.f32 %v4091, %v4194
      %v4218 = vmul.f32 %v4092, %v4194
      %v4219 = vmul.f32 %v4093, %v4195
      %v4220 = vmul.f32 %v4094, %v4195
      %v4221 = vmul.f32 %v4095, %v4196
      %v4222 = vmul.f32 %v4096, %v4196
      %v4223 = vmul.f32 %v4097, %v4197
      %v4224 = vmul.f32 %v4098, %v4197
      %v4225 = vmul.f32 %v4099, %v4198
      %v4226 = vmul.f32 %v4100, %v4198
      %v4227 = vmul.f32 %v4101, %v4199
      %v4228 = vmul.f32 %v4102, %v4199
      %v4229 = vmul.f32 %v4103, %v4200
      %v4230 = vmul.f32 %v4104, %v4200
      %v4231 = vmul.f32 %v4105, %v4201
      %v4232 = vmul.f32 %v4106, %v4201
      %v4233 = vmul.f32 %v4107, %v4202
      %v4234 = vmul.f32 %v4108, %v4202
      %v4235 = vmul.f32 %v4109, %v4203
      %v4236 = vmul.f32 %v4110, %v4203
      %v4237 = vmul.f32 %v4111, %v4204
      %v4238 = vmul.f32 %v4112, %v4204
      %v4239 = vmul.f32 %v4113, %v4205
      %v4240 = vmul.f32 %v4114, %v4205
      %v4241 = vmul.f32 %v4115, %v4206
      %v4242 = vmul.f32 %v4116, %v4206
      %4243 = vst.msk [vmem:[#allocation3] sm:$0x1] %vm1088, 0.0
      %4244 = vst.msk [vmem:[#allocation3 + $0x18] sm:$0x1] %vm1088, 0.0
      %4245 = vst.msk [vmem:[#allocation3 + $0x30] sm:$0x1] %vm1088, 0.0
      %4246 = vst.msk [vmem:[#allocation3 + $0x48] sm:$0x1] %vm1088, 0.0
      %4247 = vst.msk [vmem:[#allocation3 + $0x60] sm:$0x1] %vm1088, 0.0
      %4248 = vst.msk [vmem:[#allocation3 + $0x78] sm:$0x1] %vm1088, 0.0
      %4249 = vst.msk [vmem:[#allocation3 + $0x90] sm:$0x1] %vm1088, 0.0
      %4250 = vst.msk [vmem:[#allocation3 + $0xa8] sm:$0x1] %vm1088, 0.0
      %4251 = vst.msk [vmem:[#allocation3 + $0xc0] sm:$0x1] %vm1088, 0.0
      %4252 = vst.msk [vmem:[#allocation3 + $0xd8] sm:$0x1] %vm1088, 0.0
      %4253 = vst.msk [vmem:[#allocation3 + $0xf0] sm:$0x1] %vm1088, 0.0
      %4254 = vst.msk [vmem:[#allocation3 + $0x108] sm:$0x1] %vm1088, 0.0
      %4255 = vst.msk [vmem:[#allocation3 + $0x120] sm:$0x1] %vm1088, 0.0
      %4256 = vst.msk [vmem:[#allocation3 + $0x138] sm:$0x1] %vm1088, 0.0
      %4257 = vst.msk [vmem:[#allocation3 + $0x150] sm:$0x1] %vm1088, 0.0
      %4258 = vst.msk [vmem:[#allocation3 + $0x168] sm:$0x1] %vm1088, 0.0
      %4259 = vst.msk [vmem:[#allocation3 + $0x180] sm:$0x1] %vm1088, 0.0
      %4260 = vst.msk [vmem:[#allocation3 + $0x198] sm:$0x1] %vm1088, 0.0
      %4261 = vst.msk [vmem:[#allocation3 + $0x11] sm:$0x1] %vm1088, 0.0
      %4262 = vst.msk [vmem:[#allocation3 + $0x29] sm:$0x1] %vm1088, 0.0
      %4263 = vst.msk [vmem:[#allocation3 + $0x41] sm:$0x1] %vm1088, 0.0
      %4264 = vst.msk [vmem:[#allocation3 + $0x59] sm:$0x1] %vm1088, 0.0
      %4265 = vst.msk [vmem:[#allocation3 + $0x71] sm:$0x1] %vm1088, 0.0
      %4266 = vst.msk [vmem:[#allocation3 + $0x89] sm:$0x1] %vm1088, 0.0
      %4267 = vst.msk [vmem:[#allocation3 + $0xa1] sm:$0x1] %vm1088, 0.0
      %4268 = vst.msk [vmem:[#allocation3 + $0xb9] sm:$0x1] %vm1088, 0.0
      %4269 = vst.msk [vmem:[#allocation3 + $0xd1] sm:$0x1] %vm1088, 0.0
      %4270 = vst.msk [vmem:[#allocation3 + $0xe9] sm:$0x1] %vm1088, 0.0
      %4271 = vst.msk [vmem:[#allocation3 + $0x101] sm:$0x1] %vm1088, 0.0
      %4272 = vst.msk [vmem:[#allocation3 + $0x119] sm:$0x1] %vm1088, 0.0
      %4273 = vst.msk [vmem:[#allocation3 + $0x131] sm:$0x1] %vm1088, 0.0
      %4274 = vst.msk [vmem:[#allocation3 + $0x149] sm:$0x1] %vm1088, 0.0
      %4275 = vst.msk [vmem:[#allocation3 + $0x161] sm:$0x1] %vm1088, 0.0
      %4276 = vst.msk [vmem:[#allocation3 + $0x179] sm:$0x1] %vm1088, 0.0
      %4277 = vst.msk [vmem:[#allocation3 + $0x191] sm:$0x1] %vm1088, 0.0
      %4278 = vst.msk [vmem:[#allocation3 + $0x1a9] sm:$0x1] %vm1088, 0.0
      %4279 = vst.msk [vmem:[#allocation3 + $0x1] sm:$0xff] %vm469, %v4207
      %4280 = vst.msk [vmem:[#allocation3 + $0x9] sm:$0xff] %vm469, %v4208
      %4281 = vst.msk [vmem:[#allocation3 + $0x19] sm:$0xff] %vm469, %v4209
      %4282 = vst.msk [vmem:[#allocation3 + $0x21] sm:$0xff] %vm469, %v4210
      %4283 = vst.msk [vmem:[#allocation3 + $0x31] sm:$0xff] %vm469, %v4211
      %4284 = vst.msk [vmem:[#allocation3 + $0x39] sm:$0xff] %vm469, %v4212
      %4285 = vst.msk [vmem:[#allocation3 + $0x49] sm:$0xff] %vm469, %v4213
      %4286 = vst.msk [vmem:[#allocation3 + $0x51] sm:$0xff] %vm469, %v4214
      %4287 = vst.msk [vmem:[#allocation3 + $0x61] sm:$0xff] %vm469, %v4215
      %4288 = vst.msk [vmem:[#allocation3 + $0x69] sm:$0xff] %vm469, %v4216
      %4289 = vst.msk [vmem:[#allocation3 + $0x79] sm:$0xff] %vm469, %v4217
      %4290 = vst.msk [vmem:[#allocation3 + $0x81] sm:$0xff] %vm469, %v4218
      %4291 = vst.msk [vmem:[#allocation3 + $0x91] sm:$0xff] %vm469, %v4219
      %4292 = vst.msk [vmem:[#allocation3 + $0x99] sm:$0xff] %vm469, %v4220
      %4293 = vst.msk [vmem:[#allocation3 + $0xa9] sm:$0xff] %vm469, %v4221
      %4294 = vst.msk [vmem:[#allocation3 + $0xb1] sm:$0xff] %vm469, %v4222
      %4295 = vst.msk [vmem:[#allocation3 + $0xc1] sm:$0xff] %vm469, %v4223
      %4296 = vst.msk [vmem:[#allocation3 + $0xc9] sm:$0xff] %vm469, %v4224
      %4297 = vst.msk [vmem:[#allocation3 + $0xd9] sm:$0xff] %vm469, %v4225
      %4298 = vst.msk [vmem:[#allocation3 + $0xe1] sm:$0xff] %vm469, %v4226
      %4299 = vst.msk [vmem:[#allocation3 + $0xf1] sm:$0xff] %vm469, %v4227
      %4300 = vst.msk [vmem:[#allocation3 + $0xf9] sm:$0xff] %vm469, %v4228
      %4301 = vst.msk [vmem:[#allocation3 + $0x109] sm:$0xff] %vm469, %v4229
      %4302 = vst.msk [vmem:[#allocation3 + $0x111] sm:$0xff] %vm469, %v4230
      %4303 = vst.msk [vmem:[#allocation3 + $0x121] sm:$0xff] %vm469, %v4231
      %4304 = vst.msk [vmem:[#allocation3 + $0x129] sm:$0xff] %vm469, %v4232
      %4305 = vst.msk [vmem:[#allocation3 + $0x139] sm:$0xff] %vm469, %v4233
      %4306 = vst.msk [vmem:[#allocation3 + $0x141] sm:$0xff] %vm469, %v4234
      %4307 = vst.msk [vmem:[#allocation3 + $0x151] sm:$0xff] %vm469, %v4235
      %4308 = vst.msk [vmem:[#allocation3 + $0x159] sm:$0xff] %vm469, %v4236
      %4309 = vst.msk [vmem:[#allocation3 + $0x169] sm:$0xff] %vm469, %v4237
      %4310 = vst.msk [vmem:[#allocation3 + $0x171] sm:$0xff] %vm469, %v4238
      %4311 = vst.msk [vmem:[#allocation3 + $0x181] sm:$0xff] %vm469, %v4239
      %4312 = vst.msk [vmem:[#allocation3 + $0x189] sm:$0xff] %vm469, %v4240
      %4313 = vst.msk [vmem:[#allocation3 + $0x199] sm:$0xff] %vm469, %v4241
      %4314 = vst.msk [vmem:[#allocation3 + $0x1a1] sm:$0xff] %vm469, %v4242
      %v4315 = vld [vmem:[%s6] sm:$0x1]
      %v4316 = vld [vmem:[#allocation3] sm:$0xff]
      %v4317 = vld [vmem:[#allocation3 + $0x8] sm:$0xff]
      %v4318 = vld [vmem:[#allocation3 + $0x18] sm:$0xff]
      %v4319 = vld [vmem:[#allocation3 + $0x20] sm:$0xff]
      %v4320 = vld [vmem:[#allocation3 + $0x30] sm:$0xff]
      %v4321 = vld [vmem:[#allocation3 + $0x38] sm:$0xff]
      %v4322 = vld [vmem:[#allocation3 + $0x48] sm:$0xff]
      %v4323 = vld [vmem:[#allocation3 + $0x50] sm:$0xff]
      %v4324 = vld [vmem:[#allocation3 + $0x60] sm:$0xff]
      %v4325 = vld [vmem:[#allocation3 + $0x68] sm:$0xff]
      %v4326 = vld [vmem:[#allocation3 + $0x78] sm:$0xff]
      %v4327 = vld [vmem:[#allocation3 + $0x80] sm:$0xff]
      %v4328 = vld [vmem:[#allocation3 + $0x90] sm:$0xff]
      %v4329 = vld [vmem:[#allocation3 + $0x98] sm:$0xff]
      %v4330 = vld [vmem:[#allocation3 + $0xa8] sm:$0xff]
      %v4331 = vld [vmem:[#allocation3 + $0xb0] sm:$0xff]
      %v4332 = vld [vmem:[#allocation3 + $0xc0] sm:$0xff]
      %v4333 = vld [vmem:[#allocation3 + $0xc8] sm:$0xff]
      %v4334 = vld [vmem:[#allocation3 + $0xd8] sm:$0xff]
      %v4335 = vld [vmem:[#allocation3 + $0xe0] sm:$0xff]
      %v4336 = vld [vmem:[#allocation3 + $0xf0] sm:$0xff]
      %v4337 = vld [vmem:[#allocation3 + $0xf8] sm:$0xff]
      %v4338 = vld [vmem:[#allocation3 + $0x108] sm:$0xff]
      %v4339 = vld [vmem:[#allocation3 + $0x110] sm:$0xff]
      %v4340 = vld [vmem:[#allocation3 + $0x120] sm:$0xff]
      %v4341 = vld [vmem:[#allocation3 + $0x128] sm:$0xff]
      %v4342 = vld [vmem:[#allocation3 + $0x138] sm:$0xff]
      %v4343 = vld [vmem:[#allocation3 + $0x140] sm:$0xff]
      %v4344 = vld [vmem:[#allocation3 + $0x150] sm:$0xff]
      %v4345 = vld [vmem:[#allocation3 + $0x158] sm:$0xff]
      %v4346 = vld [vmem:[#allocation3 + $0x168] sm:$0xff]
      %v4347 = vld [vmem:[#allocation3 + $0x170] sm:$0xff]
      %v4348 = vld [vmem:[%s5] sm:$0xff]
      %v4350 = vsel %vm469, %v4316, 0
      %v4353 = vsel %vm469, %v4317, 0
      %v4356 = vsel %vm469, %v4318, 0
      %v4359 = vsel %vm469, %v4319, 0
      %v4362 = vsel %vm469, %v4320, 0
      %v4365 = vsel %vm469, %v4321, 0
      %v4368 = vsel %vm469, %v4322, 0
      %v4371 = vsel %vm469, %v4323, 0
      %v4374 = vsel %vm469, %v4324, 0
      %v4377 = vsel %vm469, %v4325, 0
      %v4380 = vsel %vm469, %v4326, 0
      %v4383 = vsel %vm469, %v4327, 0
      %v4386 = vsel %vm469, %v4328, 0
      %v4389 = vsel %vm469, %v4329, 0
      %v4392 = vsel %vm469, %v4330, 0
      %v4395 = vsel %vm469, %v4331, 0
      %v4398 = vsel %vm469, %v4332, 0
      %v4401 = vsel %vm469, %v4333, 0
      %v4404 = vsel %vm469, %v4334, 0
      %v4407 = vsel %vm469, %v4335, 0
      %v4410 = vsel %vm469, %v4336, 0
      %v4413 = vsel %vm469, %v4337, 0
      %v4416 = vsel %vm469, %v4338, 0
      %v4419 = vsel %vm469, %v4339, 0
      %v4422 = vsel %vm469, %v4340, 0
      %v4425 = vsel %vm469, %v4341, 0
      %v4428 = vsel %vm469, %v4342, 0
      %v4431 = vsel %vm469, %v4343, 0
      %v4434 = vsel %vm469, %v4344, 0
      %v4437 = vsel %vm469, %v4345, 0
      %v4440 = vsel %vm469, %v4346, 0
      %v4443 = vsel %vm469, %v4347, 0
      %4445 = vmatpush.msra.mxu0 0.0
      %4446 = vmatpush.msra.mxu0 0.0
      %4447 = vmatpush.msra.mxu0 0.0
      %4448 = vmatpush.msra.mxu0 0.0
      %4449 = vmatpush.msra.mxu0 0.0
      %4450 = vmatpush.msra.mxu0 0.0
      %4451 = vmatpush.msra.mxu0 0.0
      %4452 = vmatpush.msra.mxu0 0.0
      %4453 = vmatpush.msra.mxu0 0.0
      %4454 = vmatpush.msra.mxu0 0.0
      %4455 = vmatpush.msra.mxu0 0.0
      %4456 = vmatpush.msra.mxu0 0.0
      %4457 = vmatpush.msra.mxu0 0.0
      %4458 = vmatpush.msra.mxu0 0.0
      %4459 = vmatpush.msra.mxu0 0.0
      %4460 = vmatpush.msra.mxu0 %v4348
      %4461 = vmatmul.f32.gmra.mxu0 %v4350
      %v4462 = vpop.f32.mrf.mxu0
      %v4463 = vadd.f32 0.0, %v4462
      %4464 = vmatmul.f32.gmra.mxu0 %v4353
      %v4465 = vpop.f32.mrf.mxu0
      %v4466 = vadd.f32 0.0, %v4465
      %4467 = vmatmul.f32.gmra.mxu0 %v4356
      %v4468 = vpop.f32.mrf.mxu0
      %v4469 = vadd.f32 0.0, %v4468
      %4470 = vmatmul.f32.gmra.mxu0 %v4359
      %v4471 = vpop.f32.mrf.mxu0
      %v4472 = vadd.f32 0.0, %v4471
      %4473 = vmatmul.f32.gmra.mxu0 %v4362
      %v4474 = vpop.f32.mrf.mxu0
      %v4475 = vadd.f32 0.0, %v4474
      %4476 = vmatmul.f32.gmra.mxu0 %v4365
      %v4477 = vpop.f32.mrf.mxu0
      %v4478 = vadd.f32 0.0, %v4477
      %4479 = vmatmul.f32.gmra.mxu0 %v4368
      %v4480 = vpop.f32.mrf.mxu0
      %v4481 = vadd.f32 0.0, %v4480
      %4482 = vmatmul.f32.gmra.mxu0 %v4371
      %v4483 = vpop.f32.mrf.mxu0
      %v4484 = vadd.f32 0.0, %v4483
      %4485 = vmatmul.f32.gmra.mxu0 %v4374
      %v4486 = vpop.f32.mrf.mxu0
      %v4487 = vadd.f32 0.0, %v4486
      %4488 = vmatmul.f32.gmra.mxu0 %v4377
      %v4489 = vpop.f32.mrf.mxu0
      %v4490 = vadd.f32 0.0, %v4489
      %4491 = vmatmul.f32.gmra.mxu0 %v4380
      %v4492 = vpop.f32.mrf.mxu0
      %v4493 = vadd.f32 0.0, %v4492
      %4494 = vmatmul.f32.gmra.mxu0 %v4383
      %v4495 = vpop.f32.mrf.mxu0
      %v4496 = vadd.f32 0.0, %v4495
      %4497 = vmatmul.f32.gmra.mxu0 %v4386
      %v4498 = vpop.f32.mrf.mxu0
      %v4499 = vadd.f32 0.0, %v4498
      %4500 = vmatmul.f32.gmra.mxu0 %v4389
      %v4501 = vpop.f32.mrf.mxu0
      %v4502 = vadd.f32 0.0, %v4501
      %4503 = vmatmul.f32.gmra.mxu0 %v4392
      %v4504 = vpop.f32.mrf.mxu0
      %v4505 = vadd.f32 0.0, %v4504
      %4506 = vmatmul.f32.gmra.mxu0 %v4395
      %v4507 = vpop.f32.mrf.mxu0
      %v4508 = vadd.f32 0.0, %v4507
      %4509 = vmatmul.f32.gmra.mxu0 %v4398
      %v4510 = vpop.f32.mrf.mxu0
      %v4511 = vadd.f32 0.0, %v4510
      %4512 = vmatmul.f32.gmra.mxu0 %v4401
      %v4513 = vpop.f32.mrf.mxu0
      %v4514 = vadd.f32 0.0, %v4513
      %4515 = vmatmul.f32.gmra.mxu0 %v4404
      %v4516 = vpop.f32.mrf.mxu0
      %v4517 = vadd.f32 0.0, %v4516
      %4518 = vmatmul.f32.gmra.mxu0 %v4407
      %v4519 = vpop.f32.mrf.mxu0
      %v4520 = vadd.f32 0.0, %v4519
      %4521 = vmatmul.f32.gmra.mxu0 %v4410
      %v4522 = vpop.f32.mrf.mxu0
      %v4523 = vadd.f32 0.0, %v4522
      %4524 = vmatmul.f32.gmra.mxu0 %v4413
      %v4525 = vpop.f32.mrf.mxu0
      %v4526 = vadd.f32 0.0, %v4525
      %4527 = vmatmul.f32.gmra.mxu0 %v4416
      %v4528 = vpop.f32.mrf.mxu0
      %v4529 = vadd.f32 0.0, %v4528
      %4530 = vmatmul.f32.gmra.mxu0 %v4419
      %v4531 = vpop.f32.mrf.mxu0
      %v4532 = vadd.f32 0.0, %v4531
      %4533 = vmatmul.f32.gmra.mxu0 %v4422
      %v4534 = vpop.f32.mrf.mxu0
      %v4535 = vadd.f32 0.0, %v4534
      %4536 = vmatmul.f32.gmra.mxu0 %v4425
      %v4537 = vpop.f32.mrf.mxu0
      %v4538 = vadd.f32 0.0, %v4537
      %4539 = vmatmul.f32.gmra.mxu0 %v4428
      %v4540 = vpop.f32.mrf.mxu0
      %v4541 = vadd.f32 0.0, %v4540
      %4542 = vmatmul.f32.gmra.mxu0 %v4431
      %v4543 = vpop.f32.mrf.mxu0
      %v4544 = vadd.f32 0.0, %v4543
      %4545 = vmatmul.f32.gmra.mxu0 %v4434
      %v4546 = vpop.f32.mrf.mxu0
      %v4547 = vadd.f32 0.0, %v4546
      %4548 = vmatmul.f32.gmra.mxu0 %v4437
      %v4549 = vpop.f32.mrf.mxu0
      %v4550 = vadd.f32 0.0, %v4549
      %4551 = vmatmul.f32.gmra.mxu0 %v4440
      %v4552 = vpop.f32.mrf.mxu0
      %v4553 = vadd.f32 0.0, %v4552
      %4554 = vmatmul.f32.gmra.mxu0 %v4443
      %v4555 = vpop.f32.mrf.mxu0
      %v4556 = vadd.f32 0.0, %v4555
      %4557 = vdwg.mxu0
      %v4559 = vperm.slane %v4315, 0
      %v4561 = vadd.f32 %v4559, %v4463
      %v4562 = vadd.f32 %v4559, %v4466
      %v4563 = vadd.f32 %v4559, %v4469
      %v4564 = vadd.f32 %v4559, %v4472
      %v4565 = vadd.f32 %v4559, %v4475
      %v4566 = vadd.f32 %v4559, %v4478
      %v4567 = vadd.f32 %v4559, %v4481
      %v4568 = vadd.f32 %v4559, %v4484
      %v4569 = vadd.f32 %v4559, %v4487
      %v4570 = vadd.f32 %v4559, %v4490
      %v4571 = vadd.f32 %v4559, %v4493
      %v4572 = vadd.f32 %v4559, %v4496
      %v4573 = vadd.f32 %v4559, %v4499
      %v4574 = vadd.f32 %v4559, %v4502
      %v4575 = vadd.f32 %v4559, %v4505
      %v4576 = vadd.f32 %v4559, %v4508
      %v4577 = vadd.f32 %v4559, %v4511
      %v4578 = vadd.f32 %v4559, %v4514
      %v4579 = vadd.f32 %v4559, %v4517
      %v4580 = vadd.f32 %v4559, %v4520
      %v4581 = vadd.f32 %v4559, %v4523
      %v4582 = vadd.f32 %v4559, %v4526
      %v4583 = vadd.f32 %v4559, %v4529
      %v4584 = vadd.f32 %v4559, %v4532
      %v4585 = vadd.f32 %v4559, %v4535
      %v4586 = vadd.f32 %v4559, %v4538
      %v4587 = vadd.f32 %v4559, %v4541
      %v4588 = vadd.f32 %v4559, %v4544
      %v4589 = vadd.f32 %v4559, %v4547
      %v4590 = vadd.f32 %v4559, %v4550
      %v4591 = vadd.f32 %v4559, %v4553
      %v4592 = vadd.f32 %v4559, %v4556
      %v4593 = vld [vmem:[#allocation3 + $0x1] sm:$0xff]
      %v4594 = vld [vmem:[#allocation3 + $0x9] sm:$0xff]
      %v4595 = vld [vmem:[#allocation3 + $0x19] sm:$0xff]
      %v4596 = vld [vmem:[#allocation3 + $0x21] sm:$0xff]
      %v4597 = vld [vmem:[#allocation3 + $0x31] sm:$0xff]
      %v4598 = vld [vmem:[#allocation3 + $0x39] sm:$0xff]
      %v4599 = vld [vmem:[#allocation3 + $0x49] sm:$0xff]
      %v4600 = vld [vmem:[#allocation3 + $0x51] sm:$0xff]
      %v4601 = vld [vmem:[#allocation3 + $0x61] sm:$0xff]
      %v4602 = vld [vmem:[#allocation3 + $0x69] sm:$0xff]
      %v4603 = vld [vmem:[#allocation3 + $0x79] sm:$0xff]
      %v4604 = vld [vmem:[#allocation3 + $0x81] sm:$0xff]
      %v4605 = vld [vmem:[#allocation3 + $0x91] sm:$0xff]
      %v4606 = vld [vmem:[#allocation3 + $0x99] sm:$0xff]
      %v4607 = vld [vmem:[#allocation3 + $0xa9] sm:$0xff]
      %v4608 = vld [vmem:[#allocation3 + $0xb1] sm:$0xff]
      %v4609 = vld [vmem:[#allocation3 + $0xc1] sm:$0xff]
      %v4610 = vld [vmem:[#allocation3 + $0xc9] sm:$0xff]
      %v4611 = vld [vmem:[#allocation3 + $0xd9] sm:$0xff]
      %v4612 = vld [vmem:[#allocation3 + $0xe1] sm:$0xff]
      %v4613 = vld [vmem:[#allocation3 + $0xf1] sm:$0xff]
      %v4614 = vld [vmem:[#allocation3 + $0xf9] sm:$0xff]
      %v4615 = vld [vmem:[#allocation3 + $0x109] sm:$0xff]
      %v4616 = vld [vmem:[#allocation3 + $0x111] sm:$0xff]
      %v4617 = vld [vmem:[#allocation3 + $0x121] sm:$0xff]
      %v4618 = vld [vmem:[#allocation3 + $0x129] sm:$0xff]
      %v4619 = vld [vmem:[#allocation3 + $0x139] sm:$0xff]
      %v4620 = vld [vmem:[#allocation3 + $0x141] sm:$0xff]
      %v4621 = vld [vmem:[#allocation3 + $0x151] sm:$0xff]
      %v4622 = vld [vmem:[#allocation3 + $0x159] sm:$0xff]
      %v4623 = vld [vmem:[#allocation3 + $0x169] sm:$0xff]
      %v4624 = vld [vmem:[#allocation3 + $0x171] sm:$0xff]
      %s4625 = scalar_lea.vmem %s5, 8
      %v4626 = vld [vmem:[%s4625] sm:$0xff]
      %v4628 = vsel %vm469, %v4593, 0
      %v4631 = vsel %vm469, %v4594, 0
      %v4634 = vsel %vm469, %v4595, 0
      %v4637 = vsel %vm469, %v4596, 0
      %v4640 = vsel %vm469, %v4597, 0
      %v4643 = vsel %vm469, %v4598, 0
      %v4646 = vsel %vm469, %v4599, 0
      %v4649 = vsel %vm469, %v4600, 0
      %v4652 = vsel %vm469, %v4601, 0
      %v4655 = vsel %vm469, %v4602, 0
      %v4658 = vsel %vm469, %v4603, 0
      %v4661 = vsel %vm469, %v4604, 0
      %v4664 = vsel %vm469, %v4605, 0
      %v4667 = vsel %vm469, %v4606, 0
      %v4670 = vsel %vm469, %v4607, 0
      %v4673 = vsel %vm469, %v4608, 0
      %v4676 = vsel %vm469, %v4609, 0
      %v4679 = vsel %vm469, %v4610, 0
      %v4682 = vsel %vm469, %v4611, 0
      %v4685 = vsel %vm469, %v4612, 0
      %v4688 = vsel %vm469, %v4613, 0
      %v4691 = vsel %vm469, %v4614, 0
      %v4694 = vsel %vm469, %v4615, 0
      %v4697 = vsel %vm469, %v4616, 0
      %v4700 = vsel %vm469, %v4617, 0
      %v4703 = vsel %vm469, %v4618, 0
      %v4706 = vsel %vm469, %v4619, 0
      %v4709 = vsel %vm469, %v4620, 0
      %v4712 = vsel %vm469, %v4621, 0
      %v4715 = vsel %vm469, %v4622, 0
      %v4718 = vsel %vm469, %v4623, 0
      %v4721 = vsel %vm469, %v4624, 0
      %4723 = vmatpush.msra.mxu0 0.0
      %4724 = vmatpush.msra.mxu0 0.0
      %4725 = vmatpush.msra.mxu0 0.0
      %4726 = vmatpush.msra.mxu0 0.0
      %4727 = vmatpush.msra.mxu0 0.0
      %4728 = vmatpush.msra.mxu0 0.0
      %4729 = vmatpush.msra.mxu0 0.0
      %4730 = vmatpush.msra.mxu0 0.0
      %4731 = vmatpush.msra.mxu0 0.0
      %4732 = vmatpush.msra.mxu0 0.0
      %4733 = vmatpush.msra.mxu0 0.0
      %4734 = vmatpush.msra.mxu0 0.0
      %4735 = vmatpush.msra.mxu0 0.0
      %4736 = vmatpush.msra.mxu0 0.0
      %4737 = vmatpush.msra.mxu0 0.0
      %4738 = vmatpush.msra.mxu0 %v4626
      %4739 = vmatmul.f32.gmra.mxu0 %v4628
      %v4740 = vpop.f32.mrf.mxu0
      %v4741 = vadd.f32 0.0, %v4740
      %4742 = vmatmul.f32.gmra.mxu0 %v4631
      %v4743 = vpop.f32.mrf.mxu0
      %v4744 = vadd.f32 0.0, %v4743
      %4745 = vmatmul.f32.gmra.mxu0 %v4634
      %v4746 = vpop.f32.mrf.mxu0
      %v4747 = vadd.f32 0.0, %v4746
      %4748 = vmatmul.f32.gmra.mxu0 %v4637
      %v4749 = vpop.f32.mrf.mxu0
      %v4750 = vadd.f32 0.0, %v4749
      %4751 = vmatmul.f32.gmra.mxu0 %v4640
      %v4752 = vpop.f32.mrf.mxu0
      %v4753 = vadd.f32 0.0, %v4752
      %4754 = vmatmul.f32.gmra.mxu0 %v4643
      %v4755 = vpop.f32.mrf.mxu0
      %v4756 = vadd.f32 0.0, %v4755
      %4757 = vmatmul.f32.gmra.mxu0 %v4646
      %v4758 = vpop.f32.mrf.mxu0
      %v4759 = vadd.f32 0.0, %v4758
      %4760 = vmatmul.f32.gmra.mxu0 %v4649
      %v4761 = vpop.f32.mrf.mxu0
      %v4762 = vadd.f32 0.0, %v4761
      %4763 = vmatmul.f32.gmra.mxu0 %v4652
      %v4764 = vpop.f32.mrf.mxu0
      %v4765 = vadd.f32 0.0, %v4764
      %4766 = vmatmul.f32.gmra.mxu0 %v4655
      %v4767 = vpop.f32.mrf.mxu0
      %v4768 = vadd.f32 0.0, %v4767
      %4769 = vmatmul.f32.gmra.mxu0 %v4658
      %v4770 = vpop.f32.mrf.mxu0
      %v4771 = vadd.f32 0.0, %v4770
      %4772 = vmatmul.f32.gmra.mxu0 %v4661
      %v4773 = vpop.f32.mrf.mxu0
      %v4774 = vadd.f32 0.0, %v4773
      %4775 = vmatmul.f32.gmra.mxu0 %v4664
      %v4776 = vpop.f32.mrf.mxu0
      %v4777 = vadd.f32 0.0, %v4776
      %4778 = vmatmul.f32.gmra.mxu0 %v4667
      %v4779 = vpop.f32.mrf.mxu0
      %v4780 = vadd.f32 0.0, %v4779
      %4781 = vmatmul.f32.gmra.mxu0 %v4670
      %v4782 = vpop.f32.mrf.mxu0
      %v4783 = vadd.f32 0.0, %v4782
      %4784 = vmatmul.f32.gmra.mxu0 %v4673
      %v4785 = vpop.f32.mrf.mxu0
      %v4786 = vadd.f32 0.0, %v4785
      %4787 = vmatmul.f32.gmra.mxu0 %v4676
      %v4788 = vpop.f32.mrf.mxu0
      %v4789 = vadd.f32 0.0, %v4788
      %4790 = vmatmul.f32.gmra.mxu0 %v4679
      %v4791 = vpop.f32.mrf.mxu0
      %v4792 = vadd.f32 0.0, %v4791
      %4793 = vmatmul.f32.gmra.mxu0 %v4682
      %v4794 = vpop.f32.mrf.mxu0
      %v4795 = vadd.f32 0.0, %v4794
      %4796 = vmatmul.f32.gmra.mxu0 %v4685
      %v4797 = vpop.f32.mrf.mxu0
      %v4798 = vadd.f32 0.0, %v4797
      %4799 = vmatmul.f32.gmra.mxu0 %v4688
      %v4800 = vpop.f32.mrf.mxu0
      %v4801 = vadd.f32 0.0, %v4800
      %4802 = vmatmul.f32.gmra.mxu0 %v4691
      %v4803 = vpop.f32.mrf.mxu0
      %v4804 = vadd.f32 0.0, %v4803
      %4805 = vmatmul.f32.gmra.mxu0 %v4694
      %v4806 = vpop.f32.mrf.mxu0
      %v4807 = vadd.f32 0.0, %v4806
      %4808 = vmatmul.f32.gmra.mxu0 %v4697
      %v4809 = vpop.f32.mrf.mxu0
      %v4810 = vadd.f32 0.0, %v4809
      %4811 = vmatmul.f32.gmra.mxu0 %v4700
      %v4812 = vpop.f32.mrf.mxu0
      %v4813 = vadd.f32 0.0, %v4812
      %4814 = vmatmul.f32.gmra.mxu0 %v4703
      %v4815 = vpop.f32.mrf.mxu0
      %v4816 = vadd.f32 0.0, %v4815
      %4817 = vmatmul.f32.gmra.mxu0 %v4706
      %v4818 = vpop.f32.mrf.mxu0
      %v4819 = vadd.f32 0.0, %v4818
      %4820 = vmatmul.f32.gmra.mxu0 %v4709
      %v4821 = vpop.f32.mrf.mxu0
      %v4822 = vadd.f32 0.0, %v4821
      %4823 = vmatmul.f32.gmra.mxu0 %v4712
      %v4824 = vpop.f32.mrf.mxu0
      %v4825 = vadd.f32 0.0, %v4824
      %4826 = vmatmul.f32.gmra.mxu0 %v4715
      %v4827 = vpop.f32.mrf.mxu0
      %v4828 = vadd.f32 0.0, %v4827
      %4829 = vmatmul.f32.gmra.mxu0 %v4718
      %v4830 = vpop.f32.mrf.mxu0
      %v4831 = vadd.f32 0.0, %v4830
      %4832 = vmatmul.f32.gmra.mxu0 %v4721
      %v4833 = vpop.f32.mrf.mxu0
      %v4834 = vadd.f32 0.0, %v4833
      %4835 = vdwg.mxu0
      %v4836 = vadd.f32 %v4561, %v4741
      %v4837 = vadd.f32 %v4562, %v4744
      %v4838 = vadd.f32 %v4563, %v4747
      %v4839 = vadd.f32 %v4564, %v4750
      %v4840 = vadd.f32 %v4565, %v4753
      %v4841 = vadd.f32 %v4566, %v4756
      %v4842 = vadd.f32 %v4567, %v4759
      %v4843 = vadd.f32 %v4568, %v4762
      %v4844 = vadd.f32 %v4569, %v4765
      %v4845 = vadd.f32 %v4570, %v4768
      %v4846 = vadd.f32 %v4571, %v4771
      %v4847 = vadd.f32 %v4572, %v4774
      %v4848 = vadd.f32 %v4573, %v4777
      %v4849 = vadd.f32 %v4574, %v4780
      %v4850 = vadd.f32 %v4575, %v4783
      %v4851 = vadd.f32 %v4576, %v4786
      %v4852 = vadd.f32 %v4577, %v4789
      %v4853 = vadd.f32 %v4578, %v4792
      %v4854 = vadd.f32 %v4579, %v4795
      %v4855 = vadd.f32 %v4580, %v4798
      %v4856 = vadd.f32 %v4581, %v4801
      %v4857 = vadd.f32 %v4582, %v4804
      %v4858 = vadd.f32 %v4583, %v4807
      %v4859 = vadd.f32 %v4584, %v4810
      %v4860 = vadd.f32 %v4585, %v4813
      %v4861 = vadd.f32 %v4586, %v4816
      %v4862 = vadd.f32 %v4587, %v4819
      %v4863 = vadd.f32 %v4588, %v4822
      %v4864 = vadd.f32 %v4589, %v4825
      %v4865 = vadd.f32 %v4590, %v4828
      %v4866 = vadd.f32 %v4591, %v4831
      %v4867 = vadd.f32 %v4592, %v4834
      %v4868 = vld [vmem:[#allocation3 + $0x2] sm:$0xff]
      %v4869 = vld [vmem:[#allocation3 + $0xa] sm:$0xff]
      %v4870 = vld [vmem:[#allocation3 + $0x1a] sm:$0xff]
      %v4871 = vld [vmem:[#allocation3 + $0x22] sm:$0xff]
      %v4872 = vld [vmem:[#allocation3 + $0x32] sm:$0xff]
      %v4873 = vld [vmem:[#allocation3 + $0x3a] sm:$0xff]
      %v4874 = vld [vmem:[#allocation3 + $0x4a] sm:$0xff]
      %v4875 = vld [vmem:[#allocation3 + $0x52] sm:$0xff]
      %v4876 = vld [vmem:[#allocation3 + $0x62] sm:$0xff]
      %v4877 = vld [vmem:[#allocation3 + $0x6a] sm:$0xff]
      %v4878 = vld [vmem:[#allocation3 + $0x7a] sm:$0xff]
      %v4879 = vld [vmem:[#allocation3 + $0x82] sm:$0xff]
      %v4880 = vld [vmem:[#allocation3 + $0x92] sm:$0xff]
      %v4881 = vld [vmem:[#allocation3 + $0x9a] sm:$0xff]
      %v4882 = vld [vmem:[#allocation3 + $0xaa] sm:$0xff]
      %v4883 = vld [vmem:[#allocation3 + $0xb2] sm:$0xff]
      %v4884 = vld [vmem:[#allocation3 + $0xc2] sm:$0xff]
      %v4885 = vld [vmem:[#allocation3 + $0xca] sm:$0xff]
      %v4886 = vld [vmem:[#allocation3 + $0xda] sm:$0xff]
      %v4887 = vld [vmem:[#allocation3 + $0xe2] sm:$0xff]
      %v4888 = vld [vmem:[#allocation3 + $0xf2] sm:$0xff]
      %v4889 = vld [vmem:[#allocation3 + $0xfa] sm:$0xff]
      %v4890 = vld [vmem:[#allocation3 + $0x10a] sm:$0xff]
      %v4891 = vld [vmem:[#allocation3 + $0x112] sm:$0xff]
      %v4892 = vld [vmem:[#allocation3 + $0x122] sm:$0xff]
      %v4893 = vld [vmem:[#allocation3 + $0x12a] sm:$0xff]
      %v4894 = vld [vmem:[#allocation3 + $0x13a] sm:$0xff]
      %v4895 = vld [vmem:[#allocation3 + $0x142] sm:$0xff]
      %v4896 = vld [vmem:[#allocation3 + $0x152] sm:$0xff]
      %v4897 = vld [vmem:[#allocation3 + $0x15a] sm:$0xff]
      %v4898 = vld [vmem:[#allocation3 + $0x16a] sm:$0xff]
      %v4899 = vld [vmem:[#allocation3 + $0x172] sm:$0xff]
      %s4900 = scalar_lea.vmem %s5, 16
      %v4901 = vld [vmem:[%s4900] sm:$0xff]
      %v4903 = vsel %vm469, %v4868, 0
      %v4906 = vsel %vm469, %v4869, 0
      %v4909 = vsel %vm469, %v4870, 0
      %v4912 = vsel %vm469, %v4871, 0
      %v4915 = vsel %vm469, %v4872, 0
      %v4918 = vsel %vm469, %v4873, 0
      %v4921 = vsel %vm469, %v4874, 0
      %v4924 = vsel %vm469, %v4875, 0
      %v4927 = vsel %vm469, %v4876, 0
      %v4930 = vsel %vm469, %v4877, 0
      %v4933 = vsel %vm469, %v4878, 0
      %v4936 = vsel %vm469, %v4879, 0
      %v4939 = vsel %vm469, %v4880, 0
      %v4942 = vsel %vm469, %v4881, 0
      %v4945 = vsel %vm469, %v4882, 0
      %v4948 = vsel %vm469, %v4883, 0
      %v4951 = vsel %vm469, %v4884, 0
      %v4954 = vsel %vm469, %v4885, 0
      %v4957 = vsel %vm469, %v4886, 0
      %v4960 = vsel %vm469, %v4887, 0
      %v4963 = vsel %vm469, %v4888, 0
      %v4966 = vsel %vm469, %v4889, 0
      %v4969 = vsel %vm469, %v4890, 0
      %v4972 = vsel %vm469, %v4891, 0
      %v4975 = vsel %vm469, %v4892, 0
      %v4978 = vsel %vm469, %v4893, 0
      %v4981 = vsel %vm469, %v4894, 0
      %v4984 = vsel %vm469, %v4895, 0
      %v4987 = vsel %vm469, %v4896, 0
      %v4990 = vsel %vm469, %v4897, 0
      %v4993 = vsel %vm469, %v4898, 0
      %v4996 = vsel %vm469, %v4899, 0
      %4998 = vmatpush.msra.mxu0 0.0
      %4999 = vmatpush.msra.mxu0 0.0
      %5000 = vmatpush.msra.mxu0 0.0
      %5001 = vmatpush.msra.mxu0 0.0
      %5002 = vmatpush.msra.mxu0 0.0
      %5003 = vmatpush.msra.mxu0 0.0
      %5004 = vmatpush.msra.mxu0 0.0
      %5005 = vmatpush.msra.mxu0 0.0
      %5006 = vmatpush.msra.mxu0 0.0
      %5007 = vmatpush.msra.mxu0 0.0
      %5008 = vmatpush.msra.mxu0 0.0
      %5009 = vmatpush.msra.mxu0 0.0
      %5010 = vmatpush.msra.mxu0 0.0
      %5011 = vmatpush.msra.mxu0 0.0
      %5012 = vmatpush.msra.mxu0 0.0
      %5013 = vmatpush.msra.mxu0 %v4901
      %5014 = vmatmul.f32.gmra.mxu0 %v4903
      %v5015 = vpop.f32.mrf.mxu0
      %v5016 = vadd.f32 0.0, %v5015
      %5017 = vmatmul.f32.gmra.mxu0 %v4906
      %v5018 = vpop.f32.mrf.mxu0
      %v5019 = vadd.f32 0.0, %v5018
      %5020 = vmatmul.f32.gmra.mxu0 %v4909
      %v5021 = vpop.f32.mrf.mxu0
      %v5022 = vadd.f32 0.0, %v5021
      %5023 = vmatmul.f32.gmra.mxu0 %v4912
      %v5024 = vpop.f32.mrf.mxu0
      %v5025 = vadd.f32 0.0, %v5024
      %5026 = vmatmul.f32.gmra.mxu0 %v4915
      %v5027 = vpop.f32.mrf.mxu0
      %v5028 = vadd.f32 0.0, %v5027
      %5029 = vmatmul.f32.gmra.mxu0 %v4918
      %v5030 = vpop.f32.mrf.mxu0
      %v5031 = vadd.f32 0.0, %v5030
      %5032 = vmatmul.f32.gmra.mxu0 %v4921
      %v5033 = vpop.f32.mrf.mxu0
      %v5034 = vadd.f32 0.0, %v5033
      %5035 = vmatmul.f32.gmra.mxu0 %v4924
      %v5036 = vpop.f32.mrf.mxu0
      %v5037 = vadd.f32 0.0, %v5036
      %5038 = vmatmul.f32.gmra.mxu0 %v4927
      %v5039 = vpop.f32.mrf.mxu0
      %v5040 = vadd.f32 0.0, %v5039
      %5041 = vmatmul.f32.gmra.mxu0 %v4930
      %v5042 = vpop.f32.mrf.mxu0
      %v5043 = vadd.f32 0.0, %v5042
      %5044 = vmatmul.f32.gmra.mxu0 %v4933
      %v5045 = vpop.f32.mrf.mxu0
      %v5046 = vadd.f32 0.0, %v5045
      %5047 = vmatmul.f32.gmra.mxu0 %v4936
      %v5048 = vpop.f32.mrf.mxu0
      %v5049 = vadd.f32 0.0, %v5048
      %5050 = vmatmul.f32.gmra.mxu0 %v4939
      %v5051 = vpop.f32.mrf.mxu0
      %v5052 = vadd.f32 0.0, %v5051
      %5053 = vmatmul.f32.gmra.mxu0 %v4942
      %v5054 = vpop.f32.mrf.mxu0
      %v5055 = vadd.f32 0.0, %v5054
      %5056 = vmatmul.f32.gmra.mxu0 %v4945
      %v5057 = vpop.f32.mrf.mxu0
      %v5058 = vadd.f32 0.0, %v5057
      %5059 = vmatmul.f32.gmra.mxu0 %v4948
      %v5060 = vpop.f32.mrf.mxu0
      %v5061 = vadd.f32 0.0, %v5060
      %5062 = vmatmul.f32.gmra.mxu0 %v4951
      %v5063 = vpop.f32.mrf.mxu0
      %v5064 = vadd.f32 0.0, %v5063
      %5065 = vmatmul.f32.gmra.mxu0 %v4954
      %v5066 = vpop.f32.mrf.mxu0
      %v5067 = vadd.f32 0.0, %v5066
      %5068 = vmatmul.f32.gmra.mxu0 %v4957
      %v5069 = vpop.f32.mrf.mxu0
      %v5070 = vadd.f32 0.0, %v5069
      %5071 = vmatmul.f32.gmra.mxu0 %v4960
      %v5072 = vpop.f32.mrf.mxu0
      %v5073 = vadd.f32 0.0, %v5072
      %5074 = vmatmul.f32.gmra.mxu0 %v4963
      %v5075 = vpop.f32.mrf.mxu0
      %v5076 = vadd.f32 0.0, %v5075
      %5077 = vmatmul.f32.gmra.mxu0 %v4966
      %v5078 = vpop.f32.mrf.mxu0
      %v5079 = vadd.f32 0.0, %v5078
      %5080 = vmatmul.f32.gmra.mxu0 %v4969
      %v5081 = vpop.f32.mrf.mxu0
      %v5082 = vadd.f32 0.0, %v5081
      %5083 = vmatmul.f32.gmra.mxu0 %v4972
      %v5084 = vpop.f32.mrf.mxu0
      %v5085 = vadd.f32 0.0, %v5084
      %5086 = vmatmul.f32.gmra.mxu0 %v4975
      %v5087 = vpop.f32.mrf.mxu0
      %v5088 = vadd.f32 0.0, %v5087
      %5089 = vmatmul.f32.gmra.mxu0 %v4978
      %v5090 = vpop.f32.mrf.mxu0
      %v5091 = vadd.f32 0.0, %v5090
      %5092 = vmatmul.f32.gmra.mxu0 %v4981
      %v5093 = vpop.f32.mrf.mxu0
      %v5094 = vadd.f32 0.0, %v5093
      %5095 = vmatmul.f32.gmra.mxu0 %v4984
      %v5096 = vpop.f32.mrf.mxu0
      %v5097 = vadd.f32 0.0, %v5096
      %5098 = vmatmul.f32.gmra.mxu0 %v4987
      %v5099 = vpop.f32.mrf.mxu0
      %v5100 = vadd.f32 0.0, %v5099
      %5101 = vmatmul.f32.gmra.mxu0 %v4990
      %v5102 = vpop.f32.mrf.mxu0
      %v5103 = vadd.f32 0.0, %v5102
      %5104 = vmatmul.f32.gmra.mxu0 %v4993
      %v5105 = vpop.f32.mrf.mxu0
      %v5106 = vadd.f32 0.0, %v5105
      %5107 = vmatmul.f32.gmra.mxu0 %v4996
      %v5108 = vpop.f32.mrf.mxu0
      %v5109 = vadd.f32 0.0, %v5108
      %5110 = vdwg.mxu0
      %v5111 = vadd.f32 %v4836, %v5016
      %v5112 = vadd.f32 %v4837, %v5019
      %v5113 = vadd.f32 %v4838, %v5022
      %v5114 = vadd.f32 %v4839, %v5025
      %v5115 = vadd.f32 %v4840, %v5028
      %v5116 = vadd.f32 %v4841, %v5031
      %v5117 = vadd.f32 %v4842, %v5034
      %v5118 = vadd.f32 %v4843, %v5037
      %v5119 = vadd.f32 %v4844, %v5040
      %v5120 = vadd.f32 %v4845, %v5043
      %v5121 = vadd.f32 %v4846, %v5046
      %v5122 = vadd.f32 %v4847, %v5049
      %v5123 = vadd.f32 %v4848, %v5052
      %v5124 = vadd.f32 %v4849, %v5055
      %v5125 = vadd.f32 %v4850, %v5058
      %v5126 = vadd.f32 %v4851, %v5061
      %v5127 = vadd.f32 %v4852, %v5064
      %v5128 = vadd.f32 %v4853, %v5067
      %v5129 = vadd.f32 %v4854, %v5070
      %v5130 = vadd.f32 %v4855, %v5073
      %v5131 = vadd.f32 %v4856, %v5076
      %v5132 = vadd.f32 %v4857, %v5079
      %v5133 = vadd.f32 %v4858, %v5082
      %v5134 = vadd.f32 %v4859, %v5085
      %v5135 = vadd.f32 %v4860, %v5088
      %v5136 = vadd.f32 %v4861, %v5091
      %v5137 = vadd.f32 %v4862, %v5094
      %v5138 = vadd.f32 %v4863, %v5097
      %v5139 = vadd.f32 %v4864, %v5100
      %v5140 = vadd.f32 %v4865, %v5103
      %v5141 = vadd.f32 %v4866, %v5106
      %v5142 = vadd.f32 %v4867, %v5109
      %s5143 = scalar_lea.vmem [#allocation3], 24
      %v5144 = vld [vmem:[%s5143] sm:$0xff]
      %v5145 = vld [vmem:[%s5143 + $0x8] sm:$0xff]
      %v5146 = vld [vmem:[%s5143 + $0x18] sm:$0xff]
      %v5147 = vld [vmem:[%s5143 + $0x20] sm:$0xff]
      %v5148 = vld [vmem:[%s5143 + $0x30] sm:$0xff]
      %v5149 = vld [vmem:[%s5143 + $0x38] sm:$0xff]
      %v5150 = vld [vmem:[%s5143 + $0x48] sm:$0xff]
      %v5151 = vld [vmem:[%s5143 + $0x50] sm:$0xff]
      %v5152 = vld [vmem:[%s5143 + $0x60] sm:$0xff]
      %v5153 = vld [vmem:[%s5143 + $0x68] sm:$0xff]
      %v5154 = vld [vmem:[%s5143 + $0x78] sm:$0xff]
      %v5155 = vld [vmem:[%s5143 + $0x80] sm:$0xff]
      %v5156 = vld [vmem:[%s5143 + $0x90] sm:$0xff]
      %v5157 = vld [vmem:[%s5143 + $0x98] sm:$0xff]
      %v5158 = vld [vmem:[%s5143 + $0xa8] sm:$0xff]
      %v5159 = vld [vmem:[%s5143 + $0xb0] sm:$0xff]
      %v5160 = vld [vmem:[%s5143 + $0xc0] sm:$0xff]
      %v5161 = vld [vmem:[%s5143 + $0xc8] sm:$0xff]
      %v5162 = vld [vmem:[%s5143 + $0xd8] sm:$0xff]
      %v5163 = vld [vmem:[%s5143 + $0xe0] sm:$0xff]
      %v5164 = vld [vmem:[%s5143 + $0xf0] sm:$0xff]
      %v5165 = vld [vmem:[%s5143 + $0xf8] sm:$0xff]
      %v5166 = vld [vmem:[%s5143 + $0x108] sm:$0xff]
      %v5167 = vld [vmem:[%s5143 + $0x110] sm:$0xff]
      %v5168 = vld [vmem:[%s5143 + $0x120] sm:$0xff]
      %v5169 = vld [vmem:[%s5143 + $0x128] sm:$0xff]
      %v5170 = vld [vmem:[%s5143 + $0x138] sm:$0xff]
      %v5171 = vld [vmem:[%s5143 + $0x140] sm:$0xff]
      %v5172 = vld [vmem:[%s5143 + $0x150] sm:$0xff]
      %v5173 = vld [vmem:[%s5143 + $0x158] sm:$0xff]
      %v5174 = vld [vmem:[%s5143 + $0x168] sm:$0xff]
      %v5175 = vld [vmem:[%s5143 + $0x170] sm:$0xff]
      %s5176 = scalar_lea.vmem %s5, 24
      %v5177 = vld [vmem:[%s5176] sm:$0xff]
      %v5179 = vsel %vm469, %v5144, 0
      %v5182 = vsel %vm469, %v5145, 0
      %v5185 = vsel %vm469, %v5146, 0
      %v5188 = vsel %vm469, %v5147, 0
      %v5191 = vsel %vm469, %v5148, 0
      %v5194 = vsel %vm469, %v5149, 0
      %v5197 = vsel %vm469, %v5150, 0
      %v5200 = vsel %vm469, %v5151, 0
      %v5203 = vsel %vm469, %v5152, 0
      %v5206 = vsel %vm469, %v5153, 0
      %v5209 = vsel %vm469, %v5154, 0
      %v5212 = vsel %vm469, %v5155, 0
      %v5215 = vsel %vm469, %v5156, 0
      %v5218 = vsel %vm469, %v5157, 0
      %v5221 = vsel %vm469, %v5158, 0
      %v5224 = vsel %vm469, %v5159, 0
      %v5227 = vsel %vm469, %v5160, 0
      %v5230 = vsel %vm469, %v5161, 0
      %v5233 = vsel %vm469, %v5162, 0
      %v5236 = vsel %vm469, %v5163, 0
      %v5239 = vsel %vm469, %v5164, 0
      %v5242 = vsel %vm469, %v5165, 0
      %v5245 = vsel %vm469, %v5166, 0
      %v5248 = vsel %vm469, %v5167, 0
      %v5251 = vsel %vm469, %v5168, 0
      %v5254 = vsel %vm469, %v5169, 0
      %v5257 = vsel %vm469, %v5170, 0
      %v5260 = vsel %vm469, %v5171, 0
      %v5263 = vsel %vm469, %v5172, 0
      %v5266 = vsel %vm469, %v5173, 0
      %v5269 = vsel %vm469, %v5174, 0
      %v5272 = vsel %vm469, %v5175, 0
      %5274 = vmatpush.msra.mxu0 0.0
      %5275 = vmatpush.msra.mxu0 0.0
      %5276 = vmatpush.msra.mxu0 0.0
      %5277 = vmatpush.msra.mxu0 0.0
      %5278 = vmatpush.msra.mxu0 0.0
      %5279 = vmatpush.msra.mxu0 0.0
      %5280 = vmatpush.msra.mxu0 0.0
      %5281 = vmatpush.msra.mxu0 0.0
      %5282 = vmatpush.msra.mxu0 0.0
      %5283 = vmatpush.msra.mxu0 0.0
      %5284 = vmatpush.msra.mxu0 0.0
      %5285 = vmatpush.msra.mxu0 0.0
      %5286 = vmatpush.msra.mxu0 0.0
      %5287 = vmatpush.msra.mxu0 0.0
      %5288 = vmatpush.msra.mxu0 0.0
      %5289 = vmatpush.msra.mxu0 %v5177
      %5290 = vmatmul.f32.gmra.mxu0 %v5179
      %v5291 = vpop.f32.mrf.mxu0
      %v5292 = vadd.f32 0.0, %v5291
      %5293 = vmatmul.f32.gmra.mxu0 %v5182
      %v5294 = vpop.f32.mrf.mxu0
      %v5295 = vadd.f32 0.0, %v5294
      %5296 = vmatmul.f32.gmra.mxu0 %v5185
      %v5297 = vpop.f32.mrf.mxu0
      %v5298 = vadd.f32 0.0, %v5297
      %5299 = vmatmul.f32.gmra.mxu0 %v5188
      %v5300 = vpop.f32.mrf.mxu0
      %v5301 = vadd.f32 0.0, %v5300
      %5302 = vmatmul.f32.gmra.mxu0 %v5191
      %v5303 = vpop.f32.mrf.mxu0
      %v5304 = vadd.f32 0.0, %v5303
      %5305 = vmatmul.f32.gmra.mxu0 %v5194
      %v5306 = vpop.f32.mrf.mxu0
      %v5307 = vadd.f32 0.0, %v5306
      %5308 = vmatmul.f32.gmra.mxu0 %v5197
      %v5309 = vpop.f32.mrf.mxu0
      %v5310 = vadd.f32 0.0, %v5309
      %5311 = vmatmul.f32.gmra.mxu0 %v5200
      %v5312 = vpop.f32.mrf.mxu0
      %v5313 = vadd.f32 0.0, %v5312
      %5314 = vmatmul.f32.gmra.mxu0 %v5203
      %v5315 = vpop.f32.mrf.mxu0
      %v5316 = vadd.f32 0.0, %v5315
      %5317 = vmatmul.f32.gmra.mxu0 %v5206
      %v5318 = vpop.f32.mrf.mxu0
      %v5319 = vadd.f32 0.0, %v5318
      %5320 = vmatmul.f32.gmra.mxu0 %v5209
      %v5321 = vpop.f32.mrf.mxu0
      %v5322 = vadd.f32 0.0, %v5321
      %5323 = vmatmul.f32.gmra.mxu0 %v5212
      %v5324 = vpop.f32.mrf.mxu0
      %v5325 = vadd.f32 0.0, %v5324
      %5326 = vmatmul.f32.gmra.mxu0 %v5215
      %v5327 = vpop.f32.mrf.mxu0
      %v5328 = vadd.f32 0.0, %v5327
      %5329 = vmatmul.f32.gmra.mxu0 %v5218
      %v5330 = vpop.f32.mrf.mxu0
      %v5331 = vadd.f32 0.0, %v5330
      %5332 = vmatmul.f32.gmra.mxu0 %v5221
      %v5333 = vpop.f32.mrf.mxu0
      %v5334 = vadd.f32 0.0, %v5333
      %5335 = vmatmul.f32.gmra.mxu0 %v5224
      %v5336 = vpop.f32.mrf.mxu0
      %v5337 = vadd.f32 0.0, %v5336
      %5338 = vmatmul.f32.gmra.mxu0 %v5227
      %v5339 = vpop.f32.mrf.mxu0
      %v5340 = vadd.f32 0.0, %v5339
      %5341 = vmatmul.f32.gmra.mxu0 %v5230
      %v5342 = vpop.f32.mrf.mxu0
      %v5343 = vadd.f32 0.0, %v5342
      %5344 = vmatmul.f32.gmra.mxu0 %v5233
      %v5345 = vpop.f32.mrf.mxu0
      %v5346 = vadd.f32 0.0, %v5345
      %5347 = vmatmul.f32.gmra.mxu0 %v5236
      %v5348 = vpop.f32.mrf.mxu0
      %v5349 = vadd.f32 0.0, %v5348
      %5350 = vmatmul.f32.gmra.mxu0 %v5239
      %v5351 = vpop.f32.mrf.mxu0
      %v5352 = vadd.f32 0.0, %v5351
      %5353 = vmatmul.f32.gmra.mxu0 %v5242
      %v5354 = vpop.f32.mrf.mxu0
      %v5355 = vadd.f32 0.0, %v5354
      %5356 = vmatmul.f32.gmra.mxu0 %v5245
      %v5357 = vpop.f32.mrf.mxu0
      %v5358 = vadd.f32 0.0, %v5357
      %5359 = vmatmul.f32.gmra.mxu0 %v5248
      %v5360 = vpop.f32.mrf.mxu0
      %v5361 = vadd.f32 0.0, %v5360
      %5362 = vmatmul.f32.gmra.mxu0 %v5251
      %v5363 = vpop.f32.mrf.mxu0
      %v5364 = vadd.f32 0.0, %v5363
      %5365 = vmatmul.f32.gmra.mxu0 %v5254
      %v5366 = vpop.f32.mrf.mxu0
      %v5367 = vadd.f32 0.0, %v5366
      %5368 = vmatmul.f32.gmra.mxu0 %v5257
      %v5369 = vpop.f32.mrf.mxu0
      %v5370 = vadd.f32 0.0, %v5369
      %5371 = vmatmul.f32.gmra.mxu0 %v5260
      %v5372 = vpop.f32.mrf.mxu0
      %v5373 = vadd.f32 0.0, %v5372
      %5374 = vmatmul.f32.gmra.mxu0 %v5263
      %v5375 = vpop.f32.mrf.mxu0
      %v5376 = vadd.f32 0.0, %v5375
      %5377 = vmatmul.f32.gmra.mxu0 %v5266
      %v5378 = vpop.f32.mrf.mxu0
      %v5379 = vadd.f32 0.0, %v5378
      %5380 = vmatmul.f32.gmra.mxu0 %v5269
      %v5381 = vpop.f32.mrf.mxu0
      %v5382 = vadd.f32 0.0, %v5381
      %5383 = vmatmul.f32.gmra.mxu0 %v5272
      %v5384 = vpop.f32.mrf.mxu0
      %v5385 = vadd.f32 0.0, %v5384
      %5386 = vdwg.mxu0
      %v5387 = vadd.f32 %v5111, %v5292
      %v5388 = vadd.f32 %v5112, %v5295
      %v5389 = vadd.f32 %v5113, %v5298
      %v5390 = vadd.f32 %v5114, %v5301
      %v5391 = vadd.f32 %v5115, %v5304
      %v5392 = vadd.f32 %v5116, %v5307
      %v5393 = vadd.f32 %v5117, %v5310
      %v5394 = vadd.f32 %v5118, %v5313
      %v5395 = vadd.f32 %v5119, %v5316
      %v5396 = vadd.f32 %v5120, %v5319
      %v5397 = vadd.f32 %v5121, %v5322
      %v5398 = vadd.f32 %v5122, %v5325
      %v5399 = vadd.f32 %v5123, %v5328
      %v5400 = vadd.f32 %v5124, %v5331
      %v5401 = vadd.f32 %v5125, %v5334
      %v5402 = vadd.f32 %v5126, %v5337
      %v5403 = vadd.f32 %v5127, %v5340
      %v5404 = vadd.f32 %v5128, %v5343
      %v5405 = vadd.f32 %v5129, %v5346
      %v5406 = vadd.f32 %v5130, %v5349
      %v5407 = vadd.f32 %v5131, %v5352
      %v5408 = vadd.f32 %v5132, %v5355
      %v5409 = vadd.f32 %v5133, %v5358
      %v5410 = vadd.f32 %v5134, %v5361
      %v5411 = vadd.f32 %v5135, %v5364
      %v5412 = vadd.f32 %v5136, %v5367
      %v5413 = vadd.f32 %v5137, %v5370
      %v5414 = vadd.f32 %v5138, %v5373
      %v5415 = vadd.f32 %v5139, %v5376
      %v5416 = vadd.f32 %v5140, %v5379
      %v5417 = vadd.f32 %v5141, %v5382
      %v5418 = vadd.f32 %v5142, %v5385
      %v5419 = vld [vmem:[%s5143 + $0x1] sm:$0xff]
      %v5420 = vld [vmem:[%s5143 + $0x9] sm:$0xff]
      %v5421 = vld [vmem:[%s5143 + $0x19] sm:$0xff]
      %v5422 = vld [vmem:[%s5143 + $0x21] sm:$0xff]
      %v5423 = vld [vmem:[%s5143 + $0x31] sm:$0xff]
      %v5424 = vld [vmem:[%s5143 + $0x39] sm:$0xff]
      %v5425 = vld [vmem:[%s5143 + $0x49] sm:$0xff]
      %v5426 = vld [vmem:[%s5143 + $0x51] sm:$0xff]
      %v5427 = vld [vmem:[%s5143 + $0x61] sm:$0xff]
      %v5428 = vld [vmem:[%s5143 + $0x69] sm:$0xff]
      %v5429 = vld [vmem:[%s5143 + $0x79] sm:$0xff]
      %v5430 = vld [vmem:[%s5143 + $0x81] sm:$0xff]
      %v5431 = vld [vmem:[%s5143 + $0x91] sm:$0xff]
      %v5432 = vld [vmem:[%s5143 + $0x99] sm:$0xff]
      %v5433 = vld [vmem:[%s5143 + $0xa9] sm:$0xff]
      %v5434 = vld [vmem:[%s5143 + $0xb1] sm:$0xff]
      %v5435 = vld [vmem:[%s5143 + $0xc1] sm:$0xff]
      %v5436 = vld [vmem:[%s5143 + $0xc9] sm:$0xff]
      %v5437 = vld [vmem:[%s5143 + $0xd9] sm:$0xff]
      %v5438 = vld [vmem:[%s5143 + $0xe1] sm:$0xff]
      %v5439 = vld [vmem:[%s5143 + $0xf1] sm:$0xff]
      %v5440 = vld [vmem:[%s5143 + $0xf9] sm:$0xff]
      %v5441 = vld [vmem:[%s5143 + $0x109] sm:$0xff]
      %v5442 = vld [vmem:[%s5143 + $0x111] sm:$0xff]
      %v5443 = vld [vmem:[%s5143 + $0x121] sm:$0xff]
      %v5444 = vld [vmem:[%s5143 + $0x129] sm:$0xff]
      %v5445 = vld [vmem:[%s5143 + $0x139] sm:$0xff]
      %v5446 = vld [vmem:[%s5143 + $0x141] sm:$0xff]
      %v5447 = vld [vmem:[%s5143 + $0x151] sm:$0xff]
      %v5448 = vld [vmem:[%s5143 + $0x159] sm:$0xff]
      %v5449 = vld [vmem:[%s5143 + $0x169] sm:$0xff]
      %v5450 = vld [vmem:[%s5143 + $0x171] sm:$0xff]
      %s5451 = scalar_lea.vmem %s5, 32
      %v5452 = vld [vmem:[%s5451] sm:$0xff]
      %v5454 = vsel %vm469, %v5419, 0
      %v5457 = vsel %vm469, %v5420, 0
      %v5460 = vsel %vm469, %v5421, 0
      %v5463 = vsel %vm469, %v5422, 0
      %v5466 = vsel %vm469, %v5423, 0
      %v5469 = vsel %vm469, %v5424, 0
      %v5472 = vsel %vm469, %v5425, 0
      %v5475 = vsel %vm469, %v5426, 0
      %v5478 = vsel %vm469, %v5427, 0
      %v5481 = vsel %vm469, %v5428, 0
      %v5484 = vsel %vm469, %v5429, 0
      %v5487 = vsel %vm469, %v5430, 0
      %v5490 = vsel %vm469, %v5431, 0
      %v5493 = vsel %vm469, %v5432, 0
      %v5496 = vsel %vm469, %v5433, 0
      %v5499 = vsel %vm469, %v5434, 0
      %v5502 = vsel %vm469, %v5435, 0
      %v5505 = vsel %vm469, %v5436, 0
      %v5508 = vsel %vm469, %v5437, 0
      %v5511 = vsel %vm469, %v5438, 0
      %v5514 = vsel %vm469, %v5439, 0
      %v5517 = vsel %vm469, %v5440, 0
      %v5520 = vsel %vm469, %v5441, 0
      %v5523 = vsel %vm469, %v5442, 0
      %v5526 = vsel %vm469, %v5443, 0
      %v5529 = vsel %vm469, %v5444, 0
      %v5532 = vsel %vm469, %v5445, 0
      %v5535 = vsel %vm469, %v5446, 0
      %v5538 = vsel %vm469, %v5447, 0
      %v5541 = vsel %vm469, %v5448, 0
      %v5544 = vsel %vm469, %v5449, 0
      %v5547 = vsel %vm469, %v5450, 0
      %5549 = vmatpush.msra.mxu0 0.0
      %5550 = vmatpush.msra.mxu0 0.0
      %5551 = vmatpush.msra.mxu0 0.0
      %5552 = vmatpush.msra.mxu0 0.0
      %5553 = vmatpush.msra.mxu0 0.0
      %5554 = vmatpush.msra.mxu0 0.0
      %5555 = vmatpush.msra.mxu0 0.0
      %5556 = vmatpush.msra.mxu0 0.0
      %5557 = vmatpush.msra.mxu0 0.0
      %5558 = vmatpush.msra.mxu0 0.0
      %5559 = vmatpush.msra.mxu0 0.0
      %5560 = vmatpush.msra.mxu0 0.0
      %5561 = vmatpush.msra.mxu0 0.0
      %5562 = vmatpush.msra.mxu0 0.0
      %5563 = vmatpush.msra.mxu0 0.0
      %5564 = vmatpush.msra.mxu0 %v5452
      %5565 = vmatmul.f32.gmra.mxu0 %v5454
      %v5566 = vpop.f32.mrf.mxu0
      %v5567 = vadd.f32 0.0, %v5566
      %5568 = vmatmul.f32.gmra.mxu0 %v5457
      %v5569 = vpop.f32.mrf.mxu0
      %v5570 = vadd.f32 0.0, %v5569
      %5571 = vmatmul.f32.gmra.mxu0 %v5460
      %v5572 = vpop.f32.mrf.mxu0
      %v5573 = vadd.f32 0.0, %v5572
      %5574 = vmatmul.f32.gmra.mxu0 %v5463
      %v5575 = vpop.f32.mrf.mxu0
      %v5576 = vadd.f32 0.0, %v5575
      %5577 = vmatmul.f32.gmra.mxu0 %v5466
      %v5578 = vpop.f32.mrf.mxu0
      %v5579 = vadd.f32 0.0, %v5578
      %5580 = vmatmul.f32.gmra.mxu0 %v5469
      %v5581 = vpop.f32.mrf.mxu0
      %v5582 = vadd.f32 0.0, %v5581
      %5583 = vmatmul.f32.gmra.mxu0 %v5472
      %v5584 = vpop.f32.mrf.mxu0
      %v5585 = vadd.f32 0.0, %v5584
      %5586 = vmatmul.f32.gmra.mxu0 %v5475
      %v5587 = vpop.f32.mrf.mxu0
      %v5588 = vadd.f32 0.0, %v5587
      %5589 = vmatmul.f32.gmra.mxu0 %v5478
      %v5590 = vpop.f32.mrf.mxu0
      %v5591 = vadd.f32 0.0, %v5590
      %5592 = vmatmul.f32.gmra.mxu0 %v5481
      %v5593 = vpop.f32.mrf.mxu0
      %v5594 = vadd.f32 0.0, %v5593
      %5595 = vmatmul.f32.gmra.mxu0 %v5484
      %v5596 = vpop.f32.mrf.mxu0
      %v5597 = vadd.f32 0.0, %v5596
      %5598 = vmatmul.f32.gmra.mxu0 %v5487
      %v5599 = vpop.f32.mrf.mxu0
      %v5600 = vadd.f32 0.0, %v5599
      %5601 = vmatmul.f32.gmra.mxu0 %v5490
      %v5602 = vpop.f32.mrf.mxu0
      %v5603 = vadd.f32 0.0, %v5602
      %5604 = vmatmul.f32.gmra.mxu0 %v5493
      %v5605 = vpop.f32.mrf.mxu0
      %v5606 = vadd.f32 0.0, %v5605
      %5607 = vmatmul.f32.gmra.mxu0 %v5496
      %v5608 = vpop.f32.mrf.mxu0
      %v5609 = vadd.f32 0.0, %v5608
      %5610 = vmatmul.f32.gmra.mxu0 %v5499
      %v5611 = vpop.f32.mrf.mxu0
      %v5612 = vadd.f32 0.0, %v5611
      %5613 = vmatmul.f32.gmra.mxu0 %v5502
      %v5614 = vpop.f32.mrf.mxu0
      %v5615 = vadd.f32 0.0, %v5614
      %5616 = vmatmul.f32.gmra.mxu0 %v5505
      %v5617 = vpop.f32.mrf.mxu0
      %v5618 = vadd.f32 0.0, %v5617
      %5619 = vmatmul.f32.gmra.mxu0 %v5508
      %v5620 = vpop.f32.mrf.mxu0
      %v5621 = vadd.f32 0.0, %v5620
      %5622 = vmatmul.f32.gmra.mxu0 %v5511
      %v5623 = vpop.f32.mrf.mxu0
      %v5624 = vadd.f32 0.0, %v5623
      %5625 = vmatmul.f32.gmra.mxu0 %v5514
      %v5626 = vpop.f32.mrf.mxu0
      %v5627 = vadd.f32 0.0, %v5626
      %5628 = vmatmul.f32.gmra.mxu0 %v5517
      %v5629 = vpop.f32.mrf.mxu0
      %v5630 = vadd.f32 0.0, %v5629
      %5631 = vmatmul.f32.gmra.mxu0 %v5520
      %v5632 = vpop.f32.mrf.mxu0
      %v5633 = vadd.f32 0.0, %v5632
      %5634 = vmatmul.f32.gmra.mxu0 %v5523
      %v5635 = vpop.f32.mrf.mxu0
      %v5636 = vadd.f32 0.0, %v5635
      %5637 = vmatmul.f32.gmra.mxu0 %v5526
      %v5638 = vpop.f32.mrf.mxu0
      %v5639 = vadd.f32 0.0, %v5638
      %5640 = vmatmul.f32.gmra.mxu0 %v5529
      %v5641 = vpop.f32.mrf.mxu0
      %v5642 = vadd.f32 0.0, %v5641
      %5643 = vmatmul.f32.gmra.mxu0 %v5532
      %v5644 = vpop.f32.mrf.mxu0
      %v5645 = vadd.f32 0.0, %v5644
      %5646 = vmatmul.f32.gmra.mxu0 %v5535
      %v5647 = vpop.f32.mrf.mxu0
      %v5648 = vadd.f32 0.0, %v5647
      %5649 = vmatmul.f32.gmra.mxu0 %v5538
      %v5650 = vpop.f32.mrf.mxu0
      %v5651 = vadd.f32 0.0, %v5650
      %5652 = vmatmul.f32.gmra.mxu0 %v5541
      %v5653 = vpop.f32.mrf.mxu0
      %v5654 = vadd.f32 0.0, %v5653
      %5655 = vmatmul.f32.gmra.mxu0 %v5544
      %v5656 = vpop.f32.mrf.mxu0
      %v5657 = vadd.f32 0.0, %v5656
      %5658 = vmatmul.f32.gmra.mxu0 %v5547
      %v5659 = vpop.f32.mrf.mxu0
      %v5660 = vadd.f32 0.0, %v5659
      %5661 = vdwg.mxu0
      %v5662 = vadd.f32 %v5387, %v5567
      %v5663 = vadd.f32 %v5388, %v5570
      %v5664 = vadd.f32 %v5389, %v5573
      %v5665 = vadd.f32 %v5390, %v5576
      %v5666 = vadd.f32 %v5391, %v5579
      %v5667 = vadd.f32 %v5392, %v5582
      %v5668 = vadd.f32 %v5393, %v5585
      %v5669 = vadd.f32 %v5394, %v5588
      %v5670 = vadd.f32 %v5395, %v5591
      %v5671 = vadd.f32 %v5396, %v5594
      %v5672 = vadd.f32 %v5397, %v5597
      %v5673 = vadd.f32 %v5398, %v5600
      %v5674 = vadd.f32 %v5399, %v5603
      %v5675 = vadd.f32 %v5400, %v5606
      %v5676 = vadd.f32 %v5401, %v5609
      %v5677 = vadd.f32 %v5402, %v5612
      %v5678 = vadd.f32 %v5403, %v5615
      %v5679 = vadd.f32 %v5404, %v5618
      %v5680 = vadd.f32 %v5405, %v5621
      %v5681 = vadd.f32 %v5406, %v5624
      %v5682 = vadd.f32 %v5407, %v5627
      %v5683 = vadd.f32 %v5408, %v5630
      %v5684 = vadd.f32 %v5409, %v5633
      %v5685 = vadd.f32 %v5410, %v5636
      %v5686 = vadd.f32 %v5411, %v5639
      %v5687 = vadd.f32 %v5412, %v5642
      %v5688 = vadd.f32 %v5413, %v5645
      %v5689 = vadd.f32 %v5414, %v5648
      %v5690 = vadd.f32 %v5415, %v5651
      %v5691 = vadd.f32 %v5416, %v5654
      %v5692 = vadd.f32 %v5417, %v5657
      %v5693 = vadd.f32 %v5418, %v5660
      %v5694 = vld [vmem:[%s5143 + $0x2] sm:$0xff]
      %v5695 = vld [vmem:[%s5143 + $0xa] sm:$0xff]
      %v5696 = vld [vmem:[%s5143 + $0x1a] sm:$0xff]
      %v5697 = vld [vmem:[%s5143 + $0x22] sm:$0xff]
      %v5698 = vld [vmem:[%s5143 + $0x32] sm:$0xff]
      %v5699 = vld [vmem:[%s5143 + $0x3a] sm:$0xff]
      %v5700 = vld [vmem:[%s5143 + $0x4a] sm:$0xff]
      %v5701 = vld [vmem:[%s5143 + $0x52] sm:$0xff]
      %v5702 = vld [vmem:[%s5143 + $0x62] sm:$0xff]
      %v5703 = vld [vmem:[%s5143 + $0x6a] sm:$0xff]
      %v5704 = vld [vmem:[%s5143 + $0x7a] sm:$0xff]
      %v5705 = vld [vmem:[%s5143 + $0x82] sm:$0xff]
      %v5706 = vld [vmem:[%s5143 + $0x92] sm:$0xff]
      %v5707 = vld [vmem:[%s5143 + $0x9a] sm:$0xff]
      %v5708 = vld [vmem:[%s5143 + $0xaa] sm:$0xff]
      %v5709 = vld [vmem:[%s5143 + $0xb2] sm:$0xff]
      %v5710 = vld [vmem:[%s5143 + $0xc2] sm:$0xff]
      %v5711 = vld [vmem:[%s5143 + $0xca] sm:$0xff]
      %v5712 = vld [vmem:[%s5143 + $0xda] sm:$0xff]
      %v5713 = vld [vmem:[%s5143 + $0xe2] sm:$0xff]
      %v5714 = vld [vmem:[%s5143 + $0xf2] sm:$0xff]
      %v5715 = vld [vmem:[%s5143 + $0xfa] sm:$0xff]
      %v5716 = vld [vmem:[%s5143 + $0x10a] sm:$0xff]
      %v5717 = vld [vmem:[%s5143 + $0x112] sm:$0xff]
      %v5718 = vld [vmem:[%s5143 + $0x122] sm:$0xff]
      %v5719 = vld [vmem:[%s5143 + $0x12a] sm:$0xff]
      %v5720 = vld [vmem:[%s5143 + $0x13a] sm:$0xff]
      %v5721 = vld [vmem:[%s5143 + $0x142] sm:$0xff]
      %v5722 = vld [vmem:[%s5143 + $0x152] sm:$0xff]
      %v5723 = vld [vmem:[%s5143 + $0x15a] sm:$0xff]
      %v5724 = vld [vmem:[%s5143 + $0x16a] sm:$0xff]
      %v5725 = vld [vmem:[%s5143 + $0x172] sm:$0xff]
      %s5726 = scalar_lea.vmem %s5, 40
      %v5727 = vld [vmem:[%s5726] sm:$0xff]
      %v5729 = vsel %vm469, %v5694, 0
      %v5732 = vsel %vm469, %v5695, 0
      %v5735 = vsel %vm469, %v5696, 0
      %v5738 = vsel %vm469, %v5697, 0
      %v5741 = vsel %vm469, %v5698, 0
      %v5744 = vsel %vm469, %v5699, 0
      %v5747 = vsel %vm469, %v5700, 0
      %v5750 = vsel %vm469, %v5701, 0
      %v5753 = vsel %vm469, %v5702, 0
      %v5756 = vsel %vm469, %v5703, 0
      %v5759 = vsel %vm469, %v5704, 0
      %v5762 = vsel %vm469, %v5705, 0
      %v5765 = vsel %vm469, %v5706, 0
      %v5768 = vsel %vm469, %v5707, 0
      %v5771 = vsel %vm469, %v5708, 0
      %v5774 = vsel %vm469, %v5709, 0
      %v5777 = vsel %vm469, %v5710, 0
      %v5780 = vsel %vm469, %v5711, 0
      %v5783 = vsel %vm469, %v5712, 0
      %v5786 = vsel %vm469, %v5713, 0
      %v5789 = vsel %vm469, %v5714, 0
      %v5792 = vsel %vm469, %v5715, 0
      %v5795 = vsel %vm469, %v5716, 0
      %v5798 = vsel %vm469, %v5717, 0
      %v5801 = vsel %vm469, %v5718, 0
      %v5804 = vsel %vm469, %v5719, 0
      %v5807 = vsel %vm469, %v5720, 0
      %v5810 = vsel %vm469, %v5721, 0
      %v5813 = vsel %vm469, %v5722, 0
      %v5816 = vsel %vm469, %v5723, 0
      %v5819 = vsel %vm469, %v5724, 0
      %v5822 = vsel %vm469, %v5725, 0
      %5824 = vmatpush.msra.mxu0 0.0
      %5825 = vmatpush.msra.mxu0 0.0
      %5826 = vmatpush.msra.mxu0 0.0
      %5827 = vmatpush.msra.mxu0 0.0
      %5828 = vmatpush.msra.mxu0 0.0
      %5829 = vmatpush.msra.mxu0 0.0
      %5830 = vmatpush.msra.mxu0 0.0
      %5831 = vmatpush.msra.mxu0 0.0
      %5832 = vmatpush.msra.mxu0 0.0
      %5833 = vmatpush.msra.mxu0 0.0
      %5834 = vmatpush.msra.mxu0 0.0
      %5835 = vmatpush.msra.mxu0 0.0
      %5836 = vmatpush.msra.mxu0 0.0
      %5837 = vmatpush.msra.mxu0 0.0
      %5838 = vmatpush.msra.mxu0 0.0
      %5839 = vmatpush.msra.mxu0 %v5727
      %5840 = vmatmul.f32.gmra.mxu0 %v5729
      %v5841 = vpop.f32.mrf.mxu0
      %v5842 = vadd.f32 0.0, %v5841
      %5843 = vmatmul.f32.gmra.mxu0 %v5732
      %v5844 = vpop.f32.mrf.mxu0
      %v5845 = vadd.f32 0.0, %v5844
      %5846 = vmatmul.f32.gmra.mxu0 %v5735
      %v5847 = vpop.f32.mrf.mxu0
      %v5848 = vadd.f32 0.0, %v5847
      %5849 = vmatmul.f32.gmra.mxu0 %v5738
      %v5850 = vpop.f32.mrf.mxu0
      %v5851 = vadd.f32 0.0, %v5850
      %5852 = vmatmul.f32.gmra.mxu0 %v5741
      %v5853 = vpop.f32.mrf.mxu0
      %v5854 = vadd.f32 0.0, %v5853
      %5855 = vmatmul.f32.gmra.mxu0 %v5744
      %v5856 = vpop.f32.mrf.mxu0
      %v5857 = vadd.f32 0.0, %v5856
      %5858 = vmatmul.f32.gmra.mxu0 %v5747
      %v5859 = vpop.f32.mrf.mxu0
      %v5860 = vadd.f32 0.0, %v5859
      %5861 = vmatmul.f32.gmra.mxu0 %v5750
      %v5862 = vpop.f32.mrf.mxu0
      %v5863 = vadd.f32 0.0, %v5862
      %5864 = vmatmul.f32.gmra.mxu0 %v5753
      %v5865 = vpop.f32.mrf.mxu0
      %v5866 = vadd.f32 0.0, %v5865
      %5867 = vmatmul.f32.gmra.mxu0 %v5756
      %v5868 = vpop.f32.mrf.mxu0
      %v5869 = vadd.f32 0.0, %v5868
      %5870 = vmatmul.f32.gmra.mxu0 %v5759
      %v5871 = vpop.f32.mrf.mxu0
      %v5872 = vadd.f32 0.0, %v5871
      %5873 = vmatmul.f32.gmra.mxu0 %v5762
      %v5874 = vpop.f32.mrf.mxu0
      %v5875 = vadd.f32 0.0, %v5874
      %5876 = vmatmul.f32.gmra.mxu0 %v5765
      %v5877 = vpop.f32.mrf.mxu0
      %v5878 = vadd.f32 0.0, %v5877
      %5879 = vmatmul.f32.gmra.mxu0 %v5768
      %v5880 = vpop.f32.mrf.mxu0
      %v5881 = vadd.f32 0.0, %v5880
      %5882 = vmatmul.f32.gmra.mxu0 %v5771
      %v5883 = vpop.f32.mrf.mxu0
      %v5884 = vadd.f32 0.0, %v5883
      %5885 = vmatmul.f32.gmra.mxu0 %v5774
      %v5886 = vpop.f32.mrf.mxu0
      %v5887 = vadd.f32 0.0, %v5886
      %5888 = vmatmul.f32.gmra.mxu0 %v5777
      %v5889 = vpop.f32.mrf.mxu0
      %v5890 = vadd.f32 0.0, %v5889
      %5891 = vmatmul.f32.gmra.mxu0 %v5780
      %v5892 = vpop.f32.mrf.mxu0
      %v5893 = vadd.f32 0.0, %v5892
      %5894 = vmatmul.f32.gmra.mxu0 %v5783
      %v5895 = vpop.f32.mrf.mxu0
      %v5896 = vadd.f32 0.0, %v5895
      %5897 = vmatmul.f32.gmra.mxu0 %v5786
      %v5898 = vpop.f32.mrf.mxu0
      %v5899 = vadd.f32 0.0, %v5898
      %5900 = vmatmul.f32.gmra.mxu0 %v5789
      %v5901 = vpop.f32.mrf.mxu0
      %v5902 = vadd.f32 0.0, %v5901
      %5903 = vmatmul.f32.gmra.mxu0 %v5792
      %v5904 = vpop.f32.mrf.mxu0
      %v5905 = vadd.f32 0.0, %v5904
      %5906 = vmatmul.f32.gmra.mxu0 %v5795
      %v5907 = vpop.f32.mrf.mxu0
      %v5908 = vadd.f32 0.0, %v5907
      %5909 = vmatmul.f32.gmra.mxu0 %v5798
      %v5910 = vpop.f32.mrf.mxu0
      %v5911 = vadd.f32 0.0, %v5910
      %5912 = vmatmul.f32.gmra.mxu0 %v5801
      %v5913 = vpop.f32.mrf.mxu0
      %v5914 = vadd.f32 0.0, %v5913
      %5915 = vmatmul.f32.gmra.mxu0 %v5804
      %v5916 = vpop.f32.mrf.mxu0
      %v5917 = vadd.f32 0.0, %v5916
      %5918 = vmatmul.f32.gmra.mxu0 %v5807
      %v5919 = vpop.f32.mrf.mxu0
      %v5920 = vadd.f32 0.0, %v5919
      %5921 = vmatmul.f32.gmra.mxu0 %v5810
      %v5922 = vpop.f32.mrf.mxu0
      %v5923 = vadd.f32 0.0, %v5922
      %5924 = vmatmul.f32.gmra.mxu0 %v5813
      %v5925 = vpop.f32.mrf.mxu0
      %v5926 = vadd.f32 0.0, %v5925
      %5927 = vmatmul.f32.gmra.mxu0 %v5816
      %v5928 = vpop.f32.mrf.mxu0
      %v5929 = vadd.f32 0.0, %v5928
      %5930 = vmatmul.f32.gmra.mxu0 %v5819
      %v5931 = vpop.f32.mrf.mxu0
      %v5932 = vadd.f32 0.0, %v5931
      %5933 = vmatmul.f32.gmra.mxu0 %v5822
      %v5934 = vpop.f32.mrf.mxu0
      %v5935 = vadd.f32 0.0, %v5934
      %5936 = vdwg.mxu0
      %v5937 = vadd.f32 %v5662, %v5842
      %v5938 = vadd.f32 %v5663, %v5845
      %v5939 = vadd.f32 %v5664, %v5848
      %v5940 = vadd.f32 %v5665, %v5851
      %v5941 = vadd.f32 %v5666, %v5854
      %v5942 = vadd.f32 %v5667, %v5857
      %v5943 = vadd.f32 %v5668, %v5860
      %v5944 = vadd.f32 %v5669, %v5863
      %v5945 = vadd.f32 %v5670, %v5866
      %v5946 = vadd.f32 %v5671, %v5869
      %v5947 = vadd.f32 %v5672, %v5872
      %v5948 = vadd.f32 %v5673, %v5875
      %v5949 = vadd.f32 %v5674, %v5878
      %v5950 = vadd.f32 %v5675, %v5881
      %v5951 = vadd.f32 %v5676, %v5884
      %v5952 = vadd.f32 %v5677, %v5887
      %v5953 = vadd.f32 %v5678, %v5890
      %v5954 = vadd.f32 %v5679, %v5893
      %v5955 = vadd.f32 %v5680, %v5896
      %v5956 = vadd.f32 %v5681, %v5899
      %v5957 = vadd.f32 %v5682, %v5902
      %v5958 = vadd.f32 %v5683, %v5905
      %v5959 = vadd.f32 %v5684, %v5908
      %v5960 = vadd.f32 %v5685, %v5911
      %v5961 = vadd.f32 %v5686, %v5914
      %v5962 = vadd.f32 %v5687, %v5917
      %v5963 = vadd.f32 %v5688, %v5920
      %v5964 = vadd.f32 %v5689, %v5923
      %v5965 = vadd.f32 %v5690, %v5926
      %v5966 = vadd.f32 %v5691, %v5929
      %v5967 = vadd.f32 %v5692, %v5932
      %v5968 = vadd.f32 %v5693, %v5935
      %s5969 = scalar_lea.vmem [#allocation3], 48
      %v5970 = vld [vmem:[%s5969] sm:$0xff]
      %v5971 = vld [vmem:[%s5969 + $0x8] sm:$0xff]
      %v5972 = vld [vmem:[%s5969 + $0x18] sm:$0xff]
      %v5973 = vld [vmem:[%s5969 + $0x20] sm:$0xff]
      %v5974 = vld [vmem:[%s5969 + $0x30] sm:$0xff]
      %v5975 = vld [vmem:[%s5969 + $0x38] sm:$0xff]
      %v5976 = vld [vmem:[%s5969 + $0x48] sm:$0xff]
      %v5977 = vld [vmem:[%s5969 + $0x50] sm:$0xff]
      %v5978 = vld [vmem:[%s5969 + $0x60] sm:$0xff]
      %v5979 = vld [vmem:[%s5969 + $0x68] sm:$0xff]
      %v5980 = vld [vmem:[%s5969 + $0x78] sm:$0xff]
      %v5981 = vld [vmem:[%s5969 + $0x80] sm:$0xff]
      %v5982 = vld [vmem:[%s5969 + $0x90] sm:$0xff]
      %v5983 = vld [vmem:[%s5969 + $0x98] sm:$0xff]
      %v5984 = vld [vmem:[%s5969 + $0xa8] sm:$0xff]
      %v5985 = vld [vmem:[%s5969 + $0xb0] sm:$0xff]
      %v5986 = vld [vmem:[%s5969 + $0xc0] sm:$0xff]
      %v5987 = vld [vmem:[%s5969 + $0xc8] sm:$0xff]
      %v5988 = vld [vmem:[%s5969 + $0xd8] sm:$0xff]
      %v5989 = vld [vmem:[%s5969 + $0xe0] sm:$0xff]
      %v5990 = vld [vmem:[%s5969 + $0xf0] sm:$0xff]
      %v5991 = vld [vmem:[%s5969 + $0xf8] sm:$0xff]
      %v5992 = vld [vmem:[%s5969 + $0x108] sm:$0xff]
      %v5993 = vld [vmem:[%s5969 + $0x110] sm:$0xff]
      %v5994 = vld [vmem:[%s5969 + $0x120] sm:$0xff]
      %v5995 = vld [vmem:[%s5969 + $0x128] sm:$0xff]
      %v5996 = vld [vmem:[%s5969 + $0x138] sm:$0xff]
      %v5997 = vld [vmem:[%s5969 + $0x140] sm:$0xff]
      %v5998 = vld [vmem:[%s5969 + $0x150] sm:$0xff]
      %v5999 = vld [vmem:[%s5969 + $0x158] sm:$0xff]
      %v6000 = vld [vmem:[%s5969 + $0x168] sm:$0xff]
      %v6001 = vld [vmem:[%s5969 + $0x170] sm:$0xff]
      %s6002 = scalar_lea.vmem %s5, 48
      %v6003 = vld [vmem:[%s6002] sm:$0xff]
      %v6005 = vsel %vm469, %v5970, 0
      %v6008 = vsel %vm469, %v5971, 0
      %v6011 = vsel %vm469, %v5972, 0
      %v6014 = vsel %vm469, %v5973, 0
      %v6017 = vsel %vm469, %v5974, 0
      %v6020 = vsel %vm469, %v5975, 0
      %v6023 = vsel %vm469, %v5976, 0
      %v6026 = vsel %vm469, %v5977, 0
      %v6029 = vsel %vm469, %v5978, 0
      %v6032 = vsel %vm469, %v5979, 0
      %v6035 = vsel %vm469, %v5980, 0
      %v6038 = vsel %vm469, %v5981, 0
      %v6041 = vsel %vm469, %v5982, 0
      %v6044 = vsel %vm469, %v5983, 0
      %v6047 = vsel %vm469, %v5984, 0
      %v6050 = vsel %vm469, %v5985, 0
      %v6053 = vsel %vm469, %v5986, 0
      %v6056 = vsel %vm469, %v5987, 0
      %v6059 = vsel %vm469, %v5988, 0
      %v6062 = vsel %vm469, %v5989, 0
      %v6065 = vsel %vm469, %v5990, 0
      %v6068 = vsel %vm469, %v5991, 0
      %v6071 = vsel %vm469, %v5992, 0
      %v6074 = vsel %vm469, %v5993, 0
      %v6077 = vsel %vm469, %v5994, 0
      %v6080 = vsel %vm469, %v5995, 0
      %v6083 = vsel %vm469, %v5996, 0
      %v6086 = vsel %vm469, %v5997, 0
      %v6089 = vsel %vm469, %v5998, 0
      %v6092 = vsel %vm469, %v5999, 0
      %v6095 = vsel %vm469, %v6000, 0
      %v6098 = vsel %vm469, %v6001, 0
      %6100 = vmatpush.msra.mxu0 0.0
      %6101 = vmatpush.msra.mxu0 0.0
      %6102 = vmatpush.msra.mxu0 0.0
      %6103 = vmatpush.msra.mxu0 0.0
      %6104 = vmatpush.msra.mxu0 0.0
      %6105 = vmatpush.msra.mxu0 0.0
      %6106 = vmatpush.msra.mxu0 0.0
      %6107 = vmatpush.msra.mxu0 0.0
      %6108 = vmatpush.msra.mxu0 0.0
      %6109 = vmatpush.msra.mxu0 0.0
      %6110 = vmatpush.msra.mxu0 0.0
      %6111 = vmatpush.msra.mxu0 0.0
      %6112 = vmatpush.msra.mxu0 0.0
      %6113 = vmatpush.msra.mxu0 0.0
      %6114 = vmatpush.msra.mxu0 0.0
      %6115 = vmatpush.msra.mxu0 %v6003
      %6116 = vmatmul.f32.gmra.mxu0 %v6005
      %v6117 = vpop.f32.mrf.mxu0
      %v6118 = vadd.f32 0.0, %v6117
      %6119 = vmatmul.f32.gmra.mxu0 %v6008
      %v6120 = vpop.f32.mrf.mxu0
      %v6121 = vadd.f32 0.0, %v6120
      %6122 = vmatmul.f32.gmra.mxu0 %v6011
      %v6123 = vpop.f32.mrf.mxu0
      %v6124 = vadd.f32 0.0, %v6123
      %6125 = vmatmul.f32.gmra.mxu0 %v6014
      %v6126 = vpop.f32.mrf.mxu0
      %v6127 = vadd.f32 0.0, %v6126
      %6128 = vmatmul.f32.gmra.mxu0 %v6017
      %v6129 = vpop.f32.mrf.mxu0
      %v6130 = vadd.f32 0.0, %v6129
      %6131 = vmatmul.f32.gmra.mxu0 %v6020
      %v6132 = vpop.f32.mrf.mxu0
      %v6133 = vadd.f32 0.0, %v6132
      %6134 = vmatmul.f32.gmra.mxu0 %v6023
      %v6135 = vpop.f32.mrf.mxu0
      %v6136 = vadd.f32 0.0, %v6135
      %6137 = vmatmul.f32.gmra.mxu0 %v6026
      %v6138 = vpop.f32.mrf.mxu0
      %v6139 = vadd.f32 0.0, %v6138
      %6140 = vmatmul.f32.gmra.mxu0 %v6029
      %v6141 = vpop.f32.mrf.mxu0
      %v6142 = vadd.f32 0.0, %v6141
      %6143 = vmatmul.f32.gmra.mxu0 %v6032
      %v6144 = vpop.f32.mrf.mxu0
      %v6145 = vadd.f32 0.0, %v6144
      %6146 = vmatmul.f32.gmra.mxu0 %v6035
      %v6147 = vpop.f32.mrf.mxu0
      %v6148 = vadd.f32 0.0, %v6147
      %6149 = vmatmul.f32.gmra.mxu0 %v6038
      %v6150 = vpop.f32.mrf.mxu0
      %v6151 = vadd.f32 0.0, %v6150
      %6152 = vmatmul.f32.gmra.mxu0 %v6041
      %v6153 = vpop.f32.mrf.mxu0
      %v6154 = vadd.f32 0.0, %v6153
      %6155 = vmatmul.f32.gmra.mxu0 %v6044
      %v6156 = vpop.f32.mrf.mxu0
      %v6157 = vadd.f32 0.0, %v6156
      %6158 = vmatmul.f32.gmra.mxu0 %v6047
      %v6159 = vpop.f32.mrf.mxu0
      %v6160 = vadd.f32 0.0, %v6159
      %6161 = vmatmul.f32.gmra.mxu0 %v6050
      %v6162 = vpop.f32.mrf.mxu0
      %v6163 = vadd.f32 0.0, %v6162
      %6164 = vmatmul.f32.gmra.mxu0 %v6053
      %v6165 = vpop.f32.mrf.mxu0
      %v6166 = vadd.f32 0.0, %v6165
      %6167 = vmatmul.f32.gmra.mxu0 %v6056
      %v6168 = vpop.f32.mrf.mxu0
      %v6169 = vadd.f32 0.0, %v6168
      %6170 = vmatmul.f32.gmra.mxu0 %v6059
      %v6171 = vpop.f32.mrf.mxu0
      %v6172 = vadd.f32 0.0, %v6171
      %6173 = vmatmul.f32.gmra.mxu0 %v6062
      %v6174 = vpop.f32.mrf.mxu0
      %v6175 = vadd.f32 0.0, %v6174
      %6176 = vmatmul.f32.gmra.mxu0 %v6065
      %v6177 = vpop.f32.mrf.mxu0
      %v6178 = vadd.f32 0.0, %v6177
      %6179 = vmatmul.f32.gmra.mxu0 %v6068
      %v6180 = vpop.f32.mrf.mxu0
      %v6181 = vadd.f32 0.0, %v6180
      %6182 = vmatmul.f32.gmra.mxu0 %v6071
      %v6183 = vpop.f32.mrf.mxu0
      %v6184 = vadd.f32 0.0, %v6183
      %6185 = vmatmul.f32.gmra.mxu0 %v6074
      %v6186 = vpop.f32.mrf.mxu0
      %v6187 = vadd.f32 0.0, %v6186
      %6188 = vmatmul.f32.gmra.mxu0 %v6077
      %v6189 = vpop.f32.mrf.mxu0
      %v6190 = vadd.f32 0.0, %v6189
      %6191 = vmatmul.f32.gmra.mxu0 %v6080
      %v6192 = vpop.f32.mrf.mxu0
      %v6193 = vadd.f32 0.0, %v6192
      %6194 = vmatmul.f32.gmra.mxu0 %v6083
      %v6195 = vpop.f32.mrf.mxu0
      %v6196 = vadd.f32 0.0, %v6195
      %6197 = vmatmul.f32.gmra.mxu0 %v6086
      %v6198 = vpop.f32.mrf.mxu0
      %v6199 = vadd.f32 0.0, %v6198
      %6200 = vmatmul.f32.gmra.mxu0 %v6089
      %v6201 = vpop.f32.mrf.mxu0
      %v6202 = vadd.f32 0.0, %v6201
      %6203 = vmatmul.f32.gmra.mxu0 %v6092
      %v6204 = vpop.f32.mrf.mxu0
      %v6205 = vadd.f32 0.0, %v6204
      %6206 = vmatmul.f32.gmra.mxu0 %v6095
      %v6207 = vpop.f32.mrf.mxu0
      %v6208 = vadd.f32 0.0, %v6207
      %6209 = vmatmul.f32.gmra.mxu0 %v6098
      %v6210 = vpop.f32.mrf.mxu0
      %v6211 = vadd.f32 0.0, %v6210
      %6212 = vdwg.mxu0
      %v6213 = vadd.f32 %v5937, %v6118
      %v6214 = vadd.f32 %v5938, %v6121
      %v6215 = vadd.f32 %v5939, %v6124
      %v6216 = vadd.f32 %v5940, %v6127
      %v6217 = vadd.f32 %v5941, %v6130
      %v6218 = vadd.f32 %v5942, %v6133
      %v6219 = vadd.f32 %v5943, %v6136
      %v6220 = vadd.f32 %v5944, %v6139
      %v6221 = vadd.f32 %v5945, %v6142
      %v6222 = vadd.f32 %v5946, %v6145
      %v6223 = vadd.f32 %v5947, %v6148
      %v6224 = vadd.f32 %v5948, %v6151
      %v6225 = vadd.f32 %v5949, %v6154
      %v6226 = vadd.f32 %v5950, %v6157
      %v6227 = vadd.f32 %v5951, %v6160
      %v6228 = vadd.f32 %v5952, %v6163
      %v6229 = vadd.f32 %v5953, %v6166
      %v6230 = vadd.f32 %v5954, %v6169
      %v6231 = vadd.f32 %v5955, %v6172
      %v6232 = vadd.f32 %v5956, %v6175
      %v6233 = vadd.f32 %v5957, %v6178
      %v6234 = vadd.f32 %v5958, %v6181
      %v6235 = vadd.f32 %v5959, %v6184
      %v6236 = vadd.f32 %v5960, %v6187
      %v6237 = vadd.f32 %v5961, %v6190
      %v6238 = vadd.f32 %v5962, %v6193
      %v6239 = vadd.f32 %v5963, %v6196
      %v6240 = vadd.f32 %v5964, %v6199
      %v6241 = vadd.f32 %v5965, %v6202
      %v6242 = vadd.f32 %v5966, %v6205
      %v6243 = vadd.f32 %v5967, %v6208
      %v6244 = vadd.f32 %v5968, %v6211
      %v6245 = vld [vmem:[%s5969 + $0x1] sm:$0xff]
      %v6246 = vld [vmem:[%s5969 + $0x9] sm:$0xff]
      %v6247 = vld [vmem:[%s5969 + $0x19] sm:$0xff]
      %v6248 = vld [vmem:[%s5969 + $0x21] sm:$0xff]
      %v6249 = vld [vmem:[%s5969 + $0x31] sm:$0xff]
      %v6250 = vld [vmem:[%s5969 + $0x39] sm:$0xff]
      %v6251 = vld [vmem:[%s5969 + $0x49] sm:$0xff]
      %v6252 = vld [vmem:[%s5969 + $0x51] sm:$0xff]
      %v6253 = vld [vmem:[%s5969 + $0x61] sm:$0xff]
      %v6254 = vld [vmem:[%s5969 + $0x69] sm:$0xff]
      %v6255 = vld [vmem:[%s5969 + $0x79] sm:$0xff]
      %v6256 = vld [vmem:[%s5969 + $0x81] sm:$0xff]
      %v6257 = vld [vmem:[%s5969 + $0x91] sm:$0xff]
      %v6258 = vld [vmem:[%s5969 + $0x99] sm:$0xff]
      %v6259 = vld [vmem:[%s5969 + $0xa9] sm:$0xff]
      %v6260 = vld [vmem:[%s5969 + $0xb1] sm:$0xff]
      %v6261 = vld [vmem:[%s5969 + $0xc1] sm:$0xff]
      %v6262 = vld [vmem:[%s5969 + $0xc9] sm:$0xff]
      %v6263 = vld [vmem:[%s5969 + $0xd9] sm:$0xff]
      %v6264 = vld [vmem:[%s5969 + $0xe1] sm:$0xff]
      %v6265 = vld [vmem:[%s5969 + $0xf1] sm:$0xff]
      %v6266 = vld [vmem:[%s5969 + $0xf9] sm:$0xff]
      %v6267 = vld [vmem:[%s5969 + $0x109] sm:$0xff]
      %v6268 = vld [vmem:[%s5969 + $0x111] sm:$0xff]
      %v6269 = vld [vmem:[%s5969 + $0x121] sm:$0xff]
      %v6270 = vld [vmem:[%s5969 + $0x129] sm:$0xff]
      %v6271 = vld [vmem:[%s5969 + $0x139] sm:$0xff]
      %v6272 = vld [vmem:[%s5969 + $0x141] sm:$0xff]
      %v6273 = vld [vmem:[%s5969 + $0x151] sm:$0xff]
      %v6274 = vld [vmem:[%s5969 + $0x159] sm:$0xff]
      %v6275 = vld [vmem:[%s5969 + $0x169] sm:$0xff]
      %v6276 = vld [vmem:[%s5969 + $0x171] sm:$0xff]
      %s6277 = scalar_lea.vmem %s5, 56
      %v6278 = vld [vmem:[%s6277] sm:$0xff]
      %v6280 = vsel %vm469, %v6245, 0
      %v6283 = vsel %vm469, %v6246, 0
      %v6286 = vsel %vm469, %v6247, 0
      %v6289 = vsel %vm469, %v6248, 0
      %v6292 = vsel %vm469, %v6249, 0
      %v6295 = vsel %vm469, %v6250, 0
      %v6298 = vsel %vm469, %v6251, 0
      %v6301 = vsel %vm469, %v6252, 0
      %v6304 = vsel %vm469, %v6253, 0
      %v6307 = vsel %vm469, %v6254, 0
      %v6310 = vsel %vm469, %v6255, 0
      %v6313 = vsel %vm469, %v6256, 0
      %v6316 = vsel %vm469, %v6257, 0
      %v6319 = vsel %vm469, %v6258, 0
      %v6322 = vsel %vm469, %v6259, 0
      %v6325 = vsel %vm469, %v6260, 0
      %v6328 = vsel %vm469, %v6261, 0
      %v6331 = vsel %vm469, %v6262, 0
      %v6334 = vsel %vm469, %v6263, 0
      %v6337 = vsel %vm469, %v6264, 0
      %v6340 = vsel %vm469, %v6265, 0
      %v6343 = vsel %vm469, %v6266, 0
      %v6346 = vsel %vm469, %v6267, 0
      %v6349 = vsel %vm469, %v6268, 0
      %v6352 = vsel %vm469, %v6269, 0
      %v6355 = vsel %vm469, %v6270, 0
      %v6358 = vsel %vm469, %v6271, 0
      %v6361 = vsel %vm469, %v6272, 0
      %v6364 = vsel %vm469, %v6273, 0
      %v6367 = vsel %vm469, %v6274, 0
      %v6370 = vsel %vm469, %v6275, 0
      %v6373 = vsel %vm469, %v6276, 0
      %6375 = vmatpush.msra.mxu0 0.0
      %6376 = vmatpush.msra.mxu0 0.0
      %6377 = vmatpush.msra.mxu0 0.0
      %6378 = vmatpush.msra.mxu0 0.0
      %6379 = vmatpush.msra.mxu0 0.0
      %6380 = vmatpush.msra.mxu0 0.0
      %6381 = vmatpush.msra.mxu0 0.0
      %6382 = vmatpush.msra.mxu0 0.0
      %6383 = vmatpush.msra.mxu0 0.0
      %6384 = vmatpush.msra.mxu0 0.0
      %6385 = vmatpush.msra.mxu0 0.0
      %6386 = vmatpush.msra.mxu0 0.0
      %6387 = vmatpush.msra.mxu0 0.0
      %6388 = vmatpush.msra.mxu0 0.0
      %6389 = vmatpush.msra.mxu0 0.0
      %6390 = vmatpush.msra.mxu0 %v6278
      %6391 = vmatmul.f32.gmra.mxu0 %v6280
      %v6392 = vpop.f32.mrf.mxu0
      %v6393 = vadd.f32 0.0, %v6392
      %6394 = vmatmul.f32.gmra.mxu0 %v6283
      %v6395 = vpop.f32.mrf.mxu0
      %v6396 = vadd.f32 0.0, %v6395
      %6397 = vmatmul.f32.gmra.mxu0 %v6286
      %v6398 = vpop.f32.mrf.mxu0
      %v6399 = vadd.f32 0.0, %v6398
      %6400 = vmatmul.f32.gmra.mxu0 %v6289
      %v6401 = vpop.f32.mrf.mxu0
      %v6402 = vadd.f32 0.0, %v6401
      %6403 = vmatmul.f32.gmra.mxu0 %v6292
      %v6404 = vpop.f32.mrf.mxu0
      %v6405 = vadd.f32 0.0, %v6404
      %6406 = vmatmul.f32.gmra.mxu0 %v6295
      %v6407 = vpop.f32.mrf.mxu0
      %v6408 = vadd.f32 0.0, %v6407
      %6409 = vmatmul.f32.gmra.mxu0 %v6298
      %v6410 = vpop.f32.mrf.mxu0
      %v6411 = vadd.f32 0.0, %v6410
      %6412 = vmatmul.f32.gmra.mxu0 %v6301
      %v6413 = vpop.f32.mrf.mxu0
      %v6414 = vadd.f32 0.0, %v6413
      %6415 = vmatmul.f32.gmra.mxu0 %v6304
      %v6416 = vpop.f32.mrf.mxu0
      %v6417 = vadd.f32 0.0, %v6416
      %6418 = vmatmul.f32.gmra.mxu0 %v6307
      %v6419 = vpop.f32.mrf.mxu0
      %v6420 = vadd.f32 0.0, %v6419
      %6421 = vmatmul.f32.gmra.mxu0 %v6310
      %v6422 = vpop.f32.mrf.mxu0
      %v6423 = vadd.f32 0.0, %v6422
      %6424 = vmatmul.f32.gmra.mxu0 %v6313
      %v6425 = vpop.f32.mrf.mxu0
      %v6426 = vadd.f32 0.0, %v6425
      %6427 = vmatmul.f32.gmra.mxu0 %v6316
      %v6428 = vpop.f32.mrf.mxu0
      %v6429 = vadd.f32 0.0, %v6428
      %6430 = vmatmul.f32.gmra.mxu0 %v6319
      %v6431 = vpop.f32.mrf.mxu0
      %v6432 = vadd.f32 0.0, %v6431
      %6433 = vmatmul.f32.gmra.mxu0 %v6322
      %v6434 = vpop.f32.mrf.mxu0
      %v6435 = vadd.f32 0.0, %v6434
      %6436 = vmatmul.f32.gmra.mxu0 %v6325
      %v6437 = vpop.f32.mrf.mxu0
      %v6438 = vadd.f32 0.0, %v6437
      %6439 = vmatmul.f32.gmra.mxu0 %v6328
      %v6440 = vpop.f32.mrf.mxu0
      %v6441 = vadd.f32 0.0, %v6440
      %6442 = vmatmul.f32.gmra.mxu0 %v6331
      %v6443 = vpop.f32.mrf.mxu0
      %v6444 = vadd.f32 0.0, %v6443
      %6445 = vmatmul.f32.gmra.mxu0 %v6334
      %v6446 = vpop.f32.mrf.mxu0
      %v6447 = vadd.f32 0.0, %v6446
      %6448 = vmatmul.f32.gmra.mxu0 %v6337
      %v6449 = vpop.f32.mrf.mxu0
      %v6450 = vadd.f32 0.0, %v6449
      %6451 = vmatmul.f32.gmra.mxu0 %v6340
      %v6452 = vpop.f32.mrf.mxu0
      %v6453 = vadd.f32 0.0, %v6452
      %6454 = vmatmul.f32.gmra.mxu0 %v6343
      %v6455 = vpop.f32.mrf.mxu0
      %v6456 = vadd.f32 0.0, %v6455
      %6457 = vmatmul.f32.gmra.mxu0 %v6346
      %v6458 = vpop.f32.mrf.mxu0
      %v6459 = vadd.f32 0.0, %v6458
      %6460 = vmatmul.f32.gmra.mxu0 %v6349
      %v6461 = vpop.f32.mrf.mxu0
      %v6462 = vadd.f32 0.0, %v6461
      %6463 = vmatmul.f32.gmra.mxu0 %v6352
      %v6464 = vpop.f32.mrf.mxu0
      %v6465 = vadd.f32 0.0, %v6464
      %6466 = vmatmul.f32.gmra.mxu0 %v6355
      %v6467 = vpop.f32.mrf.mxu0
      %v6468 = vadd.f32 0.0, %v6467
      %6469 = vmatmul.f32.gmra.mxu0 %v6358
      %v6470 = vpop.f32.mrf.mxu0
      %v6471 = vadd.f32 0.0, %v6470
      %6472 = vmatmul.f32.gmra.mxu0 %v6361
      %v6473 = vpop.f32.mrf.mxu0
      %v6474 = vadd.f32 0.0, %v6473
      %6475 = vmatmul.f32.gmra.mxu0 %v6364
      %v6476 = vpop.f32.mrf.mxu0
      %v6477 = vadd.f32 0.0, %v6476
      %6478 = vmatmul.f32.gmra.mxu0 %v6367
      %v6479 = vpop.f32.mrf.mxu0
      %v6480 = vadd.f32 0.0, %v6479
      %6481 = vmatmul.f32.gmra.mxu0 %v6370
      %v6482 = vpop.f32.mrf.mxu0
      %v6483 = vadd.f32 0.0, %v6482
      %6484 = vmatmul.f32.gmra.mxu0 %v6373
      %v6485 = vpop.f32.mrf.mxu0
      %v6486 = vadd.f32 0.0, %v6485
      %6487 = vdwg.mxu0
      %v6488 = vadd.f32 %v6213, %v6393
      %v6489 = vadd.f32 %v6214, %v6396
      %v6490 = vadd.f32 %v6215, %v6399
      %v6491 = vadd.f32 %v6216, %v6402
      %v6492 = vadd.f32 %v6217, %v6405
      %v6493 = vadd.f32 %v6218, %v6408
      %v6494 = vadd.f32 %v6219, %v6411
      %v6495 = vadd.f32 %v6220, %v6414
      %v6496 = vadd.f32 %v6221, %v6417
      %v6497 = vadd.f32 %v6222, %v6420
      %v6498 = vadd.f32 %v6223, %v6423
      %v6499 = vadd.f32 %v6224, %v6426
      %v6500 = vadd.f32 %v6225, %v6429
      %v6501 = vadd.f32 %v6226, %v6432
      %v6502 = vadd.f32 %v6227, %v6435
      %v6503 = vadd.f32 %v6228, %v6438
      %v6504 = vadd.f32 %v6229, %v6441
      %v6505 = vadd.f32 %v6230, %v6444
      %v6506 = vadd.f32 %v6231, %v6447
      %v6507 = vadd.f32 %v6232, %v6450
      %v6508 = vadd.f32 %v6233, %v6453
      %v6509 = vadd.f32 %v6234, %v6456
      %v6510 = vadd.f32 %v6235, %v6459
      %v6511 = vadd.f32 %v6236, %v6462
      %v6512 = vadd.f32 %v6237, %v6465
      %v6513 = vadd.f32 %v6238, %v6468
      %v6514 = vadd.f32 %v6239, %v6471
      %v6515 = vadd.f32 %v6240, %v6474
      %v6516 = vadd.f32 %v6241, %v6477
      %v6517 = vadd.f32 %v6242, %v6480
      %v6518 = vadd.f32 %v6243, %v6483
      %v6519 = vadd.f32 %v6244, %v6486
      %v6520 = vld [vmem:[%s5969 + $0x2] sm:$0xff]
      %v6521 = vld [vmem:[%s5969 + $0xa] sm:$0xff]
      %v6522 = vld [vmem:[%s5969 + $0x1a] sm:$0xff]
      %v6523 = vld [vmem:[%s5969 + $0x22] sm:$0xff]
      %v6524 = vld [vmem:[%s5969 + $0x32] sm:$0xff]
      %v6525 = vld [vmem:[%s5969 + $0x3a] sm:$0xff]
      %v6526 = vld [vmem:[%s5969 + $0x4a] sm:$0xff]
      %v6527 = vld [vmem:[%s5969 + $0x52] sm:$0xff]
      %v6528 = vld [vmem:[%s5969 + $0x62] sm:$0xff]
      %v6529 = vld [vmem:[%s5969 + $0x6a] sm:$0xff]
      %v6530 = vld [vmem:[%s5969 + $0x7a] sm:$0xff]
      %v6531 = vld [vmem:[%s5969 + $0x82] sm:$0xff]
      %v6532 = vld [vmem:[%s5969 + $0x92] sm:$0xff]
      %v6533 = vld [vmem:[%s5969 + $0x9a] sm:$0xff]
      %v6534 = vld [vmem:[%s5969 + $0xaa] sm:$0xff]
      %v6535 = vld [vmem:[%s5969 + $0xb2] sm:$0xff]
      %v6536 = vld [vmem:[%s5969 + $0xc2] sm:$0xff]
      %v6537 = vld [vmem:[%s5969 + $0xca] sm:$0xff]
      %v6538 = vld [vmem:[%s5969 + $0xda] sm:$0xff]
      %v6539 = vld [vmem:[%s5969 + $0xe2] sm:$0xff]
      %v6540 = vld [vmem:[%s5969 + $0xf2] sm:$0xff]
      %v6541 = vld [vmem:[%s5969 + $0xfa] sm:$0xff]
      %v6542 = vld [vmem:[%s5969 + $0x10a] sm:$0xff]
      %v6543 = vld [vmem:[%s5969 + $0x112] sm:$0xff]
      %v6544 = vld [vmem:[%s5969 + $0x122] sm:$0xff]
      %v6545 = vld [vmem:[%s5969 + $0x12a] sm:$0xff]
      %v6546 = vld [vmem:[%s5969 + $0x13a] sm:$0xff]
      %v6547 = vld [vmem:[%s5969 + $0x142] sm:$0xff]
      %v6548 = vld [vmem:[%s5969 + $0x152] sm:$0xff]
      %v6549 = vld [vmem:[%s5969 + $0x15a] sm:$0xff]
      %v6550 = vld [vmem:[%s5969 + $0x16a] sm:$0xff]
      %v6551 = vld [vmem:[%s5969 + $0x172] sm:$0xff]
      %s6552 = scalar_lea.vmem %s5, 64
      %v6553 = vld [vmem:[%s6552] sm:$0xff]
      %v6555 = vsel %vm469, %v6520, 0
      %v6558 = vsel %vm469, %v6521, 0
      %v6561 = vsel %vm469, %v6522, 0
      %v6564 = vsel %vm469, %v6523, 0
      %v6567 = vsel %vm469, %v6524, 0
      %v6570 = vsel %vm469, %v6525, 0
      %v6573 = vsel %vm469, %v6526, 0
      %v6576 = vsel %vm469, %v6527, 0
      %v6579 = vsel %vm469, %v6528, 0
      %v6582 = vsel %vm469, %v6529, 0
      %v6585 = vsel %vm469, %v6530, 0
      %v6588 = vsel %vm469, %v6531, 0
      %v6591 = vsel %vm469, %v6532, 0
      %v6594 = vsel %vm469, %v6533, 0
      %v6597 = vsel %vm469, %v6534, 0
      %v6600 = vsel %vm469, %v6535, 0
      %v6603 = vsel %vm469, %v6536, 0
      %v6606 = vsel %vm469, %v6537, 0
      %v6609 = vsel %vm469, %v6538, 0
      %v6612 = vsel %vm469, %v6539, 0
      %v6615 = vsel %vm469, %v6540, 0
      %v6618 = vsel %vm469, %v6541, 0
      %v6621 = vsel %vm469, %v6542, 0
      %v6624 = vsel %vm469, %v6543, 0
      %v6627 = vsel %vm469, %v6544, 0
      %v6630 = vsel %vm469, %v6545, 0
      %v6633 = vsel %vm469, %v6546, 0
      %v6636 = vsel %vm469, %v6547, 0
      %v6639 = vsel %vm469, %v6548, 0
      %v6642 = vsel %vm469, %v6549, 0
      %v6645 = vsel %vm469, %v6550, 0
      %v6648 = vsel %vm469, %v6551, 0
      %6650 = vmatpush.msra.mxu0 0.0
      %6651 = vmatpush.msra.mxu0 0.0
      %6652 = vmatpush.msra.mxu0 0.0
      %6653 = vmatpush.msra.mxu0 0.0
      %6654 = vmatpush.msra.mxu0 0.0
      %6655 = vmatpush.msra.mxu0 0.0
      %6656 = vmatpush.msra.mxu0 0.0
      %6657 = vmatpush.msra.mxu0 0.0
      %6658 = vmatpush.msra.mxu0 0.0
      %6659 = vmatpush.msra.mxu0 0.0
      %6660 = vmatpush.msra.mxu0 0.0
      %6661 = vmatpush.msra.mxu0 0.0
      %6662 = vmatpush.msra.mxu0 0.0
      %6663 = vmatpush.msra.mxu0 0.0
      %6664 = vmatpush.msra.mxu0 0.0
      %6665 = vmatpush.msra.mxu0 %v6553
      %6666 = vmatmul.f32.gmra.mxu0 %v6555
      %v6667 = vpop.f32.mrf.mxu0
      %v6668 = vadd.f32 0.0, %v6667
      %6669 = vmatmul.f32.gmra.mxu0 %v6558
      %v6670 = vpop.f32.mrf.mxu0
      %v6671 = vadd.f32 0.0, %v6670
      %6672 = vmatmul.f32.gmra.mxu0 %v6561
      %v6673 = vpop.f32.mrf.mxu0
      %v6674 = vadd.f32 0.0, %v6673
      %6675 = vmatmul.f32.gmra.mxu0 %v6564
      %v6676 = vpop.f32.mrf.mxu0
      %v6677 = vadd.f32 0.0, %v6676
      %6678 = vmatmul.f32.gmra.mxu0 %v6567
      %v6679 = vpop.f32.mrf.mxu0
      %v6680 = vadd.f32 0.0, %v6679
      %6681 = vmatmul.f32.gmra.mxu0 %v6570
      %v6682 = vpop.f32.mrf.mxu0
      %v6683 = vadd.f32 0.0, %v6682
      %6684 = vmatmul.f32.gmra.mxu0 %v6573
      %v6685 = vpop.f32.mrf.mxu0
      %v6686 = vadd.f32 0.0, %v6685
      %6687 = vmatmul.f32.gmra.mxu0 %v6576
      %v6688 = vpop.f32.mrf.mxu0
      %v6689 = vadd.f32 0.0, %v6688
      %6690 = vmatmul.f32.gmra.mxu0 %v6579
      %v6691 = vpop.f32.mrf.mxu0
      %v6692 = vadd.f32 0.0, %v6691
      %6693 = vmatmul.f32.gmra.mxu0 %v6582
      %v6694 = vpop.f32.mrf.mxu0
      %v6695 = vadd.f32 0.0, %v6694
      %6696 = vmatmul.f32.gmra.mxu0 %v6585
      %v6697 = vpop.f32.mrf.mxu0
      %v6698 = vadd.f32 0.0, %v6697
      %6699 = vmatmul.f32.gmra.mxu0 %v6588
      %v6700 = vpop.f32.mrf.mxu0
      %v6701 = vadd.f32 0.0, %v6700
      %6702 = vmatmul.f32.gmra.mxu0 %v6591
      %v6703 = vpop.f32.mrf.mxu0
      %v6704 = vadd.f32 0.0, %v6703
      %6705 = vmatmul.f32.gmra.mxu0 %v6594
      %v6706 = vpop.f32.mrf.mxu0
      %v6707 = vadd.f32 0.0, %v6706
      %6708 = vmatmul.f32.gmra.mxu0 %v6597
      %v6709 = vpop.f32.mrf.mxu0
      %v6710 = vadd.f32 0.0, %v6709
      %6711 = vmatmul.f32.gmra.mxu0 %v6600
      %v6712 = vpop.f32.mrf.mxu0
      %v6713 = vadd.f32 0.0, %v6712
      %6714 = vmatmul.f32.gmra.mxu0 %v6603
      %v6715 = vpop.f32.mrf.mxu0
      %v6716 = vadd.f32 0.0, %v6715
      %6717 = vmatmul.f32.gmra.mxu0 %v6606
      %v6718 = vpop.f32.mrf.mxu0
      %v6719 = vadd.f32 0.0, %v6718
      %6720 = vmatmul.f32.gmra.mxu0 %v6609
      %v6721 = vpop.f32.mrf.mxu0
      %v6722 = vadd.f32 0.0, %v6721
      %6723 = vmatmul.f32.gmra.mxu0 %v6612
      %v6724 = vpop.f32.mrf.mxu0
      %v6725 = vadd.f32 0.0, %v6724
      %6726 = vmatmul.f32.gmra.mxu0 %v6615
      %v6727 = vpop.f32.mrf.mxu0
      %v6728 = vadd.f32 0.0, %v6727
      %6729 = vmatmul.f32.gmra.mxu0 %v6618
      %v6730 = vpop.f32.mrf.mxu0
      %v6731 = vadd.f32 0.0, %v6730
      %6732 = vmatmul.f32.gmra.mxu0 %v6621
      %v6733 = vpop.f32.mrf.mxu0
      %v6734 = vadd.f32 0.0, %v6733
      %6735 = vmatmul.f32.gmra.mxu0 %v6624
      %v6736 = vpop.f32.mrf.mxu0
      %v6737 = vadd.f32 0.0, %v6736
      %6738 = vmatmul.f32.gmra.mxu0 %v6627
      %v6739 = vpop.f32.mrf.mxu0
      %v6740 = vadd.f32 0.0, %v6739
      %6741 = vmatmul.f32.gmra.mxu0 %v6630
      %v6742 = vpop.f32.mrf.mxu0
      %v6743 = vadd.f32 0.0, %v6742
      %6744 = vmatmul.f32.gmra.mxu0 %v6633
      %v6745 = vpop.f32.mrf.mxu0
      %v6746 = vadd.f32 0.0, %v6745
      %6747 = vmatmul.f32.gmra.mxu0 %v6636
      %v6748 = vpop.f32.mrf.mxu0
      %v6749 = vadd.f32 0.0, %v6748
      %6750 = vmatmul.f32.gmra.mxu0 %v6639
      %v6751 = vpop.f32.mrf.mxu0
      %v6752 = vadd.f32 0.0, %v6751
      %6753 = vmatmul.f32.gmra.mxu0 %v6642
      %v6754 = vpop.f32.mrf.mxu0
      %v6755 = vadd.f32 0.0, %v6754
      %6756 = vmatmul.f32.gmra.mxu0 %v6645
      %v6757 = vpop.f32.mrf.mxu0
      %v6758 = vadd.f32 0.0, %v6757
      %6759 = vmatmul.f32.gmra.mxu0 %v6648
      %v6760 = vpop.f32.mrf.mxu0
      %v6761 = vadd.f32 0.0, %v6760
      %6762 = vdwg.mxu0
      %v6763 = vadd.f32 %v6488, %v6668
      %v6764 = vadd.f32 %v6489, %v6671
      %v6765 = vadd.f32 %v6490, %v6674
      %v6766 = vadd.f32 %v6491, %v6677
      %v6767 = vadd.f32 %v6492, %v6680
      %v6768 = vadd.f32 %v6493, %v6683
      %v6769 = vadd.f32 %v6494, %v6686
      %v6770 = vadd.f32 %v6495, %v6689
      %v6771 = vadd.f32 %v6496, %v6692
      %v6772 = vadd.f32 %v6497, %v6695
      %v6773 = vadd.f32 %v6498, %v6698
      %v6774 = vadd.f32 %v6499, %v6701
      %v6775 = vadd.f32 %v6500, %v6704
      %v6776 = vadd.f32 %v6501, %v6707
      %v6777 = vadd.f32 %v6502, %v6710
      %v6778 = vadd.f32 %v6503, %v6713
      %v6779 = vadd.f32 %v6504, %v6716
      %v6780 = vadd.f32 %v6505, %v6719
      %v6781 = vadd.f32 %v6506, %v6722
      %v6782 = vadd.f32 %v6507, %v6725
      %v6783 = vadd.f32 %v6508, %v6728
      %v6784 = vadd.f32 %v6509, %v6731
      %v6785 = vadd.f32 %v6510, %v6734
      %v6786 = vadd.f32 %v6511, %v6737
      %v6787 = vadd.f32 %v6512, %v6740
      %v6788 = vadd.f32 %v6513, %v6743
      %v6789 = vadd.f32 %v6514, %v6746
      %v6790 = vadd.f32 %v6515, %v6749
      %v6791 = vadd.f32 %v6516, %v6752
      %v6792 = vadd.f32 %v6517, %v6755
      %v6793 = vadd.f32 %v6518, %v6758
      %v6794 = vadd.f32 %v6519, %v6761
      %v6795 = vmul.f32 %v6763, 0.5
      %v6796 = vmul.f32 %v6764, 0.5
      %v6797 = vmul.f32 %v6765, 0.5
      %v6798 = vmul.f32 %v6766, 0.5
      %v6799 = vmul.f32 %v6767, 0.5
      %v6800 = vmul.f32 %v6768, 0.5
      %v6801 = vmul.f32 %v6769, 0.5
      %v6802 = vmul.f32 %v6770, 0.5
      %v6803 = vmul.f32 %v6771, 0.5
      %v6804 = vmul.f32 %v6772, 0.5
      %v6805 = vmul.f32 %v6773, 0.5
      %v6806 = vmul.f32 %v6774, 0.5
      %v6807 = vmul.f32 %v6775, 0.5
      %v6808 = vmul.f32 %v6776, 0.5
      %v6809 = vmul.f32 %v6777, 0.5
      %v6810 = vmul.f32 %v6778, 0.5
      %v6811 = vmul.f32 %v6779, 0.5
      %v6812 = vmul.f32 %v6780, 0.5
      %v6813 = vmul.f32 %v6781, 0.5
      %v6814 = vmul.f32 %v6782, 0.5
      %v6815 = vmul.f32 %v6783, 0.5
      %v6816 = vmul.f32 %v6784, 0.5
      %v6817 = vmul.f32 %v6785, 0.5
      %v6818 = vmul.f32 %v6786, 0.5
      %v6819 = vmul.f32 %v6787, 0.5
      %v6820 = vmul.f32 %v6788, 0.5
      %v6821 = vmul.f32 %v6789, 0.5
      %v6822 = vmul.f32 %v6790, 0.5
      %v6823 = vmul.f32 %v6791, 0.5
      %v6824 = vmul.f32 %v6792, 0.5
      %v6825 = vmul.f32 %v6793, 0.5
      %v6826 = vmul.f32 %v6794, 0.5
      %v6827 = vtanh.pop %v6795
      %v6828 = vtanh.pop %v6796
      %v6829 = vtanh.pop %v6797
      %v6830 = vtanh.pop %v6798
      %v6831 = vtanh.pop %v6799
      %v6832 = vtanh.pop %v6800
      %v6833 = vtanh.pop %v6801
      %v6834 = vtanh.pop %v6802
      %v6835 = vtanh.pop %v6803
      %v6836 = vtanh.pop %v6804
      %v6837 = vtanh.pop %v6805
      %v6838 = vtanh.pop %v6806
      %v6839 = vtanh.pop %v6807
      %v6840 = vtanh.pop %v6808
      %v6841 = vtanh.pop %v6809
      %v6842 = vtanh.pop %v6810
      %v6843 = vtanh.pop %v6811
      %v6844 = vtanh.pop %v6812
      %v6845 = vtanh.pop %v6813
      %v6846 = vtanh.pop %v6814
      %v6847 = vtanh.pop %v6815
      %v6848 = vtanh.pop %v6816
      %v6849 = vtanh.pop %v6817
      %v6850 = vtanh.pop %v6818
      %v6851 = vtanh.pop %v6819
      %v6852 = vtanh.pop %v6820
      %v6853 = vtanh.pop %v6821
      %v6854 = vtanh.pop %v6822
      %v6855 = vtanh.pop %v6823
      %v6856 = vtanh.pop %v6824
      %v6857 = vtanh.pop %v6825
      %v6858 = vtanh.pop %v6826
      %v6859 = vmul.f32 %v6827, 0.5
      %v6860 = vmul.f32 %v6828, 0.5
      %v6861 = vmul.f32 %v6829, 0.5
      %v6862 = vmul.f32 %v6830, 0.5
      %v6863 = vmul.f32 %v6831, 0.5
      %v6864 = vmul.f32 %v6832, 0.5
      %v6865 = vmul.f32 %v6833, 0.5
      %v6866 = vmul.f32 %v6834, 0.5
      %v6867 = vmul.f32 %v6835, 0.5
      %v6868 = vmul.f32 %v6836, 0.5
      %v6869 = vmul.f32 %v6837, 0.5
      %v6870 = vmul.f32 %v6838, 0.5
      %v6871 = vmul.f32 %v6839, 0.5
      %v6872 = vmul.f32 %v6840, 0.5
      %v6873 = vmul.f32 %v6841, 0.5
      %v6874 = vmul.f32 %v6842, 0.5
      %v6875 = vmul.f32 %v6843, 0.5
      %v6876 = vmul.f32 %v6844, 0.5
      %v6877 = vmul.f32 %v6845, 0.5
      %v6878 = vmul.f32 %v6846, 0.5
      %v6879 = vmul.f32 %v6847, 0.5
      %v6880 = vmul.f32 %v6848, 0.5
      %v6881 = vmul.f32 %v6849, 0.5
      %v6882 = vmul.f32 %v6850, 0.5
      %v6883 = vmul.f32 %v6851, 0.5
      %v6884 = vmul.f32 %v6852, 0.5
      %v6885 = vmul.f32 %v6853, 0.5
      %v6886 = vmul.f32 %v6854, 0.5
      %v6887 = vmul.f32 %v6855, 0.5
      %v6888 = vmul.f32 %v6856, 0.5
      %v6889 = vmul.f32 %v6857, 0.5
      %v6890 = vmul.f32 %v6858, 0.5
      %v6891 = vadd.f32 %v6859, 0.5
      %v6892 = vadd.f32 %v6860, 0.5
      %v6893 = vadd.f32 %v6861, 0.5
      %v6894 = vadd.f32 %v6862, 0.5
      %v6895 = vadd.f32 %v6863, 0.5
      %v6896 = vadd.f32 %v6864, 0.5
      %v6897 = vadd.f32 %v6865, 0.5
      %v6898 = vadd.f32 %v6866, 0.5
      %v6899 = vadd.f32 %v6867, 0.5
      %v6900 = vadd.f32 %v6868, 0.5
      %v6901 = vadd.f32 %v6869, 0.5
      %v6902 = vadd.f32 %v6870, 0.5
      %v6903 = vadd.f32 %v6871, 0.5
      %v6904 = vadd.f32 %v6872, 0.5
      %v6905 = vadd.f32 %v6873, 0.5
      %v6906 = vadd.f32 %v6874, 0.5
      %v6907 = vadd.f32 %v6875, 0.5
      %v6908 = vadd.f32 %v6876, 0.5
      %v6909 = vadd.f32 %v6877, 0.5
      %v6910 = vadd.f32 %v6878, 0.5
      %v6911 = vadd.f32 %v6879, 0.5
      %v6912 = vadd.f32 %v6880, 0.5
      %v6913 = vadd.f32 %v6881, 0.5
      %v6914 = vadd.f32 %v6882, 0.5
      %v6915 = vadd.f32 %v6883, 0.5
      %v6916 = vadd.f32 %v6884, 0.5
      %v6917 = vadd.f32 %v6885, 0.5
      %v6918 = vadd.f32 %v6886, 0.5
      %v6919 = vadd.f32 %v6887, 0.5
      %v6920 = vadd.f32 %v6888, 0.5
      %v6921 = vadd.f32 %v6889, 0.5
      %v6922 = vadd.f32 %v6890, 0.5
      %v6923 = vmul.f32 %v6763, %v6891
      %v6924 = vmul.f32 %v6764, %v6892
      %v6925 = vmul.f32 %v6765, %v6893
      %v6926 = vmul.f32 %v6766, %v6894
      %v6927 = vmul.f32 %v6767, %v6895
      %v6928 = vmul.f32 %v6768, %v6896
      %v6929 = vmul.f32 %v6769, %v6897
      %v6930 = vmul.f32 %v6770, %v6898
      %v6931 = vmul.f32 %v6771, %v6899
      %v6932 = vmul.f32 %v6772, %v6900
      %v6933 = vmul.f32 %v6773, %v6901
      %v6934 = vmul.f32 %v6774, %v6902
      %v6935 = vmul.f32 %v6775, %v6903
      %v6936 = vmul.f32 %v6776, %v6904
      %v6937 = vmul.f32 %v6777, %v6905
      %v6938 = vmul.f32 %v6778, %v6906
      %v6939 = vmul.f32 %v6779, %v6907
      %v6940 = vmul.f32 %v6780, %v6908
      %v6941 = vmul.f32 %v6781, %v6909
      %v6942 = vmul.f32 %v6782, %v6910
      %v6943 = vmul.f32 %v6783, %v6911
      %v6944 = vmul.f32 %v6784, %v6912
      %v6945 = vmul.f32 %v6785, %v6913
      %v6946 = vmul.f32 %v6786, %v6914
      %v6947 = vmul.f32 %v6787, %v6915
      %v6948 = vmul.f32 %v6788, %v6916
      %v6949 = vmul.f32 %v6789, %v6917
      %v6950 = vmul.f32 %v6790, %v6918
      %v6951 = vmul.f32 %v6791, %v6919
      %v6952 = vmul.f32 %v6792, %v6920
      %v6953 = vmul.f32 %v6793, %v6921
      %v6954 = vmul.f32 %v6794, %v6922
      %v6955 = vadd.f32 %v1052, %v6923
      %v6956 = vadd.f32 %v1053, %v6924
      %v6957 = vadd.f32 %v1054, %v6925
      %v6958 = vadd.f32 %v1055, %v6926
      %v6959 = vadd.f32 %v1056, %v6927
      %v6960 = vadd.f32 %v1057, %v6928
      %v6961 = vadd.f32 %v1058, %v6929
      %v6962 = vadd.f32 %v1059, %v6930
      %v6963 = vadd.f32 %v1060, %v6931
      %v6964 = vadd.f32 %v1061, %v6932
      %v6965 = vadd.f32 %v1062, %v6933
      %v6966 = vadd.f32 %v1063, %v6934
      %v6967 = vadd.f32 %v1064, %v6935
      %v6968 = vadd.f32 %v1065, %v6936
      %v6969 = vadd.f32 %v1066, %v6937
      %v6970 = vadd.f32 %v1067, %v6938
      %v6971 = vadd.f32 %v1068, %v6939
      %v6972 = vadd.f32 %v1069, %v6940
      %v6973 = vadd.f32 %v1070, %v6941
      %v6974 = vadd.f32 %v1071, %v6942
      %v6975 = vadd.f32 %v1072, %v6943
      %v6976 = vadd.f32 %v1073, %v6944
      %v6977 = vadd.f32 %v1074, %v6945
      %v6978 = vadd.f32 %v1075, %v6946
      %v6979 = vadd.f32 %v1076, %v6947
      %v6980 = vadd.f32 %v1077, %v6948
      %v6981 = vadd.f32 %v1078, %v6949
      %v6982 = vadd.f32 %v1079, %v6950
      %v6983 = vadd.f32 %v1080, %v6951
      %v6984 = vadd.f32 %v1081, %v6952
      %v6985 = vadd.f32 %v1082, %v6953
      %v6986 = vadd.f32 %v1083, %v6954
      %v6987 = vld [vmem:[%s7] sm:$0xff]
      %v6988 = vld [vmem:[%s8] sm:$0x1]
      %v6990 = vperm.slane %v6988, 0
      %v6993 = vsel %vm469, %v6955, 0
      %v6996 = vsel %vm469, %v6956, 0
      %v6999 = vsel %vm469, %v6957, 0
      %v7002 = vsel %vm469, %v6958, 0
      %v7005 = vsel %vm469, %v6959, 0
      %v7008 = vsel %vm469, %v6960, 0
      %v7011 = vsel %vm469, %v6961, 0
      %v7014 = vsel %vm469, %v6962, 0
      %v7017 = vsel %vm469, %v6963, 0
      %v7020 = vsel %vm469, %v6964, 0
      %v7023 = vsel %vm469, %v6965, 0
      %v7026 = vsel %vm469, %v6966, 0
      %v7029 = vsel %vm469, %v6967, 0
      %v7032 = vsel %vm469, %v6968, 0
      %v7035 = vsel %vm469, %v6969, 0
      %v7038 = vsel %vm469, %v6970, 0
      %v7041 = vsel %vm469, %v6971, 0
      %v7044 = vsel %vm469, %v6972, 0
      %v7047 = vsel %vm469, %v6973, 0
      %v7050 = vsel %vm469, %v6974, 0
      %v7053 = vsel %vm469, %v6975, 0
      %v7056 = vsel %vm469, %v6976, 0
      %v7059 = vsel %vm469, %v6977, 0
      %v7062 = vsel %vm469, %v6978, 0
      %v7065 = vsel %vm469, %v6979, 0
      %v7068 = vsel %vm469, %v6980, 0
      %v7071 = vsel %vm469, %v6981, 0
      %v7074 = vsel %vm469, %v6982, 0
      %v7077 = vsel %vm469, %v6983, 0
      %v7080 = vsel %vm469, %v6984, 0
      %v7083 = vsel %vm469, %v6985, 0
      %v7086 = vsel %vm469, %v6986, 0
      %7088 = vmatpush.msra.mxu0 0.0
      %7089 = vmatpush.msra.mxu0 0.0
      %7090 = vmatpush.msra.mxu0 0.0
      %7091 = vmatpush.msra.mxu0 0.0
      %7092 = vmatpush.msra.mxu0 0.0
      %7093 = vmatpush.msra.mxu0 0.0
      %7094 = vmatpush.msra.mxu0 0.0
      %7095 = vmatpush.msra.mxu0 0.0
      %7096 = vmatpush.msra.mxu0 0.0
      %7097 = vmatpush.msra.mxu0 0.0
      %7098 = vmatpush.msra.mxu0 0.0
      %7099 = vmatpush.msra.mxu0 0.0
      %7100 = vmatpush.msra.mxu0 0.0
      %7101 = vmatpush.msra.mxu0 0.0
      %7102 = vmatpush.msra.mxu0 0.0
      %7103 = vmatpush.msra.mxu0 %v6987
      %7104 = vmatmul.f32.gmra.mxu0 %v6993
      %v7105 = vpop.f32.mrf.mxu0
      %v7106 = vadd.f32 %v6990, %v7105
      %7107 = vmatmul.f32.gmra.mxu0 %v6996
      %v7108 = vpop.f32.mrf.mxu0
      %v7109 = vadd.f32 %v6990, %v7108
      %7110 = vmatmul.f32.gmra.mxu0 %v6999
      %v7111 = vpop.f32.mrf.mxu0
      %v7112 = vadd.f32 %v6990, %v7111
      %7113 = vmatmul.f32.gmra.mxu0 %v7002
      %v7114 = vpop.f32.mrf.mxu0
      %v7115 = vadd.f32 %v6990, %v7114
      %7116 = vmatmul.f32.gmra.mxu0 %v7005
      %v7117 = vpop.f32.mrf.mxu0
      %v7118 = vadd.f32 %v6990, %v7117
      %7119 = vmatmul.f32.gmra.mxu0 %v7008
      %v7120 = vpop.f32.mrf.mxu0
      %v7121 = vadd.f32 %v6990, %v7120
      %7122 = vmatmul.f32.gmra.mxu0 %v7011
      %v7123 = vpop.f32.mrf.mxu0
      %v7124 = vadd.f32 %v6990, %v7123
      %7125 = vmatmul.f32.gmra.mxu0 %v7014
      %v7126 = vpop.f32.mrf.mxu0
      %v7127 = vadd.f32 %v6990, %v7126
      %7128 = vmatmul.f32.gmra.mxu0 %v7017
      %v7129 = vpop.f32.mrf.mxu0
      %v7130 = vadd.f32 %v6990, %v7129
      %7131 = vmatmul.f32.gmra.mxu0 %v7020
      %v7132 = vpop.f32.mrf.mxu0
      %v7133 = vadd.f32 %v6990, %v7132
      %7134 = vmatmul.f32.gmra.mxu0 %v7023
      %v7135 = vpop.f32.mrf.mxu0
      %v7136 = vadd.f32 %v6990, %v7135
      %7137 = vmatmul.f32.gmra.mxu0 %v7026
      %v7138 = vpop.f32.mrf.mxu0
      %v7139 = vadd.f32 %v6990, %v7138
      %7140 = vmatmul.f32.gmra.mxu0 %v7029
      %v7141 = vpop.f32.mrf.mxu0
      %v7142 = vadd.f32 %v6990, %v7141
      %7143 = vmatmul.f32.gmra.mxu0 %v7032
      %v7144 = vpop.f32.mrf.mxu0
      %v7145 = vadd.f32 %v6990, %v7144
      %7146 = vmatmul.f32.gmra.mxu0 %v7035
      %v7147 = vpop.f32.mrf.mxu0
      %v7148 = vadd.f32 %v6990, %v7147
      %7149 = vmatmul.f32.gmra.mxu0 %v7038
      %v7150 = vpop.f32.mrf.mxu0
      %v7151 = vadd.f32 %v6990, %v7150
      %7152 = vmatmul.f32.gmra.mxu0 %v7041
      %v7153 = vpop.f32.mrf.mxu0
      %v7154 = vadd.f32 %v6990, %v7153
      %7155 = vmatmul.f32.gmra.mxu0 %v7044
      %v7156 = vpop.f32.mrf.mxu0
      %v7157 = vadd.f32 %v6990, %v7156
      %7158 = vmatmul.f32.gmra.mxu0 %v7047
      %v7159 = vpop.f32.mrf.mxu0
      %v7160 = vadd.f32 %v6990, %v7159
      %7161 = vmatmul.f32.gmra.mxu0 %v7050
      %v7162 = vpop.f32.mrf.mxu0
      %v7163 = vadd.f32 %v6990, %v7162
      %7164 = vmatmul.f32.gmra.mxu0 %v7053
      %v7165 = vpop.f32.mrf.mxu0
      %v7166 = vadd.f32 %v6990, %v7165
      %7167 = vmatmul.f32.gmra.mxu0 %v7056
      %v7168 = vpop.f32.mrf.mxu0
      %v7169 = vadd.f32 %v6990, %v7168
      %7170 = vmatmul.f32.gmra.mxu0 %v7059
      %v7171 = vpop.f32.mrf.mxu0
      %v7172 = vadd.f32 %v6990, %v7171
      %7173 = vmatmul.f32.gmra.mxu0 %v7062
      %v7174 = vpop.f32.mrf.mxu0
      %v7175 = vadd.f32 %v6990, %v7174
      %7176 = vmatmul.f32.gmra.mxu0 %v7065
      %v7177 = vpop.f32.mrf.mxu0
      %v7178 = vadd.f32 %v6990, %v7177
      %7179 = vmatmul.f32.gmra.mxu0 %v7068
      %v7180 = vpop.f32.mrf.mxu0
      %v7181 = vadd.f32 %v6990, %v7180
      %7182 = vmatmul.f32.gmra.mxu0 %v7071
      %v7183 = vpop.f32.mrf.mxu0
      %v7184 = vadd.f32 %v6990, %v7183
      %7185 = vmatmul.f32.gmra.mxu0 %v7074
      %v7186 = vpop.f32.mrf.mxu0
      %v7187 = vadd.f32 %v6990, %v7186
      %7188 = vmatmul.f32.gmra.mxu0 %v7077
      %v7189 = vpop.f32.mrf.mxu0
      %v7190 = vadd.f32 %v6990, %v7189
      %7191 = vmatmul.f32.gmra.mxu0 %v7080
      %v7192 = vpop.f32.mrf.mxu0
      %v7193 = vadd.f32 %v6990, %v7192
      %7194 = vmatmul.f32.gmra.mxu0 %v7083
      %v7195 = vpop.f32.mrf.mxu0
      %v7196 = vadd.f32 %v6990, %v7195
      %7197 = vmatmul.f32.gmra.mxu0 %v7086
      %v7198 = vpop.f32.mrf.mxu0
      %v7199 = vadd.f32 %v6990, %v7198
      %7200 = vdwg.mxu0
      %v7201 = vmul.f32 %v7106, 0.5
      %v7202 = vmul.f32 %v7109, 0.5
      %v7203 = vmul.f32 %v7112, 0.5
      %v7204 = vmul.f32 %v7115, 0.5
      %v7205 = vmul.f32 %v7118, 0.5
      %v7206 = vmul.f32 %v7121, 0.5
      %v7207 = vmul.f32 %v7124, 0.5
      %v7208 = vmul.f32 %v7127, 0.5
      %v7209 = vmul.f32 %v7130, 0.5
      %v7210 = vmul.f32 %v7133, 0.5
      %v7211 = vmul.f32 %v7136, 0.5
      %v7212 = vmul.f32 %v7139, 0.5
      %v7213 = vmul.f32 %v7142, 0.5
      %v7214 = vmul.f32 %v7145, 0.5
      %v7215 = vmul.f32 %v7148, 0.5
      %v7216 = vmul.f32 %v7151, 0.5
      %v7217 = vmul.f32 %v7154, 0.5
      %v7218 = vmul.f32 %v7157, 0.5
      %v7219 = vmul.f32 %v7160, 0.5
      %v7220 = vmul.f32 %v7163, 0.5
      %v7221 = vmul.f32 %v7166, 0.5
      %v7222 = vmul.f32 %v7169, 0.5
      %v7223 = vmul.f32 %v7172, 0.5
      %v7224 = vmul.f32 %v7175, 0.5
      %v7225 = vmul.f32 %v7178, 0.5
      %v7226 = vmul.f32 %v7181, 0.5
      %v7227 = vmul.f32 %v7184, 0.5
      %v7228 = vmul.f32 %v7187, 0.5
      %v7229 = vmul.f32 %v7190, 0.5
      %v7230 = vmul.f32 %v7193, 0.5
      %v7231 = vmul.f32 %v7196, 0.5
      %v7232 = vmul.f32 %v7199, 0.5
      %v7233 = vtanh.pop %v7201
      %v7234 = vtanh.pop %v7202
      %v7235 = vtanh.pop %v7203
      %v7236 = vtanh.pop %v7204
      %v7237 = vtanh.pop %v7205
      %v7238 = vtanh.pop %v7206
      %v7239 = vtanh.pop %v7207
      %v7240 = vtanh.pop %v7208
      %v7241 = vtanh.pop %v7209
      %v7242 = vtanh.pop %v7210
      %v7243 = vtanh.pop %v7211
      %v7244 = vtanh.pop %v7212
      %v7245 = vtanh.pop %v7213
      %v7246 = vtanh.pop %v7214
      %v7247 = vtanh.pop %v7215
      %v7248 = vtanh.pop %v7216
      %v7249 = vtanh.pop %v7217
      %v7250 = vtanh.pop %v7218
      %v7251 = vtanh.pop %v7219
      %v7252 = vtanh.pop %v7220
      %v7253 = vtanh.pop %v7221
      %v7254 = vtanh.pop %v7222
      %v7255 = vtanh.pop %v7223
      %v7256 = vtanh.pop %v7224
      %v7257 = vtanh.pop %v7225
      %v7258 = vtanh.pop %v7226
      %v7259 = vtanh.pop %v7227
      %v7260 = vtanh.pop %v7228
      %v7261 = vtanh.pop %v7229
      %v7262 = vtanh.pop %v7230
      %v7263 = vtanh.pop %v7231
      %v7264 = vtanh.pop %v7232
      %v7265 = vmul.f32 %v7233, 0.5
      %v7266 = vmul.f32 %v7234, 0.5
      %v7267 = vmul.f32 %v7235, 0.5
      %v7268 = vmul.f32 %v7236, 0.5
      %v7269 = vmul.f32 %v7237, 0.5
      %v7270 = vmul.f32 %v7238, 0.5
      %v7271 = vmul.f32 %v7239, 0.5
      %v7272 = vmul.f32 %v7240, 0.5
      %v7273 = vmul.f32 %v7241, 0.5
      %v7274 = vmul.f32 %v7242, 0.5
      %v7275 = vmul.f32 %v7243, 0.5
      %v7276 = vmul.f32 %v7244, 0.5
      %v7277 = vmul.f32 %v7245, 0.5
      %v7278 = vmul.f32 %v7246, 0.5
      %v7279 = vmul.f32 %v7247, 0.5
      %v7280 = vmul.f32 %v7248, 0.5
      %v7281 = vmul.f32 %v7249, 0.5
      %v7282 = vmul.f32 %v7250, 0.5
      %v7283 = vmul.f32 %v7251, 0.5
      %v7284 = vmul.f32 %v7252, 0.5
      %v7285 = vmul.f32 %v7253, 0.5
      %v7286 = vmul.f32 %v7254, 0.5
      %v7287 = vmul.f32 %v7255, 0.5
      %v7288 = vmul.f32 %v7256, 0.5
      %v7289 = vmul.f32 %v7257, 0.5
      %v7290 = vmul.f32 %v7258, 0.5
      %v7291 = vmul.f32 %v7259, 0.5
      %v7292 = vmul.f32 %v7260, 0.5
      %v7293 = vmul.f32 %v7261, 0.5
      %v7294 = vmul.f32 %v7262, 0.5
      %v7295 = vmul.f32 %v7263, 0.5
      %v7296 = vmul.f32 %v7264, 0.5
      %v7297 = vadd.f32 %v7265, 0.5
      %v7298 = vadd.f32 %v7266, 0.5
      %v7299 = vadd.f32 %v7267, 0.5
      %v7300 = vadd.f32 %v7268, 0.5
      %v7301 = vadd.f32 %v7269, 0.5
      %v7302 = vadd.f32 %v7270, 0.5
      %v7303 = vadd.f32 %v7271, 0.5
      %v7304 = vadd.f32 %v7272, 0.5
      %v7305 = vadd.f32 %v7273, 0.5
      %v7306 = vadd.f32 %v7274, 0.5
      %v7307 = vadd.f32 %v7275, 0.5
      %v7308 = vadd.f32 %v7276, 0.5
      %v7309 = vadd.f32 %v7277, 0.5
      %v7310 = vadd.f32 %v7278, 0.5
      %v7311 = vadd.f32 %v7279, 0.5
      %v7312 = vadd.f32 %v7280, 0.5
      %v7313 = vadd.f32 %v7281, 0.5
      %v7314 = vadd.f32 %v7282, 0.5
      %v7315 = vadd.f32 %v7283, 0.5
      %v7316 = vadd.f32 %v7284, 0.5
      %v7317 = vadd.f32 %v7285, 0.5
      %v7318 = vadd.f32 %v7286, 0.5
      %v7319 = vadd.f32 %v7287, 0.5
      %v7320 = vadd.f32 %v7288, 0.5
      %v7321 = vadd.f32 %v7289, 0.5
      %v7322 = vadd.f32 %v7290, 0.5
      %v7323 = vadd.f32 %v7291, 0.5
      %v7324 = vadd.f32 %v7292, 0.5
      %v7325 = vadd.f32 %v7293, 0.5
      %v7326 = vadd.f32 %v7294, 0.5
      %v7327 = vadd.f32 %v7295, 0.5
      %v7328 = vadd.f32 %v7296, 0.5
      %v7329 = vmul.f32 %v7106, %v7297
      %v7330 = vmul.f32 %v7109, %v7298
      %v7331 = vmul.f32 %v7112, %v7299
      %v7332 = vmul.f32 %v7115, %v7300
      %v7333 = vmul.f32 %v7118, %v7301
      %v7334 = vmul.f32 %v7121, %v7302
      %v7335 = vmul.f32 %v7124, %v7303
      %v7336 = vmul.f32 %v7127, %v7304
      %v7337 = vmul.f32 %v7130, %v7305
      %v7338 = vmul.f32 %v7133, %v7306
      %v7339 = vmul.f32 %v7136, %v7307
      %v7340 = vmul.f32 %v7139, %v7308
      %v7341 = vmul.f32 %v7142, %v7309
      %v7342 = vmul.f32 %v7145, %v7310
      %v7343 = vmul.f32 %v7148, %v7311
      %v7344 = vmul.f32 %v7151, %v7312
      %v7345 = vmul.f32 %v7154, %v7313
      %v7346 = vmul.f32 %v7157, %v7314
      %v7347 = vmul.f32 %v7160, %v7315
      %v7348 = vmul.f32 %v7163, %v7316
      %v7349 = vmul.f32 %v7166, %v7317
      %v7350 = vmul.f32 %v7169, %v7318
      %v7351 = vmul.f32 %v7172, %v7319
      %v7352 = vmul.f32 %v7175, %v7320
      %v7353 = vmul.f32 %v7178, %v7321
      %v7354 = vmul.f32 %v7181, %v7322
      %v7355 = vmul.f32 %v7184, %v7323
      %v7356 = vmul.f32 %v7187, %v7324
      %v7357 = vmul.f32 %v7190, %v7325
      %v7358 = vmul.f32 %v7193, %v7326
      %v7359 = vmul.f32 %v7196, %v7327
      %v7360 = vmul.f32 %v7199, %v7328
      %v7361 = vld [vmem:[%s9] sm:$0xff]
      %v7362 = vld [vmem:[%s9 + $0x8] sm:$0xff]
      %7395 = vrot.lane.b32.xlu0 %v891, 120
      %v7396 = vpop.permute.xlu0 %7395
      %7397 = vrot.lane.b32.xlu0 %v892, 120
      %v7398 = vpop.permute.xlu0 %7397
      %7399 = vrot.lane.b32.xlu0 %v893, 120
      %v7400 = vpop.permute.xlu0 %7399
      %7401 = vrot.lane.b32.xlu0 %v894, 120
      %v7402 = vpop.permute.xlu0 %7401
      %7403 = vrot.lane.b32.xlu0 %v895, 120
      %v7404 = vpop.permute.xlu0 %7403
      %7405 = vrot.lane.b32.xlu0 %v896, 120
      %v7406 = vpop.permute.xlu0 %7405
      %7407 = vrot.lane.b32.xlu0 %v897, 120
      %v7408 = vpop.permute.xlu0 %7407
      %7409 = vrot.lane.b32.xlu0 %v898, 120
      %v7410 = vpop.permute.xlu0 %7409
      %7411 = vrot.lane.b32.xlu0 %v899, 120
      %v7412 = vpop.permute.xlu0 %7411
      %7413 = vrot.lane.b32.xlu0 %v900, 120
      %v7414 = vpop.permute.xlu0 %7413
      %7415 = vrot.lane.b32.xlu0 %v901, 120
      %v7416 = vpop.permute.xlu0 %7415
      %7417 = vrot.lane.b32.xlu0 %v902, 120
      %v7418 = vpop.permute.xlu0 %7417
      %7419 = vrot.lane.b32.xlu0 %v903, 120
      %v7420 = vpop.permute.xlu0 %7419
      %7421 = vrot.lane.b32.xlu0 %v904, 120
      %v7422 = vpop.permute.xlu0 %7421
      %7423 = vrot.lane.b32.xlu0 %v905, 120
      %v7424 = vpop.permute.xlu0 %7423
      %7425 = vrot.lane.b32.xlu0 %v906, 120
      %v7426 = vpop.permute.xlu0 %7425
      %7427 = vrot.lane.b32.xlu0 %v907, 120
      %v7428 = vpop.permute.xlu0 %7427
      %7429 = vrot.lane.b32.xlu0 %v908, 120
      %v7430 = vpop.permute.xlu0 %7429
      %7431 = vrot.lane.b32.xlu0 %v909, 120
      %v7432 = vpop.permute.xlu0 %7431
      %7433 = vrot.lane.b32.xlu0 %v910, 120
      %v7434 = vpop.permute.xlu0 %7433
      %7435 = vrot.lane.b32.xlu0 %v911, 120
      %v7436 = vpop.permute.xlu0 %7435
      %7437 = vrot.lane.b32.xlu0 %v912, 120
      %v7438 = vpop.permute.xlu0 %7437
      %7439 = vrot.lane.b32.xlu0 %v913, 120
      %v7440 = vpop.permute.xlu0 %7439
      %7441 = vrot.lane.b32.xlu0 %v914, 120
      %v7442 = vpop.permute.xlu0 %7441
      %7443 = vrot.lane.b32.xlu0 %v915, 120
      %v7444 = vpop.permute.xlu0 %7443
      %7445 = vrot.lane.b32.xlu0 %v916, 120
      %v7446 = vpop.permute.xlu0 %7445
      %7447 = vrot.lane.b32.xlu0 %v917, 120
      %v7448 = vpop.permute.xlu0 %7447
      %7449 = vrot.lane.b32.xlu0 %v918, 120
      %v7450 = vpop.permute.xlu0 %7449
      %7451 = vrot.lane.b32.xlu0 %v919, 120
      %v7452 = vpop.permute.xlu0 %7451
      %7453 = vrot.lane.b32.xlu0 %v920, 120
      %v7454 = vpop.permute.xlu0 %7453
      %7455 = vrot.lane.b32.xlu0 %v921, 120
      %v7456 = vpop.permute.xlu0 %7455
      %7457 = vrot.lane.b32.xlu0 %v922, 120
      %v7458 = vpop.permute.xlu0 %7457
      %v7459 = vsel %vm469, %v7396, 0
      %v7461 = vsel %vm469, %v7398, 0
      %v7463 = vsel %vm469, %v7400, 0
      %v7465 = vsel %vm469, %v7402, 0
      %v7467 = vsel %vm469, %v7404, 0
      %v7469 = vsel %vm469, %v7406, 0
      %v7471 = vsel %vm469, %v7408, 0
      %v7473 = vsel %vm469, %v7410, 0
      %v7475 = vsel %vm469, %v7412, 0
      %v7477 = vsel %vm469, %v7414, 0
      %v7479 = vsel %vm469, %v7416, 0
      %v7481 = vsel %vm469, %v7418, 0
      %v7483 = vsel %vm469, %v7420, 0
      %v7485 = vsel %vm469, %v7422, 0
      %v7487 = vsel %vm469, %v7424, 0
      %v7489 = vsel %vm469, %v7426, 0
      %v7491 = vsel %vm469, %v7428, 0
      %v7493 = vsel %vm469, %v7430, 0
      %v7495 = vsel %vm469, %v7432, 0
      %v7497 = vsel %vm469, %v7434, 0
      %v7499 = vsel %vm469, %v7436, 0
      %v7501 = vsel %vm469, %v7438, 0
      %v7503 = vsel %vm469, %v7440, 0
      %v7505 = vsel %vm469, %v7442, 0
      %v7507 = vsel %vm469, %v7444, 0
      %v7509 = vsel %vm469, %v7446, 0
      %v7511 = vsel %vm469, %v7448, 0
      %v7513 = vsel %vm469, %v7450, 0
      %v7515 = vsel %vm469, %v7452, 0
      %v7517 = vsel %vm469, %v7454, 0
      %v7519 = vsel %vm469, %v7456, 0
      %v7521 = vsel %vm469, %v7458, 0
      %7523 = vmatpush.msra.mxu0 0.0
      %7524 = vmatpush.msra.mxu0 0.0
      %7525 = vmatpush.msra.mxu0 0.0
      %7526 = vmatpush.msra.mxu0 0.0
      %7527 = vmatpush.msra.mxu0 0.0
      %7528 = vmatpush.msra.mxu0 0.0
      %7529 = vmatpush.msra.mxu0 0.0
      %7530 = vmatpush.msra.mxu0 0.0
      %7531 = vmatpush.msra.mxu0 0.0
      %7532 = vmatpush.msra.mxu0 0.0
      %7533 = vmatpush.msra.mxu0 0.0
      %7534 = vmatpush.msra.mxu0 0.0
      %7535 = vmatpush.msra.mxu0 0.0
      %7536 = vmatpush.msra.mxu0 0.0
      %7537 = vmatpush.msra.mxu0 0.0
      %7538 = vmatpush.msra.mxu0 %v7362
      %7539 = vmatmul.f32.gmra.mxu0 %v7459
      %v7540 = vpop.f32.mrf.mxu0
      %v7541 = vadd.f32 0.0, %v7540
      %7542 = vmatmul.f32.gmra.mxu0 %v7461
      %v7543 = vpop.f32.mrf.mxu0
      %v7544 = vadd.f32 0.0, %v7543
      %7545 = vmatmul.f32.gmra.mxu0 %v7463
      %v7546 = vpop.f32.mrf.mxu0
      %v7547 = vadd.f32 0.0, %v7546
      %7548 = vmatmul.f32.gmra.mxu0 %v7465
      %v7549 = vpop.f32.mrf.mxu0
      %v7550 = vadd.f32 0.0, %v7549
      %7551 = vmatmul.f32.gmra.mxu0 %v7467
      %v7552 = vpop.f32.mrf.mxu0
      %v7553 = vadd.f32 0.0, %v7552
      %7554 = vmatmul.f32.gmra.mxu0 %v7469
      %v7555 = vpop.f32.mrf.mxu0
      %v7556 = vadd.f32 0.0, %v7555
      %7557 = vmatmul.f32.gmra.mxu0 %v7471
      %v7558 = vpop.f32.mrf.mxu0
      %v7559 = vadd.f32 0.0, %v7558
      %7560 = vmatmul.f32.gmra.mxu0 %v7473
      %v7561 = vpop.f32.mrf.mxu0
      %v7562 = vadd.f32 0.0, %v7561
      %7563 = vmatmul.f32.gmra.mxu0 %v7475
      %v7564 = vpop.f32.mrf.mxu0
      %v7565 = vadd.f32 0.0, %v7564
      %7566 = vmatmul.f32.gmra.mxu0 %v7477
      %v7567 = vpop.f32.mrf.mxu0
      %v7568 = vadd.f32 0.0, %v7567
      %7569 = vmatmul.f32.gmra.mxu0 %v7479
      %v7570 = vpop.f32.mrf.mxu0
      %v7571 = vadd.f32 0.0, %v7570
      %7572 = vmatmul.f32.gmra.mxu0 %v7481
      %v7573 = vpop.f32.mrf.mxu0
      %v7574 = vadd.f32 0.0, %v7573
      %7575 = vmatmul.f32.gmra.mxu0 %v7483
      %v7576 = vpop.f32.mrf.mxu0
      %v7577 = vadd.f32 0.0, %v7576
      %7578 = vmatmul.f32.gmra.mxu0 %v7485
      %v7579 = vpop.f32.mrf.mxu0
      %v7580 = vadd.f32 0.0, %v7579
      %7581 = vmatmul.f32.gmra.mxu0 %v7487
      %v7582 = vpop.f32.mrf.mxu0
      %v7583 = vadd.f32 0.0, %v7582
      %7584 = vmatmul.f32.gmra.mxu0 %v7489
      %v7585 = vpop.f32.mrf.mxu0
      %v7586 = vadd.f32 0.0, %v7585
      %7587 = vmatmul.f32.gmra.mxu0 %v7491
      %v7588 = vpop.f32.mrf.mxu0
      %v7589 = vadd.f32 0.0, %v7588
      %7590 = vmatmul.f32.gmra.mxu0 %v7493
      %v7591 = vpop.f32.mrf.mxu0
      %v7592 = vadd.f32 0.0, %v7591
      %7593 = vmatmul.f32.gmra.mxu0 %v7495
      %v7594 = vpop.f32.mrf.mxu0
      %v7595 = vadd.f32 0.0, %v7594
      %7596 = vmatmul.f32.gmra.mxu0 %v7497
      %v7597 = vpop.f32.mrf.mxu0
      %v7598 = vadd.f32 0.0, %v7597
      %7599 = vmatmul.f32.gmra.mxu0 %v7499
      %v7600 = vpop.f32.mrf.mxu0
      %v7601 = vadd.f32 0.0, %v7600
      %7602 = vmatmul.f32.gmra.mxu0 %v7501
      %v7603 = vpop.f32.mrf.mxu0
      %v7604 = vadd.f32 0.0, %v7603
      %7605 = vmatmul.f32.gmra.mxu0 %v7503
      %v7606 = vpop.f32.mrf.mxu0
      %v7607 = vadd.f32 0.0, %v7606
      %7608 = vmatmul.f32.gmra.mxu0 %v7505
      %v7609 = vpop.f32.mrf.mxu0
      %v7610 = vadd.f32 0.0, %v7609
      %7611 = vmatmul.f32.gmra.mxu0 %v7507
      %v7612 = vpop.f32.mrf.mxu0
      %v7613 = vadd.f32 0.0, %v7612
      %7614 = vmatmul.f32.gmra.mxu0 %v7509
      %v7615 = vpop.f32.mrf.mxu0
      %v7616 = vadd.f32 0.0, %v7615
      %7617 = vmatmul.f32.gmra.mxu0 %v7511
      %v7618 = vpop.f32.mrf.mxu0
      %v7619 = vadd.f32 0.0, %v7618
      %7620 = vmatmul.f32.gmra.mxu0 %v7513
      %v7621 = vpop.f32.mrf.mxu0
      %v7622 = vadd.f32 0.0, %v7621
      %7623 = vmatmul.f32.gmra.mxu0 %v7515
      %v7624 = vpop.f32.mrf.mxu0
      %v7625 = vadd.f32 0.0, %v7624
      %7626 = vmatmul.f32.gmra.mxu0 %v7517
      %v7627 = vpop.f32.mrf.mxu0
      %v7628 = vadd.f32 0.0, %v7627
      %7629 = vmatmul.f32.gmra.mxu0 %v7519
      %v7630 = vpop.f32.mrf.mxu0
      %v7631 = vadd.f32 0.0, %v7630
      %7632 = vmatmul.f32.gmra.mxu0 %v7521
      %v7633 = vpop.f32.mrf.mxu0
      %v7634 = vadd.f32 0.0, %v7633
      %7635 = vdwg.mxu0
      %v7637 = vsel %vm469, %v7329, 0
      %v7640 = vsel %vm469, %v7330, 0
      %v7643 = vsel %vm469, %v7331, 0
      %v7646 = vsel %vm469, %v7332, 0
      %v7649 = vsel %vm469, %v7333, 0
      %v7652 = vsel %vm469, %v7334, 0
      %v7655 = vsel %vm469, %v7335, 0
      %v7658 = vsel %vm469, %v7336, 0
      %v7661 = vsel %vm469, %v7337, 0
      %v7664 = vsel %vm469, %v7338, 0
      %v7667 = vsel %vm469, %v7339, 0
      %v7670 = vsel %vm469, %v7340, 0
      %v7673 = vsel %vm469, %v7341, 0
      %v7676 = vsel %vm469, %v7342, 0
      %v7679 = vsel %vm469, %v7343, 0
      %v7682 = vsel %vm469, %v7344, 0
      %v7685 = vsel %vm469, %v7345, 0
      %v7688 = vsel %vm469, %v7346, 0
      %v7691 = vsel %vm469, %v7347, 0
      %v7694 = vsel %vm469, %v7348, 0
      %v7697 = vsel %vm469, %v7349, 0
      %v7700 = vsel %vm469, %v7350, 0
      %v7703 = vsel %vm469, %v7351, 0
      %v7706 = vsel %vm469, %v7352, 0
      %v7709 = vsel %vm469, %v7353, 0
      %v7712 = vsel %vm469, %v7354, 0
      %v7715 = vsel %vm469, %v7355, 0
      %v7718 = vsel %vm469, %v7356, 0
      %v7721 = vsel %vm469, %v7357, 0
      %v7724 = vsel %vm469, %v7358, 0
      %v7727 = vsel %vm469, %v7359, 0
      %v7730 = vsel %vm469, %v7360, 0
      %7732 = vmatpush.msra.mxu0 0.0
      %7733 = vmatpush.msra.mxu0 0.0
      %7734 = vmatpush.msra.mxu0 0.0
      %7735 = vmatpush.msra.mxu0 0.0
      %7736 = vmatpush.msra.mxu0 0.0
      %7737 = vmatpush.msra.mxu0 0.0
      %7738 = vmatpush.msra.mxu0 0.0
      %7739 = vmatpush.msra.mxu0 0.0
      %7740 = vmatpush.msra.mxu0 0.0
      %7741 = vmatpush.msra.mxu0 0.0
      %7742 = vmatpush.msra.mxu0 0.0
      %7743 = vmatpush.msra.mxu0 0.0
      %7744 = vmatpush.msra.mxu0 0.0
      %7745 = vmatpush.msra.mxu0 0.0
      %7746 = vmatpush.msra.mxu0 0.0
      %7747 = vmatpush.msra.mxu0 %v7361
      %7748 = vmatmul.f32.gmra.mxu0 %v7637
      %v7749 = vpop.f32.mrf.mxu0
      %v7750 = vadd.f32 %v7541, %v7749
      %7751 = vmatmul.f32.gmra.mxu0 %v7640
      %v7752 = vpop.f32.mrf.mxu0
      %v7753 = vadd.f32 %v7544, %v7752
      %7754 = vmatmul.f32.gmra.mxu0 %v7643
      %v7755 = vpop.f32.mrf.mxu0
      %v7756 = vadd.f32 %v7547, %v7755
      %7757 = vmatmul.f32.gmra.mxu0 %v7646
      %v7758 = vpop.f32.mrf.mxu0
      %v7759 = vadd.f32 %v7550, %v7758
      %7760 = vmatmul.f32.gmra.mxu0 %v7649
      %v7761 = vpop.f32.mrf.mxu0
      %v7762 = vadd.f32 %v7553, %v7761
      %7763 = vmatmul.f32.gmra.mxu0 %v7652
      %v7764 = vpop.f32.mrf.mxu0
      %v7765 = vadd.f32 %v7556, %v7764
      %7766 = vmatmul.f32.gmra.mxu0 %v7655
      %v7767 = vpop.f32.mrf.mxu0
      %v7768 = vadd.f32 %v7559, %v7767
      %7769 = vmatmul.f32.gmra.mxu0 %v7658
      %v7770 = vpop.f32.mrf.mxu0
      %v7771 = vadd.f32 %v7562, %v7770
      %7772 = vmatmul.f32.gmra.mxu0 %v7661
      %v7773 = vpop.f32.mrf.mxu0
      %v7774 = vadd.f32 %v7565, %v7773
      %7775 = vmatmul.f32.gmra.mxu0 %v7664
      %v7776 = vpop.f32.mrf.mxu0
      %v7777 = vadd.f32 %v7568, %v7776
      %7778 = vmatmul.f32.gmra.mxu0 %v7667
      %v7779 = vpop.f32.mrf.mxu0
      %v7780 = vadd.f32 %v7571, %v7779
      %7781 = vmatmul.f32.gmra.mxu0 %v7670
      %v7782 = vpop.f32.mrf.mxu0
      %v7783 = vadd.f32 %v7574, %v7782
      %7784 = vmatmul.f32.gmra.mxu0 %v7673
      %v7785 = vpop.f32.mrf.mxu0
      %v7786 = vadd.f32 %v7577, %v7785
      %7787 = vmatmul.f32.gmra.mxu0 %v7676
      %v7788 = vpop.f32.mrf.mxu0
      %v7789 = vadd.f32 %v7580, %v7788
      %7790 = vmatmul.f32.gmra.mxu0 %v7679
      %v7791 = vpop.f32.mrf.mxu0
      %v7792 = vadd.f32 %v7583, %v7791
      %7793 = vmatmul.f32.gmra.mxu0 %v7682
      %v7794 = vpop.f32.mrf.mxu0
      %v7795 = vadd.f32 %v7586, %v7794
      %7796 = vmatmul.f32.gmra.mxu0 %v7685
      %v7797 = vpop.f32.mrf.mxu0
      %v7798 = vadd.f32 %v7589, %v7797
      %7799 = vmatmul.f32.gmra.mxu0 %v7688
      %v7800 = vpop.f32.mrf.mxu0
      %v7801 = vadd.f32 %v7592, %v7800
      %7802 = vmatmul.f32.gmra.mxu0 %v7691
      %v7803 = vpop.f32.mrf.mxu0
      %v7804 = vadd.f32 %v7595, %v7803
      %7805 = vmatmul.f32.gmra.mxu0 %v7694
      %v7806 = vpop.f32.mrf.mxu0
      %v7807 = vadd.f32 %v7598, %v7806
      %7808 = vmatmul.f32.gmra.mxu0 %v7697
      %v7809 = vpop.f32.mrf.mxu0
      %v7810 = vadd.f32 %v7601, %v7809
      %7811 = vmatmul.f32.gmra.mxu0 %v7700
      %v7812 = vpop.f32.mrf.mxu0
      %v7813 = vadd.f32 %v7604, %v7812
      %7814 = vmatmul.f32.gmra.mxu0 %v7703
      %v7815 = vpop.f32.mrf.mxu0
      %v7816 = vadd.f32 %v7607, %v7815
      %7817 = vmatmul.f32.gmra.mxu0 %v7706
      %v7818 = vpop.f32.mrf.mxu0
      %v7819 = vadd.f32 %v7610, %v7818
      %7820 = vmatmul.f32.gmra.mxu0 %v7709
      %v7821 = vpop.f32.mrf.mxu0
      %v7822 = vadd.f32 %v7613, %v7821
      %7823 = vmatmul.f32.gmra.mxu0 %v7712
      %v7824 = vpop.f32.mrf.mxu0
      %v7825 = vadd.f32 %v7616, %v7824
      %7826 = vmatmul.f32.gmra.mxu0 %v7715
      %v7827 = vpop.f32.mrf.mxu0
      %v7828 = vadd.f32 %v7619, %v7827
      %7829 = vmatmul.f32.gmra.mxu0 %v7718
      %v7830 = vpop.f32.mrf.mxu0
      %v7831 = vadd.f32 %v7622, %v7830
      %7832 = vmatmul.f32.gmra.mxu0 %v7721
      %v7833 = vpop.f32.mrf.mxu0
      %v7834 = vadd.f32 %v7625, %v7833
      %7835 = vmatmul.f32.gmra.mxu0 %v7724
      %v7836 = vpop.f32.mrf.mxu0
      %v7837 = vadd.f32 %v7628, %v7836
      %7838 = vmatmul.f32.gmra.mxu0 %v7727
      %v7839 = vpop.f32.mrf.mxu0
      %v7840 = vadd.f32 %v7631, %v7839
      %7841 = vmatmul.f32.gmra.mxu0 %v7730
      %v7842 = vpop.f32.mrf.mxu0
      %v7843 = vadd.f32 %v7634, %v7842
      %7844 = vdwg.mxu0
      %v7845 = vld [vmem:[%s10] sm:$0x1]
      %v7847 = vperm.slane %v7845, 0
      %v7849 = vadd.f32 %v7750, %v7847
      %v7850 = vadd.f32 %v7753, %v7847
      %v7851 = vadd.f32 %v7756, %v7847
      %v7852 = vadd.f32 %v7759, %v7847
      %v7853 = vadd.f32 %v7762, %v7847
      %v7854 = vadd.f32 %v7765, %v7847
      %v7855 = vadd.f32 %v7768, %v7847
      %v7856 = vadd.f32 %v7771, %v7847
      %v7857 = vadd.f32 %v7774, %v7847
      %v7858 = vadd.f32 %v7777, %v7847
      %v7859 = vadd.f32 %v7780, %v7847
      %v7860 = vadd.f32 %v7783, %v7847
      %v7861 = vadd.f32 %v7786, %v7847
      %v7862 = vadd.f32 %v7789, %v7847
      %v7863 = vadd.f32 %v7792, %v7847
      %v7864 = vadd.f32 %v7795, %v7847
      %v7865 = vadd.f32 %v7798, %v7847
      %v7866 = vadd.f32 %v7801, %v7847
      %v7867 = vadd.f32 %v7804, %v7847
      %v7868 = vadd.f32 %v7807, %v7847
      %v7869 = vadd.f32 %v7810, %v7847
      %v7870 = vadd.f32 %v7813, %v7847
      %v7871 = vadd.f32 %v7816, %v7847
      %v7872 = vadd.f32 %v7819, %v7847
      %v7873 = vadd.f32 %v7822, %v7847
      %v7874 = vadd.f32 %v7825, %v7847
      %v7875 = vadd.f32 %v7828, %v7847
      %v7876 = vadd.f32 %v7831, %v7847
      %v7877 = vadd.f32 %v7834, %v7847
      %v7878 = vadd.f32 %v7837, %v7847
      %v7879 = vadd.f32 %v7840, %v7847
      %v7880 = vadd.f32 %v7843, %v7847
      %v7881 = vmul.f32 %v7849, 0.5
      %v7882 = vmul.f32 %v7850, 0.5
      %v7883 = vmul.f32 %v7851, 0.5
      %v7884 = vmul.f32 %v7852, 0.5
      %v7885 = vmul.f32 %v7853, 0.5
      %v7886 = vmul.f32 %v7854, 0.5
      %v7887 = vmul.f32 %v7855, 0.5
      %v7888 = vmul.f32 %v7856, 0.5
      %v7889 = vmul.f32 %v7857, 0.5
      %v7890 = vmul.f32 %v7858, 0.5
      %v7891 = vmul.f32 %v7859, 0.5
      %v7892 = vmul.f32 %v7860, 0.5
      %v7893 = vmul.f32 %v7861, 0.5
      %v7894 = vmul.f32 %v7862, 0.5
      %v7895 = vmul.f32 %v7863, 0.5
      %v7896 = vmul.f32 %v7864, 0.5
      %v7897 = vmul.f32 %v7865, 0.5
      %v7898 = vmul.f32 %v7866, 0.5
      %v7899 = vmul.f32 %v7867, 0.5
      %v7900 = vmul.f32 %v7868, 0.5
      %v7901 = vmul.f32 %v7869, 0.5
      %v7902 = vmul.f32 %v7870, 0.5
      %v7903 = vmul.f32 %v7871, 0.5
      %v7904 = vmul.f32 %v7872, 0.5
      %v7905 = vmul.f32 %v7873, 0.5
      %v7906 = vmul.f32 %v7874, 0.5
      %v7907 = vmul.f32 %v7875, 0.5
      %v7908 = vmul.f32 %v7876, 0.5
      %v7909 = vmul.f32 %v7877, 0.5
      %v7910 = vmul.f32 %v7878, 0.5
      %v7911 = vmul.f32 %v7879, 0.5
      %v7912 = vmul.f32 %v7880, 0.5
      %v7913 = vtanh.pop %v7881
      %v7914 = vtanh.pop %v7882
      %v7915 = vtanh.pop %v7883
      %v7916 = vtanh.pop %v7884
      %v7917 = vtanh.pop %v7885
      %v7918 = vtanh.pop %v7886
      %v7919 = vtanh.pop %v7887
      %v7920 = vtanh.pop %v7888
      %v7921 = vtanh.pop %v7889
      %v7922 = vtanh.pop %v7890
      %v7923 = vtanh.pop %v7891
      %v7924 = vtanh.pop %v7892
      %v7925 = vtanh.pop %v7893
      %v7926 = vtanh.pop %v7894
      %v7927 = vtanh.pop %v7895
      %v7928 = vtanh.pop %v7896
      %v7929 = vtanh.pop %v7897
      %v7930 = vtanh.pop %v7898
      %v7931 = vtanh.pop %v7899
      %v7932 = vtanh.pop %v7900
      %v7933 = vtanh.pop %v7901
      %v7934 = vtanh.pop %v7902
      %v7935 = vtanh.pop %v7903
      %v7936 = vtanh.pop %v7904
      %v7937 = vtanh.pop %v7905
      %v7938 = vtanh.pop %v7906
      %v7939 = vtanh.pop %v7907
      %v7940 = vtanh.pop %v7908
      %v7941 = vtanh.pop %v7909
      %v7942 = vtanh.pop %v7910
      %v7943 = vtanh.pop %v7911
      %v7944 = vtanh.pop %v7912
      %v7945 = vmul.f32 %v7913, 0.5
      %v7946 = vmul.f32 %v7914, 0.5
      %v7947 = vmul.f32 %v7915, 0.5
      %v7948 = vmul.f32 %v7916, 0.5
      %v7949 = vmul.f32 %v7917, 0.5
      %v7950 = vmul.f32 %v7918, 0.5
      %v7951 = vmul.f32 %v7919, 0.5
      %v7952 = vmul.f32 %v7920, 0.5
      %v7953 = vmul.f32 %v7921, 0.5
      %v7954 = vmul.f32 %v7922, 0.5
      %v7955 = vmul.f32 %v7923, 0.5
      %v7956 = vmul.f32 %v7924, 0.5
      %v7957 = vmul.f32 %v7925, 0.5
      %v7958 = vmul.f32 %v7926, 0.5
      %v7959 = vmul.f32 %v7927, 0.5
      %v7960 = vmul.f32 %v7928, 0.5
      %v7961 = vmul.f32 %v7929, 0.5
      %v7962 = vmul.f32 %v7930, 0.5
      %v7963 = vmul.f32 %v7931, 0.5
      %v7964 = vmul.f32 %v7932, 0.5
      %v7965 = vmul.f32 %v7933, 0.5
      %v7966 = vmul.f32 %v7934, 0.5
      %v7967 = vmul.f32 %v7935, 0.5
      %v7968 = vmul.f32 %v7936, 0.5
      %v7969 = vmul.f32 %v7937, 0.5
      %v7970 = vmul.f32 %v7938, 0.5
      %v7971 = vmul.f32 %v7939, 0.5
      %v7972 = vmul.f32 %v7940, 0.5
      %v7973 = vmul.f32 %v7941, 0.5
      %v7974 = vmul.f32 %v7942, 0.5
      %v7975 = vmul.f32 %v7943, 0.5
      %v7976 = vmul.f32 %v7944, 0.5
      %v7977 = vadd.f32 %v7945, 0.5
      %v7978 = vadd.f32 %v7946, 0.5
      %v7979 = vadd.f32 %v7947, 0.5
      %v7980 = vadd.f32 %v7948, 0.5
      %v7981 = vadd.f32 %v7949, 0.5
      %v7982 = vadd.f32 %v7950, 0.5
      %v7983 = vadd.f32 %v7951, 0.5
      %v7984 = vadd.f32 %v7952, 0.5
      %v7985 = vadd.f32 %v7953, 0.5
      %v7986 = vadd.f32 %v7954, 0.5
      %v7987 = vadd.f32 %v7955, 0.5
      %v7988 = vadd.f32 %v7956, 0.5
      %v7989 = vadd.f32 %v7957, 0.5
      %v7990 = vadd.f32 %v7958, 0.5
      %v7991 = vadd.f32 %v7959, 0.5
      %v7992 = vadd.f32 %v7960, 0.5
      %v7993 = vadd.f32 %v7961, 0.5
      %v7994 = vadd.f32 %v7962, 0.5
      %v7995 = vadd.f32 %v7963, 0.5
      %v7996 = vadd.f32 %v7964, 0.5
      %v7997 = vadd.f32 %v7965, 0.5
      %v7998 = vadd.f32 %v7966, 0.5
      %v7999 = vadd.f32 %v7967, 0.5
      %v8000 = vadd.f32 %v7968, 0.5
      %v8001 = vadd.f32 %v7969, 0.5
      %v8002 = vadd.f32 %v7970, 0.5
      %v8003 = vadd.f32 %v7971, 0.5
      %v8004 = vadd.f32 %v7972, 0.5
      %v8005 = vadd.f32 %v7973, 0.5
      %v8006 = vadd.f32 %v7974, 0.5
      %v8007 = vadd.f32 %v7975, 0.5
      %v8008 = vadd.f32 %v7976, 0.5
      %v8009 = vmul.f32 %v7849, %v7977
      %v8010 = vmul.f32 %v7850, %v7978
      %v8011 = vmul.f32 %v7851, %v7979
      %v8012 = vmul.f32 %v7852, %v7980
      %v8013 = vmul.f32 %v7853, %v7981
      %v8014 = vmul.f32 %v7854, %v7982
      %v8015 = vmul.f32 %v7855, %v7983
      %v8016 = vmul.f32 %v7856, %v7984
      %v8017 = vmul.f32 %v7857, %v7985
      %v8018 = vmul.f32 %v7858, %v7986
      %v8019 = vmul.f32 %v7859, %v7987
      %v8020 = vmul.f32 %v7860, %v7988
      %v8021 = vmul.f32 %v7861, %v7989
      %v8022 = vmul.f32 %v7862, %v7990
      %v8023 = vmul.f32 %v7863, %v7991
      %v8024 = vmul.f32 %v7864, %v7992
      %v8025 = vmul.f32 %v7865, %v7993
      %v8026 = vmul.f32 %v7866, %v7994
      %v8027 = vmul.f32 %v7867, %v7995
      %v8028 = vmul.f32 %v7868, %v7996
      %v8029 = vmul.f32 %v7869, %v7997
      %v8030 = vmul.f32 %v7870, %v7998
      %v8031 = vmul.f32 %v7871, %v7999
      %v8032 = vmul.f32 %v7872, %v8000
      %v8033 = vmul.f32 %v7873, %v8001
      %v8034 = vmul.f32 %v7874, %v8002
      %v8035 = vmul.f32 %v7875, %v8003
      %v8036 = vmul.f32 %v7876, %v8004
      %v8037 = vmul.f32 %v7877, %v8005
      %v8038 = vmul.f32 %v7878, %v8006
      %v8039 = vmul.f32 %v7879, %v8007
      %v8040 = vmul.f32 %v7880, %v8008
      %vm8041 = vcmask 130048
      %8042 = vst.msk [vmem:[%s422] sm:$0xff] %vm8041, %v8009
      %8043 = vst.msk [vmem:[%s422 + $0x8] sm:$0xff] %vm8041, %v8010
      %8044 = vst.msk [vmem:[%s422 + $0x10] sm:$0xff] %vm8041, %v8011
      %8045 = vst.msk [vmem:[%s422 + $0x18] sm:$0xff] %vm8041, %v8012
      %8046 = vst.msk [vmem:[%s422 + $0x20] sm:$0xff] %vm8041, %v8013
      %8047 = vst.msk [vmem:[%s422 + $0x28] sm:$0xff] %vm8041, %v8014
      %8048 = vst.msk [vmem:[%s422 + $0x30] sm:$0xff] %vm8041, %v8015
      %8049 = vst.msk [vmem:[%s422 + $0x38] sm:$0xff] %vm8041, %v8016
      %8050 = vst.msk [vmem:[%s422 + $0x40] sm:$0xff] %vm8041, %v8017
      %8051 = vst.msk [vmem:[%s422 + $0x48] sm:$0xff] %vm8041, %v8018
      %8052 = vst.msk [vmem:[%s422 + $0x50] sm:$0xff] %vm8041, %v8019
      %8053 = vst.msk [vmem:[%s422 + $0x58] sm:$0xff] %vm8041, %v8020
      %8054 = vst.msk [vmem:[%s422 + $0x60] sm:$0xff] %vm8041, %v8021
      %8055 = vst.msk [vmem:[%s422 + $0x68] sm:$0xff] %vm8041, %v8022
      %8056 = vst.msk [vmem:[%s422 + $0x70] sm:$0xff] %vm8041, %v8023
      %8057 = vst.msk [vmem:[%s422 + $0x78] sm:$0xff] %vm8041, %v8024
      %8058 = vst.msk [vmem:[%s422 + $0x80] sm:$0xff] %vm8041, %v8025
      %8059 = vst.msk [vmem:[%s422 + $0x88] sm:$0xff] %vm8041, %v8026
      %8060 = vst.msk [vmem:[%s422 + $0x90] sm:$0xff] %vm8041, %v8027
      %8061 = vst.msk [vmem:[%s422 + $0x98] sm:$0xff] %vm8041, %v8028
      %8062 = vst.msk [vmem:[%s422 + $0xa0] sm:$0xff] %vm8041, %v8029
      %8063 = vst.msk [vmem:[%s422 + $0xa8] sm:$0xff] %vm8041, %v8030
      %8064 = vst.msk [vmem:[%s422 + $0xb0] sm:$0xff] %vm8041, %v8031
      %8065 = vst.msk [vmem:[%s422 + $0xb8] sm:$0xff] %vm8041, %v8032
      %8066 = vst.msk [vmem:[%s422 + $0xc0] sm:$0xff] %vm8041, %v8033
      %8067 = vst.msk [vmem:[%s422 + $0xc8] sm:$0xff] %vm8041, %v8034
      %8068 = vst.msk [vmem:[%s422 + $0xd0] sm:$0xff] %vm8041, %v8035
      %8069 = vst.msk [vmem:[%s422 + $0xd8] sm:$0xff] %vm8041, %v8036
      %8070 = vst.msk [vmem:[%s422 + $0xe0] sm:$0xff] %vm8041, %v8037
      %8071 = vst.msk [vmem:[%s422 + $0xe8] sm:$0xff] %vm8041, %v8038
      %8072 = vst.msk [vmem:[%s422 + $0xf0] sm:$0xff] %vm8041, %v8039
      %8073 = vst.msk [vmem:[%s422 + $0xf8] sm:$0xff] %vm8041, %v8040
      %s8074 = smul.u32 32, %s27
      %p8075 = scmp.lt.s32.totalorder %s26, 1
      %s8076 = scalar_select %p8075, %s26, 1
      %p8077 = scmp.lt.s32.totalorder %s8074, 31
      %s8078 = scalar_select %p8077, %s8074, 31
      %s8079 = smul.addr %s8076, 32
      %s8080 = sadd.s32 %s8078, %s8079
      %s8081 = smul.addr %s8080, 8
      %s8082 = scalar_lea.vmem %s11, %s8081
      // Predicated region
      $region65: #{tpu_custom_call.1} parent=63 // pred_check
        %p8083 = pneg %p292
      $region66: #{tpu_custom_call.1} parent=63 // pred_check_branch
        %8085 = sbr.rel (%p8083) target = $region68
      $region67: #{tpu_custom_call.1} parent=63 // pred_region
        %s8086 = smul.u32 32, %s27
      $region68: #{tpu_custom_call.1} parent=63 // pred_fallthru
        _
    $region64: #{tpu_custom_call.1} parent=5 // pred_fallthru
      _
    %p8087 = scmp.le.s32.totalorder 2, %s17
    // Predicated region
    $region69: #{tpu_custom_call.1} parent=5 // pred_check
      %p8088 = pneg %p8087
    $region70: #{tpu_custom_call.1} parent=5 // pred_check_branch
      %8090 = sbr.rel (%p8088) target = $region72
    $region71: #{tpu_custom_call.1} parent=5 // pred_region
      %s8091 = ssub.s32 %s17, 2
      // Predicated region
      $region73: #{tpu_custom_call.1} parent=71 // pred_check
        %p8092 = pneg %p298
      $region74: #{tpu_custom_call.1} parent=71 // pred_check_branch
        %8094 = sbr.rel (%p8092) target = $region76
      $region75: #{tpu_custom_call.1} parent=71 // pred_region
        %s8095 = smul.u32 32, %s29
        %p8096 = scmp.lt.s32.totalorder %s28, 1
        %s8097 = scalar_select %p8096, %s28, 1
        %p8098 = scmp.lt.s32.totalorder %s8095, 31
        %s8099 = scalar_select %p8098, %s8095, 31
        %s8100 = smul.addr %s8097, 32
        %s8101 = sadd.s32 %s8099, %s8100
        %s8102 = smul.addr %s8101, 8
        %s8103 = scalar_lea.vmem %s11, %s8102
      $region76: #{tpu_custom_call.1} parent=71 // pred_fallthru
        _
    $region72: #{tpu_custom_call.1} parent=5 // pred_fallthru
      _
  $region6: #{tpu_custom_call.1} parent=0 // loop_footer
    %s21 = sadd.s32 1, %s17
  $region7: #{tpu_custom_call.1} parent=0 // loop_footer_branch
    %16 = sbr.rel target = $region3
  $region8: #{tpu_custom_call.1} parent=0 // loop_exit
    _

</llo_original>
